<compile_context>
chip_gen: v5e
topology: v5e:2x2
jax: 0.10.0
libtpu: 0.0.40
codegen_flags: <defaults>
</compile_context>

<pallas_src>
import jax
import jax.numpy as jnp
from jax.experimental import pallas as pl
from jax.experimental.pallas import tpu as pltpu


def _cca_kernel(x_ref, wqkv_ref, bqkv_ref, gamma_ref, o_ref,
                q_s, k_s, v_s, kT_s, vT_s):
    # x block is (1, H, W, C) for one batch element; out block is (1, Th, W, C)
    _, H, W, C = x_ref.shape
    Th = o_ref.shape[1]
    Cq = q_s.shape[-1]
    t = pl.program_id(1)

    # ---- per-image precompute (row-tile 0): fused q/k/v projection ---------
    @pl.when(t == 0)
    def _():
        xf = x_ref[0].reshape(H * W, C).astype(jnp.bfloat16)        # (H*W, C)
        # single wide MXU matmul: (H*W, C) @ (C, 2*Cq + C), f32 accumulation
        proj = jnp.dot(xf, wqkv_ref[...],
                       preferred_element_type=jnp.float32) + bqkv_ref[...]
        q = proj[:, :Cq].reshape(H, W, Cq)
        k = proj[:, Cq:2 * Cq].reshape(H, W, Cq)
        v = proj[:, 2 * Cq:].reshape(H, W, C)
        q_s[...] = q.astype(jnp.bfloat16)                           # (H, W, Cq)
        k_s[...] = k.astype(jnp.bfloat16)                           # (H, W, Cq)
        v_s[...] = v.astype(jnp.bfloat16)                           # (H, W, C)
        # pre-transpose once per image for the column-attention path
        kT_s[...] = jnp.transpose(k, (1, 0, 2)).astype(jnp.bfloat16)  # (W, H, Cq)
        vT_s[...] = jnp.transpose(v, (1, 0, 2)).astype(jnp.bfloat16)  # (W, H, C)

    # ---- per row-tile attention --------------------------------------------
    r0 = pl.multiple_of(t * Th, Th)

    q_rows = q_s[pl.ds(r0, Th)]                                     # (Th, W, Cq) bf16
    k_rows = k_s[pl.ds(r0, Th)]                                     # (Th, W, Cq) bf16
    v_rows = v_s[pl.ds(r0, Th)]                                     # (Th, W, C)  bf16
    kT = kT_s[...]                                                  # (W, H, Cq)  bf16
    vT = vT_s[...]                                                  # (W, H, C)   bf16

    # tiny per-tile transpose of q (f32 roundtrip keeps the relayout on a
    # well-supported layout) so the column einsum has a leading batch dim
    qT_tile = jnp.transpose(q_rows.astype(jnp.float32),
                            (1, 0, 2)).astype(jnp.bfloat16)         # (W, Th, Cq)

    # column (H-direction) energies, batched over columns w:
    #   e_hT[w, i, h] = sum_c q[r0+i, w, c] * k[h, w, c]
    e_hT = jnp.einsum('wtc,whc->wth', qT_tile, kT,
                      preferred_element_type=jnp.float32)           # (W, Th, H)

    # additive diagonal bias (the INF(B,H,W) term), only (Th, H) elements
    rows = jax.lax.broadcasted_iota(jnp.int32, (Th, H), 0) + r0
    cols = jax.lax.broadcasted_iota(jnp.int32, (Th, H), 1)
    diag_bias = jnp.where(rows == cols, jnp.float32(-1e30), jnp.float32(0.0))
    e_hT = e_hT + diag_bias[None, :, :]

    # row (W-direction) energies, batched over the tile's rows:
    #   e_w[i, j, w] = sum_c q[r0+i, j, c] * k[r0+i, w, c]
    e_w = jnp.einsum('tjc,twc->tjw', q_rows, k_rows,
                     preferred_element_type=jnp.float32)            # (Th, W, W)

    # joint softmax over the concatenated (H + W) axis, f32 math, no concat
    m_w = jnp.max(e_w, axis=-1)                                     # (Th, W)
    m_hT = jnp.max(e_hT, axis=-1)                                   # (W, Th)
    m = jnp.maximum(m_w, m_hT.T)                                    # (Th, W)
    mT = m.T                                                        # (W, Th)
    p_w = jnp.exp(e_w - m[:, :, None])                              # (Th, W, W)
    p_hT = jnp.exp(e_hT - mT[:, :, None])                           # (W, Th, H)
    denom = jnp.sum(p_w, axis=-1) + jnp.sum(p_hT, axis=-1).T        # (Th, W)
    inv = pl.reciprocal(denom, approx=True)                         # EUP slot

    # attention-weighted values (bf16 operands, f32 accumulation);
    # normalization folded into a single (Th, W, C) scale at the end
    out_w = jnp.einsum('tjw,twc->tjc', p_w.astype(jnp.bfloat16), v_rows,
                       preferred_element_type=jnp.float32)          # (Th, W, C)
    out_hT = jnp.einsum('wth,whc->wtc', p_hT.astype(jnp.bfloat16), vT,
                        preferred_element_type=jnp.float32)         # (W, Th, C)
    out_h = jnp.transpose(out_hT, (1, 0, 2))                        # (Th, W, C)

    x_tile = x_ref[0, pl.ds(r0, Th)].astype(jnp.float32)            # (Th, W, C)
    gamma = gamma_ref[0]
    o_ref[0] = (gamma * ((out_h + out_w) * inv[:, :, None])
                + x_tile).astype(o_ref.dtype)


def _pick_th(H, W, C, budget_bytes=4 << 20):
    """Largest row-tile Th dividing H whose per-tile f32 intermediates fit the
    budget; prefers multiples of 8 (sublane-aligned slices). Shrink the budget
    on v7x (64 MiB VMEM) for very large H, W, C."""
    per_row = 4 * W * (3 * (H + W) + 4 * C)          # rough f32 bytes per query row
    th_max = max(1, budget_bytes // max(per_row, 1))
    if th_max >= H:
        return H
    divs = [d for d in range(1, H + 1) if H % d == 0 and d <= th_max]
    mult8 = [d for d in divs if d % 8 == 0]
    return max(mult8 if mult8 else divs)


def _vmem_limit_bytes(H, W, C, Cq, th):
    n_out = 2 * Cq + C
    f32, bf16 = 4, 2
    io = 2 * (H * W * C * f32) + 2 * (th * W * C * f32)       # x block + out block
    scratch = bf16 * (2 * H * W * Cq + W * H * Cq + H * W * C + W * H * C)
    interm = f32 * (H * W * n_out                             # fused projection (t == 0)
                    + 2 * W * th * H + 2 * th * W * W         # energies + exp
                    + 3 * th * W * C)                         # out_h / out_w / result
    est = io + scratch + interm
    # 64 MiB cap keeps the request valid on v7x (64 MiB physical VMEM per TC).
    return int(min(64 << 20, max(32 << 20, 2 * est)))


def criss_cross_attention(x_nchw, params, *, th=None):
    """Pallas implementation. x_nchw: (B, C, H, W) float32 -> (B, C, H, W)."""
    wq, bq = params['wq'], params['bq']
    wk, bk = params['wk'], params['bk']
    wv, bv = params['wv'], params['bv']
    gamma = params['gamma']

    B, C, H, W = x_nchw.shape
    Cq = wq.shape[1]
    if th is None:
        th = _pick_th(H, W, C)
    if H % th != 0:
        raise ValueError(f"row tile {th} must divide H={H}")
    n_out = 2 * Cq + C

    x = jnp.transpose(x_nchw, (0, 2, 3, 1))                   # NHWC for the kernel
    # fused projection weights (bf16 MXU operands); bias stays f32
    wqkv = jnp.concatenate([wq, wk, wv], axis=1).astype(jnp.bfloat16)   # (C, n_out)
    bqkv = jnp.concatenate([bq, bk, bv]).reshape(1, n_out).astype(jnp.float32)

    out = pl.pallas_call(
        _cca_kernel,
        out_shape=jax.ShapeDtypeStruct((B, H, W, C), x.dtype),
        grid_spec=pltpu.PrefetchScalarGridSpec(
            num_scalar_prefetch=0,
            grid=(B, H // th),
            in_specs=[
                pl.BlockSpec((1, H, W, C), lambda b, t: (b, 0, 0, 0)),   # x (full image)
                pl.BlockSpec((C, n_out), lambda b, t: (0, 0)),           # fused W_qkv
                pl.BlockSpec((1, n_out), lambda b, t: (0, 0)),           # fused b_qkv
                pl.BlockSpec(memory_space=pltpu.MemorySpace.SMEM),       # gamma
            ],
            out_specs=pl.BlockSpec((1, th, W, C), lambda b, t: (b, t, 0, 0)),
            scratch_shapes=[
                pltpu.VMEM((H, W, Cq), jnp.bfloat16),   # q
                pltpu.VMEM((H, W, Cq), jnp.bfloat16),   # k
                pltpu.VMEM((H, W, C), jnp.bfloat16),    # v
                pltpu.VMEM((W, H, Cq), jnp.bfloat16),   # k, column layout
                pltpu.VMEM((W, H, C), jnp.bfloat16),    # v, column layout
            ],
        ),
        compiler_params=pltpu.CompilerParams(
            # row-tile axis is sequential: tile 0 fills the per-image scratch
            dimension_semantics=("parallel", "arbitrary"),
            vmem_limit_bytes=_vmem_limit_bytes(H, W, C, Cq, th),
        ),
    )(x, wqkv, bqkv, gamma.reshape(-1))

    # TODO(synk): for small C (< 128) the output store is lane-masked; a
    # lane-dense (B, H, W*C) out layout would need an in-kernel relayout and is
    # unnecessary for production C >= 128.
    return jnp.transpose(out, (0, 3, 1, 2))                   # back to NCHW


def criss_cross_attention_ref(x_nchw, params):
    """Pure-JAX f32 reference with identical semantics to the PyTorch forward."""
    wq, bq = params['wq'], params['bq']
    wk, bk = params['wk'], params['bk']
    wv, bv = params['wv'], params['bv']
    gamma = params['gamma']
    x = jnp.transpose(x_nchw, (0, 2, 3, 1))
    B, H, W, C = x.shape
    q = jnp.einsum('bijc,cd->bijd', x, wq) + bq
    k = jnp.einsum('bijc,cd->bijd', x, wk) + bk
    v = jnp.einsum('bijc,cd->bijd', x, wv) + bv
    e_h = jnp.einsum('bijc,bhjc->bijh', q, k)
    e_h = jnp.where(jnp.eye(H, dtype=bool)[None, :, None, :], -jnp.inf, e_h)
    e_w = jnp.einsum('bijc,biwc->bijw', q, k)
    att = jax.nn.softmax(jnp.concatenate([e_h, e_w], axis=-1), axis=-1)
    out_h = jnp.einsum('bijh,bhjc->bijc', att[..., :H], v)
    out_w = jnp.einsum('bijw,biwc->bijc', att[..., H:], v)
    out = gamma[0] * (out_h + out_w) + x
    return jnp.transpose(out, (0, 3, 1, 2))


if __name__ == "__main__":
    key = jax.random.PRNGKey(0)
    B, C, H, W = 2, 32, 16, 24        # in_dim=32 so query/key channels = 4
    Cq = C // 8
    ks = jax.random.split(key, 7)
    x = jax.random.normal(ks[0], (B, C, H, W), jnp.float32)
    params = dict(
        wq=jax.random.normal(ks[1], (C, Cq), jnp.float32) * 0.1,
        bq=jax.random.normal(ks[2], (Cq,), jnp.float32) * 0.1,
        wk=jax.random.normal(ks[3], (C, Cq), jnp.float32) * 0.1,
        bk=jax.random.normal(ks[4], (Cq,), jnp.float32) * 0.1,
        wv=jax.random.normal(ks[5], (C, C), jnp.float32) * 0.1,
        bv=jax.random.normal(ks[6], (C,), jnp.float32) * 0.1,
        gamma=jnp.zeros((1,), jnp.float32),   # nn.Parameter(torch.zeros(1))
    )

    # module-default init (gamma == 0): single row-tile path
    out0 = jax.block_until_ready(criss_cross_attention(x, params))
    ref0 = criss_cross_attention_ref(x, params)
    assert out0.shape == x.shape
    err0 = float(jnp.max(jnp.abs(out0 - ref0)))
    assert err0 < 1e-5, err0

    # non-zero gamma exercises the full attention path; th=8 forces 2 row-tiles
    # (bf16 MXU operands with f32 accumulation -> relaxed tolerance)
    params_nz = dict(params, gamma=jnp.full((1,), 0.7, jnp.float32))
    out1 = jax.block_until_ready(criss_cross_attention(x, params_nz, th=8))
    ref1 = criss_cross_attention_ref(x, params_nz)
    scale = float(jnp.max(jnp.abs(ref1))) + 1e-6
    err1 = float(jnp.max(jnp.abs(out1 - ref1))) / scale
    assert err1 < 2e-2, err1

    print("KERNEL_OK")
</pallas_src>

<mosaic_0001>
module attributes {stable_mosaic.version = 11 : i64} {
  func.func @_cca_kernel(%arg0: i32, %arg1: i32, %arg2: memref<1x16x24x32xf32, #tpu.memory_space<vmem>>, %arg3: memref<32x40xbf16, #tpu.memory_space<vmem>>, %arg4: memref<1x40xf32, #tpu.memory_space<vmem>>, %arg5: memref<1xf32, #tpu.memory_space<smem>>, %arg6: memref<1x16x24x32xf32, #tpu.memory_space<vmem>>, %arg7: memref<16x24x4xbf16, #tpu.memory_space<vmem>>, %arg8: memref<16x24x4xbf16, #tpu.memory_space<vmem>>, %arg9: memref<16x24x32xbf16, #tpu.memory_space<vmem>>, %arg10: memref<24x16x4xbf16, #tpu.memory_space<vmem>>, %arg11: memref<24x16x32xbf16, #tpu.memory_space<vmem>>) attributes {dimension_semantics = [#tpu.dimension_semantics<parallel>, #tpu.dimension_semantics<arbitrary>], iteration_bounds = array<i64: 2, 1>, scalar_prefetch = 0 : i64, scratch_operands = 5 : i64, tpu.core_type = #tpu.core_type<tc>, window_params = [{transform_indices = @transform_0, window_bounds = array<i64: 1, 16, 24, 32>}, {pipeline_mode = #tpu.pipeline_mode<synchronous>, transform_indices = @transform_1, window_bounds = array<i64: 32, 40>}, {pipeline_mode = #tpu.pipeline_mode<synchronous>, transform_indices = @transform_2, window_bounds = array<i64: 1, 40>}, {transform_indices = @transform_3, window_bounds = array<i64: 1>}, {transform_indices = @transform_4, window_bounds = array<i64: 1, 16, 24, 32>}]} {
    %c0_i32 = arith.constant 0 : i32
    %0 = arith.cmpi eq, %arg1, %c0_i32 : i32
    %1 = arith.extui %0 : i1 to i32
    %c0_i32_0 = arith.constant 0 : i32
    %2 = arith.cmpi ne, %1, %c0_i32_0 : i32
    scf.if %2 {
      %c0_29 = arith.constant 0 : index
      %c0_30 = arith.constant 0 : index
      %c0_31 = arith.constant 0 : index
      %c0_32 = arith.constant 0 : index
      %66 = vector.load %arg2[%c0_29, %c0_30, %c0_31, %c0_32] : memref<1x16x24x32xf32, #tpu.memory_space<vmem>>, vector<1x16x24x32xf32>
      %67 = vector.shape_cast %66 : vector<1x16x24x32xf32> to vector<16x24x32xf32>
      %68 = vector.shape_cast %67 : vector<16x24x32xf32> to vector<384x32xf32>
      %69 = arith.truncf %68 : vector<384x32xf32> to vector<384x32xbf16>
      %c0_33 = arith.constant 0 : index
      %c0_34 = arith.constant 0 : index
      %70 = vector.load %arg3[%c0_33, %c0_34] : memref<32x40xbf16, #tpu.memory_space<vmem>>, vector<32x40xbf16>
      %cst_35 = arith.constant dense<0.000000e+00> : vector<384x40xf32>
      %71 = tpu.matmul %69, %70, %cst_35 {dimension_numbers = #tpu.dot_dimension_numbers<[1], [0], [0], [1], [0, 0, 1, 1], [], []>} : vector<384x32xbf16>, vector<32x40xbf16>, vector<384x40xf32> -> vector<384x40xf32>
      %c0_36 = arith.constant 0 : index
      %c0_37 = arith.constant 0 : index
      %72 = vector.load %arg4[%c0_36, %c0_37] : memref<1x40xf32, #tpu.memory_space<vmem>>, vector<1x40xf32>
      %73 = vector.broadcast %72 : vector<1x40xf32> to vector<384x40xf32>
      %74 = arith.addf %71, %73 : vector<384x40xf32>
      %75 = vector.extract_strided_slice %74 {offsets = [0, 0], sizes = [384, 4], strides = [1, 1]} : vector<384x40xf32> to vector<384x4xf32>
      %76 = vector.shape_cast %75 : vector<384x4xf32> to vector<16x24x4xf32>
      %77 = vector.extract_strided_slice %74 {offsets = [0, 4], sizes = [384, 4], strides = [1, 1]} : vector<384x40xf32> to vector<384x4xf32>
      %78 = vector.shape_cast %77 : vector<384x4xf32> to vector<16x24x4xf32>
      %79 = vector.extract_strided_slice %74 {offsets = [0, 8], sizes = [384, 32], strides = [1, 1]} : vector<384x40xf32> to vector<384x32xf32>
      %80 = vector.shape_cast %79 : vector<384x32xf32> to vector<16x24x32xf32>
      %81 = arith.truncf %76 : vector<16x24x4xf32> to vector<16x24x4xbf16>
      %c0_38 = arith.constant 0 : index
      %c0_39 = arith.constant 0 : index
      %c0_40 = arith.constant 0 : index
      %82 = vector.load %arg7[%c0_38, %c0_39, %c0_40] : memref<16x24x4xbf16, #tpu.memory_space<vmem>>, vector<16x24x4xbf16>
      tpu.vector_store %arg7[%c0_38, %c0_39, %c0_40], %81 {strides = array<i32>} : memref<16x24x4xbf16, #tpu.memory_space<vmem>>, vector<16x24x4xbf16>,
      %83 = arith.truncf %78 : vector<16x24x4xf32> to vector<16x24x4xbf16>
      %c0_41 = arith.constant 0 : index
      %c0_42 = arith.constant 0 : index
      %c0_43 = arith.constant 0 : index
      %84 = vector.load %arg8[%c0_41, %c0_42, %c0_43] : memref<16x24x4xbf16, #tpu.memory_space<vmem>>, vector<16x24x4xbf16>
      tpu.vector_store %arg8[%c0_41, %c0_42, %c0_43], %83 {strides = array<i32>} : memref<16x24x4xbf16, #tpu.memory_space<vmem>>, vector<16x24x4xbf16>,
      %85 = arith.truncf %80 : vector<16x24x32xf32> to vector<16x24x32xbf16>
      %c0_44 = arith.constant 0 : index
      %c0_45 = arith.constant 0 : index
      %c0_46 = arith.constant 0 : index
      %86 = vector.load %arg9[%c0_44, %c0_45, %c0_46] : memref<16x24x32xbf16, #tpu.memory_space<vmem>>, vector<16x24x32xbf16>
      tpu.vector_store %arg9[%c0_44, %c0_45, %c0_46], %85 {strides = array<i32>} : memref<16x24x32xbf16, #tpu.memory_space<vmem>>, vector<16x24x32xbf16>,
      %87 = tpu.transpose %78, [1, 0, 2] : vector<16x24x4xf32> -> vector<24x16x4xf32>
      %88 = arith.truncf %87 : vector<24x16x4xf32> to vector<24x16x4xbf16>
      %c0_47 = arith.constant 0 : index
      %c0_48 = arith.constant 0 : index
      %c0_49 = arith.constant 0 : index
      %89 = vector.load %arg10[%c0_47, %c0_48, %c0_49] : memref<24x16x4xbf16, #tpu.memory_space<vmem>>, vector<24x16x4xbf16>
      tpu.vector_store %arg10[%c0_47, %c0_48, %c0_49], %88 {strides = array<i32>} : memref<24x16x4xbf16, #tpu.memory_space<vmem>>, vector<24x16x4xbf16>,
      %90 = tpu.transpose %80, [1, 0, 2] : vector<16x24x32xf32> -> vector<24x16x32xf32>
      %91 = arith.truncf %90 : vector<24x16x32xf32> to vector<24x16x32xbf16>
      %c0_50 = arith.constant 0 : index
      %c0_51 = arith.constant 0 : index
      %c0_52 = arith.constant 0 : index
      %92 = vector.load %arg11[%c0_50, %c0_51, %c0_52] : memref<24x16x32xbf16, #tpu.memory_space<vmem>>, vector<24x16x32xbf16>
      tpu.vector_store %arg11[%c0_50, %c0_51, %c0_52], %91 {strides = array<i32>} : memref<24x16x32xbf16, #tpu.memory_space<vmem>>, vector<24x16x32xbf16>,
    } else {
    }
    %c16_i32 = arith.constant 16 : i32
    %3 = arith.muli %arg1, %c16_i32 : i32
    %4 = tpu.assume_multiple %3, 16 : i32
    %5 = arith.index_cast %4 : i32 to index
    %c0 = arith.constant 0 : index
    %c0_1 = arith.constant 0 : index
    %6 = vector.load %arg7[%5, %c0, %c0_1] : memref<16x24x4xbf16, #tpu.memory_space<vmem>>, vector<16x24x4xbf16>
    %7 = arith.index_cast %4 : i32 to index
    %c0_2 = arith.constant 0 : index
    %c0_3 = arith.constant 0 : index
    %8 = vector.load %arg8[%7, %c0_2, %c0_3] : memref<16x24x4xbf16, #tpu.memory_space<vmem>>, vector<16x24x4xbf16>
    %9 = arith.index_cast %4 : i32 to index
    %c0_4 = arith.constant 0 : index
    %c0_5 = arith.constant 0 : index
    %10 = vector.load %arg9[%9, %c0_4, %c0_5] : memref<16x24x32xbf16, #tpu.memory_space<vmem>>, vector<16x24x32xbf16>
    %c0_6 = arith.constant 0 : index
    %c0_7 = arith.constant 0 : index
    %c0_8 = arith.constant 0 : index
    %11 = vector.load %arg10[%c0_6, %c0_7, %c0_8] : memref<24x16x4xbf16, #tpu.memory_space<vmem>>, vector<24x16x4xbf16>
    %c0_9 = arith.constant 0 : index
    %c0_10 = arith.constant 0 : index
    %c0_11 = arith.constant 0 : index
    %12 = vector.load %arg11[%c0_9, %c0_10, %c0_11] : memref<24x16x32xbf16, #tpu.memory_space<vmem>>, vector<24x16x32xbf16>
    %13 = arith.extf %6 : vector<16x24x4xbf16> to vector<16x24x4xf32>
    %14 = tpu.transpose %13, [1, 0, 2] : vector<16x24x4xf32> -> vector<24x16x4xf32>
    %15 = arith.truncf %14 : vector<24x16x4xf32> to vector<24x16x4xbf16>
    "tpu.trace_start"() <{level = 10 : i32, message = "wtc,whc->wth"}> : () -> ()
    %cst = arith.constant dense<0.000000e+00> : vector<24x16x16xf32>
    %16 = tpu.matmul %15, %11, %cst {dimension_numbers = #tpu.dot_dimension_numbers<[2], [2], [1], [1], [0, 0, 0, 1, 1, 1], [0], [0]>} : vector<24x16x4xbf16>, vector<24x16x4xbf16>, vector<24x16x16xf32> -> vector<24x16x16xf32>
    "tpu.trace_stop"() : () -> ()
    %17 = tpu.iota {dimensions = array<i32: 0>} : vector<16x16xi32>
    %18 = vector.broadcast %4 : i32 to vector<16x16xi32>
    %19 = arith.addi %17, %18 : vector<16x16xi32>
    %20 = tpu.iota {dimensions = array<i32: 1>} : vector<16x16xi32>
    %21 = arith.cmpi eq, %19, %20 : vector<16x16xi32>
    %cst_12 = arith.constant -1.000000e+30 : f32
    %cst_13 = arith.constant 0.000000e+00 : f32
    %22 = vector.broadcast %cst_12 : f32 to vector<16x16xf32>
    %23 = vector.broadcast %cst_13 : f32 to vector<16x16xf32>
    %24 = arith.select %21, %22, %23 : vector<16x16xi1>, vector<16x16xf32>
    %25 = vector.shape_cast %24 : vector<16x16xf32> to vector<1x16x16xf32>
    %26 = vector.broadcast %25 : vector<1x16x16xf32> to vector<24x16x16xf32>
    %27 = arith.addf %16, %26 : vector<24x16x16xf32>
    "tpu.trace_start"() <{level = 10 : i32, message = "tjc,twc->tjw"}> : () -> ()
    %cst_14 = arith.constant dense<0.000000e+00> : vector<16x24x24xf32>
    %28 = tpu.matmul %6, %8, %cst_14 {dimension_numbers = #tpu.dot_dimension_numbers<[2], [2], [1], [1], [0, 0, 0, 1, 1, 1], [0], [0]>} : vector<16x24x4xbf16>, vector<16x24x4xbf16>, vector<16x24x24xf32> -> vector<16x24x24xf32>
    "tpu.trace_stop"() : () -> ()
    %cst_15 = arith.constant dense<0xFF800000> : vector<16x24xf32>
    %29 = vector.multi_reduction <maximumf>, %28, %cst_15 [2] : vector<16x24x24xf32> to vector<16x24xf32>
    %cst_16 = arith.constant dense<0xFF800000> : vector<24x16xf32>
    %30 = vector.multi_reduction <maximumf>, %27, %cst_16 [2] : vector<24x16x16xf32> to vector<24x16xf32>
    %31 = tpu.transpose %30, [1, 0] : vector<24x16xf32> -> vector<16x24xf32>
    %32 = arith.maximumf %29, %31 : vector<16x24xf32>
    %33 = tpu.transpose %32, [1, 0] : vector<16x24xf32> -> vector<24x16xf32>
    %34 = vector.shape_cast %32 : vector<16x24xf32> to vector<16x24x1xf32>
    %35 = vector.broadcast %34 : vector<16x24x1xf32> to vector<16x24x24xf32>
    %36 = arith.subf %28, %35 : vector<16x24x24xf32>
    %37 = math.exp %36 : vector<16x24x24xf32>
    %38 = vector.shape_cast %33 : vector<24x16xf32> to vector<24x16x1xf32>
    %39 = vector.broadcast %38 : vector<24x16x1xf32> to vector<24x16x16xf32>
    %40 = arith.subf %27, %39 : vector<24x16x16xf32>
    %41 = math.exp %40 : vector<24x16x16xf32>
    %cst_17 = arith.constant dense<0.000000e+00> : vector<16x24xf32>
    %42 = vector.multi_reduction <add>, %37, %cst_17 [2] : vector<16x24x24xf32> to vector<16x24xf32>
    %cst_18 = arith.constant dense<0.000000e+00> : vector<24x16xf32>
    %43 = vector.multi_reduction <add>, %41, %cst_18 [2] : vector<24x16x16xf32> to vector<24x16xf32>
    %44 = tpu.transpose %43, [1, 0] : vector<24x16xf32> -> vector<16x24xf32>
    %45 = arith.addf %42, %44 : vector<16x24xf32>
    %46 = tpu.reciprocal %45 {approx = true} : vector<16x24xf32> -> vector<16x24xf32>
    %47 = arith.truncf %37 : vector<16x24x24xf32> to vector<16x24x24xbf16>
    "tpu.trace_start"() <{level = 10 : i32, message = "tjw,twc->tjc"}> : () -> ()
    %cst_19 = arith.constant dense<0.000000e+00> : vector<16x24x32xf32>
    %48 = tpu.matmul %47, %10, %cst_19 {dimension_numbers = #tpu.dot_dimension_numbers<[2], [1], [1], [2], [0, 0, 0, 1, 1, 2], [0], [0]>} : vector<16x24x24xbf16>, vector<16x24x32xbf16>, vector<16x24x32xf32> -> vector<16x24x32xf32>
    "tpu.trace_stop"() : () -> ()
    %49 = arith.truncf %41 : vector<24x16x16xf32> to vector<24x16x16xbf16>
    "tpu.trace_start"() <{level = 10 : i32, message = "wth,whc->wtc"}> : () -> ()
    %cst_20 = arith.constant dense<0.000000e+00> : vector<24x16x32xf32>
    %50 = tpu.matmul %49, %12, %cst_20 {dimension_numbers = #tpu.dot_dimension_numbers<[2], [1], [1], [2], [0, 0, 0, 1, 1, 2], [0], [0]>} : vector<24x16x16xbf16>, vector<24x16x32xbf16>, vector<24x16x32xf32> -> vector<24x16x32xf32>
    "tpu.trace_stop"() : () -> ()
    %51 = tpu.transpose %50, [1, 0, 2] : vector<24x16x32xf32> -> vector<16x24x32xf32>
    %c0_21 = arith.constant 0 : index
    %52 = arith.index_cast %4 : i32 to index
    %c0_22 = arith.constant 0 : index
    %c0_23 = arith.constant 0 : index
    %53 = vector.load %arg2[%c0_21, %52, %c0_22, %c0_23] : memref<1x16x24x32xf32, #tpu.memory_space<vmem>>, vector<1x16x24x32xf32>
    %54 = vector.shape_cast %53 : vector<1x16x24x32xf32> to vector<16x24x32xf32>
    %c0_24 = arith.constant 0 : index
    %55 = memref.load %arg5[%c0_24] : memref<1xf32, #tpu.memory_space<smem>>
    %56 = arith.addf %51, %48 : vector<16x24x32xf32>
    %57 = vector.shape_cast %46 : vector<16x24xf32> to vector<16x24x1xf32>
    %58 = vector.broadcast %57 : vector<16x24x1xf32> to vector<16x24x32xf32>
    %59 = arith.mulf %56, %58 : vector<16x24x32xf32>
    %60 = vector.broadcast %55 : f32 to vector<16x24x32xf32>
    %61 = arith.mulf %60, %59 : vector<16x24x32xf32>
    %62 = arith.addf %61, %54 : vector<16x24x32xf32>
    %c0_25 = arith.constant 0 : index
    %c0_26 = arith.constant 0 : index
    %c0_27 = arith.constant 0 : index
    %c0_28 = arith.constant 0 : index
    %63 = vector.load %arg6[%c0_25, %c0_26, %c0_27, %c0_28] : memref<1x16x24x32xf32, #tpu.memory_space<vmem>>, vector<1x16x24x32xf32>
    %64 = vector.shape_cast %63 : vector<1x16x24x32xf32> to vector<16x24x32xf32>
    %65 = vector.shape_cast %62 : vector<16x24x32xf32> to vector<1x16x24x32xf32>
    tpu.vector_store %arg6[%c0_25, %c0_26, %c0_27, %c0_28], %65 {strides = array<i32>} : memref<1x16x24x32xf32, #tpu.memory_space<vmem>>, vector<1x16x24x32xf32>,
    return
  }
  func.func @transform_0(%arg0: i32, %arg1: i32) -> (i32, i32, i32, i32) {
    %c0_i32 = arith.constant 0 : i32
    %c0_i32_0 = arith.constant 0 : i32
    %c0_i32_1 = arith.constant 0 : i32
    %c0_i32_2 = arith.constant 0 : i32
    return %arg0, %c0_i32, %c0_i32_0, %c0_i32_1 : i32, i32, i32, i32
  }
  func.func @transform_1(%arg0: i32, %arg1: i32) -> (i32, i32) {
    %c0_i32 = arith.constant 0 : i32
    %c0_i32_0 = arith.constant 0 : i32
    %c0_i32_1 = arith.constant 0 : i32
    return %c0_i32, %c0_i32_0 : i32, i32
  }
  func.func @transform_2(%arg0: i32, %arg1: i32) -> (i32, i32) {
    %c0_i32 = arith.constant 0 : i32
    %c0_i32_0 = arith.constant 0 : i32
    %c0_i32_1 = arith.constant 0 : i32
    return %c0_i32, %c0_i32_0 : i32, i32
  }
  func.func @transform_3(%arg0: i32, %arg1: i32) -> i32 {
    %c0_i32 = arith.constant 0 : i32
    %c0_i32_0 = arith.constant 0 : i32
    return %c0_i32 : i32
  }
  func.func @transform_4(%arg0: i32, %arg1: i32) -> (i32, i32, i32, i32) {
    %c0_i32 = arith.constant 0 : i32
    %c0_i32_0 = arith.constant 0 : i32
    %c0_i32_1 = arith.constant 0 : i32
    return %arg0, %arg1, %c0_i32, %c0_i32_0 : i32, i32, i32, i32
  }
}

</mosaic_0001>

<llo_original>
// kernel: tpu_custom_call.1
$region0: #{tpu_custom_call.1}
  #allocation0 [shape = 'u32[]', space=smem, size = 0x4, offset = 0x4, fixed_abs, tag = 'smem constant byte address 0x4 - core index']
  #allocation1 [shape = 'u32[72,128]{1,0:T(1,128)}', space=vmem, size = 0x9000, scoped, tag = 'internal scratch']
  #allocation2 [shape = 'bf16[16,24,4]{2,1,0:T(8,128)(2,1)}', space=vmem, size = 0x18000, scoped, tag = 'scratch operand']
  #allocation3 [shape = 'bf16[16,24,4]{2,1,0:T(8,128)(2,1)}', space=vmem, size = 0x18000, scoped, tag = 'scratch operand']
  #allocation4 [shape = 'bf16[16,24,32]{2,1,0:T(8,128)(2,1)}', space=vmem, size = 0x18000, scoped, tag = 'scratch operand']
  #allocation5 [shape = 'bf16[24,16,4]{2,1,0:T(8,128)(2,1)}', space=vmem, size = 0x18000, scoped, tag = 'scratch operand']
  #allocation6 [shape = 'bf16[24,16,32]{2,1,0:T(8,128)(2,1)}', space=vmem, size = 0x18000, scoped, tag = 'scratch operand']
  #allocation7 [shape = 'f32[1]{0:T(128)S(6)}', space=smem, size = 0x200, scoped, tag = 'scoped memory for tpu_custom_call.1']
  %s0 = inlined_call_operand.hbm [shape: f32[2,16,24,32], index: 0, kind: input, shape index: {}]
  %s1 = inlined_call_operand.hbm [shape: bf16[32,40], index: 1, kind: input, shape index: {}]
  %s2 = inlined_call_operand.vmem [shape: f32[1,40], index: 2, kind: input, shape index: {}]
  %s3 = inlined_call_operand.<no memory space> [shape: f32[1], index: 3, kind: input, shape index: {}]
  %s4 = inlined_call_operand.hbm [shape: f32[2,16,24,32], index: 4, kind: output, shape index: {}]
  %s5 = sld [smem:[#allocation0]]
  $region61: #{tpu_custom_call.1} parent=0
    _
  %s7 = ssub.s32 1, %s5
  %s8 = scalar_select 0, %s7, %s5
  %9 = sst [smem:[#allocation7]] %s3
  $region1: #{tpu_custom_call.1} parent=0
    #allocation8 [shape = 'u8[393216]{0}', space=vmem, size = 0x60000, scoped, tag = 'input window, operand 0']
    #allocation9 [shape = 's32[2]{0}', space=sflag, size = 0x8, scoped, tag = 'scoped memory for tpu_custom_call.1']
    #allocation10 [shape = 's32[2]{0}', space=sflag, size = 0x8, scoped, tag = 'scoped memory for tpu_custom_call.1']
    #allocation11 [shape = 'u8[8192]{0}', space=vmem, size = 0x2000, scoped, tag = 'input window, operand 1, single buffered']
    #allocation12 [shape = 's32[1]{0}', space=sflag, size = 0x4, scoped, tag = 'scoped memory for tpu_custom_call.1']
    #allocation13 [shape = 'u8[393216]{0}', space=vmem, size = 0x60000, scoped, tag = 'output window, operand 0']
    %10 = vsyncpa [#allocation9], 0
    %s11 = scalar_lea.sflag [#allocation9], 1
    %12 = vsyncpa %s11, 0
    %13 = vsyncpa [#allocation12], 0
    %14 = vsyncpa [#allocation10], 0
    %s15 = scalar_lea.sflag [#allocation10], 1
    %16 = vsyncpa %s15, 0
    loop: start=0, step=1, limit=4
    $region2: #{tpu_custom_call.1} parent=1 // loop_pre_header
      _
    $region3: #{tpu_custom_call.1} parent=1 // loop_header
      %s18 = sphi 0, %s22
      %p19 = scmp.ge.s32.totalorder %s18, 4
      %s25 = sphi 0, %s37
      %s26 = sphi 0, %s33
      %s27 = sphi 0, %s25
      %s28 = sphi 0, %s26
      %s29 = sphi 0, %s27
      %s30 = sphi 0, %s28
      %s40 = sphi 0, %s42
      %s43 = sphi 0, %s40
      %s44 = sphi 0, %s43
      %s60 = sphi 0, %s44
      %s64 = sphi 0, %s64
      %s66 = sphi 0, %s64
      %s67 = sphi 0, %s66
      %s81 = sphi 0, %s67
      %s85 = sphi 0, %s85
      %s87 = sphi 0, %s85
      %s88 = sphi 0, %s87
      %s102 = sphi 0, %s88
      %s106 = sphi 0, %s106
      %s108 = sphi 0, %s106
      %s109 = sphi 0, %s108
      %s123 = sphi 0, %s109
      %s131 = sphi 0, %s133
      %s134 = sphi 0, %s131
      %s135 = sphi 0, %s134
      %s151 = sphi 0, %s135
    $region4: #{tpu_custom_call.1} parent=1 // loop_header_branch
      %21 = sbr.rel (%p19) target = $region8
    $region5: #{tpu_custom_call.1} parent=1 // loop_body
      %s23 = ssub.s32 %s18, 1
      %s24 = ssub.s32 %s18, 2
      %s31 = sadd.s32 1, %s26
      %p32 = scmp.ge.s32.totalorder %s31, 1
      %s33 = scalar_select %p32, 0, %s31
      %s34 = sadd.s32 1, %s25
      %s35 = scalar_select %p32, %s34, %s25
      %p36 = scmp.ge.s32.totalorder %s35, 2
      %s37 = scalar_select %p36, 0, %s35
      %s38 = ssub.s32 %s25, %s37
      %p39 = scmp.eq.s32.totalorder %s38, 0
      %s41 = sadd.s32 %s40, 1
      %s42 = scalar_select %p39, %s40, %s41
      %p45 = pneg %p39
      %p46 = scmp.eq.s32.totalorder %s18, 1
      %p47 = por %p45, %p46
      %p48 = scmp.ne.s32.totalorder %s40, %s43
      %p49 = scmp.eq.s32.totalorder %s18, 0
      %p50 = por %p48, %p49
      %p51 = scmp.ne.s32.totalorder %s40, %s43
      %p52 = scmp.eq.s32.totalorder %s23, 1
      %p53 = por %p51, %p52
      %p54 = scmp.ne.s32.totalorder %s43, %s44
      %p55 = scmp.eq.s32.totalorder %s23, 0
      %p56 = por %p54, %p55
      %p57 = scmp.ne.s32.totalorder %s43, %s44
      %p58 = scmp.eq.s32.totalorder %s24, 1
      %p59 = por %p57, %p58
      %p61 = scmp.ne.s32.totalorder %s44, %s60
      %p62 = scmp.eq.s32.totalorder %s24, 0
      %p63 = por %p61, %p62
      %s65 = sadd.s32 %s64, 1
      %p68 = scmp.eq.s32.totalorder %s18, 1
      %p69 = scmp.ne.s32.totalorder %s64, %s66
      %p70 = scmp.eq.s32.totalorder %s18, 0
      %p71 = por %p69, %p70
      %p72 = scmp.ne.s32.totalorder %s64, %s66
      %p73 = scmp.eq.s32.totalorder %s23, 1
      %p74 = por %p72, %p73
      %p75 = scmp.ne.s32.totalorder %s66, %s67
      %p76 = scmp.eq.s32.totalorder %s23, 0
      %p77 = por %p75, %p76
      %p78 = scmp.ne.s32.totalorder %s66, %s67
      %p79 = scmp.eq.s32.totalorder %s24, 1
      %p80 = por %p78, %p79
      %p82 = scmp.ne.s32.totalorder %s67, %s81
      %p83 = scmp.eq.s32.totalorder %s24, 0
      %p84 = por %p82, %p83
      %s86 = sadd.s32 %s85, 1
      %p89 = scmp.eq.s32.totalorder %s18, 1
      %p90 = scmp.ne.s32.totalorder %s85, %s87
      %p91 = scmp.eq.s32.totalorder %s18, 0
      %p92 = por %p90, %p91
      %p93 = scmp.ne.s32.totalorder %s85, %s87
      %p94 = scmp.eq.s32.totalorder %s23, 1
      %p95 = por %p93, %p94
      %p96 = scmp.ne.s32.totalorder %s87, %s88
      %p97 = scmp.eq.s32.totalorder %s23, 0
      %p98 = por %p96, %p97
      %p99 = scmp.ne.s32.totalorder %s87, %s88
      %p100 = scmp.eq.s32.totalorder %s24, 1
      %p101 = por %p99, %p100
      %p103 = scmp.ne.s32.totalorder %s88, %s102
      %p104 = scmp.eq.s32.totalorder %s24, 0
      %p105 = por %p103, %p104
      %s107 = sadd.s32 %s106, 1
      %p110 = scmp.eq.s32.totalorder %s18, 1
      %p111 = scmp.ne.s32.totalorder %s106, %s108
      %p112 = scmp.eq.s32.totalorder %s18, 0
      %p113 = por %p111, %p112
      %p114 = scmp.ne.s32.totalorder %s106, %s108
      %p115 = scmp.eq.s32.totalorder %s23, 1
      %p116 = por %p114, %p115
      %p117 = scmp.ne.s32.totalorder %s108, %s109
      %p118 = scmp.eq.s32.totalorder %s23, 0
      %p119 = por %p117, %p118
      %p120 = scmp.ne.s32.totalorder %s108, %s109
      %p121 = scmp.eq.s32.totalorder %s24, 1
      %p122 = por %p120, %p121
      %p124 = scmp.ne.s32.totalorder %s109, %s123
      %p125 = scmp.eq.s32.totalorder %s24, 0
      %p126 = por %p124, %p125
      %s127 = ssub.s32 %s25, %s37
      %s128 = ssub.s32 %s26, %s33
      %s129 = sor.u32 %s127, %s128
      %p130 = scmp.eq.s32.totalorder %s129, 0
      %s132 = sadd.s32 %s131, 1
      %s133 = scalar_select %p130, %s131, %s132
      %p136 = pneg %p130
      %p137 = scmp.eq.s32.totalorder %s18, 1
      %p138 = por %p136, %p137
      %p139 = scmp.ne.s32.totalorder %s131, %s134
      %p140 = scmp.eq.s32.totalorder %s18, 0
      %p141 = por %p139, %p140
      %p142 = scmp.ne.s32.totalorder %s131, %s134
      %p143 = scmp.eq.s32.totalorder %s23, 1
      %p144 = por %p142, %p143
      %p145 = scmp.ne.s32.totalorder %s134, %s135
      %p146 = scmp.eq.s32.totalorder %s23, 0
      %p147 = por %p145, %p146
      %p148 = scmp.ne.s32.totalorder %s134, %s135
      %p149 = scmp.eq.s32.totalorder %s24, 1
      %p150 = por %p148, %p149
      %p152 = scmp.ne.s32.totalorder %s135, %s151
      %p153 = scmp.eq.s32.totalorder %s24, 0
      %p154 = por %p152, %p153
      %p155 = scmp.le.s32.totalorder 1, %s18
      %p156 = scmp.lt.s32.totalorder %s18, 3
      %p157 = pnand %p155, %p156
      %p158 = pneg %p157
      // Predicated region
      $region9: #{tpu_custom_call.1} parent=5 // pred_check
        _
      $region10: #{tpu_custom_call.1} parent=5 // pred_check_branch
        %160 = sbr.rel (%p157) target = $region12
      $region11: #{tpu_custom_call.1} parent=5 // pred_region
        %s161 = ssub.s32 %s18, 1
        // Predicated region
        $region13: #{tpu_custom_call.1} parent=11 // pred_check
          %p162 = pneg %p77
        $region14: #{tpu_custom_call.1} parent=11 // pred_check_branch
          %164 = sbr.rel (%p162) target = $region16
        $region15: #{tpu_custom_call.1} parent=11 // pred_region
          %166 = vsyncadd [#allocation12], 0
          %s167 = sshll.u32 %s1, 4
          %s168 = int_to_ptr.hbm [resolvable:$true] %s167
          %s169 = sshll.u32 [#allocation11], 4
          %s170 = int_to_ptr.vmem [resolvable:$true] %s169
          %175 = dma.hbm_to_vmem [thread:$0]  %s168, 256, %s170, [#allocation12], 64, 64, 4
        $region16: #{tpu_custom_call.1} parent=11 // pred_fallthru
          _
        // Predicated region
        $region17: #{tpu_custom_call.1} parent=11 // pred_check
          %p176 = pneg %p98
        $region18: #{tpu_custom_call.1} parent=11 // pred_check_branch
          %178 = sbr.rel (%p176) target = $region20
        $region19: #{tpu_custom_call.1} parent=11 // pred_region
          _
        $region20: #{tpu_custom_call.1} parent=11 // pred_fallthru
          _
        // Predicated region
        $region21: #{tpu_custom_call.1} parent=11 // pred_check
          %p179 = pneg %p119
        $region22: #{tpu_custom_call.1} parent=11 // pred_check_branch
          %181 = sbr.rel (%p179) target = $region24
        $region23: #{tpu_custom_call.1} parent=11 // pred_region
          _
        $region24: #{tpu_custom_call.1} parent=11 // pred_fallthru
          _
      $region12: #{tpu_custom_call.1} parent=5 // pred_fallthru
        _
      %p182 = scmp.lt.s32.totalorder %s18, 2
      // Predicated region
      $region25: #{tpu_custom_call.1} parent=5 // pred_check
        %p183 = pneg %p182
      $region26: #{tpu_custom_call.1} parent=5 // pred_check_branch
        %185 = sbr.rel (%p183) target = $region28
      $region27: #{tpu_custom_call.1} parent=5 // pred_region
        // Predicated region
        $region29: #{tpu_custom_call.1} parent=27 // pred_check
          %p186 = pneg %p50
        $region30: #{tpu_custom_call.1} parent=27 // pred_check_branch
          %188 = sbr.rel (%p186) target = $region32
        $region31: #{tpu_custom_call.1} parent=27 // pred_region
          %s189 = sand.u32 %s40, 1
          %s190 = scalar_lea.sflag [#allocation9], %s189
          %s191 = sand.u32 %s40, 1
          %s192 = smul.addr %s191, 384
          %s193 = scalar_lea.vmem [#allocation8], %s192
          %195 = vsyncadd %s190, 0
          %s196 = smul.addr %s25, 48
          %s197 = smul.addr %s196, 8
          %s198 = scalar_lea.hbm %s0, %s197
          %s199 = sshll.u32 %s198, 4
          %s200 = int_to_ptr.hbm [resolvable:$true] %s199
          %s201 = sshll.u32 %s193, 4
          %s202 = int_to_ptr.vmem [resolvable:$true] %s201
          %207 = dma.hbm_to_vmem [thread:$0]  %s200, 6144, %s202, %s190, 128, 128, 8
        $region32: #{tpu_custom_call.1} parent=27 // pred_fallthru
          _
      $region28: #{tpu_custom_call.1} parent=5 // pred_fallthru
        _
      %p208 = scmp.le.s32.totalorder 1, %s18
      %p209 = scmp.lt.s32.totalorder %s18, 3
      %p210 = pnand %p208, %p209
      %p211 = pneg %p210
      // Predicated region
      $region33: #{tpu_custom_call.1} parent=5 // pred_check
        _
      $region34: #{tpu_custom_call.1} parent=5 // pred_check_branch
        %213 = sbr.rel (%p210) target = $region36
      $region35: #{tpu_custom_call.1} parent=5 // pred_region
        %s214 = ssub.s32 %s18, 1
        %s215 = sand.u32 %s43, 1
        %s216 = scalar_lea.sflag [#allocation9], %s215
        %s217 = sand.u32 %s43, 1
        %s218 = smul.addr %s217, 384
        %s219 = scalar_lea.vmem [#allocation8], %s218
        // Predicated region
        $region37: #{tpu_custom_call.1} parent=35 // pred_check
          %p220 = pneg %p56
        $region38: #{tpu_custom_call.1} parent=35 // pred_check_branch
          %222 = sbr.rel (%p220) target = $region40
        $region39: #{tpu_custom_call.1} parent=35 // pred_region
          %224 = dma.done %s216, 6144
        $region40: #{tpu_custom_call.1} parent=35 // pred_fallthru
          _
        // Predicated region
        $region41: #{tpu_custom_call.1} parent=35 // pred_check
          %p225 = pneg %p77
        $region42: #{tpu_custom_call.1} parent=35 // pred_check_branch
          %227 = sbr.rel (%p225) target = $region44
        $region43: #{tpu_custom_call.1} parent=35 // pred_region
          %229 = dma.done [#allocation12], 256
        $region44: #{tpu_custom_call.1} parent=35 // pred_fallthru
          _
        %s230 = sand.u32 %s43, 1
        %s231 = scalar_lea.sflag [#allocation9], %s230
        %s232 = sand.u32 %s43, 1
        %s233 = smul.addr %s232, 384
        %s234 = scalar_lea.vmem [#allocation8], %s233
        %p235 = pneg %p56
        %p236 = pneg %p53
        %p237 = pneg %p77
        %p238 = pneg %p74
        %p239 = pneg %p98
        %p240 = pneg %p95
        %p241 = pneg %p119
        %p242 = pneg %p116
        %p243 = pneg %p147
        %p244 = pneg %p144
        %s245 = sand.u32 %s134, 1
        %s246 = scalar_lea.sflag [#allocation10], %s245
        %s247 = sand.u32 %s134, 1
        %s248 = smul.addr %s247, 384
        %s249 = scalar_lea.vmem [#allocation13], %s248
        %s250 = smul.u32 16, %s28
        %p252 = scmp.eq.s32.totalorder %s28, 0
        // Predicated region
        $region45: #{tpu_custom_call.1} parent=35 // pred_check
          %p253 = pneg %p252
        $region46: #{tpu_custom_call.1} parent=35 // pred_check_branch
          %255 = sbr.rel (%p253) target = $region48
        $region47: #{tpu_custom_call.1} parent=35 // pred_region
          %v256 = vld [vmem:[%s219] sm:$0xff]
          %v257 = vld [vmem:[%s219 + $0x8] sm:$0xff]
          %v258 = vld [vmem:[%s219 + $0x10] sm:$0xff]
          %v259 = vld [vmem:[%s219 + $0x18] sm:$0xff]
          %v260 = vld [vmem:[%s219 + $0x20] sm:$0xff]
          %v261 = vld [vmem:[%s219 + $0x28] sm:$0xff]
          %v262 = vld [vmem:[%s219 + $0x30] sm:$0xff]
          %v263 = vld [vmem:[%s219 + $0x38] sm:$0xff]
          %v264 = vld [vmem:[%s219 + $0x40] sm:$0xff]
          %v265 = vld [vmem:[%s219 + $0x48] sm:$0xff]
          %v266 = vld [vmem:[%s219 + $0x50] sm:$0xff]
          %v267 = vld [vmem:[%s219 + $0x58] sm:$0xff]
          %v268 = vld [vmem:[%s219 + $0x60] sm:$0xff]
          %v269 = vld [vmem:[%s219 + $0x68] sm:$0xff]
          %v270 = vld [vmem:[%s219 + $0x70] sm:$0xff]
          %v271 = vld [vmem:[%s219 + $0x78] sm:$0xff]
          %v272 = vld [vmem:[%s219 + $0x80] sm:$0xff]
          %v273 = vld [vmem:[%s219 + $0x88] sm:$0xff]
          %v274 = vld [vmem:[%s219 + $0x90] sm:$0xff]
          %v275 = vld [vmem:[%s219 + $0x98] sm:$0xff]
          %v276 = vld [vmem:[%s219 + $0xa0] sm:$0xff]
          %v277 = vld [vmem:[%s219 + $0xa8] sm:$0xff]
          %v278 = vld [vmem:[%s219 + $0xb0] sm:$0xff]
          %v279 = vld [vmem:[%s219 + $0xb8] sm:$0xff]
          %v280 = vld [vmem:[%s219 + $0xc0] sm:$0xff]
          %v281 = vld [vmem:[%s219 + $0xc8] sm:$0xff]
          %v282 = vld [vmem:[%s219 + $0xd0] sm:$0xff]
          %v283 = vld [vmem:[%s219 + $0xd8] sm:$0xff]
          %v284 = vld [vmem:[%s219 + $0xe0] sm:$0xff]
          %v285 = vld [vmem:[%s219 + $0xe8] sm:$0xff]
          %v286 = vld [vmem:[%s219 + $0xf0] sm:$0xff]
          %v287 = vld [vmem:[%s219 + $0xf8] sm:$0xff]
          %v288 = vld [vmem:[%s219 + $0x100] sm:$0xff]
          %v289 = vld [vmem:[%s219 + $0x108] sm:$0xff]
          %v290 = vld [vmem:[%s219 + $0x110] sm:$0xff]
          %v291 = vld [vmem:[%s219 + $0x118] sm:$0xff]
          %v292 = vld [vmem:[%s219 + $0x120] sm:$0xff]
          %v293 = vld [vmem:[%s219 + $0x128] sm:$0xff]
          %v294 = vld [vmem:[%s219 + $0x130] sm:$0xff]
          %v295 = vld [vmem:[%s219 + $0x138] sm:$0xff]
          %v296 = vld [vmem:[%s219 + $0x140] sm:$0xff]
          %v297 = vld [vmem:[%s219 + $0x148] sm:$0xff]
          %v298 = vld [vmem:[%s219 + $0x150] sm:$0xff]
          %v299 = vld [vmem:[%s219 + $0x158] sm:$0xff]
          %v300 = vld [vmem:[%s219 + $0x160] sm:$0xff]
          %v301 = vld [vmem:[%s219 + $0x168] sm:$0xff]
          %v302 = vld [vmem:[%s219 + $0x170] sm:$0xff]
          %v303 = vld [vmem:[%s219 + $0x178] sm:$0xff]
          %v304 = vpack.c.bf16 %v257, %v256
          %v305 = vpack.c.bf16 %v259, %v258
          %v306 = vpack.c.bf16 %v261, %v260
          %v307 = vpack.c.bf16 %v263, %v262
          %v308 = vpack.c.bf16 %v265, %v264
          %v309 = vpack.c.bf16 %v267, %v266
          %v310 = vpack.c.bf16 %v269, %v268
          %v311 = vpack.c.bf16 %v271, %v270
          %v312 = vpack.c.bf16 %v273, %v272
          %v313 = vpack.c.bf16 %v275, %v274
          %v314 = vpack.c.bf16 %v277, %v276
          %v315 = vpack.c.bf16 %v279, %v278
          %v316 = vpack.c.bf16 %v281, %v280
          %v317 = vpack.c.bf16 %v283, %v282
          %v318 = vpack.c.bf16 %v285, %v284
          %v319 = vpack.c.bf16 %v287, %v286
          %v320 = vpack.c.bf16 %v289, %v288
          %v321 = vpack.c.bf16 %v291, %v290
          %v322 = vpack.c.bf16 %v293, %v292
          %v323 = vpack.c.bf16 %v295, %v294
          %v324 = vpack.c.bf16 %v297, %v296
          %v325 = vpack.c.bf16 %v299, %v298
          %v326 = vpack.c.bf16 %v301, %v300
          %v327 = vpack.c.bf16 %v303, %v302
          %v328 = vld [vmem:[#allocation11] sm:$0xf]
          %v329 = vld [vmem:[#allocation11 + $0x4] sm:$0xf]
          %v330 = vld [vmem:[#allocation11 + $0x8] sm:$0xf]
          %v331 = vld [vmem:[#allocation11 + $0xc] sm:$0xf]
          %v332 = vld [vmem:[%s2] sm:$0x1]
          %v334 = vperm.slane %v332, 0
          %v340 = vunpack.c.l.b16 %v328
          %v341 = vunpack.c.l.b16 %v329
          %v342 = vunpack.c.l.b16 %v330
          %v343 = vunpack.c.l.b16 %v331
          %v344 = vpack.c.b16 %v341, %v340
          %v345 = vpack.c.b16 %v343, %v342
          %vm348 = vcmask 261120
          %v350 = vsel %vm348, %v304, 0
          %v353 = vsel %vm348, %v305, 0
          %v356 = vsel %vm348, %v306, 0
          %v359 = vsel %vm348, %v307, 0
          %v362 = vsel %vm348, %v308, 0
          %v365 = vsel %vm348, %v309, 0
          %v368 = vsel %vm348, %v310, 0
          %v371 = vsel %vm348, %v311, 0
          %v374 = vsel %vm348, %v312, 0
          %v377 = vsel %vm348, %v313, 0
          %v380 = vsel %vm348, %v314, 0
          %v383 = vsel %vm348, %v315, 0
          %v386 = vsel %vm348, %v316, 0
          %v389 = vsel %vm348, %v317, 0
          %v392 = vsel %vm348, %v318, 0
          %v395 = vsel %vm348, %v319, 0
          %v398 = vsel %vm348, %v320, 0
          %v401 = vsel %vm348, %v321, 0
          %v404 = vsel %vm348, %v322, 0
          %v407 = vsel %vm348, %v323, 0
          %v410 = vsel %vm348, %v324, 0
          %v413 = vsel %vm348, %v325, 0
          %v416 = vsel %vm348, %v326, 0
          %v419 = vsel %vm348, %v327, 0
          %421 = vmatpush.bf16.msra.mxu0 0
          %422 = vmatpush.bf16.msra.mxu0 0
          %423 = vmatpush.bf16.msra.mxu0 0
          %424 = vmatpush.bf16.msra.mxu0 0
          %425 = vmatpush.bf16.msra.mxu0 0
          %426 = vmatpush.bf16.msra.mxu0 0
          %427 = vmatpush.bf16.msra.mxu0 %v345
          %428 = vmatpush.bf16.msra.mxu0 %v344
          %429 = vmatmul.bf16.gmra.mxu0 %v350
          %v430 = vpop.f32.mrf.mxu0
          %v431 = vadd.f32 %v334, %v430
          %v432 = vpop.f32.mrf.mxu0
          %v433 = vadd.f32 %v334, %v432
          %434 = vmatmul.bf16.gmra.mxu0 %v353
          %v435 = vpop.f32.mrf.mxu0
          %v436 = vadd.f32 %v334, %v435
          %v437 = vpop.f32.mrf.mxu0
          %v438 = vadd.f32 %v334, %v437
          %439 = vmatmul.bf16.gmra.mxu0 %v356
          %v440 = vpop.f32.mrf.mxu0
          %v441 = vadd.f32 %v334, %v440
          %v442 = vpop.f32.mrf.mxu0
          %v443 = vadd.f32 %v334, %v442
          %444 = vmatmul.bf16.gmra.mxu0 %v359
          %v445 = vpop.f32.mrf.mxu0
          %v446 = vadd.f32 %v334, %v445
          %v447 = vpop.f32.mrf.mxu0
          %v448 = vadd.f32 %v334, %v447
          %449 = vmatmul.bf16.gmra.mxu0 %v362
          %v450 = vpop.f32.mrf.mxu0
          %v451 = vadd.f32 %v334, %v450
          %v452 = vpop.f32.mrf.mxu0
          %v453 = vadd.f32 %v334, %v452
          %454 = vmatmul.bf16.gmra.mxu0 %v365
          %v455 = vpop.f32.mrf.mxu0
          %v456 = vadd.f32 %v334, %v455
          %v457 = vpop.f32.mrf.mxu0
          %v458 = vadd.f32 %v334, %v457
          %459 = vmatmul.bf16.gmra.mxu0 %v368
          %v460 = vpop.f32.mrf.mxu0
          %v461 = vadd.f32 %v334, %v460
          %v462 = vpop.f32.mrf.mxu0
          %v463 = vadd.f32 %v334, %v462
          %464 = vmatmul.bf16.gmra.mxu0 %v371
          %v465 = vpop.f32.mrf.mxu0
          %v466 = vadd.f32 %v334, %v465
          %v467 = vpop.f32.mrf.mxu0
          %v468 = vadd.f32 %v334, %v467
          %469 = vmatmul.bf16.gmra.mxu0 %v374
          %v470 = vpop.f32.mrf.mxu0
          %v471 = vadd.f32 %v334, %v470
          %v472 = vpop.f32.mrf.mxu0
          %v473 = vadd.f32 %v334, %v472
          %474 = vmatmul.bf16.gmra.mxu0 %v377
          %v475 = vpop.f32.mrf.mxu0
          %v476 = vadd.f32 %v334, %v475
          %v477 = vpop.f32.mrf.mxu0
          %v478 = vadd.f32 %v334, %v477
          %479 = vmatmul.bf16.gmra.mxu0 %v380
          %v480 = vpop.f32.mrf.mxu0
          %v481 = vadd.f32 %v334, %v480
          %v482 = vpop.f32.mrf.mxu0
          %v483 = vadd.f32 %v334, %v482
          %484 = vmatmul.bf16.gmra.mxu0 %v383
          %v485 = vpop.f32.mrf.mxu0
          %v486 = vadd.f32 %v334, %v485
          %v487 = vpop.f32.mrf.mxu0
          %v488 = vadd.f32 %v334, %v487
          %489 = vmatmul.bf16.gmra.mxu0 %v386
          %v490 = vpop.f32.mrf.mxu0
          %v491 = vadd.f32 %v334, %v490
          %v492 = vpop.f32.mrf.mxu0
          %v493 = vadd.f32 %v334, %v492
          %494 = vmatmul.bf16.gmra.mxu0 %v389
          %v495 = vpop.f32.mrf.mxu0
          %v496 = vadd.f32 %v334, %v495
          %v497 = vpop.f32.mrf.mxu0
          %v498 = vadd.f32 %v334, %v497
          %499 = vmatmul.bf16.gmra.mxu0 %v392
          %v500 = vpop.f32.mrf.mxu0
          %v501 = vadd.f32 %v334, %v500
          %v502 = vpop.f32.mrf.mxu0
          %v503 = vadd.f32 %v334, %v502
          %504 = vmatmul.bf16.gmra.mxu0 %v395
          %v505 = vpop.f32.mrf.mxu0
          %v506 = vadd.f32 %v334, %v505
          %v507 = vpop.f32.mrf.mxu0
          %v508 = vadd.f32 %v334, %v507
          %509 = vmatmul.bf16.gmra.mxu0 %v398
          %v510 = vpop.f32.mrf.mxu0
          %v511 = vadd.f32 %v334, %v510
          %v512 = vpop.f32.mrf.mxu0
          %v513 = vadd.f32 %v334, %v512
          %514 = vmatmul.bf16.gmra.mxu0 %v401
          %v515 = vpop.f32.mrf.mxu0
          %v516 = vadd.f32 %v334, %v515
          %v517 = vpop.f32.mrf.mxu0
          %v518 = vadd.f32 %v334, %v517
          %519 = vmatmul.bf16.gmra.mxu0 %v404
          %v520 = vpop.f32.mrf.mxu0
          %v521 = vadd.f32 %v334, %v520
          %v522 = vpop.f32.mrf.mxu0
          %v523 = vadd.f32 %v334, %v522
          %524 = vmatmul.bf16.gmra.mxu0 %v407
          %v525 = vpop.f32.mrf.mxu0
          %v526 = vadd.f32 %v334, %v525
          %v527 = vpop.f32.mrf.mxu0
          %v528 = vadd.f32 %v334, %v527
          %529 = vmatmul.bf16.gmra.mxu0 %v410
          %v530 = vpop.f32.mrf.mxu0
          %v531 = vadd.f32 %v334, %v530
          %v532 = vpop.f32.mrf.mxu0
          %v533 = vadd.f32 %v334, %v532
          %534 = vmatmul.bf16.gmra.mxu0 %v413
          %v535 = vpop.f32.mrf.mxu0
          %v536 = vadd.f32 %v334, %v535
          %v537 = vpop.f32.mrf.mxu0
          %v538 = vadd.f32 %v334, %v537
          %539 = vmatmul.bf16.gmra.mxu0 %v416
          %v540 = vpop.f32.mrf.mxu0
          %v541 = vadd.f32 %v334, %v540
          %v542 = vpop.f32.mrf.mxu0
          %v543 = vadd.f32 %v334, %v542
          %544 = vmatmul.bf16.gmra.mxu0 %v419
          %v545 = vpop.f32.mrf.mxu0
          %v546 = vadd.f32 %v334, %v545
          %v547 = vpop.f32.mrf.mxu0
          %v548 = vadd.f32 %v334, %v547
          %549 = vdwg.mxu0
          %v550 = vpack.c.bf16 %v431, %v431
          %v551 = vpack.c.bf16 %v433, %v433
          %v552 = vpack.c.bf16 %v436, %v436
          %v553 = vpack.c.bf16 %v438, %v438
          %v554 = vpack.c.bf16 %v441, %v441
          %v555 = vpack.c.bf16 %v443, %v443
          %v556 = vpack.c.bf16 %v446, %v446
          %v557 = vpack.c.bf16 %v448, %v448
          %v558 = vpack.c.bf16 %v451, %v451
          %v559 = vpack.c.bf16 %v453, %v453
          %v560 = vpack.c.bf16 %v456, %v456
          %v561 = vpack.c.bf16 %v458, %v458
          %v562 = vpack.c.bf16 %v461, %v461
          %v563 = vpack.c.bf16 %v463, %v463
          %v564 = vpack.c.bf16 %v466, %v466
          %v565 = vpack.c.bf16 %v468, %v468
          %v566 = vpack.c.bf16 %v471, %v471
          %v567 = vpack.c.bf16 %v473, %v473
          %v568 = vpack.c.bf16 %v476, %v476
          %v569 = vpack.c.bf16 %v478, %v478
          %v570 = vpack.c.bf16 %v481, %v481
          %v571 = vpack.c.bf16 %v483, %v483
          %v572 = vpack.c.bf16 %v486, %v486
          %v573 = vpack.c.bf16 %v488, %v488
          %v574 = vpack.c.bf16 %v491, %v491
          %v575 = vpack.c.bf16 %v493, %v493
          %v576 = vpack.c.bf16 %v496, %v496
          %v577 = vpack.c.bf16 %v498, %v498
          %v578 = vpack.c.bf16 %v501, %v501
          %v579 = vpack.c.bf16 %v503, %v503
          %v580 = vpack.c.bf16 %v506, %v506
          %v581 = vpack.c.bf16 %v508, %v508
          %v582 = vpack.c.bf16 %v511, %v511
          %v583 = vpack.c.bf16 %v513, %v513
          %v584 = vpack.c.bf16 %v516, %v516
          %v585 = vpack.c.bf16 %v518, %v518
          %v586 = vpack.c.bf16 %v521, %v521
          %v587 = vpack.c.bf16 %v523, %v523
          %v588 = vpack.c.bf16 %v526, %v526
          %v589 = vpack.c.bf16 %v528, %v528
          %v590 = vpack.c.bf16 %v531, %v531
          %v591 = vpack.c.bf16 %v533, %v533
          %v592 = vpack.c.bf16 %v536, %v536
          %v593 = vpack.c.bf16 %v538, %v538
          %v594 = vpack.c.bf16 %v541, %v541
          %v595 = vpack.c.bf16 %v543, %v543
          %v596 = vpack.c.bf16 %v546, %v546
          %v597 = vpack.c.bf16 %v548, %v548
          %vm598 = vcmask 27648
          %599 = vst.msk [vmem:[#allocation2] sm:$0xf] %vm598, %v550
          %600 = vst.msk [vmem:[#allocation2 + $0x4] sm:$0xf] %vm598, %v551
          %601 = vst.msk [vmem:[#allocation2 + $0x8] sm:$0xf] %vm598, %v552
          %602 = vst.msk [vmem:[#allocation2 + $0xc] sm:$0xf] %vm598, %v553
          %603 = vst.msk [vmem:[#allocation2 + $0x10] sm:$0xf] %vm598, %v554
          %604 = vst.msk [vmem:[#allocation2 + $0x14] sm:$0xf] %vm598, %v555
          %605 = vst.msk [vmem:[#allocation2 + $0x18] sm:$0xf] %vm598, %v556
          %606 = vst.msk [vmem:[#allocation2 + $0x1c] sm:$0xf] %vm598, %v557
          %607 = vst.msk [vmem:[#allocation2 + $0x20] sm:$0xf] %vm598, %v558
          %608 = vst.msk [vmem:[#allocation2 + $0x24] sm:$0xf] %vm598, %v559
          %609 = vst.msk [vmem:[#allocation2 + $0x28] sm:$0xf] %vm598, %v560
          %610 = vst.msk [vmem:[#allocation2 + $0x2c] sm:$0xf] %vm598, %v561
          %611 = vst.msk [vmem:[#allocation2 + $0x30] sm:$0xf] %vm598, %v562
          %612 = vst.msk [vmem:[#allocation2 + $0x34] sm:$0xf] %vm598, %v563
          %613 = vst.msk [vmem:[#allocation2 + $0x38] sm:$0xf] %vm598, %v564
          %614 = vst.msk [vmem:[#allocation2 + $0x3c] sm:$0xf] %vm598, %v565
          %615 = vst.msk [vmem:[#allocation2 + $0x40] sm:$0xf] %vm598, %v566
          %616 = vst.msk [vmem:[#allocation2 + $0x44] sm:$0xf] %vm598, %v567
          %617 = vst.msk [vmem:[#allocation2 + $0x48] sm:$0xf] %vm598, %v568
          %618 = vst.msk [vmem:[#allocation2 + $0x4c] sm:$0xf] %vm598, %v569
          %619 = vst.msk [vmem:[#allocation2 + $0x50] sm:$0xf] %vm598, %v570
          %620 = vst.msk [vmem:[#allocation2 + $0x54] sm:$0xf] %vm598, %v571
          %621 = vst.msk [vmem:[#allocation2 + $0x58] sm:$0xf] %vm598, %v572
          %622 = vst.msk [vmem:[#allocation2 + $0x5c] sm:$0xf] %vm598, %v573
          %623 = vst.msk [vmem:[#allocation2 + $0x60] sm:$0xf] %vm598, %v574
          %624 = vst.msk [vmem:[#allocation2 + $0x64] sm:$0xf] %vm598, %v575
          %625 = vst.msk [vmem:[#allocation2 + $0x68] sm:$0xf] %vm598, %v576
          %626 = vst.msk [vmem:[#allocation2 + $0x6c] sm:$0xf] %vm598, %v577
          %627 = vst.msk [vmem:[#allocation2 + $0x70] sm:$0xf] %vm598, %v578
          %628 = vst.msk [vmem:[#allocation2 + $0x74] sm:$0xf] %vm598, %v579
          %629 = vst.msk [vmem:[#allocation2 + $0x78] sm:$0xf] %vm598, %v580
          %630 = vst.msk [vmem:[#allocation2 + $0x7c] sm:$0xf] %vm598, %v581
          %631 = vst.msk [vmem:[#allocation2 + $0x80] sm:$0xf] %vm598, %v582
          %632 = vst.msk [vmem:[#allocation2 + $0x84] sm:$0xf] %vm598, %v583
          %633 = vst.msk [vmem:[#allocation2 + $0x88] sm:$0xf] %vm598, %v584
          %634 = vst.msk [vmem:[#allocation2 + $0x8c] sm:$0xf] %vm598, %v585
          %635 = vst.msk [vmem:[#allocation2 + $0x90] sm:$0xf] %vm598, %v586
          %636 = vst.msk [vmem:[#allocation2 + $0x94] sm:$0xf] %vm598, %v587
          %637 = vst.msk [vmem:[#allocation2 + $0x98] sm:$0xf] %vm598, %v588
          %638 = vst.msk [vmem:[#allocation2 + $0x9c] sm:$0xf] %vm598, %v589
          %639 = vst.msk [vmem:[#allocation2 + $0xa0] sm:$0xf] %vm598, %v590
          %640 = vst.msk [vmem:[#allocation2 + $0xa4] sm:$0xf] %vm598, %v591
          %641 = vst.msk [vmem:[#allocation2 + $0xa8] sm:$0xf] %vm598, %v592
          %642 = vst.msk [vmem:[#allocation2 + $0xac] sm:$0xf] %vm598, %v593
          %643 = vst.msk [vmem:[#allocation2 + $0xb0] sm:$0xf] %vm598, %v594
          %644 = vst.msk [vmem:[#allocation2 + $0xb4] sm:$0xf] %vm598, %v595
          %645 = vst.msk [vmem:[#allocation2 + $0xb8] sm:$0xf] %vm598, %v596
          %646 = vst.msk [vmem:[#allocation2 + $0xbc] sm:$0xf] %vm598, %v597
          %695 = vrot.lane.b32.xlu0 %v550, 124
          %v696 = vpop.permute.xlu0 %695
          %697 = vrot.lane.b32.xlu0 %v551, 124
          %v698 = vpop.permute.xlu0 %697
          %699 = vrot.lane.b32.xlu0 %v552, 124
          %v700 = vpop.permute.xlu0 %699
          %701 = vrot.lane.b32.xlu0 %v553, 124
          %v702 = vpop.permute.xlu0 %701
          %703 = vrot.lane.b32.xlu0 %v554, 124
          %v704 = vpop.permute.xlu0 %703
          %705 = vrot.lane.b32.xlu0 %v555, 124
          %v706 = vpop.permute.xlu0 %705
          %707 = vrot.lane.b32.xlu0 %v556, 124
          %v708 = vpop.permute.xlu0 %707
          %709 = vrot.lane.b32.xlu0 %v557, 124
          %v710 = vpop.permute.xlu0 %709
          %711 = vrot.lane.b32.xlu0 %v558, 124
          %v712 = vpop.permute.xlu0 %711
          %713 = vrot.lane.b32.xlu0 %v559, 124
          %v714 = vpop.permute.xlu0 %713
          %715 = vrot.lane.b32.xlu0 %v560, 124
          %v716 = vpop.permute.xlu0 %715
          %717 = vrot.lane.b32.xlu0 %v561, 124
          %v718 = vpop.permute.xlu0 %717
          %719 = vrot.lane.b32.xlu0 %v562, 124
          %v720 = vpop.permute.xlu0 %719
          %721 = vrot.lane.b32.xlu0 %v563, 124
          %v722 = vpop.permute.xlu0 %721
          %723 = vrot.lane.b32.xlu0 %v564, 124
          %v724 = vpop.permute.xlu0 %723
          %725 = vrot.lane.b32.xlu0 %v565, 124
          %v726 = vpop.permute.xlu0 %725
          %727 = vrot.lane.b32.xlu0 %v566, 124
          %v728 = vpop.permute.xlu0 %727
          %729 = vrot.lane.b32.xlu0 %v567, 124
          %v730 = vpop.permute.xlu0 %729
          %731 = vrot.lane.b32.xlu0 %v568, 124
          %v732 = vpop.permute.xlu0 %731
          %733 = vrot.lane.b32.xlu0 %v569, 124
          %v734 = vpop.permute.xlu0 %733
          %735 = vrot.lane.b32.xlu0 %v570, 124
          %v736 = vpop.permute.xlu0 %735
          %737 = vrot.lane.b32.xlu0 %v571, 124
          %v738 = vpop.permute.xlu0 %737
          %739 = vrot.lane.b32.xlu0 %v572, 124
          %v740 = vpop.permute.xlu0 %739
          %741 = vrot.lane.b32.xlu0 %v573, 124
          %v742 = vpop.permute.xlu0 %741
          %743 = vrot.lane.b32.xlu0 %v574, 124
          %v744 = vpop.permute.xlu0 %743
          %745 = vrot.lane.b32.xlu0 %v575, 124
          %v746 = vpop.permute.xlu0 %745
          %747 = vrot.lane.b32.xlu0 %v576, 124
          %v748 = vpop.permute.xlu0 %747
          %749 = vrot.lane.b32.xlu0 %v577, 124
          %v750 = vpop.permute.xlu0 %749
          %751 = vrot.lane.b32.xlu0 %v578, 124
          %v752 = vpop.permute.xlu0 %751
          %753 = vrot.lane.b32.xlu0 %v579, 124
          %v754 = vpop.permute.xlu0 %753
          %755 = vrot.lane.b32.xlu0 %v580, 124
          %v756 = vpop.permute.xlu0 %755
          %757 = vrot.lane.b32.xlu0 %v581, 124
          %v758 = vpop.permute.xlu0 %757
          %759 = vrot.lane.b32.xlu0 %v582, 124
          %v760 = vpop.permute.xlu0 %759
          %761 = vrot.lane.b32.xlu0 %v583, 124
          %v762 = vpop.permute.xlu0 %761
          %763 = vrot.lane.b32.xlu0 %v584, 124
          %v764 = vpop.permute.xlu0 %763
          %765 = vrot.lane.b32.xlu0 %v585, 124
          %v766 = vpop.permute.xlu0 %765
          %767 = vrot.lane.b32.xlu0 %v586, 124
          %v768 = vpop.permute.xlu0 %767
          %769 = vrot.lane.b32.xlu0 %v587, 124
          %v770 = vpop.permute.xlu0 %769
          %771 = vrot.lane.b32.xlu0 %v588, 124
          %v772 = vpop.permute.xlu0 %771
          %773 = vrot.lane.b32.xlu0 %v589, 124
          %v774 = vpop.permute.xlu0 %773
          %775 = vrot.lane.b32.xlu0 %v590, 124
          %v776 = vpop.permute.xlu0 %775
          %777 = vrot.lane.b32.xlu0 %v591, 124
          %v778 = vpop.permute.xlu0 %777
          %779 = vrot.lane.b32.xlu0 %v592, 124
          %v780 = vpop.permute.xlu0 %779
          %781 = vrot.lane.b32.xlu0 %v593, 124
          %v782 = vpop.permute.xlu0 %781
          %783 = vrot.lane.b32.xlu0 %v594, 124
          %v784 = vpop.permute.xlu0 %783
          %785 = vrot.lane.b32.xlu0 %v595, 124
          %v786 = vpop.permute.xlu0 %785
          %787 = vrot.lane.b32.xlu0 %v596, 124
          %v788 = vpop.permute.xlu0 %787
          %789 = vrot.lane.b32.xlu0 %v597, 124
          %v790 = vpop.permute.xlu0 %789
          %839 = vst.msk [vmem:[#allocation3] sm:$0xf] %vm598, %v696
          %840 = vst.msk [vmem:[#allocation3 + $0x4] sm:$0xf] %vm598, %v698
          %841 = vst.msk [vmem:[#allocation3 + $0x8] sm:$0xf] %vm598, %v700
          %842 = vst.msk [vmem:[#allocation3 + $0xc] sm:$0xf] %vm598, %v702
          %843 = vst.msk [vmem:[#allocation3 + $0x10] sm:$0xf] %vm598, %v704
          %844 = vst.msk [vmem:[#allocation3 + $0x14] sm:$0xf] %vm598, %v706
          %845 = vst.msk [vmem:[#allocation3 + $0x18] sm:$0xf] %vm598, %v708
          %846 = vst.msk [vmem:[#allocation3 + $0x1c] sm:$0xf] %vm598, %v710
          %847 = vst.msk [vmem:[#allocation3 + $0x20] sm:$0xf] %vm598, %v712
          %848 = vst.msk [vmem:[#allocation3 + $0x24] sm:$0xf] %vm598, %v714
          %849 = vst.msk [vmem:[#allocation3 + $0x28] sm:$0xf] %vm598, %v716
          %850 = vst.msk [vmem:[#allocation3 + $0x2c] sm:$0xf] %vm598, %v718
          %851 = vst.msk [vmem:[#allocation3 + $0x30] sm:$0xf] %vm598, %v720
          %852 = vst.msk [vmem:[#allocation3 + $0x34] sm:$0xf] %vm598, %v722
          %853 = vst.msk [vmem:[#allocation3 + $0x38] sm:$0xf] %vm598, %v724
          %854 = vst.msk [vmem:[#allocation3 + $0x3c] sm:$0xf] %vm598, %v726
          %855 = vst.msk [vmem:[#allocation3 + $0x40] sm:$0xf] %vm598, %v728
          %856 = vst.msk [vmem:[#allocation3 + $0x44] sm:$0xf] %vm598, %v730
          %857 = vst.msk [vmem:[#allocation3 + $0x48] sm:$0xf] %vm598, %v732
          %858 = vst.msk [vmem:[#allocation3 + $0x4c] sm:$0xf] %vm598, %v734
          %859 = vst.msk [vmem:[#allocation3 + $0x50] sm:$0xf] %vm598, %v736
          %860 = vst.msk [vmem:[#allocation3 + $0x54] sm:$0xf] %vm598, %v738
          %861 = vst.msk [vmem:[#allocation3 + $0x58] sm:$0xf] %vm598, %v740
          %862 = vst.msk [vmem:[#allocation3 + $0x5c] sm:$0xf] %vm598, %v742
          %863 = vst.msk [vmem:[#allocation3 + $0x60] sm:$0xf] %vm598, %v744
          %864 = vst.msk [vmem:[#allocation3 + $0x64] sm:$0xf] %vm598, %v746
          %865 = vst.msk [vmem:[#allocation3 + $0x68] sm:$0xf] %vm598, %v748
          %866 = vst.msk [vmem:[#allocation3 + $0x6c] sm:$0xf] %vm598, %v750
          %867 = vst.msk [vmem:[#allocation3 + $0x70] sm:$0xf] %vm598, %v752
          %868 = vst.msk [vmem:[#allocation3 + $0x74] sm:$0xf] %vm598, %v754
          %869 = vst.msk [vmem:[#allocation3 + $0x78] sm:$0xf] %vm598, %v756
          %870 = vst.msk [vmem:[#allocation3 + $0x7c] sm:$0xf] %vm598, %v758
          %871 = vst.msk [vmem:[#allocation3 + $0x80] sm:$0xf] %vm598, %v760
          %872 = vst.msk [vmem:[#allocation3 + $0x84] sm:$0xf] %vm598, %v762
          %873 = vst.msk [vmem:[#allocation3 + $0x88] sm:$0xf] %vm598, %v764
          %874 = vst.msk [vmem:[#allocation3 + $0x8c] sm:$0xf] %vm598, %v766
          %875 = vst.msk [vmem:[#allocation3 + $0x90] sm:$0xf] %vm598, %v768
          %876 = vst.msk [vmem:[#allocation3 + $0x94] sm:$0xf] %vm598, %v770
          %877 = vst.msk [vmem:[#allocation3 + $0x98] sm:$0xf] %vm598, %v772
          %878 = vst.msk [vmem:[#allocation3 + $0x9c] sm:$0xf] %vm598, %v774
          %879 = vst.msk [vmem:[#allocation3 + $0xa0] sm:$0xf] %vm598, %v776
          %880 = vst.msk [vmem:[#allocation3 + $0xa4] sm:$0xf] %vm598, %v778
          %881 = vst.msk [vmem:[#allocation3 + $0xa8] sm:$0xf] %vm598, %v780
          %882 = vst.msk [vmem:[#allocation3 + $0xac] sm:$0xf] %vm598, %v782
          %883 = vst.msk [vmem:[#allocation3 + $0xb0] sm:$0xf] %vm598, %v784
          %884 = vst.msk [vmem:[#allocation3 + $0xb4] sm:$0xf] %vm598, %v786
          %885 = vst.msk [vmem:[#allocation3 + $0xb8] sm:$0xf] %vm598, %v788
          %886 = vst.msk [vmem:[#allocation3 + $0xbc] sm:$0xf] %vm598, %v790
          %887 = vrot.lane.b32.xlu0 %v550, 120
          %v888 = vpop.permute.xlu0 %887
          %889 = vrot.lane.b32.xlu0 %v551, 120
          %v890 = vpop.permute.xlu0 %889
          %891 = vrot.lane.b32.xlu0 %v552, 120
          %v892 = vpop.permute.xlu0 %891
          %893 = vrot.lane.b32.xlu0 %v553, 120
          %v894 = vpop.permute.xlu0 %893
          %895 = vrot.lane.b32.xlu0 %v554, 120
          %v896 = vpop.permute.xlu0 %895
          %897 = vrot.lane.b32.xlu0 %v555, 120
          %v898 = vpop.permute.xlu0 %897
          %899 = vrot.lane.b32.xlu0 %v556, 120
          %v900 = vpop.permute.xlu0 %899
          %901 = vrot.lane.b32.xlu0 %v557, 120
          %v902 = vpop.permute.xlu0 %901
          %903 = vrot.lane.b32.xlu0 %v558, 120
          %v904 = vpop.permute.xlu0 %903
          %905 = vrot.lane.b32.xlu0 %v559, 120
          %v906 = vpop.permute.xlu0 %905
          %907 = vrot.lane.b32.xlu0 %v560, 120
          %v908 = vpop.permute.xlu0 %907
          %909 = vrot.lane.b32.xlu0 %v561, 120
          %v910 = vpop.permute.xlu0 %909
          %911 = vrot.lane.b32.xlu0 %v562, 120
          %v912 = vpop.permute.xlu0 %911
          %913 = vrot.lane.b32.xlu0 %v563, 120
          %v914 = vpop.permute.xlu0 %913
          %915 = vrot.lane.b32.xlu0 %v564, 120
          %v916 = vpop.permute.xlu0 %915
          %917 = vrot.lane.b32.xlu0 %v565, 120
          %v918 = vpop.permute.xlu0 %917
          %919 = vrot.lane.b32.xlu0 %v566, 120
          %v920 = vpop.permute.xlu0 %919
          %921 = vrot.lane.b32.xlu0 %v567, 120
          %v922 = vpop.permute.xlu0 %921
          %923 = vrot.lane.b32.xlu0 %v568, 120
          %v924 = vpop.permute.xlu0 %923
          %925 = vrot.lane.b32.xlu0 %v569, 120
          %v926 = vpop.permute.xlu0 %925
          %927 = vrot.lane.b32.xlu0 %v570, 120
          %v928 = vpop.permute.xlu0 %927
          %929 = vrot.lane.b32.xlu0 %v571, 120
          %v930 = vpop.permute.xlu0 %929
          %931 = vrot.lane.b32.xlu0 %v572, 120
          %v932 = vpop.permute.xlu0 %931
          %933 = vrot.lane.b32.xlu0 %v573, 120
          %v934 = vpop.permute.xlu0 %933
          %935 = vrot.lane.b32.xlu0 %v574, 120
          %v936 = vpop.permute.xlu0 %935
          %937 = vrot.lane.b32.xlu0 %v575, 120
          %v938 = vpop.permute.xlu0 %937
          %939 = vrot.lane.b32.xlu0 %v576, 120
          %v940 = vpop.permute.xlu0 %939
          %941 = vrot.lane.b32.xlu0 %v577, 120
          %v942 = vpop.permute.xlu0 %941
          %943 = vrot.lane.b32.xlu0 %v578, 120
          %v944 = vpop.permute.xlu0 %943
          %945 = vrot.lane.b32.xlu0 %v579, 120
          %v946 = vpop.permute.xlu0 %945
          %947 = vrot.lane.b32.xlu0 %v580, 120
          %v948 = vpop.permute.xlu0 %947
          %949 = vrot.lane.b32.xlu0 %v581, 120
          %v950 = vpop.permute.xlu0 %949
          %951 = vrot.lane.b32.xlu0 %v582, 120
          %v952 = vpop.permute.xlu0 %951
          %953 = vrot.lane.b32.xlu0 %v583, 120
          %v954 = vpop.permute.xlu0 %953
          %955 = vrot.lane.b32.xlu0 %v584, 120
          %v956 = vpop.permute.xlu0 %955
          %957 = vrot.lane.b32.xlu0 %v585, 120
          %v958 = vpop.permute.xlu0 %957
          %959 = vrot.lane.b32.xlu0 %v586, 120
          %v960 = vpop.permute.xlu0 %959
          %961 = vrot.lane.b32.xlu0 %v587, 120
          %v962 = vpop.permute.xlu0 %961
          %963 = vrot.lane.b32.xlu0 %v588, 120
          %v964 = vpop.permute.xlu0 %963
          %965 = vrot.lane.b32.xlu0 %v589, 120
          %v966 = vpop.permute.xlu0 %965
          %967 = vrot.lane.b32.xlu0 %v590, 120
          %v968 = vpop.permute.xlu0 %967
          %969 = vrot.lane.b32.xlu0 %v591, 120
          %v970 = vpop.permute.xlu0 %969
          %971 = vrot.lane.b32.xlu0 %v592, 120
          %v972 = vpop.permute.xlu0 %971
          %973 = vrot.lane.b32.xlu0 %v593, 120
          %v974 = vpop.permute.xlu0 %973
          %975 = vrot.lane.b32.xlu0 %v594, 120
          %v976 = vpop.permute.xlu0 %975
          %977 = vrot.lane.b32.xlu0 %v595, 120
          %v978 = vpop.permute.xlu0 %977
          %979 = vrot.lane.b32.xlu0 %v596, 120
          %v980 = vpop.permute.xlu0 %979
          %981 = vrot.lane.b32.xlu0 %v597, 120
          %v982 = vpop.permute.xlu0 %981
          %vm1031 = vcmask 257024
          %1032 = vst.msk [vmem:[#allocation4] sm:$0xf] %vm1031, %v888
          %1033 = vst.msk [vmem:[#allocation4 + $0x4] sm:$0xf] %vm1031, %v890
          %1034 = vst.msk [vmem:[#allocation4 + $0x8] sm:$0xf] %vm1031, %v892
          %1035 = vst.msk [vmem:[#allocation4 + $0xc] sm:$0xf] %vm1031, %v894
          %1036 = vst.msk [vmem:[#allocation4 + $0x10] sm:$0xf] %vm1031, %v896
          %1037 = vst.msk [vmem:[#allocation4 + $0x14] sm:$0xf] %vm1031, %v898
          %1038 = vst.msk [vmem:[#allocation4 + $0x18] sm:$0xf] %vm1031, %v900
          %1039 = vst.msk [vmem:[#allocation4 + $0x1c] sm:$0xf] %vm1031, %v902
          %1040 = vst.msk [vmem:[#allocation4 + $0x20] sm:$0xf] %vm1031, %v904
          %1041 = vst.msk [vmem:[#allocation4 + $0x24] sm:$0xf] %vm1031, %v906
          %1042 = vst.msk [vmem:[#allocation4 + $0x28] sm:$0xf] %vm1031, %v908
          %1043 = vst.msk [vmem:[#allocation4 + $0x2c] sm:$0xf] %vm1031, %v910
          %1044 = vst.msk [vmem:[#allocation4 + $0x30] sm:$0xf] %vm1031, %v912
          %1045 = vst.msk [vmem:[#allocation4 + $0x34] sm:$0xf] %vm1031, %v914
          %1046 = vst.msk [vmem:[#allocation4 + $0x38] sm:$0xf] %vm1031, %v916
          %1047 = vst.msk [vmem:[#allocation4 + $0x3c] sm:$0xf] %vm1031, %v918
          %1048 = vst.msk [vmem:[#allocation4 + $0x40] sm:$0xf] %vm1031, %v920
          %1049 = vst.msk [vmem:[#allocation4 + $0x44] sm:$0xf] %vm1031, %v922
          %1050 = vst.msk [vmem:[#allocation4 + $0x48] sm:$0xf] %vm1031, %v924
          %1051 = vst.msk [vmem:[#allocation4 + $0x4c] sm:$0xf] %vm1031, %v926
          %1052 = vst.msk [vmem:[#allocation4 + $0x50] sm:$0xf] %vm1031, %v928
          %1053 = vst.msk [vmem:[#allocation4 + $0x54] sm:$0xf] %vm1031, %v930
          %1054 = vst.msk [vmem:[#allocation4 + $0x58] sm:$0xf] %vm1031, %v932
          %1055 = vst.msk [vmem:[#allocation4 + $0x5c] sm:$0xf] %vm1031, %v934
          %1056 = vst.msk [vmem:[#allocation4 + $0x60] sm:$0xf] %vm1031, %v936
          %1057 = vst.msk [vmem:[#allocation4 + $0x64] sm:$0xf] %vm1031, %v938
          %1058 = vst.msk [vmem:[#allocation4 + $0x68] sm:$0xf] %vm1031, %v940
          %1059 = vst.msk [vmem:[#allocation4 + $0x6c] sm:$0xf] %vm1031, %v942
          %1060 = vst.msk [vmem:[#allocation4 + $0x70] sm:$0xf] %vm1031, %v944
          %1061 = vst.msk [vmem:[#allocation4 + $0x74] sm:$0xf] %vm1031, %v946
          %1062 = vst.msk [vmem:[#allocation4 + $0x78] sm:$0xf] %vm1031, %v948
          %1063 = vst.msk [vmem:[#allocation4 + $0x7c] sm:$0xf] %vm1031, %v950
          %1064 = vst.msk [vmem:[#allocation4 + $0x80] sm:$0xf] %vm1031, %v952
          %1065 = vst.msk [vmem:[#allocation4 + $0x84] sm:$0xf] %vm1031, %v954
          %1066 = vst.msk [vmem:[#allocation4 + $0x88] sm:$0xf] %vm1031, %v956
          %1067 = vst.msk [vmem:[#allocation4 + $0x8c] sm:$0xf] %vm1031, %v958
          %1068 = vst.msk [vmem:[#allocation4 + $0x90] sm:$0xf] %vm1031, %v960
          %1069 = vst.msk [vmem:[#allocation4 + $0x94] sm:$0xf] %vm1031, %v962
          %1070 = vst.msk [vmem:[#allocation4 + $0x98] sm:$0xf] %vm1031, %v964
          %1071 = vst.msk [vmem:[#allocation4 + $0x9c] sm:$0xf] %vm1031, %v966
          %1072 = vst.msk [vmem:[#allocation4 + $0xa0] sm:$0xf] %vm1031, %v968
          %1073 = vst.msk [vmem:[#allocation4 + $0xa4] sm:$0xf] %vm1031, %v970
          %1074 = vst.msk [vmem:[#allocation4 + $0xa8] sm:$0xf] %vm1031, %v972
          %1075 = vst.msk [vmem:[#allocation4 + $0xac] sm:$0xf] %vm1031, %v974
          %1076 = vst.msk [vmem:[#allocation4 + $0xb0] sm:$0xf] %vm1031, %v976
          %1077 = vst.msk [vmem:[#allocation4 + $0xb4] sm:$0xf] %vm1031, %v978
          %1078 = vst.msk [vmem:[#allocation4 + $0xb8] sm:$0xf] %vm1031, %v980
          %1079 = vst.msk [vmem:[#allocation4 + $0xbc] sm:$0xf] %vm1031, %v982
          %1128 = vrot.lane.b32.xlu0 %v431, 124
          %v1129 = vpop.permute.xlu0 %1128
          %1130 = vrot.lane.b32.xlu0 %v433, 124
          %v1131 = vpop.permute.xlu0 %1130
          %1132 = vrot.lane.b32.xlu0 %v436, 124
          %v1133 = vpop.permute.xlu0 %1132
          %1134 = vrot.lane.b32.xlu0 %v438, 124
          %v1135 = vpop.permute.xlu0 %1134
          %1136 = vrot.lane.b32.xlu0 %v441, 124
          %v1137 = vpop.permute.xlu0 %1136
          %1138 = vrot.lane.b32.xlu0 %v443, 124
          %v1139 = vpop.permute.xlu0 %1138
          %1140 = vrot.lane.b32.xlu0 %v446, 124
          %v1141 = vpop.permute.xlu0 %1140
          %1142 = vrot.lane.b32.xlu0 %v448, 124
          %v1143 = vpop.permute.xlu0 %1142
          %1144 = vrot.lane.b32.xlu0 %v451, 124
          %v1145 = vpop.permute.xlu0 %1144
          %1146 = vrot.lane.b32.xlu0 %v453, 124
          %v1147 = vpop.permute.xlu0 %1146
          %1148 = vrot.lane.b32.xlu0 %v456, 124
          %v1149 = vpop.permute.xlu0 %1148
          %1150 = vrot.lane.b32.xlu0 %v458, 124
          %v1151 = vpop.permute.xlu0 %1150
          %1152 = vrot.lane.b32.xlu0 %v461, 124
          %v1153 = vpop.permute.xlu0 %1152
          %1154 = vrot.lane.b32.xlu0 %v463, 124
          %v1155 = vpop.permute.xlu0 %1154
          %1156 = vrot.lane.b32.xlu0 %v466, 124
          %v1157 = vpop.permute.xlu0 %1156
          %1158 = vrot.lane.b32.xlu0 %v468, 124
          %v1159 = vpop.permute.xlu0 %1158
          %1160 = vrot.lane.b32.xlu0 %v471, 124
          %v1161 = vpop.permute.xlu0 %1160
          %1162 = vrot.lane.b32.xlu0 %v473, 124
          %v1163 = vpop.permute.xlu0 %1162
          %1164 = vrot.lane.b32.xlu0 %v476, 124
          %v1165 = vpop.permute.xlu0 %1164
          %1166 = vrot.lane.b32.xlu0 %v478, 124
          %v1167 = vpop.permute.xlu0 %1166
          %1168 = vrot.lane.b32.xlu0 %v481, 124
          %v1169 = vpop.permute.xlu0 %1168
          %1170 = vrot.lane.b32.xlu0 %v483, 124
          %v1171 = vpop.permute.xlu0 %1170
          %1172 = vrot.lane.b32.xlu0 %v486, 124
          %v1173 = vpop.permute.xlu0 %1172
          %1174 = vrot.lane.b32.xlu0 %v488, 124
          %v1175 = vpop.permute.xlu0 %1174
          %1176 = vrot.lane.b32.xlu0 %v491, 124
          %v1177 = vpop.permute.xlu0 %1176
          %1178 = vrot.lane.b32.xlu0 %v493, 124
          %v1179 = vpop.permute.xlu0 %1178
          %1180 = vrot.lane.b32.xlu0 %v496, 124
          %v1181 = vpop.permute.xlu0 %1180
          %1182 = vrot.lane.b32.xlu0 %v498, 124
          %v1183 = vpop.permute.xlu0 %1182
          %1184 = vrot.lane.b32.xlu0 %v501, 124
          %v1185 = vpop.permute.xlu0 %1184
          %1186 = vrot.lane.b32.xlu0 %v503, 124
          %v1187 = vpop.permute.xlu0 %1186
          %1188 = vrot.lane.b32.xlu0 %v506, 124
          %v1189 = vpop.permute.xlu0 %1188
          %1190 = vrot.lane.b32.xlu0 %v508, 124
          %v1191 = vpop.permute.xlu0 %1190
          %1192 = vrot.lane.b32.xlu0 %v511, 124
          %v1193 = vpop.permute.xlu0 %1192
          %1194 = vrot.lane.b32.xlu0 %v513, 124
          %v1195 = vpop.permute.xlu0 %1194
          %1196 = vrot.lane.b32.xlu0 %v516, 124
          %v1197 = vpop.permute.xlu0 %1196
          %1198 = vrot.lane.b32.xlu0 %v518, 124
          %v1199 = vpop.permute.xlu0 %1198
          %1200 = vrot.lane.b32.xlu0 %v521, 124
          %v1201 = vpop.permute.xlu0 %1200
          %1202 = vrot.lane.b32.xlu0 %v523, 124
          %v1203 = vpop.permute.xlu0 %1202
          %1204 = vrot.lane.b32.xlu0 %v526, 124
          %v1205 = vpop.permute.xlu0 %1204
          %1206 = vrot.lane.b32.xlu0 %v528, 124
          %v1207 = vpop.permute.xlu0 %1206
          %1208 = vrot.lane.b32.xlu0 %v531, 124
          %v1209 = vpop.permute.xlu0 %1208
          %1210 = vrot.lane.b32.xlu0 %v533, 124
          %v1211 = vpop.permute.xlu0 %1210
          %1212 = vrot.lane.b32.xlu0 %v536, 124
          %v1213 = vpop.permute.xlu0 %1212
          %1214 = vrot.lane.b32.xlu0 %v538, 124
          %v1215 = vpop.permute.xlu0 %1214
          %1216 = vrot.lane.b32.xlu0 %v541, 124
          %v1217 = vpop.permute.xlu0 %1216
          %1218 = vrot.lane.b32.xlu0 %v543, 124
          %v1219 = vpop.permute.xlu0 %1218
          %1220 = vrot.lane.b32.xlu0 %v546, 124
          %v1221 = vpop.permute.xlu0 %1220
          %1222 = vrot.lane.b32.xlu0 %v548, 124
          %v1223 = vpop.permute.xlu0 %1222
          %v1272 = vrot.slane %v1141, 4
          %vm1273 = vcmask 1047556
          %v1274 = vsel %vm1273, %v1272, %v1129
          %v1275 = vrot.slane %v1129, 4
          %v1276 = vsel %vm1273, %v1141, %v1275
          %v1278 = vunpack.c.l.s4 1983009808
          %v1279 = vunpack.c.0.s8 %v1278
          %v1280 = vperm.slane %v1274, %v1279
          %v1282 = vunpack.c.l.s4 1983009808
          %v1283 = vunpack.c.0.s8 %v1282
          %v1284 = vperm.slane %v1276, %v1283
          %v1285 = vrot.slane %v1147, 4
          %v1286 = vsel %vm1273, %v1285, %v1135
          %v1287 = vrot.slane %v1135, 4
          %v1288 = vsel %vm1273, %v1147, %v1287
          %v1290 = vunpack.c.l.s4 1983009808
          %v1291 = vunpack.c.0.s8 %v1290
          %v1292 = vperm.slane %v1286, %v1291
          %v1294 = vunpack.c.l.s4 1983009808
          %v1295 = vunpack.c.0.s8 %v1294
          %v1296 = vperm.slane %v1288, %v1295
          %v1297 = vrot.slane %v1165, 4
          %v1298 = vsel %vm1273, %v1297, %v1153
          %v1299 = vrot.slane %v1153, 4
          %v1300 = vsel %vm1273, %v1165, %v1299
          %v1302 = vunpack.c.l.s4 1983009808
          %v1303 = vunpack.c.0.s8 %v1302
          %v1304 = vperm.slane %v1298, %v1303
          %v1306 = vunpack.c.l.s4 1983009808
          %v1307 = vunpack.c.0.s8 %v1306
          %v1308 = vperm.slane %v1300, %v1307
          %v1309 = vrot.slane %v1171, 4
          %v1310 = vsel %vm1273, %v1309, %v1159
          %v1311 = vrot.slane %v1159, 4
          %v1312 = vsel %vm1273, %v1171, %v1311
          %v1314 = vunpack.c.l.s4 1983009808
          %v1315 = vunpack.c.0.s8 %v1314
          %v1316 = vperm.slane %v1310, %v1315
          %v1318 = vunpack.c.l.s4 1983009808
          %v1319 = vunpack.c.0.s8 %v1318
          %v1320 = vperm.slane %v1312, %v1319
          %v1321 = vrot.slane %v1292, 4
          %v1322 = vsel %vm1273, %v1321, %v1280
          %v1323 = vrot.slane %v1280, 4
          %v1324 = vsel %vm1273, %v1292, %v1323
          %v1326 = vunpack.c.l.s4 1934713408
          %v1327 = vunpack.c.0.s8 %v1326
          %v1328 = vperm.slane %v1322, %v1327
          %v1330 = vunpack.c.l.s4 1934713408
          %v1331 = vunpack.c.0.s8 %v1330
          %v1332 = vperm.slane %v1324, %v1331
          %v1333 = vrot.slane %v1296, 4
          %v1334 = vsel %vm1273, %v1333, %v1284
          %v1335 = vrot.slane %v1284, 4
          %v1336 = vsel %vm1273, %v1296, %v1335
          %v1338 = vunpack.c.l.s4 1934713408
          %v1339 = vunpack.c.0.s8 %v1338
          %v1340 = vperm.slane %v1334, %v1339
          %v1342 = vunpack.c.l.s4 1934713408
          %v1343 = vunpack.c.0.s8 %v1342
          %v1344 = vperm.slane %v1336, %v1343
          %v1345 = vrot.slane %v1316, 4
          %v1346 = vsel %vm1273, %v1345, %v1304
          %v1347 = vrot.slane %v1304, 4
          %v1348 = vsel %vm1273, %v1316, %v1347
          %v1350 = vunpack.c.l.s4 1934713408
          %v1351 = vunpack.c.0.s8 %v1350
          %v1352 = vperm.slane %v1346, %v1351
          %v1354 = vunpack.c.l.s4 1934713408
          %v1355 = vunpack.c.0.s8 %v1354
          %v1356 = vperm.slane %v1348, %v1355
          %v1357 = vrot.slane %v1320, 4
          %v1358 = vsel %vm1273, %v1357, %v1308
          %v1359 = vrot.slane %v1308, 4
          %v1360 = vsel %vm1273, %v1320, %v1359
          %v1362 = vunpack.c.l.s4 1934713408
          %v1363 = vunpack.c.0.s8 %v1362
          %v1364 = vperm.slane %v1358, %v1363
          %v1366 = vunpack.c.l.s4 1934713408
          %v1367 = vunpack.c.0.s8 %v1366
          %v1368 = vperm.slane %v1360, %v1367
          %v1369 = vrot.slane %v1352, 4
          %v1370 = vsel %vm1273, %v1369, %v1328
          %v1371 = vrot.slane %v1328, 4
          %v1372 = vsel %vm1273, %v1352, %v1371
          %v1373 = vrot.slane %v1356, 4
          %v1374 = vsel %vm1273, %v1373, %v1332
          %v1375 = vrot.slane %v1332, 4
          %v1376 = vsel %vm1273, %v1356, %v1375
          %v1377 = vrot.slane %v1364, 4
          %v1378 = vsel %vm1273, %v1377, %v1340
          %v1379 = vrot.slane %v1340, 4
          %v1380 = vsel %vm1273, %v1364, %v1379
          %v1381 = vrot.slane %v1368, 4
          %v1382 = vsel %vm1273, %v1381, %v1344
          %v1383 = vrot.slane %v1344, 4
          %v1384 = vsel %vm1273, %v1368, %v1383
          %v1385 = vrot.slane %v1189, 4
          %v1386 = vsel %vm1273, %v1385, %v1177
          %v1387 = vrot.slane %v1177, 4
          %v1388 = vsel %vm1273, %v1189, %v1387
          %v1390 = vunpack.c.l.s4 1983009808
          %v1391 = vunpack.c.0.s8 %v1390
          %v1392 = vperm.slane %v1386, %v1391
          %v1394 = vunpack.c.l.s4 1983009808
          %v1395 = vunpack.c.0.s8 %v1394
          %v1396 = vperm.slane %v1388, %v1395
          %v1397 = vrot.slane %v1195, 4
          %v1398 = vsel %vm1273, %v1397, %v1183
          %v1399 = vrot.slane %v1183, 4
          %v1400 = vsel %vm1273, %v1195, %v1399
          %v1402 = vunpack.c.l.s4 1983009808
          %v1403 = vunpack.c.0.s8 %v1402
          %v1404 = vperm.slane %v1398, %v1403
          %v1406 = vunpack.c.l.s4 1983009808
          %v1407 = vunpack.c.0.s8 %v1406
          %v1408 = vperm.slane %v1400, %v1407
          %v1409 = vrot.slane %v1213, 4
          %v1410 = vsel %vm1273, %v1409, %v1201
          %v1411 = vrot.slane %v1201, 4
          %v1412 = vsel %vm1273, %v1213, %v1411
          %v1414 = vunpack.c.l.s4 1983009808
          %v1415 = vunpack.c.0.s8 %v1414
          %v1416 = vperm.slane %v1410, %v1415
          %v1418 = vunpack.c.l.s4 1983009808
          %v1419 = vunpack.c.0.s8 %v1418
          %v1420 = vperm.slane %v1412, %v1419
          %v1421 = vrot.slane %v1219, 4
          %v1422 = vsel %vm1273, %v1421, %v1207
          %v1423 = vrot.slane %v1207, 4
          %v1424 = vsel %vm1273, %v1219, %v1423
          %v1426 = vunpack.c.l.s4 1983009808
          %v1427 = vunpack.c.0.s8 %v1426
          %v1428 = vperm.slane %v1422, %v1427
          %v1430 = vunpack.c.l.s4 1983009808
          %v1431 = vunpack.c.0.s8 %v1430
          %v1432 = vperm.slane %v1424, %v1431
          %v1433 = vrot.slane %v1404, 4
          %v1434 = vsel %vm1273, %v1433, %v1392
          %v1435 = vrot.slane %v1392, 4
          %v1436 = vsel %vm1273, %v1404, %v1435
          %v1438 = vunpack.c.l.s4 1934713408
          %v1439 = vunpack.c.0.s8 %v1438
          %v1440 = vperm.slane %v1434, %v1439
          %v1442 = vunpack.c.l.s4 1934713408
          %v1443 = vunpack.c.0.s8 %v1442
          %v1444 = vperm.slane %v1436, %v1443
          %v1445 = vrot.slane %v1408, 4
          %v1446 = vsel %vm1273, %v1445, %v1396
          %v1447 = vrot.slane %v1396, 4
          %v1448 = vsel %vm1273, %v1408, %v1447
          %v1450 = vunpack.c.l.s4 1934713408
          %v1451 = vunpack.c.0.s8 %v1450
          %v1452 = vperm.slane %v1446, %v1451
          %v1454 = vunpack.c.l.s4 1934713408
          %v1455 = vunpack.c.0.s8 %v1454
          %v1456 = vperm.slane %v1448, %v1455
          %v1457 = vrot.slane %v1428, 4
          %v1458 = vsel %vm1273, %v1457, %v1416
          %v1459 = vrot.slane %v1416, 4
          %v1460 = vsel %vm1273, %v1428, %v1459
          %v1462 = vunpack.c.l.s4 1934713408
          %v1463 = vunpack.c.0.s8 %v1462
          %v1464 = vperm.slane %v1458, %v1463
          %v1466 = vunpack.c.l.s4 1934713408
          %v1467 = vunpack.c.0.s8 %v1466
          %v1468 = vperm.slane %v1460, %v1467
          %v1469 = vrot.slane %v1432, 4
          %v1470 = vsel %vm1273, %v1469, %v1420
          %v1471 = vrot.slane %v1420, 4
          %v1472 = vsel %vm1273, %v1432, %v1471
          %v1474 = vunpack.c.l.s4 1934713408
          %v1475 = vunpack.c.0.s8 %v1474
          %v1476 = vperm.slane %v1470, %v1475
          %v1478 = vunpack.c.l.s4 1934713408
          %v1479 = vunpack.c.0.s8 %v1478
          %v1480 = vperm.slane %v1472, %v1479
          %v1481 = vrot.slane %v1464, 4
          %v1482 = vsel %vm1273, %v1481, %v1440
          %v1483 = vrot.slane %v1440, 4
          %v1484 = vsel %vm1273, %v1464, %v1483
          %v1485 = vrot.slane %v1468, 4
          %v1486 = vsel %vm1273, %v1485, %v1444
          %v1487 = vrot.slane %v1444, 4
          %v1488 = vsel %vm1273, %v1468, %v1487
          %v1489 = vrot.slane %v1476, 4
          %v1490 = vsel %vm1273, %v1489, %v1452
          %v1491 = vrot.slane %v1452, 4
          %v1492 = vsel %vm1273, %v1476, %v1491
          %v1493 = vrot.slane %v1480, 4
          %v1494 = vsel %vm1273, %v1493, %v1456
          %v1495 = vrot.slane %v1456, 4
          %v1496 = vsel %vm1273, %v1480, %v1495
          %v1497 = vrot.slane %v1143, 4
          %v1498 = vsel %vm1273, %v1497, %v1131
          %v1499 = vrot.slane %v1131, 4
          %v1500 = vsel %vm1273, %v1143, %v1499
          %v1502 = vunpack.c.l.s4 1983009808
          %v1503 = vunpack.c.0.s8 %v1502
          %v1504 = vperm.slane %v1498, %v1503
          %v1506 = vunpack.c.l.s4 1983009808
          %v1507 = vunpack.c.0.s8 %v1506
          %v1508 = vperm.slane %v1500, %v1507
          %v1509 = vrot.slane %v1149, 4
          %v1510 = vsel %vm1273, %v1509, %v1137
          %v1511 = vrot.slane %v1137, 4
          %v1512 = vsel %vm1273, %v1149, %v1511
          %v1514 = vunpack.c.l.s4 1983009808
          %v1515 = vunpack.c.0.s8 %v1514
          %v1516 = vperm.slane %v1510, %v1515
          %v1518 = vunpack.c.l.s4 1983009808
          %v1519 = vunpack.c.0.s8 %v1518
          %v1520 = vperm.slane %v1512, %v1519
          %v1521 = vrot.slane %v1167, 4
          %v1522 = vsel %vm1273, %v1521, %v1155
          %v1523 = vrot.slane %v1155, 4
          %v1524 = vsel %vm1273, %v1167, %v1523
          %v1526 = vunpack.c.l.s4 1983009808
          %v1527 = vunpack.c.0.s8 %v1526
          %v1528 = vperm.slane %v1522, %v1527
          %v1530 = vunpack.c.l.s4 1983009808
          %v1531 = vunpack.c.0.s8 %v1530
          %v1532 = vperm.slane %v1524, %v1531
          %v1533 = vrot.slane %v1173, 4
          %v1534 = vsel %vm1273, %v1533, %v1161
          %v1535 = vrot.slane %v1161, 4
          %v1536 = vsel %vm1273, %v1173, %v1535
          %v1538 = vunpack.c.l.s4 1983009808
          %v1539 = vunpack.c.0.s8 %v1538
          %v1540 = vperm.slane %v1534, %v1539
          %v1542 = vunpack.c.l.s4 1983009808
          %v1543 = vunpack.c.0.s8 %v1542
          %v1544 = vperm.slane %v1536, %v1543
          %v1545 = vrot.slane %v1516, 4
          %v1546 = vsel %vm1273, %v1545, %v1504
          %v1547 = vrot.slane %v1504, 4
          %v1548 = vsel %vm1273, %v1516, %v1547
          %v1550 = vunpack.c.l.s4 1934713408
          %v1551 = vunpack.c.0.s8 %v1550
          %v1552 = vperm.slane %v1546, %v1551
          %v1554 = vunpack.c.l.s4 1934713408
          %v1555 = vunpack.c.0.s8 %v1554
          %v1556 = vperm.slane %v1548, %v1555
          %v1557 = vrot.slane %v1520, 4
          %v1558 = vsel %vm1273, %v1557, %v1508
          %v1559 = vrot.slane %v1508, 4
          %v1560 = vsel %vm1273, %v1520, %v1559
          %v1562 = vunpack.c.l.s4 1934713408
          %v1563 = vunpack.c.0.s8 %v1562
          %v1564 = vperm.slane %v1558, %v1563
          %v1566 = vunpack.c.l.s4 1934713408
          %v1567 = vunpack.c.0.s8 %v1566
          %v1568 = vperm.slane %v1560, %v1567
          %v1569 = vrot.slane %v1540, 4
          %v1570 = vsel %vm1273, %v1569, %v1528
          %v1571 = vrot.slane %v1528, 4
          %v1572 = vsel %vm1273, %v1540, %v1571
          %v1574 = vunpack.c.l.s4 1934713408
          %v1575 = vunpack.c.0.s8 %v1574
          %v1576 = vperm.slane %v1570, %v1575
          %v1578 = vunpack.c.l.s4 1934713408
          %v1579 = vunpack.c.0.s8 %v1578
          %v1580 = vperm.slane %v1572, %v1579
          %v1581 = vrot.slane %v1544, 4
          %v1582 = vsel %vm1273, %v1581, %v1532
          %v1583 = vrot.slane %v1532, 4
          %v1584 = vsel %vm1273, %v1544, %v1583
          %v1586 = vunpack.c.l.s4 1934713408
          %v1587 = vunpack.c.0.s8 %v1586
          %v1588 = vperm.slane %v1582, %v1587
          %v1590 = vunpack.c.l.s4 1934713408
          %v1591 = vunpack.c.0.s8 %v1590
          %v1592 = vperm.slane %v1584, %v1591
          %v1593 = vrot.slane %v1576, 4
          %v1594 = vsel %vm1273, %v1593, %v1552
          %v1595 = vrot.slane %v1552, 4
          %v1596 = vsel %vm1273, %v1576, %v1595
          %v1597 = vrot.slane %v1580, 4
          %v1598 = vsel %vm1273, %v1597, %v1556
          %v1599 = vrot.slane %v1556, 4
          %v1600 = vsel %vm1273, %v1580, %v1599
          %v1601 = vrot.slane %v1588, 4
          %v1602 = vsel %vm1273, %v1601, %v1564
          %v1603 = vrot.slane %v1564, 4
          %v1604 = vsel %vm1273, %v1588, %v1603
          %v1605 = vrot.slane %v1592, 4
          %v1606 = vsel %vm1273, %v1605, %v1568
          %v1607 = vrot.slane %v1568, 4
          %v1608 = vsel %vm1273, %v1592, %v1607
          %v1609 = vrot.slane %v1191, 4
          %v1610 = vsel %vm1273, %v1609, %v1179
          %v1611 = vrot.slane %v1179, 4
          %v1612 = vsel %vm1273, %v1191, %v1611
          %v1614 = vunpack.c.l.s4 1983009808
          %v1615 = vunpack.c.0.s8 %v1614
          %v1616 = vperm.slane %v1610, %v1615
          %v1618 = vunpack.c.l.s4 1983009808
          %v1619 = vunpack.c.0.s8 %v1618
          %v1620 = vperm.slane %v1612, %v1619
          %v1621 = vrot.slane %v1197, 4
          %v1622 = vsel %vm1273, %v1621, %v1185
          %v1623 = vrot.slane %v1185, 4
          %v1624 = vsel %vm1273, %v1197, %v1623
          %v1626 = vunpack.c.l.s4 1983009808
          %v1627 = vunpack.c.0.s8 %v1626
          %v1628 = vperm.slane %v1622, %v1627
          %v1630 = vunpack.c.l.s4 1983009808
          %v1631 = vunpack.c.0.s8 %v1630
          %v1632 = vperm.slane %v1624, %v1631
          %v1633 = vrot.slane %v1215, 4
          %v1634 = vsel %vm1273, %v1633, %v1203
          %v1635 = vrot.slane %v1203, 4
          %v1636 = vsel %vm1273, %v1215, %v1635
          %v1638 = vunpack.c.l.s4 1983009808
          %v1639 = vunpack.c.0.s8 %v1638
          %v1640 = vperm.slane %v1634, %v1639
          %v1642 = vunpack.c.l.s4 1983009808
          %v1643 = vunpack.c.0.s8 %v1642
          %v1644 = vperm.slane %v1636, %v1643
          %v1645 = vrot.slane %v1221, 4
          %v1646 = vsel %vm1273, %v1645, %v1209
          %v1647 = vrot.slane %v1209, 4
          %v1648 = vsel %vm1273, %v1221, %v1647
          %v1650 = vunpack.c.l.s4 1983009808
          %v1651 = vunpack.c.0.s8 %v1650
          %v1652 = vperm.slane %v1646, %v1651
          %v1654 = vunpack.c.l.s4 1983009808
          %v1655 = vunpack.c.0.s8 %v1654
          %v1656 = vperm.slane %v1648, %v1655
          %v1657 = vrot.slane %v1628, 4
          %v1658 = vsel %vm1273, %v1657, %v1616
          %v1659 = vrot.slane %v1616, 4
          %v1660 = vsel %vm1273, %v1628, %v1659
          %v1662 = vunpack.c.l.s4 1934713408
          %v1663 = vunpack.c.0.s8 %v1662
          %v1664 = vperm.slane %v1658, %v1663
          %v1666 = vunpack.c.l.s4 1934713408
          %v1667 = vunpack.c.0.s8 %v1666
          %v1668 = vperm.slane %v1660, %v1667
          %v1669 = vrot.slane %v1632, 4
          %v1670 = vsel %vm1273, %v1669, %v1620
          %v1671 = vrot.slane %v1620, 4
          %v1672 = vsel %vm1273, %v1632, %v1671
          %v1674 = vunpack.c.l.s4 1934713408
          %v1675 = vunpack.c.0.s8 %v1674
          %v1676 = vperm.slane %v1670, %v1675
          %v1678 = vunpack.c.l.s4 1934713408
          %v1679 = vunpack.c.0.s8 %v1678
          %v1680 = vperm.slane %v1672, %v1679
          %v1681 = vrot.slane %v1652, 4
          %v1682 = vsel %vm1273, %v1681, %v1640
          %v1683 = vrot.slane %v1640, 4
          %v1684 = vsel %vm1273, %v1652, %v1683
          %v1686 = vunpack.c.l.s4 1934713408
          %v1687 = vunpack.c.0.s8 %v1686
          %v1688 = vperm.slane %v1682, %v1687
          %v1690 = vunpack.c.l.s4 1934713408
          %v1691 = vunpack.c.0.s8 %v1690
          %v1692 = vperm.slane %v1684, %v1691
          %v1693 = vrot.slane %v1656, 4
          %v1694 = vsel %vm1273, %v1693, %v1644
          %v1695 = vrot.slane %v1644, 4
          %v1696 = vsel %vm1273, %v1656, %v1695
          %v1698 = vunpack.c.l.s4 1934713408
          %v1699 = vunpack.c.0.s8 %v1698
          %v1700 = vperm.slane %v1694, %v1699
          %v1702 = vunpack.c.l.s4 1934713408
          %v1703 = vunpack.c.0.s8 %v1702
          %v1704 = vperm.slane %v1696, %v1703
          %v1705 = vrot.slane %v1688, 4
          %v1706 = vsel %vm1273, %v1705, %v1664
          %v1707 = vrot.slane %v1664, 4
          %v1708 = vsel %vm1273, %v1688, %v1707
          %v1709 = vrot.slane %v1692, 4
          %v1710 = vsel %vm1273, %v1709, %v1668
          %v1711 = vrot.slane %v1668, 4
          %v1712 = vsel %vm1273, %v1692, %v1711
          %v1713 = vrot.slane %v1700, 4
          %v1714 = vsel %vm1273, %v1713, %v1676
          %v1715 = vrot.slane %v1676, 4
          %v1716 = vsel %vm1273, %v1700, %v1715
          %v1717 = vrot.slane %v1704, 4
          %v1718 = vsel %vm1273, %v1717, %v1680
          %v1719 = vrot.slane %v1680, 4
          %v1720 = vsel %vm1273, %v1704, %v1719
          %v1721 = vrot.slane %v1145, 4
          %v1722 = vsel %vm1273, %v1721, %v1133
          %v1723 = vrot.slane %v1133, 4
          %v1724 = vsel %vm1273, %v1145, %v1723
          %v1726 = vunpack.c.l.s4 1983009808
          %v1727 = vunpack.c.0.s8 %v1726
          %v1728 = vperm.slane %v1722, %v1727
          %v1730 = vunpack.c.l.s4 1983009808
          %v1731 = vunpack.c.0.s8 %v1730
          %v1732 = vperm.slane %v1724, %v1731
          %v1733 = vrot.slane %v1151, 4
          %v1734 = vsel %vm1273, %v1733, %v1139
          %v1735 = vrot.slane %v1139, 4
          %v1736 = vsel %vm1273, %v1151, %v1735
          %v1738 = vunpack.c.l.s4 1983009808
          %v1739 = vunpack.c.0.s8 %v1738
          %v1740 = vperm.slane %v1734, %v1739
          %v1742 = vunpack.c.l.s4 1983009808
          %v1743 = vunpack.c.0.s8 %v1742
          %v1744 = vperm.slane %v1736, %v1743
          %v1745 = vrot.slane %v1169, 4
          %v1746 = vsel %vm1273, %v1745, %v1157
          %v1747 = vrot.slane %v1157, 4
          %v1748 = vsel %vm1273, %v1169, %v1747
          %v1750 = vunpack.c.l.s4 1983009808
          %v1751 = vunpack.c.0.s8 %v1750
          %v1752 = vperm.slane %v1746, %v1751
          %v1754 = vunpack.c.l.s4 1983009808
          %v1755 = vunpack.c.0.s8 %v1754
          %v1756 = vperm.slane %v1748, %v1755
          %v1757 = vrot.slane %v1175, 4
          %v1758 = vsel %vm1273, %v1757, %v1163
          %v1759 = vrot.slane %v1163, 4
          %v1760 = vsel %vm1273, %v1175, %v1759
          %v1762 = vunpack.c.l.s4 1983009808
          %v1763 = vunpack.c.0.s8 %v1762
          %v1764 = vperm.slane %v1758, %v1763
          %v1766 = vunpack.c.l.s4 1983009808
          %v1767 = vunpack.c.0.s8 %v1766
          %v1768 = vperm.slane %v1760, %v1767
          %v1769 = vrot.slane %v1740, 4
          %v1770 = vsel %vm1273, %v1769, %v1728
          %v1771 = vrot.slane %v1728, 4
          %v1772 = vsel %vm1273, %v1740, %v1771
          %v1774 = vunpack.c.l.s4 1934713408
          %v1775 = vunpack.c.0.s8 %v1774
          %v1776 = vperm.slane %v1770, %v1775
          %v1778 = vunpack.c.l.s4 1934713408
          %v1779 = vunpack.c.0.s8 %v1778
          %v1780 = vperm.slane %v1772, %v1779
          %v1781 = vrot.slane %v1744, 4
          %v1782 = vsel %vm1273, %v1781, %v1732
          %v1783 = vrot.slane %v1732, 4
          %v1784 = vsel %vm1273, %v1744, %v1783
          %v1786 = vunpack.c.l.s4 1934713408
          %v1787 = vunpack.c.0.s8 %v1786
          %v1788 = vperm.slane %v1782, %v1787
          %v1790 = vunpack.c.l.s4 1934713408
          %v1791 = vunpack.c.0.s8 %v1790
          %v1792 = vperm.slane %v1784, %v1791
          %v1793 = vrot.slane %v1764, 4
          %v1794 = vsel %vm1273, %v1793, %v1752
          %v1795 = vrot.slane %v1752, 4
          %v1796 = vsel %vm1273, %v1764, %v1795
          %v1798 = vunpack.c.l.s4 1934713408
          %v1799 = vunpack.c.0.s8 %v1798
          %v1800 = vperm.slane %v1794, %v1799
          %v1802 = vunpack.c.l.s4 1934713408
          %v1803 = vunpack.c.0.s8 %v1802
          %v1804 = vperm.slane %v1796, %v1803
          %v1805 = vrot.slane %v1768, 4
          %v1806 = vsel %vm1273, %v1805, %v1756
          %v1807 = vrot.slane %v1756, 4
          %v1808 = vsel %vm1273, %v1768, %v1807
          %v1810 = vunpack.c.l.s4 1934713408
          %v1811 = vunpack.c.0.s8 %v1810
          %v1812 = vperm.slane %v1806, %v1811
          %v1814 = vunpack.c.l.s4 1934713408
          %v1815 = vunpack.c.0.s8 %v1814
          %v1816 = vperm.slane %v1808, %v1815
          %v1817 = vrot.slane %v1800, 4
          %v1818 = vsel %vm1273, %v1817, %v1776
          %v1819 = vrot.slane %v1776, 4
          %v1820 = vsel %vm1273, %v1800, %v1819
          %v1821 = vrot.slane %v1804, 4
          %v1822 = vsel %vm1273, %v1821, %v1780
          %v1823 = vrot.slane %v1780, 4
          %v1824 = vsel %vm1273, %v1804, %v1823
          %v1825 = vrot.slane %v1812, 4
          %v1826 = vsel %vm1273, %v1825, %v1788
          %v1827 = vrot.slane %v1788, 4
          %v1828 = vsel %vm1273, %v1812, %v1827
          %v1829 = vrot.slane %v1816, 4
          %v1830 = vsel %vm1273, %v1829, %v1792
          %v1831 = vrot.slane %v1792, 4
          %v1832 = vsel %vm1273, %v1816, %v1831
          %v1833 = vrot.slane %v1193, 4
          %v1834 = vsel %vm1273, %v1833, %v1181
          %v1835 = vrot.slane %v1181, 4
          %v1836 = vsel %vm1273, %v1193, %v1835
          %v1838 = vunpack.c.l.s4 1983009808
          %v1839 = vunpack.c.0.s8 %v1838
          %v1840 = vperm.slane %v1834, %v1839
          %v1842 = vunpack.c.l.s4 1983009808
          %v1843 = vunpack.c.0.s8 %v1842
          %v1844 = vperm.slane %v1836, %v1843
          %v1845 = vrot.slane %v1199, 4
          %v1846 = vsel %vm1273, %v1845, %v1187
          %v1847 = vrot.slane %v1187, 4
          %v1848 = vsel %vm1273, %v1199, %v1847
          %v1850 = vunpack.c.l.s4 1983009808
          %v1851 = vunpack.c.0.s8 %v1850
          %v1852 = vperm.slane %v1846, %v1851
          %v1854 = vunpack.c.l.s4 1983009808
          %v1855 = vunpack.c.0.s8 %v1854
          %v1856 = vperm.slane %v1848, %v1855
          %v1857 = vrot.slane %v1217, 4
          %v1858 = vsel %vm1273, %v1857, %v1205
          %v1859 = vrot.slane %v1205, 4
          %v1860 = vsel %vm1273, %v1217, %v1859
          %v1862 = vunpack.c.l.s4 1983009808
          %v1863 = vunpack.c.0.s8 %v1862
          %v1864 = vperm.slane %v1858, %v1863
          %v1866 = vunpack.c.l.s4 1983009808
          %v1867 = vunpack.c.0.s8 %v1866
          %v1868 = vperm.slane %v1860, %v1867
          %v1869 = vrot.slane %v1223, 4
          %v1870 = vsel %vm1273, %v1869, %v1211
          %v1871 = vrot.slane %v1211, 4
          %v1872 = vsel %vm1273, %v1223, %v1871
          %v1874 = vunpack.c.l.s4 1983009808
          %v1875 = vunpack.c.0.s8 %v1874
          %v1876 = vperm.slane %v1870, %v1875
          %v1878 = vunpack.c.l.s4 1983009808
          %v1879 = vunpack.c.0.s8 %v1878
          %v1880 = vperm.slane %v1872, %v1879
          %v1881 = vrot.slane %v1852, 4
          %v1882 = vsel %vm1273, %v1881, %v1840
          %v1883 = vrot.slane %v1840, 4
          %v1884 = vsel %vm1273, %v1852, %v1883
          %v1886 = vunpack.c.l.s4 1934713408
          %v1887 = vunpack.c.0.s8 %v1886
          %v1888 = vperm.slane %v1882, %v1887
          %v1890 = vunpack.c.l.s4 1934713408
          %v1891 = vunpack.c.0.s8 %v1890
          %v1892 = vperm.slane %v1884, %v1891
          %v1893 = vrot.slane %v1856, 4
          %v1894 = vsel %vm1273, %v1893, %v1844
          %v1895 = vrot.slane %v1844, 4
          %v1896 = vsel %vm1273, %v1856, %v1895
          %v1898 = vunpack.c.l.s4 1934713408
          %v1899 = vunpack.c.0.s8 %v1898
          %v1900 = vperm.slane %v1894, %v1899
          %v1902 = vunpack.c.l.s4 1934713408
          %v1903 = vunpack.c.0.s8 %v1902
          %v1904 = vperm.slane %v1896, %v1903
          %v1905 = vrot.slane %v1876, 4
          %v1906 = vsel %vm1273, %v1905, %v1864
          %v1907 = vrot.slane %v1864, 4
          %v1908 = vsel %vm1273, %v1876, %v1907
          %v1910 = vunpack.c.l.s4 1934713408
          %v1911 = vunpack.c.0.s8 %v1910
          %v1912 = vperm.slane %v1906, %v1911
          %v1914 = vunpack.c.l.s4 1934713408
          %v1915 = vunpack.c.0.s8 %v1914
          %v1916 = vperm.slane %v1908, %v1915
          %v1917 = vrot.slane %v1880, 4
          %v1918 = vsel %vm1273, %v1917, %v1868
          %v1919 = vrot.slane %v1868, 4
          %v1920 = vsel %vm1273, %v1880, %v1919
          %v1922 = vunpack.c.l.s4 1934713408
          %v1923 = vunpack.c.0.s8 %v1922
          %v1924 = vperm.slane %v1918, %v1923
          %v1926 = vunpack.c.l.s4 1934713408
          %v1927 = vunpack.c.0.s8 %v1926
          %v1928 = vperm.slane %v1920, %v1927
          %v1929 = vrot.slane %v1912, 4
          %v1930 = vsel %vm1273, %v1929, %v1888
          %v1931 = vrot.slane %v1888, 4
          %v1932 = vsel %vm1273, %v1912, %v1931
          %v1933 = vrot.slane %v1916, 4
          %v1934 = vsel %vm1273, %v1933, %v1892
          %v1935 = vrot.slane %v1892, 4
          %v1936 = vsel %vm1273, %v1916, %v1935
          %v1937 = vrot.slane %v1924, 4
          %v1938 = vsel %vm1273, %v1937, %v1900
          %v1939 = vrot.slane %v1900, 4
          %v1940 = vsel %vm1273, %v1924, %v1939
          %v1941 = vrot.slane %v1928, 4
          %v1942 = vsel %vm1273, %v1941, %v1904
          %v1943 = vrot.slane %v1904, 4
          %v1944 = vsel %vm1273, %v1928, %v1943
          %v1945 = vpack.c.bf16 %v1370, %v1370
          %v1946 = vpack.c.bf16 %v1482, %v1482
          %v1947 = vpack.c.bf16 %v1372, %v1372
          %v1948 = vpack.c.bf16 %v1484, %v1484
          %v1949 = vpack.c.bf16 %v1374, %v1374
          %v1950 = vpack.c.bf16 %v1486, %v1486
          %v1951 = vpack.c.bf16 %v1376, %v1376
          %v1952 = vpack.c.bf16 %v1488, %v1488
          %v1953 = vpack.c.bf16 %v1378, %v1378
          %v1954 = vpack.c.bf16 %v1490, %v1490
          %v1955 = vpack.c.bf16 %v1380, %v1380
          %v1956 = vpack.c.bf16 %v1492, %v1492
          %v1957 = vpack.c.bf16 %v1382, %v1382
          %v1958 = vpack.c.bf16 %v1494, %v1494
          %v1959 = vpack.c.bf16 %v1384, %v1384
          %v1960 = vpack.c.bf16 %v1496, %v1496
          %v1961 = vpack.c.bf16 %v1594, %v1594
          %v1962 = vpack.c.bf16 %v1706, %v1706
          %v1963 = vpack.c.bf16 %v1596, %v1596
          %v1964 = vpack.c.bf16 %v1708, %v1708
          %v1965 = vpack.c.bf16 %v1598, %v1598
          %v1966 = vpack.c.bf16 %v1710, %v1710
          %v1967 = vpack.c.bf16 %v1600, %v1600
          %v1968 = vpack.c.bf16 %v1712, %v1712
          %v1969 = vpack.c.bf16 %v1602, %v1602
          %v1970 = vpack.c.bf16 %v1714, %v1714
          %v1971 = vpack.c.bf16 %v1604, %v1604
          %v1972 = vpack.c.bf16 %v1716, %v1716
          %v1973 = vpack.c.bf16 %v1606, %v1606
          %v1974 = vpack.c.bf16 %v1718, %v1718
          %v1975 = vpack.c.bf16 %v1608, %v1608
          %v1976 = vpack.c.bf16 %v1720, %v1720
          %v1977 = vpack.c.bf16 %v1818, %v1818
          %v1978 = vpack.c.bf16 %v1930, %v1930
          %v1979 = vpack.c.bf16 %v1820, %v1820
          %v1980 = vpack.c.bf16 %v1932, %v1932
          %v1981 = vpack.c.bf16 %v1822, %v1822
          %v1982 = vpack.c.bf16 %v1934, %v1934
          %v1983 = vpack.c.bf16 %v1824, %v1824
          %v1984 = vpack.c.bf16 %v1936, %v1936
          %v1985 = vpack.c.bf16 %v1826, %v1826
          %v1986 = vpack.c.bf16 %v1938, %v1938
          %v1987 = vpack.c.bf16 %v1828, %v1828
          %v1988 = vpack.c.bf16 %v1940, %v1940
          %v1989 = vpack.c.bf16 %v1830, %v1830
          %v1990 = vpack.c.bf16 %v1942, %v1942
          %v1991 = vpack.c.bf16 %v1832, %v1832
          %v1992 = vpack.c.bf16 %v1944, %v1944
          %1993 = vst.msk [vmem:[#allocation5] sm:$0xf] %vm598, %v1945
          %1994 = vst.msk [vmem:[#allocation5 + $0x4] sm:$0xf] %vm598, %v1946
          %1995 = vst.msk [vmem:[#allocation5 + $0x8] sm:$0xf] %vm598, %v1947
          %1996 = vst.msk [vmem:[#allocation5 + $0xc] sm:$0xf] %vm598, %v1948
          %1997 = vst.msk [vmem:[#allocation5 + $0x10] sm:$0xf] %vm598, %v1949
          %1998 = vst.msk [vmem:[#allocation5 + $0x14] sm:$0xf] %vm598, %v1950
          %1999 = vst.msk [vmem:[#allocation5 + $0x18] sm:$0xf] %vm598, %v1951
          %2000 = vst.msk [vmem:[#allocation5 + $0x1c] sm:$0xf] %vm598, %v1952
          %2001 = vst.msk [vmem:[#allocation5 + $0x20] sm:$0xf] %vm598, %v1953
          %2002 = vst.msk [vmem:[#allocation5 + $0x24] sm:$0xf] %vm598, %v1954
          %2003 = vst.msk [vmem:[#allocation5 + $0x28] sm:$0xf] %vm598, %v1955
          %2004 = vst.msk [vmem:[#allocation5 + $0x2c] sm:$0xf] %vm598, %v1956
          %2005 = vst.msk [vmem:[#allocation5 + $0x30] sm:$0xf] %vm598, %v1957
          %2006 = vst.msk [vmem:[#allocation5 + $0x34] sm:$0xf] %vm598, %v1958
          %2007 = vst.msk [vmem:[#allocation5 + $0x38] sm:$0xf] %vm598, %v1959
          %2008 = vst.msk [vmem:[#allocation5 + $0x3c] sm:$0xf] %vm598, %v1960
          %2009 = vst.msk [vmem:[#allocation5 + $0x40] sm:$0xf] %vm598, %v1961
          %2010 = vst.msk [vmem:[#allocation5 + $0x44] sm:$0xf] %vm598, %v1962
          %2011 = vst.msk [vmem:[#allocation5 + $0x48] sm:$0xf] %vm598, %v1963
          %2012 = vst.msk [vmem:[#allocation5 + $0x4c] sm:$0xf] %vm598, %v1964
          %2013 = vst.msk [vmem:[#allocation5 + $0x50] sm:$0xf] %vm598, %v1965
          %2014 = vst.msk [vmem:[#allocation5 + $0x54] sm:$0xf] %vm598, %v1966
          %2015 = vst.msk [vmem:[#allocation5 + $0x58] sm:$0xf] %vm598, %v1967
          %2016 = vst.msk [vmem:[#allocation5 + $0x5c] sm:$0xf] %vm598, %v1968
          %2017 = vst.msk [vmem:[#allocation5 + $0x60] sm:$0xf] %vm598, %v1969
          %2018 = vst.msk [vmem:[#allocation5 + $0x64] sm:$0xf] %vm598, %v1970
          %2019 = vst.msk [vmem:[#allocation5 + $0x68] sm:$0xf] %vm598, %v1971
          %2020 = vst.msk [vmem:[#allocation5 + $0x6c] sm:$0xf] %vm598, %v1972
          %2021 = vst.msk [vmem:[#allocation5 + $0x70] sm:$0xf] %vm598, %v1973
          %2022 = vst.msk [vmem:[#allocation5 + $0x74] sm:$0xf] %vm598, %v1974
          %2023 = vst.msk [vmem:[#allocation5 + $0x78] sm:$0xf] %vm598, %v1975
          %2024 = vst.msk [vmem:[#allocation5 + $0x7c] sm:$0xf] %vm598, %v1976
          %2025 = vst.msk [vmem:[#allocation5 + $0x80] sm:$0xf] %vm598, %v1977
          %2026 = vst.msk [vmem:[#allocation5 + $0x84] sm:$0xf] %vm598, %v1978
          %2027 = vst.msk [vmem:[#allocation5 + $0x88] sm:$0xf] %vm598, %v1979
          %2028 = vst.msk [vmem:[#allocation5 + $0x8c] sm:$0xf] %vm598, %v1980
          %2029 = vst.msk [vmem:[#allocation5 + $0x90] sm:$0xf] %vm598, %v1981
          %2030 = vst.msk [vmem:[#allocation5 + $0x94] sm:$0xf] %vm598, %v1982
          %2031 = vst.msk [vmem:[#allocation5 + $0x98] sm:$0xf] %vm598, %v1983
          %2032 = vst.msk [vmem:[#allocation5 + $0x9c] sm:$0xf] %vm598, %v1984
          %2033 = vst.msk [vmem:[#allocation5 + $0xa0] sm:$0xf] %vm598, %v1985
          %2034 = vst.msk [vmem:[#allocation5 + $0xa4] sm:$0xf] %vm598, %v1986
          %2035 = vst.msk [vmem:[#allocation5 + $0xa8] sm:$0xf] %vm598, %v1987
          %2036 = vst.msk [vmem:[#allocation5 + $0xac] sm:$0xf] %vm598, %v1988
          %2037 = vst.msk [vmem:[#allocation5 + $0xb0] sm:$0xf] %vm598, %v1989
          %2038 = vst.msk [vmem:[#allocation5 + $0xb4] sm:$0xf] %vm598, %v1990
          %2039 = vst.msk [vmem:[#allocation5 + $0xb8] sm:$0xf] %vm598, %v1991
          %2040 = vst.msk [vmem:[#allocation5 + $0xbc] sm:$0xf] %vm598, %v1992
          %2041 = vrot.lane.b32.xlu0 %v431, 120
          %v2042 = vpop.permute.xlu0 %2041
          %2043 = vrot.lane.b32.xlu0 %v433, 120
          %v2044 = vpop.permute.xlu0 %2043
          %2045 = vrot.lane.b32.xlu0 %v436, 120
          %v2046 = vpop.permute.xlu0 %2045
          %2047 = vrot.lane.b32.xlu0 %v438, 120
          %v2048 = vpop.permute.xlu0 %2047
          %2049 = vrot.lane.b32.xlu0 %v441, 120
          %v2050 = vpop.permute.xlu0 %2049
          %2051 = vrot.lane.b32.xlu0 %v443, 120
          %v2052 = vpop.permute.xlu0 %2051
          %2053 = vrot.lane.b32.xlu0 %v446, 120
          %v2054 = vpop.permute.xlu0 %2053
          %2055 = vrot.lane.b32.xlu0 %v448, 120
          %v2056 = vpop.permute.xlu0 %2055
          %2057 = vrot.lane.b32.xlu0 %v451, 120
          %v2058 = vpop.permute.xlu0 %2057
          %2059 = vrot.lane.b32.xlu0 %v453, 120
          %v2060 = vpop.permute.xlu0 %2059
          %2061 = vrot.lane.b32.xlu0 %v456, 120
          %v2062 = vpop.permute.xlu0 %2061
          %2063 = vrot.lane.b32.xlu0 %v458, 120
          %v2064 = vpop.permute.xlu0 %2063
          %2065 = vrot.lane.b32.xlu0 %v461, 120
          %v2066 = vpop.permute.xlu0 %2065
          %2067 = vrot.lane.b32.xlu0 %v463, 120
          %v2068 = vpop.permute.xlu0 %2067
          %2069 = vrot.lane.b32.xlu0 %v466, 120
          %v2070 = vpop.permute.xlu0 %2069
          %2071 = vrot.lane.b32.xlu0 %v468, 120
          %v2072 = vpop.permute.xlu0 %2071
          %2073 = vrot.lane.b32.xlu0 %v471, 120
          %v2074 = vpop.permute.xlu0 %2073
          %2075 = vrot.lane.b32.xlu0 %v473, 120
          %v2076 = vpop.permute.xlu0 %2075
          %2077 = vrot.lane.b32.xlu0 %v476, 120
          %v2078 = vpop.permute.xlu0 %2077
          %2079 = vrot.lane.b32.xlu0 %v478, 120
          %v2080 = vpop.permute.xlu0 %2079
          %2081 = vrot.lane.b32.xlu0 %v481, 120
          %v2082 = vpop.permute.xlu0 %2081
          %2083 = vrot.lane.b32.xlu0 %v483, 120
          %v2084 = vpop.permute.xlu0 %2083
          %2085 = vrot.lane.b32.xlu0 %v486, 120
          %v2086 = vpop.permute.xlu0 %2085
          %2087 = vrot.lane.b32.xlu0 %v488, 120
          %v2088 = vpop.permute.xlu0 %2087
          %2089 = vrot.lane.b32.xlu0 %v491, 120
          %v2090 = vpop.permute.xlu0 %2089
          %2091 = vrot.lane.b32.xlu0 %v493, 120
          %v2092 = vpop.permute.xlu0 %2091
          %2093 = vrot.lane.b32.xlu0 %v496, 120
          %v2094 = vpop.permute.xlu0 %2093
          %2095 = vrot.lane.b32.xlu0 %v498, 120
          %v2096 = vpop.permute.xlu0 %2095
          %2097 = vrot.lane.b32.xlu0 %v501, 120
          %v2098 = vpop.permute.xlu0 %2097
          %2099 = vrot.lane.b32.xlu0 %v503, 120
          %v2100 = vpop.permute.xlu0 %2099
          %2101 = vrot.lane.b32.xlu0 %v506, 120
          %v2102 = vpop.permute.xlu0 %2101
          %2103 = vrot.lane.b32.xlu0 %v508, 120
          %v2104 = vpop.permute.xlu0 %2103
          %2105 = vrot.lane.b32.xlu0 %v511, 120
          %v2106 = vpop.permute.xlu0 %2105
          %2107 = vrot.lane.b32.xlu0 %v513, 120
          %v2108 = vpop.permute.xlu0 %2107
          %2109 = vrot.lane.b32.xlu0 %v516, 120
          %v2110 = vpop.permute.xlu0 %2109
          %2111 = vrot.lane.b32.xlu0 %v518, 120
          %v2112 = vpop.permute.xlu0 %2111
          %2113 = vrot.lane.b32.xlu0 %v521, 120
          %v2114 = vpop.permute.xlu0 %2113
          %2115 = vrot.lane.b32.xlu0 %v523, 120
          %v2116 = vpop.permute.xlu0 %2115
          %2117 = vrot.lane.b32.xlu0 %v526, 120
          %v2118 = vpop.permute.xlu0 %2117
          %2119 = vrot.lane.b32.xlu0 %v528, 120
          %v2120 = vpop.permute.xlu0 %2119
          %2121 = vrot.lane.b32.xlu0 %v531, 120
          %v2122 = vpop.permute.xlu0 %2121
          %2123 = vrot.lane.b32.xlu0 %v533, 120
          %v2124 = vpop.permute.xlu0 %2123
          %2125 = vrot.lane.b32.xlu0 %v536, 120
          %v2126 = vpop.permute.xlu0 %2125
          %2127 = vrot.lane.b32.xlu0 %v538, 120
          %v2128 = vpop.permute.xlu0 %2127
          %2129 = vrot.lane.b32.xlu0 %v541, 120
          %v2130 = vpop.permute.xlu0 %2129
          %2131 = vrot.lane.b32.xlu0 %v543, 120
          %v2132 = vpop.permute.xlu0 %2131
          %2133 = vrot.lane.b32.xlu0 %v546, 120
          %v2134 = vpop.permute.xlu0 %2133
          %2135 = vrot.lane.b32.xlu0 %v548, 120
          %v2136 = vpop.permute.xlu0 %2135
          %v2185 = vrot.slane %v2054, 4
          %v2186 = vsel %vm1273, %v2185, %v2042
          %v2187 = vrot.slane %v2042, 4
          %v2188 = vsel %vm1273, %v2054, %v2187
          %v2190 = vunpack.c.l.s4 1983009808
          %v2191 = vunpack.c.0.s8 %v2190
          %v2192 = vperm.slane %v2186, %v2191
          %v2194 = vunpack.c.l.s4 1983009808
          %v2195 = vunpack.c.0.s8 %v2194
          %v2196 = vperm.slane %v2188, %v2195
          %v2197 = vrot.slane %v2060, 4
          %v2198 = vsel %vm1273, %v2197, %v2048
          %v2199 = vrot.slane %v2048, 4
          %v2200 = vsel %vm1273, %v2060, %v2199
          %v2202 = vunpack.c.l.s4 1983009808
          %v2203 = vunpack.c.0.s8 %v2202
          %v2204 = vperm.slane %v2198, %v2203
          %v2206 = vunpack.c.l.s4 1983009808
          %v2207 = vunpack.c.0.s8 %v2206
          %v2208 = vperm.slane %v2200, %v2207
          %v2209 = vrot.slane %v2078, 4
          %v2210 = vsel %vm1273, %v2209, %v2066
          %v2211 = vrot.slane %v2066, 4
          %v2212 = vsel %vm1273, %v2078, %v2211
          %v2214 = vunpack.c.l.s4 1983009808
          %v2215 = vunpack.c.0.s8 %v2214
          %v2216 = vperm.slane %v2210, %v2215
          %v2218 = vunpack.c.l.s4 1983009808
          %v2219 = vunpack.c.0.s8 %v2218
          %v2220 = vperm.slane %v2212, %v2219
          %v2221 = vrot.slane %v2084, 4
          %v2222 = vsel %vm1273, %v2221, %v2072
          %v2223 = vrot.slane %v2072, 4
          %v2224 = vsel %vm1273, %v2084, %v2223
          %v2226 = vunpack.c.l.s4 1983009808
          %v2227 = vunpack.c.0.s8 %v2226
          %v2228 = vperm.slane %v2222, %v2227
          %v2230 = vunpack.c.l.s4 1983009808
          %v2231 = vunpack.c.0.s8 %v2230
          %v2232 = vperm.slane %v2224, %v2231
          %v2233 = vrot.slane %v2204, 4
          %v2234 = vsel %vm1273, %v2233, %v2192
          %v2235 = vrot.slane %v2192, 4
          %v2236 = vsel %vm1273, %v2204, %v2235
          %v2238 = vunpack.c.l.s4 1934713408
          %v2239 = vunpack.c.0.s8 %v2238
          %v2240 = vperm.slane %v2234, %v2239
          %v2242 = vunpack.c.l.s4 1934713408
          %v2243 = vunpack.c.0.s8 %v2242
          %v2244 = vperm.slane %v2236, %v2243
          %v2245 = vrot.slane %v2208, 4
          %v2246 = vsel %vm1273, %v2245, %v2196
          %v2247 = vrot.slane %v2196, 4
          %v2248 = vsel %vm1273, %v2208, %v2247
          %v2250 = vunpack.c.l.s4 1934713408
          %v2251 = vunpack.c.0.s8 %v2250
          %v2252 = vperm.slane %v2246, %v2251
          %v2254 = vunpack.c.l.s4 1934713408
          %v2255 = vunpack.c.0.s8 %v2254
          %v2256 = vperm.slane %v2248, %v2255
          %v2257 = vrot.slane %v2228, 4
          %v2258 = vsel %vm1273, %v2257, %v2216
          %v2259 = vrot.slane %v2216, 4
          %v2260 = vsel %vm1273, %v2228, %v2259
          %v2262 = vunpack.c.l.s4 1934713408
          %v2263 = vunpack.c.0.s8 %v2262
          %v2264 = vperm.slane %v2258, %v2263
          %v2266 = vunpack.c.l.s4 1934713408
          %v2267 = vunpack.c.0.s8 %v2266
          %v2268 = vperm.slane %v2260, %v2267
          %v2269 = vrot.slane %v2232, 4
          %v2270 = vsel %vm1273, %v2269, %v2220
          %v2271 = vrot.slane %v2220, 4
          %v2272 = vsel %vm1273, %v2232, %v2271
          %v2274 = vunpack.c.l.s4 1934713408
          %v2275 = vunpack.c.0.s8 %v2274
          %v2276 = vperm.slane %v2270, %v2275
          %v2278 = vunpack.c.l.s4 1934713408
          %v2279 = vunpack.c.0.s8 %v2278
          %v2280 = vperm.slane %v2272, %v2279
          %v2281 = vrot.slane %v2264, 4
          %v2282 = vsel %vm1273, %v2281, %v2240
          %v2283 = vrot.slane %v2240, 4
          %v2284 = vsel %vm1273, %v2264, %v2283
          %v2285 = vrot.slane %v2268, 4
          %v2286 = vsel %vm1273, %v2285, %v2244
          %v2287 = vrot.slane %v2244, 4
          %v2288 = vsel %vm1273, %v2268, %v2287
          %v2289 = vrot.slane %v2276, 4
          %v2290 = vsel %vm1273, %v2289, %v2252
          %v2291 = vrot.slane %v2252, 4
          %v2292 = vsel %vm1273, %v2276, %v2291
          %v2293 = vrot.slane %v2280, 4
          %v2294 = vsel %vm1273, %v2293, %v2256
          %v2295 = vrot.slane %v2256, 4
          %v2296 = vsel %vm1273, %v2280, %v2295
          %v2297 = vrot.slane %v2102, 4
          %v2298 = vsel %vm1273, %v2297, %v2090
          %v2299 = vrot.slane %v2090, 4
          %v2300 = vsel %vm1273, %v2102, %v2299
          %v2302 = vunpack.c.l.s4 1983009808
          %v2303 = vunpack.c.0.s8 %v2302
          %v2304 = vperm.slane %v2298, %v2303
          %v2306 = vunpack.c.l.s4 1983009808
          %v2307 = vunpack.c.0.s8 %v2306
          %v2308 = vperm.slane %v2300, %v2307
          %v2309 = vrot.slane %v2108, 4
          %v2310 = vsel %vm1273, %v2309, %v2096
          %v2311 = vrot.slane %v2096, 4
          %v2312 = vsel %vm1273, %v2108, %v2311
          %v2314 = vunpack.c.l.s4 1983009808
          %v2315 = vunpack.c.0.s8 %v2314
          %v2316 = vperm.slane %v2310, %v2315
          %v2318 = vunpack.c.l.s4 1983009808
          %v2319 = vunpack.c.0.s8 %v2318
          %v2320 = vperm.slane %v2312, %v2319
          %v2321 = vrot.slane %v2126, 4
          %v2322 = vsel %vm1273, %v2321, %v2114
          %v2323 = vrot.slane %v2114, 4
          %v2324 = vsel %vm1273, %v2126, %v2323
          %v2326 = vunpack.c.l.s4 1983009808
          %v2327 = vunpack.c.0.s8 %v2326
          %v2328 = vperm.slane %v2322, %v2327
          %v2330 = vunpack.c.l.s4 1983009808
          %v2331 = vunpack.c.0.s8 %v2330
          %v2332 = vperm.slane %v2324, %v2331
          %v2333 = vrot.slane %v2132, 4
          %v2334 = vsel %vm1273, %v2333, %v2120
          %v2335 = vrot.slane %v2120, 4
          %v2336 = vsel %vm1273, %v2132, %v2335
          %v2338 = vunpack.c.l.s4 1983009808
          %v2339 = vunpack.c.0.s8 %v2338
          %v2340 = vperm.slane %v2334, %v2339
          %v2342 = vunpack.c.l.s4 1983009808
          %v2343 = vunpack.c.0.s8 %v2342
          %v2344 = vperm.slane %v2336, %v2343
          %v2345 = vrot.slane %v2316, 4
          %v2346 = vsel %vm1273, %v2345, %v2304
          %v2347 = vrot.slane %v2304, 4
          %v2348 = vsel %vm1273, %v2316, %v2347
          %v2350 = vunpack.c.l.s4 1934713408
          %v2351 = vunpack.c.0.s8 %v2350
          %v2352 = vperm.slane %v2346, %v2351
          %v2354 = vunpack.c.l.s4 1934713408
          %v2355 = vunpack.c.0.s8 %v2354
          %v2356 = vperm.slane %v2348, %v2355
          %v2357 = vrot.slane %v2320, 4
          %v2358 = vsel %vm1273, %v2357, %v2308
          %v2359 = vrot.slane %v2308, 4
          %v2360 = vsel %vm1273, %v2320, %v2359
          %v2362 = vunpack.c.l.s4 1934713408
          %v2363 = vunpack.c.0.s8 %v2362
          %v2364 = vperm.slane %v2358, %v2363
          %v2366 = vunpack.c.l.s4 1934713408
          %v2367 = vunpack.c.0.s8 %v2366
          %v2368 = vperm.slane %v2360, %v2367
          %v2369 = vrot.slane %v2340, 4
          %v2370 = vsel %vm1273, %v2369, %v2328
          %v2371 = vrot.slane %v2328, 4
          %v2372 = vsel %vm1273, %v2340, %v2371
          %v2374 = vunpack.c.l.s4 1934713408
          %v2375 = vunpack.c.0.s8 %v2374
          %v2376 = vperm.slane %v2370, %v2375
          %v2378 = vunpack.c.l.s4 1934713408
          %v2379 = vunpack.c.0.s8 %v2378
          %v2380 = vperm.slane %v2372, %v2379
          %v2381 = vrot.slane %v2344, 4
          %v2382 = vsel %vm1273, %v2381, %v2332
          %v2383 = vrot.slane %v2332, 4
          %v2384 = vsel %vm1273, %v2344, %v2383
          %v2386 = vunpack.c.l.s4 1934713408
          %v2387 = vunpack.c.0.s8 %v2386
          %v2388 = vperm.slane %v2382, %v2387
          %v2390 = vunpack.c.l.s4 1934713408
          %v2391 = vunpack.c.0.s8 %v2390
          %v2392 = vperm.slane %v2384, %v2391
          %v2393 = vrot.slane %v2376, 4
          %v2394 = vsel %vm1273, %v2393, %v2352
          %v2395 = vrot.slane %v2352, 4
          %v2396 = vsel %vm1273, %v2376, %v2395
          %v2397 = vrot.slane %v2380, 4
          %v2398 = vsel %vm1273, %v2397, %v2356
          %v2399 = vrot.slane %v2356, 4
          %v2400 = vsel %vm1273, %v2380, %v2399
          %v2401 = vrot.slane %v2388, 4
          %v2402 = vsel %vm1273, %v2401, %v2364
          %v2403 = vrot.slane %v2364, 4
          %v2404 = vsel %vm1273, %v2388, %v2403
          %v2405 = vrot.slane %v2392, 4
          %v2406 = vsel %vm1273, %v2405, %v2368
          %v2407 = vrot.slane %v2368, 4
          %v2408 = vsel %vm1273, %v2392, %v2407
          %v2409 = vrot.slane %v2056, 4
          %v2410 = vsel %vm1273, %v2409, %v2044
          %v2411 = vrot.slane %v2044, 4
          %v2412 = vsel %vm1273, %v2056, %v2411
          %v2414 = vunpack.c.l.s4 1983009808
          %v2415 = vunpack.c.0.s8 %v2414
          %v2416 = vperm.slane %v2410, %v2415
          %v2418 = vunpack.c.l.s4 1983009808
          %v2419 = vunpack.c.0.s8 %v2418
          %v2420 = vperm.slane %v2412, %v2419
          %v2421 = vrot.slane %v2062, 4
          %v2422 = vsel %vm1273, %v2421, %v2050
          %v2423 = vrot.slane %v2050, 4
          %v2424 = vsel %vm1273, %v2062, %v2423
          %v2426 = vunpack.c.l.s4 1983009808
          %v2427 = vunpack.c.0.s8 %v2426
          %v2428 = vperm.slane %v2422, %v2427
          %v2430 = vunpack.c.l.s4 1983009808
          %v2431 = vunpack.c.0.s8 %v2430
          %v2432 = vperm.slane %v2424, %v2431
          %v2433 = vrot.slane %v2080, 4
          %v2434 = vsel %vm1273, %v2433, %v2068
          %v2435 = vrot.slane %v2068, 4
          %v2436 = vsel %vm1273, %v2080, %v2435
          %v2438 = vunpack.c.l.s4 1983009808
          %v2439 = vunpack.c.0.s8 %v2438
          %v2440 = vperm.slane %v2434, %v2439
          %v2442 = vunpack.c.l.s4 1983009808
          %v2443 = vunpack.c.0.s8 %v2442
          %v2444 = vperm.slane %v2436, %v2443
          %v2445 = vrot.slane %v2086, 4
          %v2446 = vsel %vm1273, %v2445, %v2074
          %v2447 = vrot.slane %v2074, 4
          %v2448 = vsel %vm1273, %v2086, %v2447
          %v2450 = vunpack.c.l.s4 1983009808
          %v2451 = vunpack.c.0.s8 %v2450
          %v2452 = vperm.slane %v2446, %v2451
          %v2454 = vunpack.c.l.s4 1983009808
          %v2455 = vunpack.c.0.s8 %v2454
          %v2456 = vperm.slane %v2448, %v2455
          %v2457 = vrot.slane %v2428, 4
          %v2458 = vsel %vm1273, %v2457, %v2416
          %v2459 = vrot.slane %v2416, 4
          %v2460 = vsel %vm1273, %v2428, %v2459
          %v2462 = vunpack.c.l.s4 1934713408
          %v2463 = vunpack.c.0.s8 %v2462
          %v2464 = vperm.slane %v2458, %v2463
          %v2466 = vunpack.c.l.s4 1934713408
          %v2467 = vunpack.c.0.s8 %v2466
          %v2468 = vperm.slane %v2460, %v2467
          %v2469 = vrot.slane %v2432, 4
          %v2470 = vsel %vm1273, %v2469, %v2420
          %v2471 = vrot.slane %v2420, 4
          %v2472 = vsel %vm1273, %v2432, %v2471
          %v2474 = vunpack.c.l.s4 1934713408
          %v2475 = vunpack.c.0.s8 %v2474
          %v2476 = vperm.slane %v2470, %v2475
          %v2478 = vunpack.c.l.s4 1934713408
          %v2479 = vunpack.c.0.s8 %v2478
          %v2480 = vperm.slane %v2472, %v2479
          %v2481 = vrot.slane %v2452, 4
          %v2482 = vsel %vm1273, %v2481, %v2440
          %v2483 = vrot.slane %v2440, 4
          %v2484 = vsel %vm1273, %v2452, %v2483
          %v2486 = vunpack.c.l.s4 1934713408
          %v2487 = vunpack.c.0.s8 %v2486
          %v2488 = vperm.slane %v2482, %v2487
          %v2490 = vunpack.c.l.s4 1934713408
          %v2491 = vunpack.c.0.s8 %v2490
          %v2492 = vperm.slane %v2484, %v2491
          %v2493 = vrot.slane %v2456, 4
          %v2494 = vsel %vm1273, %v2493, %v2444
          %v2495 = vrot.slane %v2444, 4
          %v2496 = vsel %vm1273, %v2456, %v2495
          %v2498 = vunpack.c.l.s4 1934713408
          %v2499 = vunpack.c.0.s8 %v2498
          %v2500 = vperm.slane %v2494, %v2499
          %v2502 = vunpack.c.l.s4 1934713408
          %v2503 = vunpack.c.0.s8 %v2502
          %v2504 = vperm.slane %v2496, %v2503
          %v2505 = vrot.slane %v2488, 4
          %v2506 = vsel %vm1273, %v2505, %v2464
          %v2507 = vrot.slane %v2464, 4
          %v2508 = vsel %vm1273, %v2488, %v2507
          %v2509 = vrot.slane %v2492, 4
          %v2510 = vsel %vm1273, %v2509, %v2468
          %v2511 = vrot.slane %v2468, 4
          %v2512 = vsel %vm1273, %v2492, %v2511
          %v2513 = vrot.slane %v2500, 4
          %v2514 = vsel %vm1273, %v2513, %v2476
          %v2515 = vrot.slane %v2476, 4
          %v2516 = vsel %vm1273, %v2500, %v2515
          %v2517 = vrot.slane %v2504, 4
          %v2518 = vsel %vm1273, %v2517, %v2480
          %v2519 = vrot.slane %v2480, 4
          %v2520 = vsel %vm1273, %v2504, %v2519
          %v2521 = vrot.slane %v2104, 4
          %v2522 = vsel %vm1273, %v2521, %v2092
          %v2523 = vrot.slane %v2092, 4
          %v2524 = vsel %vm1273, %v2104, %v2523
          %v2526 = vunpack.c.l.s4 1983009808
          %v2527 = vunpack.c.0.s8 %v2526
          %v2528 = vperm.slane %v2522, %v2527
          %v2530 = vunpack.c.l.s4 1983009808
          %v2531 = vunpack.c.0.s8 %v2530
          %v2532 = vperm.slane %v2524, %v2531
          %v2533 = vrot.slane %v2110, 4
          %v2534 = vsel %vm1273, %v2533, %v2098
          %v2535 = vrot.slane %v2098, 4
          %v2536 = vsel %vm1273, %v2110, %v2535
          %v2538 = vunpack.c.l.s4 1983009808
          %v2539 = vunpack.c.0.s8 %v2538
          %v2540 = vperm.slane %v2534, %v2539
          %v2542 = vunpack.c.l.s4 1983009808
          %v2543 = vunpack.c.0.s8 %v2542
          %v2544 = vperm.slane %v2536, %v2543
          %v2545 = vrot.slane %v2128, 4
          %v2546 = vsel %vm1273, %v2545, %v2116
          %v2547 = vrot.slane %v2116, 4
          %v2548 = vsel %vm1273, %v2128, %v2547
          %v2550 = vunpack.c.l.s4 1983009808
          %v2551 = vunpack.c.0.s8 %v2550
          %v2552 = vperm.slane %v2546, %v2551
          %v2554 = vunpack.c.l.s4 1983009808
          %v2555 = vunpack.c.0.s8 %v2554
          %v2556 = vperm.slane %v2548, %v2555
          %v2557 = vrot.slane %v2134, 4
          %v2558 = vsel %vm1273, %v2557, %v2122
          %v2559 = vrot.slane %v2122, 4
          %v2560 = vsel %vm1273, %v2134, %v2559
          %v2562 = vunpack.c.l.s4 1983009808
          %v2563 = vunpack.c.0.s8 %v2562
          %v2564 = vperm.slane %v2558, %v2563
          %v2566 = vunpack.c.l.s4 1983009808
          %v2567 = vunpack.c.0.s8 %v2566
          %v2568 = vperm.slane %v2560, %v2567
          %v2569 = vrot.slane %v2540, 4
          %v2570 = vsel %vm1273, %v2569, %v2528
          %v2571 = vrot.slane %v2528, 4
          %v2572 = vsel %vm1273, %v2540, %v2571
          %v2574 = vunpack.c.l.s4 1934713408
          %v2575 = vunpack.c.0.s8 %v2574
          %v2576 = vperm.slane %v2570, %v2575
          %v2578 = vunpack.c.l.s4 1934713408
          %v2579 = vunpack.c.0.s8 %v2578
          %v2580 = vperm.slane %v2572, %v2579
          %v2581 = vrot.slane %v2544, 4
          %v2582 = vsel %vm1273, %v2581, %v2532
          %v2583 = vrot.slane %v2532, 4
          %v2584 = vsel %vm1273, %v2544, %v2583
          %v2586 = vunpack.c.l.s4 1934713408
          %v2587 = vunpack.c.0.s8 %v2586
          %v2588 = vperm.slane %v2582, %v2587
          %v2590 = vunpack.c.l.s4 1934713408
          %v2591 = vunpack.c.0.s8 %v2590
          %v2592 = vperm.slane %v2584, %v2591
          %v2593 = vrot.slane %v2564, 4
          %v2594 = vsel %vm1273, %v2593, %v2552
          %v2595 = vrot.slane %v2552, 4
          %v2596 = vsel %vm1273, %v2564, %v2595
          %v2598 = vunpack.c.l.s4 1934713408
          %v2599 = vunpack.c.0.s8 %v2598
          %v2600 = vperm.slane %v2594, %v2599
          %v2602 = vunpack.c.l.s4 1934713408
          %v2603 = vunpack.c.0.s8 %v2602
          %v2604 = vperm.slane %v2596, %v2603
          %v2605 = vrot.slane %v2568, 4
          %v2606 = vsel %vm1273, %v2605, %v2556
          %v2607 = vrot.slane %v2556, 4
          %v2608 = vsel %vm1273, %v2568, %v2607
          %v2610 = vunpack.c.l.s4 1934713408
          %v2611 = vunpack.c.0.s8 %v2610
          %v2612 = vperm.slane %v2606, %v2611
          %v2614 = vunpack.c.l.s4 1934713408
          %v2615 = vunpack.c.0.s8 %v2614
          %v2616 = vperm.slane %v2608, %v2615
          %v2617 = vrot.slane %v2600, 4
          %v2618 = vsel %vm1273, %v2617, %v2576
          %v2619 = vrot.slane %v2576, 4
          %v2620 = vsel %vm1273, %v2600, %v2619
          %v2621 = vrot.slane %v2604, 4
          %v2622 = vsel %vm1273, %v2621, %v2580
          %v2623 = vrot.slane %v2580, 4
          %v2624 = vsel %vm1273, %v2604, %v2623
          %v2625 = vrot.slane %v2612, 4
          %v2626 = vsel %vm1273, %v2625, %v2588
          %v2627 = vrot.slane %v2588, 4
          %v2628 = vsel %vm1273, %v2612, %v2627
          %v2629 = vrot.slane %v2616, 4
          %v2630 = vsel %vm1273, %v2629, %v2592
          %v2631 = vrot.slane %v2592, 4
          %v2632 = vsel %vm1273, %v2616, %v2631
          %v2633 = vrot.slane %v2058, 4
          %v2634 = vsel %vm1273, %v2633, %v2046
          %v2635 = vrot.slane %v2046, 4
          %v2636 = vsel %vm1273, %v2058, %v2635
          %v2638 = vunpack.c.l.s4 1983009808
          %v2639 = vunpack.c.0.s8 %v2638
          %v2640 = vperm.slane %v2634, %v2639
          %v2642 = vunpack.c.l.s4 1983009808
          %v2643 = vunpack.c.0.s8 %v2642
          %v2644 = vperm.slane %v2636, %v2643
          %v2645 = vrot.slane %v2064, 4
          %v2646 = vsel %vm1273, %v2645, %v2052
          %v2647 = vrot.slane %v2052, 4
          %v2648 = vsel %vm1273, %v2064, %v2647
          %v2650 = vunpack.c.l.s4 1983009808
          %v2651 = vunpack.c.0.s8 %v2650
          %v2652 = vperm.slane %v2646, %v2651
          %v2654 = vunpack.c.l.s4 1983009808
          %v2655 = vunpack.c.0.s8 %v2654
          %v2656 = vperm.slane %v2648, %v2655
          %v2657 = vrot.slane %v2082, 4
          %v2658 = vsel %vm1273, %v2657, %v2070
          %v2659 = vrot.slane %v2070, 4
          %v2660 = vsel %vm1273, %v2082, %v2659
          %v2662 = vunpack.c.l.s4 1983009808
          %v2663 = vunpack.c.0.s8 %v2662
          %v2664 = vperm.slane %v2658, %v2663
          %v2666 = vunpack.c.l.s4 1983009808
          %v2667 = vunpack.c.0.s8 %v2666
          %v2668 = vperm.slane %v2660, %v2667
          %v2669 = vrot.slane %v2088, 4
          %v2670 = vsel %vm1273, %v2669, %v2076
          %v2671 = vrot.slane %v2076, 4
          %v2672 = vsel %vm1273, %v2088, %v2671
          %v2674 = vunpack.c.l.s4 1983009808
          %v2675 = vunpack.c.0.s8 %v2674
          %v2676 = vperm.slane %v2670, %v2675
          %v2678 = vunpack.c.l.s4 1983009808
          %v2679 = vunpack.c.0.s8 %v2678
          %v2680 = vperm.slane %v2672, %v2679
          %v2681 = vrot.slane %v2652, 4
          %v2682 = vsel %vm1273, %v2681, %v2640
          %v2683 = vrot.slane %v2640, 4
          %v2684 = vsel %vm1273, %v2652, %v2683
          %v2686 = vunpack.c.l.s4 1934713408
          %v2687 = vunpack.c.0.s8 %v2686
          %v2688 = vperm.slane %v2682, %v2687
          %v2690 = vunpack.c.l.s4 1934713408
          %v2691 = vunpack.c.0.s8 %v2690
          %v2692 = vperm.slane %v2684, %v2691
          %v2693 = vrot.slane %v2656, 4
          %v2694 = vsel %vm1273, %v2693, %v2644
          %v2695 = vrot.slane %v2644, 4
          %v2696 = vsel %vm1273, %v2656, %v2695
          %v2698 = vunpack.c.l.s4 1934713408
          %v2699 = vunpack.c.0.s8 %v2698
          %v2700 = vperm.slane %v2694, %v2699
          %v2702 = vunpack.c.l.s4 1934713408
          %v2703 = vunpack.c.0.s8 %v2702
          %v2704 = vperm.slane %v2696, %v2703
          %v2705 = vrot.slane %v2676, 4
          %v2706 = vsel %vm1273, %v2705, %v2664
          %v2707 = vrot.slane %v2664, 4
          %v2708 = vsel %vm1273, %v2676, %v2707
          %v2710 = vunpack.c.l.s4 1934713408
          %v2711 = vunpack.c.0.s8 %v2710
          %v2712 = vperm.slane %v2706, %v2711
          %v2714 = vunpack.c.l.s4 1934713408
          %v2715 = vunpack.c.0.s8 %v2714
          %v2716 = vperm.slane %v2708, %v2715
          %v2717 = vrot.slane %v2680, 4
          %v2718 = vsel %vm1273, %v2717, %v2668
          %v2719 = vrot.slane %v2668, 4
          %v2720 = vsel %vm1273, %v2680, %v2719
          %v2722 = vunpack.c.l.s4 1934713408
          %v2723 = vunpack.c.0.s8 %v2722
          %v2724 = vperm.slane %v2718, %v2723
          %v2726 = vunpack.c.l.s4 1934713408
          %v2727 = vunpack.c.0.s8 %v2726
          %v2728 = vperm.slane %v2720, %v2727
          %v2729 = vrot.slane %v2712, 4
          %v2730 = vsel %vm1273, %v2729, %v2688
          %v2731 = vrot.slane %v2688, 4
          %v2732 = vsel %vm1273, %v2712, %v2731
          %v2733 = vrot.slane %v2716, 4
          %v2734 = vsel %vm1273, %v2733, %v2692
          %v2735 = vrot.slane %v2692, 4
          %v2736 = vsel %vm1273, %v2716, %v2735
          %v2737 = vrot.slane %v2724, 4
          %v2738 = vsel %vm1273, %v2737, %v2700
          %v2739 = vrot.slane %v2700, 4
          %v2740 = vsel %vm1273, %v2724, %v2739
          %v2741 = vrot.slane %v2728, 4
          %v2742 = vsel %vm1273, %v2741, %v2704
          %v2743 = vrot.slane %v2704, 4
          %v2744 = vsel %vm1273, %v2728, %v2743
          %v2745 = vrot.slane %v2106, 4
          %v2746 = vsel %vm1273, %v2745, %v2094
          %v2747 = vrot.slane %v2094, 4
          %v2748 = vsel %vm1273, %v2106, %v2747
          %v2750 = vunpack.c.l.s4 1983009808
          %v2751 = vunpack.c.0.s8 %v2750
          %v2752 = vperm.slane %v2746, %v2751
          %v2754 = vunpack.c.l.s4 1983009808
          %v2755 = vunpack.c.0.s8 %v2754
          %v2756 = vperm.slane %v2748, %v2755
          %v2757 = vrot.slane %v2112, 4
          %v2758 = vsel %vm1273, %v2757, %v2100
          %v2759 = vrot.slane %v2100, 4
          %v2760 = vsel %vm1273, %v2112, %v2759
          %v2762 = vunpack.c.l.s4 1983009808
          %v2763 = vunpack.c.0.s8 %v2762
          %v2764 = vperm.slane %v2758, %v2763
          %v2766 = vunpack.c.l.s4 1983009808
          %v2767 = vunpack.c.0.s8 %v2766
          %v2768 = vperm.slane %v2760, %v2767
          %v2769 = vrot.slane %v2130, 4
          %v2770 = vsel %vm1273, %v2769, %v2118
          %v2771 = vrot.slane %v2118, 4
          %v2772 = vsel %vm1273, %v2130, %v2771
          %v2774 = vunpack.c.l.s4 1983009808
          %v2775 = vunpack.c.0.s8 %v2774
          %v2776 = vperm.slane %v2770, %v2775
          %v2778 = vunpack.c.l.s4 1983009808
          %v2779 = vunpack.c.0.s8 %v2778
          %v2780 = vperm.slane %v2772, %v2779
          %v2781 = vrot.slane %v2136, 4
          %v2782 = vsel %vm1273, %v2781, %v2124
          %v2783 = vrot.slane %v2124, 4
          %v2784 = vsel %vm1273, %v2136, %v2783
          %v2786 = vunpack.c.l.s4 1983009808
          %v2787 = vunpack.c.0.s8 %v2786
          %v2788 = vperm.slane %v2782, %v2787
          %v2790 = vunpack.c.l.s4 1983009808
          %v2791 = vunpack.c.0.s8 %v2790
          %v2792 = vperm.slane %v2784, %v2791
          %v2793 = vrot.slane %v2764, 4
          %v2794 = vsel %vm1273, %v2793, %v2752
          %v2795 = vrot.slane %v2752, 4
          %v2796 = vsel %vm1273, %v2764, %v2795
          %v2798 = vunpack.c.l.s4 1934713408
          %v2799 = vunpack.c.0.s8 %v2798
          %v2800 = vperm.slane %v2794, %v2799
          %v2802 = vunpack.c.l.s4 1934713408
          %v2803 = vunpack.c.0.s8 %v2802
          %v2804 = vperm.slane %v2796, %v2803
          %v2805 = vrot.slane %v2768, 4
          %v2806 = vsel %vm1273, %v2805, %v2756
          %v2807 = vrot.slane %v2756, 4
          %v2808 = vsel %vm1273, %v2768, %v2807
          %v2810 = vunpack.c.l.s4 1934713408
          %v2811 = vunpack.c.0.s8 %v2810
          %v2812 = vperm.slane %v2806, %v2811
          %v2814 = vunpack.c.l.s4 1934713408
          %v2815 = vunpack.c.0.s8 %v2814
          %v2816 = vperm.slane %v2808, %v2815
          %v2817 = vrot.slane %v2788, 4
          %v2818 = vsel %vm1273, %v2817, %v2776
          %v2819 = vrot.slane %v2776, 4
          %v2820 = vsel %vm1273, %v2788, %v2819
          %v2822 = vunpack.c.l.s4 1934713408
          %v2823 = vunpack.c.0.s8 %v2822
          %v2824 = vperm.slane %v2818, %v2823
          %v2826 = vunpack.c.l.s4 1934713408
          %v2827 = vunpack.c.0.s8 %v2826
          %v2828 = vperm.slane %v2820, %v2827
          %v2829 = vrot.slane %v2792, 4
          %v2830 = vsel %vm1273, %v2829, %v2780
          %v2831 = vrot.slane %v2780, 4
          %v2832 = vsel %vm1273, %v2792, %v2831
          %v2834 = vunpack.c.l.s4 1934713408
          %v2835 = vunpack.c.0.s8 %v2834
          %v2836 = vperm.slane %v2830, %v2835
          %v2838 = vunpack.c.l.s4 1934713408
          %v2839 = vunpack.c.0.s8 %v2838
          %v2840 = vperm.slane %v2832, %v2839
          %v2841 = vrot.slane %v2824, 4
          %v2842 = vsel %vm1273, %v2841, %v2800
          %v2843 = vrot.slane %v2800, 4
          %v2844 = vsel %vm1273, %v2824, %v2843
          %v2845 = vrot.slane %v2828, 4
          %v2846 = vsel %vm1273, %v2845, %v2804
          %v2847 = vrot.slane %v2804, 4
          %v2848 = vsel %vm1273, %v2828, %v2847
          %v2849 = vrot.slane %v2836, 4
          %v2850 = vsel %vm1273, %v2849, %v2812
          %v2851 = vrot.slane %v2812, 4
          %v2852 = vsel %vm1273, %v2836, %v2851
          %v2853 = vrot.slane %v2840, 4
          %v2854 = vsel %vm1273, %v2853, %v2816
          %v2855 = vrot.slane %v2816, 4
          %v2856 = vsel %vm1273, %v2840, %v2855
          %v2857 = vpack.c.bf16 %v2282, %v2282
          %v2858 = vpack.c.bf16 %v2394, %v2394
          %v2859 = vpack.c.bf16 %v2284, %v2284
          %v2860 = vpack.c.bf16 %v2396, %v2396
          %v2861 = vpack.c.bf16 %v2286, %v2286
          %v2862 = vpack.c.bf16 %v2398, %v2398
          %v2863 = vpack.c.bf16 %v2288, %v2288
          %v2864 = vpack.c.bf16 %v2400, %v2400
          %v2865 = vpack.c.bf16 %v2290, %v2290
          %v2866 = vpack.c.bf16 %v2402, %v2402
          %v2867 = vpack.c.bf16 %v2292, %v2292
          %v2868 = vpack.c.bf16 %v2404, %v2404
          %v2869 = vpack.c.bf16 %v2294, %v2294
          %v2870 = vpack.c.bf16 %v2406, %v2406
          %v2871 = vpack.c.bf16 %v2296, %v2296
          %v2872 = vpack.c.bf16 %v2408, %v2408
          %v2873 = vpack.c.bf16 %v2506, %v2506
          %v2874 = vpack.c.bf16 %v2618, %v2618
          %v2875 = vpack.c.bf16 %v2508, %v2508
          %v2876 = vpack.c.bf16 %v2620, %v2620
          %v2877 = vpack.c.bf16 %v2510, %v2510
          %v2878 = vpack.c.bf16 %v2622, %v2622
          %v2879 = vpack.c.bf16 %v2512, %v2512
          %v2880 = vpack.c.bf16 %v2624, %v2624
          %v2881 = vpack.c.bf16 %v2514, %v2514
          %v2882 = vpack.c.bf16 %v2626, %v2626
          %v2883 = vpack.c.bf16 %v2516, %v2516
          %v2884 = vpack.c.bf16 %v2628, %v2628
          %v2885 = vpack.c.bf16 %v2518, %v2518
          %v2886 = vpack.c.bf16 %v2630, %v2630
          %v2887 = vpack.c.bf16 %v2520, %v2520
          %v2888 = vpack.c.bf16 %v2632, %v2632
          %v2889 = vpack.c.bf16 %v2730, %v2730
          %v2890 = vpack.c.bf16 %v2842, %v2842
          %v2891 = vpack.c.bf16 %v2732, %v2732
          %v2892 = vpack.c.bf16 %v2844, %v2844
          %v2893 = vpack.c.bf16 %v2734, %v2734
          %v2894 = vpack.c.bf16 %v2846, %v2846
          %v2895 = vpack.c.bf16 %v2736, %v2736
          %v2896 = vpack.c.bf16 %v2848, %v2848
          %v2897 = vpack.c.bf16 %v2738, %v2738
          %v2898 = vpack.c.bf16 %v2850, %v2850
          %v2899 = vpack.c.bf16 %v2740, %v2740
          %v2900 = vpack.c.bf16 %v2852, %v2852
          %v2901 = vpack.c.bf16 %v2742, %v2742
          %v2902 = vpack.c.bf16 %v2854, %v2854
          %v2903 = vpack.c.bf16 %v2744, %v2744
          %v2904 = vpack.c.bf16 %v2856, %v2856
          %2905 = vst.msk [vmem:[#allocation6] sm:$0xf] %vm1031, %v2857
          %2906 = vst.msk [vmem:[#allocation6 + $0x4] sm:$0xf] %vm1031, %v2858
          %2907 = vst.msk [vmem:[#allocation6 + $0x8] sm:$0xf] %vm1031, %v2859
          %2908 = vst.msk [vmem:[#allocation6 + $0xc] sm:$0xf] %vm1031, %v2860
          %2909 = vst.msk [vmem:[#allocation6 + $0x10] sm:$0xf] %vm1031, %v2861
          %2910 = vst.msk [vmem:[#allocation6 + $0x14] sm:$0xf] %vm1031, %v2862
          %2911 = vst.msk [vmem:[#allocation6 + $0x18] sm:$0xf] %vm1031, %v2863
          %2912 = vst.msk [vmem:[#allocation6 + $0x1c] sm:$0xf] %vm1031, %v2864
          %2913 = vst.msk [vmem:[#allocation6 + $0x20] sm:$0xf] %vm1031, %v2865
          %2914 = vst.msk [vmem:[#allocation6 + $0x24] sm:$0xf] %vm1031, %v2866
          %2915 = vst.msk [vmem:[#allocation6 + $0x28] sm:$0xf] %vm1031, %v2867
          %2916 = vst.msk [vmem:[#allocation6 + $0x2c] sm:$0xf] %vm1031, %v2868
          %2917 = vst.msk [vmem:[#allocation6 + $0x30] sm:$0xf] %vm1031, %v2869
          %2918 = vst.msk [vmem:[#allocation6 + $0x34] sm:$0xf] %vm1031, %v2870
          %2919 = vst.msk [vmem:[#allocation6 + $0x38] sm:$0xf] %vm1031, %v2871
          %2920 = vst.msk [vmem:[#allocation6 + $0x3c] sm:$0xf] %vm1031, %v2872
          %2921 = vst.msk [vmem:[#allocation6 + $0x40] sm:$0xf] %vm1031, %v2873
          %2922 = vst.msk [vmem:[#allocation6 + $0x44] sm:$0xf] %vm1031, %v2874
          %2923 = vst.msk [vmem:[#allocation6 + $0x48] sm:$0xf] %vm1031, %v2875
          %2924 = vst.msk [vmem:[#allocation6 + $0x4c] sm:$0xf] %vm1031, %v2876
          %2925 = vst.msk [vmem:[#allocation6 + $0x50] sm:$0xf] %vm1031, %v2877
          %2926 = vst.msk [vmem:[#allocation6 + $0x54] sm:$0xf] %vm1031, %v2878
          %2927 = vst.msk [vmem:[#allocation6 + $0x58] sm:$0xf] %vm1031, %v2879
          %2928 = vst.msk [vmem:[#allocation6 + $0x5c] sm:$0xf] %vm1031, %v2880
          %2929 = vst.msk [vmem:[#allocation6 + $0x60] sm:$0xf] %vm1031, %v2881
          %2930 = vst.msk [vmem:[#allocation6 + $0x64] sm:$0xf] %vm1031, %v2882
          %2931 = vst.msk [vmem:[#allocation6 + $0x68] sm:$0xf] %vm1031, %v2883
          %2932 = vst.msk [vmem:[#allocation6 + $0x6c] sm:$0xf] %vm1031, %v2884
          %2933 = vst.msk [vmem:[#allocation6 + $0x70] sm:$0xf] %vm1031, %v2885
          %2934 = vst.msk [vmem:[#allocation6 + $0x74] sm:$0xf] %vm1031, %v2886
          %2935 = vst.msk [vmem:[#allocation6 + $0x78] sm:$0xf] %vm1031, %v2887
          %2936 = vst.msk [vmem:[#allocation6 + $0x7c] sm:$0xf] %vm1031, %v2888
          %2937 = vst.msk [vmem:[#allocation6 + $0x80] sm:$0xf] %vm1031, %v2889
          %2938 = vst.msk [vmem:[#allocation6 + $0x84] sm:$0xf] %vm1031, %v2890
          %2939 = vst.msk [vmem:[#allocation6 + $0x88] sm:$0xf] %vm1031, %v2891
          %2940 = vst.msk [vmem:[#allocation6 + $0x8c] sm:$0xf] %vm1031, %v2892
          %2941 = vst.msk [vmem:[#allocation6 + $0x90] sm:$0xf] %vm1031, %v2893
          %2942 = vst.msk [vmem:[#allocation6 + $0x94] sm:$0xf] %vm1031, %v2894
          %2943 = vst.msk [vmem:[#allocation6 + $0x98] sm:$0xf] %vm1031, %v2895
          %2944 = vst.msk [vmem:[#allocation6 + $0x9c] sm:$0xf] %vm1031, %v2896
          %2945 = vst.msk [vmem:[#allocation6 + $0xa0] sm:$0xf] %vm1031, %v2897
          %2946 = vst.msk [vmem:[#allocation6 + $0xa4] sm:$0xf] %vm1031, %v2898
          %2947 = vst.msk [vmem:[#allocation6 + $0xa8] sm:$0xf] %vm1031, %v2899
          %2948 = vst.msk [vmem:[#allocation6 + $0xac] sm:$0xf] %vm1031, %v2900
          %2949 = vst.msk [vmem:[#allocation6 + $0xb0] sm:$0xf] %vm1031, %v2901
          %2950 = vst.msk [vmem:[#allocation6 + $0xb4] sm:$0xf] %vm1031, %v2902
          %2951 = vst.msk [vmem:[#allocation6 + $0xb8] sm:$0xf] %vm1031, %v2903
          %2952 = vst.msk [vmem:[#allocation6 + $0xbc] sm:$0xf] %vm1031, %v2904
        $region48: #{tpu_custom_call.1} parent=35 // pred_fallthru
          _
        %s2953 = smul.u32 %s28, 16
        %s2954 = smul.u32 %s2953, 3
        %s2955 = smul.addr %s2954, 4
        %s2956 = scalar_lea.vmem [#allocation2], %s2955
        %v2957 = vld [vmem:[%s2956] sm:$0xf]
        %v2958 = vld [vmem:[%s2956 + $0x4] sm:$0xf]
        %v2959 = vld [vmem:[%s2956 + $0x8] sm:$0xf]
        %v2960 = vld [vmem:[%s2956 + $0xc] sm:$0xf]
        %v2961 = vld [vmem:[%s2956 + $0x10] sm:$0xf]
        %v2962 = vld [vmem:[%s2956 + $0x14] sm:$0xf]
        %v2963 = vld [vmem:[%s2956 + $0x18] sm:$0xf]
        %v2964 = vld [vmem:[%s2956 + $0x1c] sm:$0xf]
        %v2965 = vld [vmem:[%s2956 + $0x20] sm:$0xf]
        %v2966 = vld [vmem:[%s2956 + $0x24] sm:$0xf]
        %v2967 = vld [vmem:[%s2956 + $0x28] sm:$0xf]
        %v2968 = vld [vmem:[%s2956 + $0x2c] sm:$0xf]
        %v2969 = vld [vmem:[%s2956 + $0x30] sm:$0xf]
        %v2970 = vld [vmem:[%s2956 + $0x34] sm:$0xf]
        %v2971 = vld [vmem:[%s2956 + $0x38] sm:$0xf]
        %v2972 = vld [vmem:[%s2956 + $0x3c] sm:$0xf]
        %v2973 = vld [vmem:[%s2956 + $0x40] sm:$0xf]
        %v2974 = vld [vmem:[%s2956 + $0x44] sm:$0xf]
        %v2975 = vld [vmem:[%s2956 + $0x48] sm:$0xf]
        %v2976 = vld [vmem:[%s2956 + $0x4c] sm:$0xf]
        %v2977 = vld [vmem:[%s2956 + $0x50] sm:$0xf]
        %v2978 = vld [vmem:[%s2956 + $0x54] sm:$0xf]
        %v2979 = vld [vmem:[%s2956 + $0x58] sm:$0xf]
        %v2980 = vld [vmem:[%s2956 + $0x5c] sm:$0xf]
        %v2981 = vld [vmem:[%s2956 + $0x60] sm:$0xf]
        %v2982 = vld [vmem:[%s2956 + $0x64] sm:$0xf]
        %v2983 = vld [vmem:[%s2956 + $0x68] sm:$0xf]
        %v2984 = vld [vmem:[%s2956 + $0x6c] sm:$0xf]
        %v2985 = vld [vmem:[%s2956 + $0x70] sm:$0xf]
        %v2986 = vld [vmem:[%s2956 + $0x74] sm:$0xf]
        %v2987 = vld [vmem:[%s2956 + $0x78] sm:$0xf]
        %v2988 = vld [vmem:[%s2956 + $0x7c] sm:$0xf]
        %v2989 = vld [vmem:[%s2956 + $0x80] sm:$0xf]
        %v2990 = vld [vmem:[%s2956 + $0x84] sm:$0xf]
        %v2991 = vld [vmem:[%s2956 + $0x88] sm:$0xf]
        %v2992 = vld [vmem:[%s2956 + $0x8c] sm:$0xf]
        %v2993 = vld [vmem:[%s2956 + $0x90] sm:$0xf]
        %v2994 = vld [vmem:[%s2956 + $0x94] sm:$0xf]
        %v2995 = vld [vmem:[%s2956 + $0x98] sm:$0xf]
        %v2996 = vld [vmem:[%s2956 + $0x9c] sm:$0xf]
        %v2997 = vld [vmem:[%s2956 + $0xa0] sm:$0xf]
        %v2998 = vld [vmem:[%s2956 + $0xa4] sm:$0xf]
        %v2999 = vld [vmem:[%s2956 + $0xa8] sm:$0xf]
        %v3000 = vld [vmem:[%s2956 + $0xac] sm:$0xf]
        %v3001 = vld [vmem:[%s2956 + $0xb0] sm:$0xf]
        %v3002 = vld [vmem:[%s2956 + $0xb4] sm:$0xf]
        %v3003 = vld [vmem:[%s2956 + $0xb8] sm:$0xf]
        %v3004 = vld [vmem:[%s2956 + $0xbc] sm:$0xf]
        %s3005 = smul.addr %s2954, 4
        %s3006 = scalar_lea.vmem [#allocation3], %s3005
        %v3007 = vld [vmem:[%s3006] sm:$0xf]
        %v3008 = vld [vmem:[%s3006 + $0x4] sm:$0xf]
        %v3009 = vld [vmem:[%s3006 + $0x8] sm:$0xf]
        %v3010 = vld [vmem:[%s3006 + $0xc] sm:$0xf]
        %v3011 = vld [vmem:[%s3006 + $0x10] sm:$0xf]
        %v3012 = vld [vmem:[%s3006 + $0x14] sm:$0xf]
        %v3013 = vld [vmem:[%s3006 + $0x18] sm:$0xf]
        %v3014 = vld [vmem:[%s3006 + $0x1c] sm:$0xf]
        %v3015 = vld [vmem:[%s3006 + $0x20] sm:$0xf]
        %v3016 = vld [vmem:[%s3006 + $0x24] sm:$0xf]
        %v3017 = vld [vmem:[%s3006 + $0x28] sm:$0xf]
        %v3018 = vld [vmem:[%s3006 + $0x2c] sm:$0xf]
        %v3019 = vld [vmem:[%s3006 + $0x30] sm:$0xf]
        %v3020 = vld [vmem:[%s3006 + $0x34] sm:$0xf]
        %v3021 = vld [vmem:[%s3006 + $0x38] sm:$0xf]
        %v3022 = vld [vmem:[%s3006 + $0x3c] sm:$0xf]
        %v3023 = vld [vmem:[%s3006 + $0x40] sm:$0xf]
        %v3024 = vld [vmem:[%s3006 + $0x44] sm:$0xf]
        %v3025 = vld [vmem:[%s3006 + $0x48] sm:$0xf]
        %v3026 = vld [vmem:[%s3006 + $0x4c] sm:$0xf]
        %v3027 = vld [vmem:[%s3006 + $0x50] sm:$0xf]
        %v3028 = vld [vmem:[%s3006 + $0x54] sm:$0xf]
        %v3029 = vld [vmem:[%s3006 + $0x58] sm:$0xf]
        %v3030 = vld [vmem:[%s3006 + $0x5c] sm:$0xf]
        %v3031 = vld [vmem:[%s3006 + $0x60] sm:$0xf]
        %v3032 = vld [vmem:[%s3006 + $0x64] sm:$0xf]
        %v3033 = vld [vmem:[%s3006 + $0x68] sm:$0xf]
        %v3034 = vld [vmem:[%s3006 + $0x6c] sm:$0xf]
        %v3035 = vld [vmem:[%s3006 + $0x70] sm:$0xf]
        %v3036 = vld [vmem:[%s3006 + $0x74] sm:$0xf]
        %v3037 = vld [vmem:[%s3006 + $0x78] sm:$0xf]
        %v3038 = vld [vmem:[%s3006 + $0x7c] sm:$0xf]
        %v3039 = vld [vmem:[%s3006 + $0x80] sm:$0xf]
        %v3040 = vld [vmem:[%s3006 + $0x84] sm:$0xf]
        %v3041 = vld [vmem:[%s3006 + $0x88] sm:$0xf]
        %v3042 = vld [vmem:[%s3006 + $0x8c] sm:$0xf]
        %v3043 = vld [vmem:[%s3006 + $0x90] sm:$0xf]
        %v3044 = vld [vmem:[%s3006 + $0x94] sm:$0xf]
        %v3045 = vld [vmem:[%s3006 + $0x98] sm:$0xf]
        %v3046 = vld [vmem:[%s3006 + $0x9c] sm:$0xf]
        %v3047 = vld [vmem:[%s3006 + $0xa0] sm:$0xf]
        %v3048 = vld [vmem:[%s3006 + $0xa4] sm:$0xf]
        %v3049 = vld [vmem:[%s3006 + $0xa8] sm:$0xf]
        %v3050 = vld [vmem:[%s3006 + $0xac] sm:$0xf]
        %v3051 = vld [vmem:[%s3006 + $0xb0] sm:$0xf]
        %v3052 = vld [vmem:[%s3006 + $0xb4] sm:$0xf]
        %v3053 = vld [vmem:[%s3006 + $0xb8] sm:$0xf]
        %v3054 = vld [vmem:[%s3006 + $0xbc] sm:$0xf]
        %s3055 = smul.addr %s2954, 4
        %s3056 = scalar_lea.vmem [#allocation4], %s3055
        %v3057 = vld [vmem:[%s3056] sm:$0xf]
        %v3058 = vld [vmem:[%s3056 + $0x4] sm:$0xf]
        %v3059 = vld [vmem:[%s3056 + $0x8] sm:$0xf]
        %v3060 = vld [vmem:[%s3056 + $0xc] sm:$0xf]
        %v3061 = vld [vmem:[%s3056 + $0x10] sm:$0xf]
        %v3062 = vld [vmem:[%s3056 + $0x14] sm:$0xf]
        %v3063 = vld [vmem:[%s3056 + $0x18] sm:$0xf]
        %v3064 = vld [vmem:[%s3056 + $0x1c] sm:$0xf]
        %v3065 = vld [vmem:[%s3056 + $0x20] sm:$0xf]
        %v3066 = vld [vmem:[%s3056 + $0x24] sm:$0xf]
        %v3067 = vld [vmem:[%s3056 + $0x28] sm:$0xf]
        %v3068 = vld [vmem:[%s3056 + $0x2c] sm:$0xf]
        %v3069 = vld [vmem:[%s3056 + $0x30] sm:$0xf]
        %v3070 = vld [vmem:[%s3056 + $0x34] sm:$0xf]
        %v3071 = vld [vmem:[%s3056 + $0x38] sm:$0xf]
        %v3072 = vld [vmem:[%s3056 + $0x3c] sm:$0xf]
        %v3073 = vld [vmem:[%s3056 + $0x40] sm:$0xf]
        %v3074 = vld [vmem:[%s3056 + $0x44] sm:$0xf]
        %v3075 = vld [vmem:[%s3056 + $0x48] sm:$0xf]
        %v3076 = vld [vmem:[%s3056 + $0x4c] sm:$0xf]
        %v3077 = vld [vmem:[%s3056 + $0x50] sm:$0xf]
        %v3078 = vld [vmem:[%s3056 + $0x54] sm:$0xf]
        %v3079 = vld [vmem:[%s3056 + $0x58] sm:$0xf]
        %v3080 = vld [vmem:[%s3056 + $0x5c] sm:$0xf]
        %v3081 = vld [vmem:[%s3056 + $0x60] sm:$0xf]
        %v3082 = vld [vmem:[%s3056 + $0x64] sm:$0xf]
        %v3083 = vld [vmem:[%s3056 + $0x68] sm:$0xf]
        %v3084 = vld [vmem:[%s3056 + $0x6c] sm:$0xf]
        %v3085 = vld [vmem:[%s3056 + $0x70] sm:$0xf]
        %v3086 = vld [vmem:[%s3056 + $0x74] sm:$0xf]
        %v3087 = vld [vmem:[%s3056 + $0x78] sm:$0xf]
        %v3088 = vld [vmem:[%s3056 + $0x7c] sm:$0xf]
        %v3089 = vld [vmem:[%s3056 + $0x80] sm:$0xf]
        %v3090 = vld [vmem:[%s3056 + $0x84] sm:$0xf]
        %v3091 = vld [vmem:[%s3056 + $0x88] sm:$0xf]
        %v3092 = vld [vmem:[%s3056 + $0x8c] sm:$0xf]
        %v3093 = vld [vmem:[%s3056 + $0x90] sm:$0xf]
        %v3094 = vld [vmem:[%s3056 + $0x94] sm:$0xf]
        %v3095 = vld [vmem:[%s3056 + $0x98] sm:$0xf]
        %v3096 = vld [vmem:[%s3056 + $0x9c] sm:$0xf]
        %v3097 = vld [vmem:[%s3056 + $0xa0] sm:$0xf]
        %v3098 = vld [vmem:[%s3056 + $0xa4] sm:$0xf]
        %v3099 = vld [vmem:[%s3056 + $0xa8] sm:$0xf]
        %v3100 = vld [vmem:[%s3056 + $0xac] sm:$0xf]
        %v3101 = vld [vmem:[%s3056 + $0xb0] sm:$0xf]
        %v3102 = vld [vmem:[%s3056 + $0xb4] sm:$0xf]
        %v3103 = vld [vmem:[%s3056 + $0xb8] sm:$0xf]
        %v3104 = vld [vmem:[%s3056 + $0xbc] sm:$0xf]
        %v3105 = vld [vmem:[#allocation5] sm:$0xf]
        %v3106 = vld [vmem:[#allocation5 + $0x4] sm:$0xf]
        %v3107 = vld [vmem:[#allocation5 + $0x8] sm:$0xf]
        %v3108 = vld [vmem:[#allocation5 + $0xc] sm:$0xf]
        %v3109 = vld [vmem:[#allocation5 + $0x10] sm:$0xf]
        %v3110 = vld [vmem:[#allocation5 + $0x14] sm:$0xf]
        %v3111 = vld [vmem:[#allocation5 + $0x18] sm:$0xf]
        %v3112 = vld [vmem:[#allocation5 + $0x1c] sm:$0xf]
        %v3113 = vld [vmem:[#allocation5 + $0x20] sm:$0xf]
        %v3114 = vld [vmem:[#allocation5 + $0x24] sm:$0xf]
        %v3115 = vld [vmem:[#allocation5 + $0x28] sm:$0xf]
        %v3116 = vld [vmem:[#allocation5 + $0x2c] sm:$0xf]
        %v3117 = vld [vmem:[#allocation5 + $0x30] sm:$0xf]
        %v3118 = vld [vmem:[#allocation5 + $0x34] sm:$0xf]
        %v3119 = vld [vmem:[#allocation5 + $0x38] sm:$0xf]
        %v3120 = vld [vmem:[#allocation5 + $0x3c] sm:$0xf]
        %v3121 = vld [vmem:[#allocation5 + $0x40] sm:$0xf]
        %v3122 = vld [vmem:[#allocation5 + $0x44] sm:$0xf]
        %v3123 = vld [vmem:[#allocation5 + $0x48] sm:$0xf]
        %v3124 = vld [vmem:[#allocation5 + $0x4c] sm:$0xf]
        %v3125 = vld [vmem:[#allocation5 + $0x50] sm:$0xf]
        %v3126 = vld [vmem:[#allocation5 + $0x54] sm:$0xf]
        %v3127 = vld [vmem:[#allocation5 + $0x58] sm:$0xf]
        %v3128 = vld [vmem:[#allocation5 + $0x5c] sm:$0xf]
        %v3129 = vld [vmem:[#allocation5 + $0x60] sm:$0xf]
        %v3130 = vld [vmem:[#allocation5 + $0x64] sm:$0xf]
        %v3131 = vld [vmem:[#allocation5 + $0x68] sm:$0xf]
        %v3132 = vld [vmem:[#allocation5 + $0x6c] sm:$0xf]
        %v3133 = vld [vmem:[#allocation5 + $0x70] sm:$0xf]
        %v3134 = vld [vmem:[#allocation5 + $0x74] sm:$0xf]
        %v3135 = vld [vmem:[#allocation5 + $0x78] sm:$0xf]
        %v3136 = vld [vmem:[#allocation5 + $0x7c] sm:$0xf]
        %v3137 = vld [vmem:[#allocation5 + $0x80] sm:$0xf]
        %v3138 = vld [vmem:[#allocation5 + $0x84] sm:$0xf]
        %v3139 = vld [vmem:[#allocation5 + $0x88] sm:$0xf]
        %v3140 = vld [vmem:[#allocation5 + $0x8c] sm:$0xf]
        %v3141 = vld [vmem:[#allocation5 + $0x90] sm:$0xf]
        %v3142 = vld [vmem:[#allocation5 + $0x94] sm:$0xf]
        %v3143 = vld [vmem:[#allocation5 + $0x98] sm:$0xf]
        %v3144 = vld [vmem:[#allocation5 + $0x9c] sm:$0xf]
        %v3145 = vld [vmem:[#allocation5 + $0xa0] sm:$0xf]
        %v3146 = vld [vmem:[#allocation5 + $0xa4] sm:$0xf]
        %v3147 = vld [vmem:[#allocation5 + $0xa8] sm:$0xf]
        %v3148 = vld [vmem:[#allocation5 + $0xac] sm:$0xf]
        %v3149 = vld [vmem:[#allocation5 + $0xb0] sm:$0xf]
        %v3150 = vld [vmem:[#allocation5 + $0xb4] sm:$0xf]
        %v3151 = vld [vmem:[#allocation5 + $0xb8] sm:$0xf]
        %v3152 = vld [vmem:[#allocation5 + $0xbc] sm:$0xf]
        %v3153 = vld [vmem:[#allocation6] sm:$0xf]
        %v3154 = vld [vmem:[#allocation6 + $0x4] sm:$0xf]
        %v3155 = vld [vmem:[#allocation6 + $0x8] sm:$0xf]
        %v3156 = vld [vmem:[#allocation6 + $0xc] sm:$0xf]
        %v3157 = vld [vmem:[#allocation6 + $0x10] sm:$0xf]
        %v3158 = vld [vmem:[#allocation6 + $0x14] sm:$0xf]
        %v3159 = vld [vmem:[#allocation6 + $0x18] sm:$0xf]
        %v3160 = vld [vmem:[#allocation6 + $0x1c] sm:$0xf]
        %v3161 = vld [vmem:[#allocation6 + $0x20] sm:$0xf]
        %v3162 = vld [vmem:[#allocation6 + $0x24] sm:$0xf]
        %v3163 = vld [vmem:[#allocation6 + $0x28] sm:$0xf]
        %v3164 = vld [vmem:[#allocation6 + $0x2c] sm:$0xf]
        %v3165 = vld [vmem:[#allocation6 + $0x30] sm:$0xf]
        %v3166 = vld [vmem:[#allocation6 + $0x34] sm:$0xf]
        %v3167 = vld [vmem:[#allocation6 + $0x38] sm:$0xf]
        %v3168 = vld [vmem:[#allocation6 + $0x3c] sm:$0xf]
        %v3169 = vld [vmem:[#allocation6 + $0x40] sm:$0xf]
        %v3170 = vld [vmem:[#allocation6 + $0x44] sm:$0xf]
        %v3171 = vld [vmem:[#allocation6 + $0x48] sm:$0xf]
        %v3172 = vld [vmem:[#allocation6 + $0x4c] sm:$0xf]
        %v3173 = vld [vmem:[#allocation6 + $0x50] sm:$0xf]
        %v3174 = vld [vmem:[#allocation6 + $0x54] sm:$0xf]
        %v3175 = vld [vmem:[#allocation6 + $0x58] sm:$0xf]
        %v3176 = vld [vmem:[#allocation6 + $0x5c] sm:$0xf]
        %v3177 = vld [vmem:[#allocation6 + $0x60] sm:$0xf]
        %v3178 = vld [vmem:[#allocation6 + $0x64] sm:$0xf]
        %v3179 = vld [vmem:[#allocation6 + $0x68] sm:$0xf]
        %v3180 = vld [vmem:[#allocation6 + $0x6c] sm:$0xf]
        %v3181 = vld [vmem:[#allocation6 + $0x70] sm:$0xf]
        %v3182 = vld [vmem:[#allocation6 + $0x74] sm:$0xf]
        %v3183 = vld [vmem:[#allocation6 + $0x78] sm:$0xf]
        %v3184 = vld [vmem:[#allocation6 + $0x7c] sm:$0xf]
        %v3185 = vld [vmem:[#allocation6 + $0x80] sm:$0xf]
        %v3186 = vld [vmem:[#allocation6 + $0x84] sm:$0xf]
        %v3187 = vld [vmem:[#allocation6 + $0x88] sm:$0xf]
        %v3188 = vld [vmem:[#allocation6 + $0x8c] sm:$0xf]
        %v3189 = vld [vmem:[#allocation6 + $0x90] sm:$0xf]
        %v3190 = vld [vmem:[#allocation6 + $0x94] sm:$0xf]
        %v3191 = vld [vmem:[#allocation6 + $0x98] sm:$0xf]
        %v3192 = vld [vmem:[#allocation6 + $0x9c] sm:$0xf]
        %v3193 = vld [vmem:[#allocation6 + $0xa0] sm:$0xf]
        %v3194 = vld [vmem:[#allocation6 + $0xa4] sm:$0xf]
        %v3195 = vld [vmem:[#allocation6 + $0xa8] sm:$0xf]
        %v3196 = vld [vmem:[#allocation6 + $0xac] sm:$0xf]
        %v3197 = vld [vmem:[#allocation6 + $0xb0] sm:$0xf]
        %v3198 = vld [vmem:[#allocation6 + $0xb4] sm:$0xf]
        %v3199 = vld [vmem:[#allocation6 + $0xb8] sm:$0xf]
        %v3200 = vld [vmem:[#allocation6 + $0xbc] sm:$0xf]
        %v3201 = vunpack.c.l.bf16 %v2957
        %v3202 = vunpack.c.l.bf16 %v2958
        %v3203 = vunpack.c.l.bf16 %v2959
        %v3204 = vunpack.c.l.bf16 %v2960
        %v3205 = vunpack.c.l.bf16 %v2961
        %v3206 = vunpack.c.l.bf16 %v2962
        %v3207 = vunpack.c.l.bf16 %v2963
        %v3208 = vunpack.c.l.bf16 %v2964
        %v3209 = vunpack.c.l.bf16 %v2965
        %v3210 = vunpack.c.l.bf16 %v2966
        %v3211 = vunpack.c.l.bf16 %v2967
        %v3212 = vunpack.c.l.bf16 %v2968
        %v3213 = vunpack.c.l.bf16 %v2969
        %v3214 = vunpack.c.l.bf16 %v2970
        %v3215 = vunpack.c.l.bf16 %v2971
        %v3216 = vunpack.c.l.bf16 %v2972
        %v3217 = vunpack.c.l.bf16 %v2973
        %v3218 = vunpack.c.l.bf16 %v2974
        %v3219 = vunpack.c.l.bf16 %v2975
        %v3220 = vunpack.c.l.bf16 %v2976
        %v3221 = vunpack.c.l.bf16 %v2977
        %v3222 = vunpack.c.l.bf16 %v2978
        %v3223 = vunpack.c.l.bf16 %v2979
        %v3224 = vunpack.c.l.bf16 %v2980
        %v3225 = vunpack.c.l.bf16 %v2981
        %v3226 = vunpack.c.l.bf16 %v2982
        %v3227 = vunpack.c.l.bf16 %v2983
        %v3228 = vunpack.c.l.bf16 %v2984
        %v3229 = vunpack.c.l.bf16 %v2985
        %v3230 = vunpack.c.l.bf16 %v2986
        %v3231 = vunpack.c.l.bf16 %v2987
        %v3232 = vunpack.c.l.bf16 %v2988
        %v3233 = vunpack.c.l.bf16 %v2989
        %v3234 = vunpack.c.l.bf16 %v2990
        %v3235 = vunpack.c.l.bf16 %v2991
        %v3236 = vunpack.c.l.bf16 %v2992
        %v3237 = vunpack.c.l.bf16 %v2993
        %v3238 = vunpack.c.l.bf16 %v2994
        %v3239 = vunpack.c.l.bf16 %v2995
        %v3240 = vunpack.c.l.bf16 %v2996
        %v3241 = vunpack.c.l.bf16 %v2997
        %v3242 = vunpack.c.l.bf16 %v2998
        %v3243 = vunpack.c.l.bf16 %v2999
        %v3244 = vunpack.c.l.bf16 %v3000
        %v3245 = vunpack.c.l.bf16 %v3001
        %v3246 = vunpack.c.l.bf16 %v3002
        %v3247 = vunpack.c.l.bf16 %v3003
        %v3248 = vunpack.c.l.bf16 %v3004
        %v3249 = vrot.slane %v3207, 4
        %vm3250 = vcmask 1047556
        %v3251 = vsel %vm3250, %v3249, %v3201
        %v3252 = vrot.slane %v3201, 4
        %v3253 = vsel %vm3250, %v3207, %v3252
        %v3255 = vunpack.c.l.s4 1983009808
        %v3256 = vunpack.c.0.s8 %v3255
        %v3257 = vperm.slane %v3251, %v3256
        %v3259 = vunpack.c.l.s4 1983009808
        %v3260 = vunpack.c.0.s8 %v3259
        %v3261 = vperm.slane %v3253, %v3260
        %v3262 = vrot.slane %v3210, 4
        %v3263 = vsel %vm3250, %v3262, %v3204
        %v3264 = vrot.slane %v3204, 4
        %v3265 = vsel %vm3250, %v3210, %v3264
        %v3267 = vunpack.c.l.s4 1983009808
        %v3268 = vunpack.c.0.s8 %v3267
        %v3269 = vperm.slane %v3263, %v3268
        %v3271 = vunpack.c.l.s4 1983009808
        %v3272 = vunpack.c.0.s8 %v3271
        %v3273 = vperm.slane %v3265, %v3272
        %v3274 = vrot.slane %v3219, 4
        %v3275 = vsel %vm3250, %v3274, %v3213
        %v3276 = vrot.slane %v3213, 4
        %v3277 = vsel %vm3250, %v3219, %v3276
        %v3279 = vunpack.c.l.s4 1983009808
        %v3280 = vunpack.c.0.s8 %v3279
        %v3281 = vperm.slane %v3275, %v3280
        %v3283 = vunpack.c.l.s4 1983009808
        %v3284 = vunpack.c.0.s8 %v3283
        %v3285 = vperm.slane %v3277, %v3284
        %v3286 = vrot.slane %v3222, 4
        %v3287 = vsel %vm3250, %v3286, %v3216
        %v3288 = vrot.slane %v3216, 4
        %v3289 = vsel %vm3250, %v3222, %v3288
        %v3291 = vunpack.c.l.s4 1983009808
        %v3292 = vunpack.c.0.s8 %v3291
        %v3293 = vperm.slane %v3287, %v3292
        %v3295 = vunpack.c.l.s4 1983009808
        %v3296 = vunpack.c.0.s8 %v3295
        %v3297 = vperm.slane %v3289, %v3296
        %v3298 = vrot.slane %v3269, 4
        %v3299 = vsel %vm3250, %v3298, %v3257
        %v3300 = vrot.slane %v3257, 4
        %v3301 = vsel %vm3250, %v3269, %v3300
        %v3303 = vunpack.c.l.s4 1934713408
        %v3304 = vunpack.c.0.s8 %v3303
        %v3305 = vperm.slane %v3299, %v3304
        %v3307 = vunpack.c.l.s4 1934713408
        %v3308 = vunpack.c.0.s8 %v3307
        %v3309 = vperm.slane %v3301, %v3308
        %v3310 = vrot.slane %v3273, 4
        %v3311 = vsel %vm3250, %v3310, %v3261
        %v3312 = vrot.slane %v3261, 4
        %v3313 = vsel %vm3250, %v3273, %v3312
        %v3315 = vunpack.c.l.s4 1934713408
        %v3316 = vunpack.c.0.s8 %v3315
        %v3317 = vperm.slane %v3311, %v3316
        %v3319 = vunpack.c.l.s4 1934713408
        %v3320 = vunpack.c.0.s8 %v3319
        %v3321 = vperm.slane %v3313, %v3320
        %v3322 = vrot.slane %v3293, 4
        %v3323 = vsel %vm3250, %v3322, %v3281
        %v3324 = vrot.slane %v3281, 4
        %v3325 = vsel %vm3250, %v3293, %v3324
        %v3327 = vunpack.c.l.s4 1934713408
        %v3328 = vunpack.c.0.s8 %v3327
        %v3329 = vperm.slane %v3323, %v3328
        %v3331 = vunpack.c.l.s4 1934713408
        %v3332 = vunpack.c.0.s8 %v3331
        %v3333 = vperm.slane %v3325, %v3332
        %v3334 = vrot.slane %v3297, 4
        %v3335 = vsel %vm3250, %v3334, %v3285
        %v3336 = vrot.slane %v3285, 4
        %v3337 = vsel %vm3250, %v3297, %v3336
        %v3339 = vunpack.c.l.s4 1934713408
        %v3340 = vunpack.c.0.s8 %v3339
        %v3341 = vperm.slane %v3335, %v3340
        %v3343 = vunpack.c.l.s4 1934713408
        %v3344 = vunpack.c.0.s8 %v3343
        %v3345 = vperm.slane %v3337, %v3344
        %v3346 = vrot.slane %v3329, 4
        %v3347 = vsel %vm3250, %v3346, %v3305
        %v3348 = vrot.slane %v3305, 4
        %v3349 = vsel %vm3250, %v3329, %v3348
        %v3350 = vrot.slane %v3333, 4
        %v3351 = vsel %vm3250, %v3350, %v3309
        %v3352 = vrot.slane %v3309, 4
        %v3353 = vsel %vm3250, %v3333, %v3352
        %v3354 = vrot.slane %v3341, 4
        %v3355 = vsel %vm3250, %v3354, %v3317
        %v3356 = vrot.slane %v3317, 4
        %v3357 = vsel %vm3250, %v3341, %v3356
        %v3358 = vrot.slane %v3345, 4
        %v3359 = vsel %vm3250, %v3358, %v3321
        %v3360 = vrot.slane %v3321, 4
        %v3361 = vsel %vm3250, %v3345, %v3360
        %v3362 = vrot.slane %v3231, 4
        %v3363 = vsel %vm3250, %v3362, %v3225
        %v3364 = vrot.slane %v3225, 4
        %v3365 = vsel %vm3250, %v3231, %v3364
        %v3367 = vunpack.c.l.s4 1983009808
        %v3368 = vunpack.c.0.s8 %v3367
        %v3369 = vperm.slane %v3363, %v3368
        %v3371 = vunpack.c.l.s4 1983009808
        %v3372 = vunpack.c.0.s8 %v3371
        %v3373 = vperm.slane %v3365, %v3372
        %v3374 = vrot.slane %v3234, 4
        %v3375 = vsel %vm3250, %v3374, %v3228
        %v3376 = vrot.slane %v3228, 4
        %v3377 = vsel %vm3250, %v3234, %v3376
        %v3379 = vunpack.c.l.s4 1983009808
        %v3380 = vunpack.c.0.s8 %v3379
        %v3381 = vperm.slane %v3375, %v3380
        %v3383 = vunpack.c.l.s4 1983009808
        %v3384 = vunpack.c.0.s8 %v3383
        %v3385 = vperm.slane %v3377, %v3384
        %v3386 = vrot.slane %v3243, 4
        %v3387 = vsel %vm3250, %v3386, %v3237
        %v3388 = vrot.slane %v3237, 4
        %v3389 = vsel %vm3250, %v3243, %v3388
        %v3391 = vunpack.c.l.s4 1983009808
        %v3392 = vunpack.c.0.s8 %v3391
        %v3393 = vperm.slane %v3387, %v3392
        %v3395 = vunpack.c.l.s4 1983009808
        %v3396 = vunpack.c.0.s8 %v3395
        %v3397 = vperm.slane %v3389, %v3396
        %v3398 = vrot.slane %v3246, 4
        %v3399 = vsel %vm3250, %v3398, %v3240
        %v3400 = vrot.slane %v3240, 4
        %v3401 = vsel %vm3250, %v3246, %v3400
        %v3403 = vunpack.c.l.s4 1983009808
        %v3404 = vunpack.c.0.s8 %v3403
        %v3405 = vperm.slane %v3399, %v3404
        %v3407 = vunpack.c.l.s4 1983009808
        %v3408 = vunpack.c.0.s8 %v3407
        %v3409 = vperm.slane %v3401, %v3408
        %v3410 = vrot.slane %v3381, 4
        %v3411 = vsel %vm3250, %v3410, %v3369
        %v3412 = vrot.slane %v3369, 4
        %v3413 = vsel %vm3250, %v3381, %v3412
        %v3415 = vunpack.c.l.s4 1934713408
        %v3416 = vunpack.c.0.s8 %v3415
        %v3417 = vperm.slane %v3411, %v3416
        %v3419 = vunpack.c.l.s4 1934713408
        %v3420 = vunpack.c.0.s8 %v3419
        %v3421 = vperm.slane %v3413, %v3420
        %v3422 = vrot.slane %v3385, 4
        %v3423 = vsel %vm3250, %v3422, %v3373
        %v3424 = vrot.slane %v3373, 4
        %v3425 = vsel %vm3250, %v3385, %v3424
        %v3427 = vunpack.c.l.s4 1934713408
        %v3428 = vunpack.c.0.s8 %v3427
        %v3429 = vperm.slane %v3423, %v3428
        %v3431 = vunpack.c.l.s4 1934713408
        %v3432 = vunpack.c.0.s8 %v3431
        %v3433 = vperm.slane %v3425, %v3432
        %v3434 = vrot.slane %v3405, 4
        %v3435 = vsel %vm3250, %v3434, %v3393
        %v3436 = vrot.slane %v3393, 4
        %v3437 = vsel %vm3250, %v3405, %v3436
        %v3439 = vunpack.c.l.s4 1934713408
        %v3440 = vunpack.c.0.s8 %v3439
        %v3441 = vperm.slane %v3435, %v3440
        %v3443 = vunpack.c.l.s4 1934713408
        %v3444 = vunpack.c.0.s8 %v3443
        %v3445 = vperm.slane %v3437, %v3444
        %v3446 = vrot.slane %v3409, 4
        %v3447 = vsel %vm3250, %v3446, %v3397
        %v3448 = vrot.slane %v3397, 4
        %v3449 = vsel %vm3250, %v3409, %v3448
        %v3451 = vunpack.c.l.s4 1934713408
        %v3452 = vunpack.c.0.s8 %v3451
        %v3453 = vperm.slane %v3447, %v3452
        %v3455 = vunpack.c.l.s4 1934713408
        %v3456 = vunpack.c.0.s8 %v3455
        %v3457 = vperm.slane %v3449, %v3456
        %v3458 = vrot.slane %v3441, 4
        %v3459 = vsel %vm3250, %v3458, %v3417
        %v3460 = vrot.slane %v3417, 4
        %v3461 = vsel %vm3250, %v3441, %v3460
        %v3462 = vrot.slane %v3445, 4
        %v3463 = vsel %vm3250, %v3462, %v3421
        %v3464 = vrot.slane %v3421, 4
        %v3465 = vsel %vm3250, %v3445, %v3464
        %v3466 = vrot.slane %v3453, 4
        %v3467 = vsel %vm3250, %v3466, %v3429
        %v3468 = vrot.slane %v3429, 4
        %v3469 = vsel %vm3250, %v3453, %v3468
        %v3470 = vrot.slane %v3457, 4
        %v3471 = vsel %vm3250, %v3470, %v3433
        %v3472 = vrot.slane %v3433, 4
        %v3473 = vsel %vm3250, %v3457, %v3472
        %v3474 = vrot.slane %v3208, 4
        %v3475 = vsel %vm3250, %v3474, %v3202
        %v3476 = vrot.slane %v3202, 4
        %v3477 = vsel %vm3250, %v3208, %v3476
        %v3479 = vunpack.c.l.s4 1983009808
        %v3480 = vunpack.c.0.s8 %v3479
        %v3481 = vperm.slane %v3475, %v3480
        %v3483 = vunpack.c.l.s4 1983009808
        %v3484 = vunpack.c.0.s8 %v3483
        %v3485 = vperm.slane %v3477, %v3484
        %v3486 = vrot.slane %v3211, 4
        %v3487 = vsel %vm3250, %v3486, %v3205
        %v3488 = vrot.slane %v3205, 4
        %v3489 = vsel %vm3250, %v3211, %v3488
        %v3491 = vunpack.c.l.s4 1983009808
        %v3492 = vunpack.c.0.s8 %v3491
        %v3493 = vperm.slane %v3487, %v3492
        %v3495 = vunpack.c.l.s4 1983009808
        %v3496 = vunpack.c.0.s8 %v3495
        %v3497 = vperm.slane %v3489, %v3496
        %v3498 = vrot.slane %v3220, 4
        %v3499 = vsel %vm3250, %v3498, %v3214
        %v3500 = vrot.slane %v3214, 4
        %v3501 = vsel %vm3250, %v3220, %v3500
        %v3503 = vunpack.c.l.s4 1983009808
        %v3504 = vunpack.c.0.s8 %v3503
        %v3505 = vperm.slane %v3499, %v3504
        %v3507 = vunpack.c.l.s4 1983009808
        %v3508 = vunpack.c.0.s8 %v3507
        %v3509 = vperm.slane %v3501, %v3508
        %v3510 = vrot.slane %v3223, 4
        %v3511 = vsel %vm3250, %v3510, %v3217
        %v3512 = vrot.slane %v3217, 4
        %v3513 = vsel %vm3250, %v3223, %v3512
        %v3515 = vunpack.c.l.s4 1983009808
        %v3516 = vunpack.c.0.s8 %v3515
        %v3517 = vperm.slane %v3511, %v3516
        %v3519 = vunpack.c.l.s4 1983009808
        %v3520 = vunpack.c.0.s8 %v3519
        %v3521 = vperm.slane %v3513, %v3520
        %v3522 = vrot.slane %v3493, 4
        %v3523 = vsel %vm3250, %v3522, %v3481
        %v3524 = vrot.slane %v3481, 4
        %v3525 = vsel %vm3250, %v3493, %v3524
        %v3527 = vunpack.c.l.s4 1934713408
        %v3528 = vunpack.c.0.s8 %v3527
        %v3529 = vperm.slane %v3523, %v3528
        %v3531 = vunpack.c.l.s4 1934713408
        %v3532 = vunpack.c.0.s8 %v3531
        %v3533 = vperm.slane %v3525, %v3532
        %v3534 = vrot.slane %v3497, 4
        %v3535 = vsel %vm3250, %v3534, %v3485
        %v3536 = vrot.slane %v3485, 4
        %v3537 = vsel %vm3250, %v3497, %v3536
        %v3539 = vunpack.c.l.s4 1934713408
        %v3540 = vunpack.c.0.s8 %v3539
        %v3541 = vperm.slane %v3535, %v3540
        %v3543 = vunpack.c.l.s4 1934713408
        %v3544 = vunpack.c.0.s8 %v3543
        %v3545 = vperm.slane %v3537, %v3544
        %v3546 = vrot.slane %v3517, 4
        %v3547 = vsel %vm3250, %v3546, %v3505
        %v3548 = vrot.slane %v3505, 4
        %v3549 = vsel %vm3250, %v3517, %v3548
        %v3551 = vunpack.c.l.s4 1934713408
        %v3552 = vunpack.c.0.s8 %v3551
        %v3553 = vperm.slane %v3547, %v3552
        %v3555 = vunpack.c.l.s4 1934713408
        %v3556 = vunpack.c.0.s8 %v3555
        %v3557 = vperm.slane %v3549, %v3556
        %v3558 = vrot.slane %v3521, 4
        %v3559 = vsel %vm3250, %v3558, %v3509
        %v3560 = vrot.slane %v3509, 4
        %v3561 = vsel %vm3250, %v3521, %v3560
        %v3563 = vunpack.c.l.s4 1934713408
        %v3564 = vunpack.c.0.s8 %v3563
        %v3565 = vperm.slane %v3559, %v3564
        %v3567 = vunpack.c.l.s4 1934713408
        %v3568 = vunpack.c.0.s8 %v3567
        %v3569 = vperm.slane %v3561, %v3568
        %v3570 = vrot.slane %v3553, 4
        %v3571 = vsel %vm3250, %v3570, %v3529
        %v3572 = vrot.slane %v3529, 4
        %v3573 = vsel %vm3250, %v3553, %v3572
        %v3574 = vrot.slane %v3557, 4
        %v3575 = vsel %vm3250, %v3574, %v3533
        %v3576 = vrot.slane %v3533, 4
        %v3577 = vsel %vm3250, %v3557, %v3576
        %v3578 = vrot.slane %v3565, 4
        %v3579 = vsel %vm3250, %v3578, %v3541
        %v3580 = vrot.slane %v3541, 4
        %v3581 = vsel %vm3250, %v3565, %v3580
        %v3582 = vrot.slane %v3569, 4
        %v3583 = vsel %vm3250, %v3582, %v3545
        %v3584 = vrot.slane %v3545, 4
        %v3585 = vsel %vm3250, %v3569, %v3584
        %v3586 = vrot.slane %v3232, 4
        %v3587 = vsel %vm3250, %v3586, %v3226
        %v3588 = vrot.slane %v3226, 4
        %v3589 = vsel %vm3250, %v3232, %v3588
        %v3591 = vunpack.c.l.s4 1983009808
        %v3592 = vunpack.c.0.s8 %v3591
        %v3593 = vperm.slane %v3587, %v3592
        %v3595 = vunpack.c.l.s4 1983009808
        %v3596 = vunpack.c.0.s8 %v3595
        %v3597 = vperm.slane %v3589, %v3596
        %v3598 = vrot.slane %v3235, 4
        %v3599 = vsel %vm3250, %v3598, %v3229
        %v3600 = vrot.slane %v3229, 4
        %v3601 = vsel %vm3250, %v3235, %v3600
        %v3603 = vunpack.c.l.s4 1983009808
        %v3604 = vunpack.c.0.s8 %v3603
        %v3605 = vperm.slane %v3599, %v3604
        %v3607 = vunpack.c.l.s4 1983009808
        %v3608 = vunpack.c.0.s8 %v3607
        %v3609 = vperm.slane %v3601, %v3608
        %v3610 = vrot.slane %v3244, 4
        %v3611 = vsel %vm3250, %v3610, %v3238
        %v3612 = vrot.slane %v3238, 4
        %v3613 = vsel %vm3250, %v3244, %v3612
        %v3615 = vunpack.c.l.s4 1983009808
        %v3616 = vunpack.c.0.s8 %v3615
        %v3617 = vperm.slane %v3611, %v3616
        %v3619 = vunpack.c.l.s4 1983009808
        %v3620 = vunpack.c.0.s8 %v3619
        %v3621 = vperm.slane %v3613, %v3620
        %v3622 = vrot.slane %v3247, 4
        %v3623 = vsel %vm3250, %v3622, %v3241
        %v3624 = vrot.slane %v3241, 4
        %v3625 = vsel %vm3250, %v3247, %v3624
        %v3627 = vunpack.c.l.s4 1983009808
        %v3628 = vunpack.c.0.s8 %v3627
        %v3629 = vperm.slane %v3623, %v3628
        %v3631 = vunpack.c.l.s4 1983009808
        %v3632 = vunpack.c.0.s8 %v3631
        %v3633 = vperm.slane %v3625, %v3632
        %v3634 = vrot.slane %v3605, 4
        %v3635 = vsel %vm3250, %v3634, %v3593
        %v3636 = vrot.slane %v3593, 4
        %v3637 = vsel %vm3250, %v3605, %v3636
        %v3639 = vunpack.c.l.s4 1934713408
        %v3640 = vunpack.c.0.s8 %v3639
        %v3641 = vperm.slane %v3635, %v3640
        %v3643 = vunpack.c.l.s4 1934713408
        %v3644 = vunpack.c.0.s8 %v3643
        %v3645 = vperm.slane %v3637, %v3644
        %v3646 = vrot.slane %v3609, 4
        %v3647 = vsel %vm3250, %v3646, %v3597
        %v3648 = vrot.slane %v3597, 4
        %v3649 = vsel %vm3250, %v3609, %v3648
        %v3651 = vunpack.c.l.s4 1934713408
        %v3652 = vunpack.c.0.s8 %v3651
        %v3653 = vperm.slane %v3647, %v3652
        %v3655 = vunpack.c.l.s4 1934713408
        %v3656 = vunpack.c.0.s8 %v3655
        %v3657 = vperm.slane %v3649, %v3656
        %v3658 = vrot.slane %v3629, 4
        %v3659 = vsel %vm3250, %v3658, %v3617
        %v3660 = vrot.slane %v3617, 4
        %v3661 = vsel %vm3250, %v3629, %v3660
        %v3663 = vunpack.c.l.s4 1934713408
        %v3664 = vunpack.c.0.s8 %v3663
        %v3665 = vperm.slane %v3659, %v3664
        %v3667 = vunpack.c.l.s4 1934713408
        %v3668 = vunpack.c.0.s8 %v3667
        %v3669 = vperm.slane %v3661, %v3668
        %v3670 = vrot.slane %v3633, 4
        %v3671 = vsel %vm3250, %v3670, %v3621
        %v3672 = vrot.slane %v3621, 4
        %v3673 = vsel %vm3250, %v3633, %v3672
        %v3675 = vunpack.c.l.s4 1934713408
        %v3676 = vunpack.c.0.s8 %v3675
        %v3677 = vperm.slane %v3671, %v3676
        %v3679 = vunpack.c.l.s4 1934713408
        %v3680 = vunpack.c.0.s8 %v3679
        %v3681 = vperm.slane %v3673, %v3680
        %v3682 = vrot.slane %v3665, 4
        %v3683 = vsel %vm3250, %v3682, %v3641
        %v3684 = vrot.slane %v3641, 4
        %v3685 = vsel %vm3250, %v3665, %v3684
        %v3686 = vrot.slane %v3669, 4
        %v3687 = vsel %vm3250, %v3686, %v3645
        %v3688 = vrot.slane %v3645, 4
        %v3689 = vsel %vm3250, %v3669, %v3688
        %v3690 = vrot.slane %v3677, 4
        %v3691 = vsel %vm3250, %v3690, %v3653
        %v3692 = vrot.slane %v3653, 4
        %v3693 = vsel %vm3250, %v3677, %v3692
        %v3694 = vrot.slane %v3681, 4
        %v3695 = vsel %vm3250, %v3694, %v3657
        %v3696 = vrot.slane %v3657, 4
        %v3697 = vsel %vm3250, %v3681, %v3696
        %v3698 = vrot.slane %v3209, 4
        %v3699 = vsel %vm3250, %v3698, %v3203
        %v3700 = vrot.slane %v3203, 4
        %v3701 = vsel %vm3250, %v3209, %v3700
        %v3703 = vunpack.c.l.s4 1983009808
        %v3704 = vunpack.c.0.s8 %v3703
        %v3705 = vperm.slane %v3699, %v3704
        %v3707 = vunpack.c.l.s4 1983009808
        %v3708 = vunpack.c.0.s8 %v3707
        %v3709 = vperm.slane %v3701, %v3708
        %v3710 = vrot.slane %v3212, 4
        %v3711 = vsel %vm3250, %v3710, %v3206
        %v3712 = vrot.slane %v3206, 4
        %v3713 = vsel %vm3250, %v3212, %v3712
        %v3715 = vunpack.c.l.s4 1983009808
        %v3716 = vunpack.c.0.s8 %v3715
        %v3717 = vperm.slane %v3711, %v3716
        %v3719 = vunpack.c.l.s4 1983009808
        %v3720 = vunpack.c.0.s8 %v3719
        %v3721 = vperm.slane %v3713, %v3720
        %v3722 = vrot.slane %v3221, 4
        %v3723 = vsel %vm3250, %v3722, %v3215
        %v3724 = vrot.slane %v3215, 4
        %v3725 = vsel %vm3250, %v3221, %v3724
        %v3727 = vunpack.c.l.s4 1983009808
        %v3728 = vunpack.c.0.s8 %v3727
        %v3729 = vperm.slane %v3723, %v3728
        %v3731 = vunpack.c.l.s4 1983009808
        %v3732 = vunpack.c.0.s8 %v3731
        %v3733 = vperm.slane %v3725, %v3732
        %v3734 = vrot.slane %v3224, 4
        %v3735 = vsel %vm3250, %v3734, %v3218
        %v3736 = vrot.slane %v3218, 4
        %v3737 = vsel %vm3250, %v3224, %v3736
        %v3739 = vunpack.c.l.s4 1983009808
        %v3740 = vunpack.c.0.s8 %v3739
        %v3741 = vperm.slane %v3735, %v3740
        %v3743 = vunpack.c.l.s4 1983009808
        %v3744 = vunpack.c.0.s8 %v3743
        %v3745 = vperm.slane %v3737, %v3744
        %v3746 = vrot.slane %v3717, 4
        %v3747 = vsel %vm3250, %v3746, %v3705
        %v3748 = vrot.slane %v3705, 4
        %v3749 = vsel %vm3250, %v3717, %v3748
        %v3751 = vunpack.c.l.s4 1934713408
        %v3752 = vunpack.c.0.s8 %v3751
        %v3753 = vperm.slane %v3747, %v3752
        %v3755 = vunpack.c.l.s4 1934713408
        %v3756 = vunpack.c.0.s8 %v3755
        %v3757 = vperm.slane %v3749, %v3756
        %v3758 = vrot.slane %v3721, 4
        %v3759 = vsel %vm3250, %v3758, %v3709
        %v3760 = vrot.slane %v3709, 4
        %v3761 = vsel %vm3250, %v3721, %v3760
        %v3763 = vunpack.c.l.s4 1934713408
        %v3764 = vunpack.c.0.s8 %v3763
        %v3765 = vperm.slane %v3759, %v3764
        %v3767 = vunpack.c.l.s4 1934713408
        %v3768 = vunpack.c.0.s8 %v3767
        %v3769 = vperm.slane %v3761, %v3768
        %v3770 = vrot.slane %v3741, 4
        %v3771 = vsel %vm3250, %v3770, %v3729
        %v3772 = vrot.slane %v3729, 4
        %v3773 = vsel %vm3250, %v3741, %v3772
        %v3775 = vunpack.c.l.s4 1934713408
        %v3776 = vunpack.c.0.s8 %v3775
        %v3777 = vperm.slane %v3771, %v3776
        %v3779 = vunpack.c.l.s4 1934713408
        %v3780 = vunpack.c.0.s8 %v3779
        %v3781 = vperm.slane %v3773, %v3780
        %v3782 = vrot.slane %v3745, 4
        %v3783 = vsel %vm3250, %v3782, %v3733
        %v3784 = vrot.slane %v3733, 4
        %v3785 = vsel %vm3250, %v3745, %v3784
        %v3787 = vunpack.c.l.s4 1934713408
        %v3788 = vunpack.c.0.s8 %v3787
        %v3789 = vperm.slane %v3783, %v3788
        %v3791 = vunpack.c.l.s4 1934713408
        %v3792 = vunpack.c.0.s8 %v3791
        %v3793 = vperm.slane %v3785, %v3792
        %v3794 = vrot.slane %v3777, 4
        %v3795 = vsel %vm3250, %v3794, %v3753
        %v3796 = vrot.slane %v3753, 4
        %v3797 = vsel %vm3250, %v3777, %v3796
        %v3798 = vrot.slane %v3781, 4
        %v3799 = vsel %vm3250, %v3798, %v3757
        %v3800 = vrot.slane %v3757, 4
        %v3801 = vsel %vm3250, %v3781, %v3800
        %v3802 = vrot.slane %v3789, 4
        %v3803 = vsel %vm3250, %v3802, %v3765
        %v3804 = vrot.slane %v3765, 4
        %v3805 = vsel %vm3250, %v3789, %v3804
        %v3806 = vrot.slane %v3793, 4
        %v3807 = vsel %vm3250, %v3806, %v3769
        %v3808 = vrot.slane %v3769, 4
        %v3809 = vsel %vm3250, %v3793, %v3808
        %v3810 = vrot.slane %v3233, 4
        %v3811 = vsel %vm3250, %v3810, %v3227
        %v3812 = vrot.slane %v3227, 4
        %v3813 = vsel %vm3250, %v3233, %v3812
        %v3815 = vunpack.c.l.s4 1983009808
        %v3816 = vunpack.c.0.s8 %v3815
        %v3817 = vperm.slane %v3811, %v3816
        %v3819 = vunpack.c.l.s4 1983009808
        %v3820 = vunpack.c.0.s8 %v3819
        %v3821 = vperm.slane %v3813, %v3820
        %v3822 = vrot.slane %v3236, 4
        %v3823 = vsel %vm3250, %v3822, %v3230
        %v3824 = vrot.slane %v3230, 4
        %v3825 = vsel %vm3250, %v3236, %v3824
        %v3827 = vunpack.c.l.s4 1983009808
        %v3828 = vunpack.c.0.s8 %v3827
        %v3829 = vperm.slane %v3823, %v3828
        %v3831 = vunpack.c.l.s4 1983009808
        %v3832 = vunpack.c.0.s8 %v3831
        %v3833 = vperm.slane %v3825, %v3832
        %v3834 = vrot.slane %v3245, 4
        %v3835 = vsel %vm3250, %v3834, %v3239
        %v3836 = vrot.slane %v3239, 4
        %v3837 = vsel %vm3250, %v3245, %v3836
        %v3839 = vunpack.c.l.s4 1983009808
        %v3840 = vunpack.c.0.s8 %v3839
        %v3841 = vperm.slane %v3835, %v3840
        %v3843 = vunpack.c.l.s4 1983009808
        %v3844 = vunpack.c.0.s8 %v3843
        %v3845 = vperm.slane %v3837, %v3844
        %v3846 = vrot.slane %v3248, 4
        %v3847 = vsel %vm3250, %v3846, %v3242
        %v3848 = vrot.slane %v3242, 4
        %v3849 = vsel %vm3250, %v3248, %v3848
        %v3851 = vunpack.c.l.s4 1983009808
        %v3852 = vunpack.c.0.s8 %v3851
        %v3853 = vperm.slane %v3847, %v3852
        %v3855 = vunpack.c.l.s4 1983009808
        %v3856 = vunpack.c.0.s8 %v3855
        %v3857 = vperm.slane %v3849, %v3856
        %v3858 = vrot.slane %v3829, 4
        %v3859 = vsel %vm3250, %v3858, %v3817
        %v3860 = vrot.slane %v3817, 4
        %v3861 = vsel %vm3250, %v3829, %v3860
        %v3863 = vunpack.c.l.s4 1934713408
        %v3864 = vunpack.c.0.s8 %v3863
        %v3865 = vperm.slane %v3859, %v3864
        %v3867 = vunpack.c.l.s4 1934713408
        %v3868 = vunpack.c.0.s8 %v3867
        %v3869 = vperm.slane %v3861, %v3868
        %v3870 = vrot.slane %v3833, 4
        %v3871 = vsel %vm3250, %v3870, %v3821
        %v3872 = vrot.slane %v3821, 4
        %v3873 = vsel %vm3250, %v3833, %v3872
        %v3875 = vunpack.c.l.s4 1934713408
        %v3876 = vunpack.c.0.s8 %v3875
        %v3877 = vperm.slane %v3871, %v3876
        %v3879 = vunpack.c.l.s4 1934713408
        %v3880 = vunpack.c.0.s8 %v3879
        %v3881 = vperm.slane %v3873, %v3880
        %v3882 = vrot.slane %v3853, 4
        %v3883 = vsel %vm3250, %v3882, %v3841
        %v3884 = vrot.slane %v3841, 4
        %v3885 = vsel %vm3250, %v3853, %v3884
        %v3887 = vunpack.c.l.s4 1934713408
        %v3888 = vunpack.c.0.s8 %v3887
        %v3889 = vperm.slane %v3883, %v3888
        %v3891 = vunpack.c.l.s4 1934713408
        %v3892 = vunpack.c.0.s8 %v3891
        %v3893 = vperm.slane %v3885, %v3892
        %v3894 = vrot.slane %v3857, 4
        %v3895 = vsel %vm3250, %v3894, %v3845
        %v3896 = vrot.slane %v3845, 4
        %v3897 = vsel %vm3250, %v3857, %v3896
        %v3899 = vunpack.c.l.s4 1934713408
        %v3900 = vunpack.c.0.s8 %v3899
        %v3901 = vperm.slane %v3895, %v3900
        %v3903 = vunpack.c.l.s4 1934713408
        %v3904 = vunpack.c.0.s8 %v3903
        %v3905 = vperm.slane %v3897, %v3904
        %v3906 = vrot.slane %v3889, 4
        %v3907 = vsel %vm3250, %v3906, %v3865
        %v3908 = vrot.slane %v3865, 4
        %v3909 = vsel %vm3250, %v3889, %v3908
        %v3910 = vrot.slane %v3893, 4
        %v3911 = vsel %vm3250, %v3910, %v3869
        %v3912 = vrot.slane %v3869, 4
        %v3913 = vsel %vm3250, %v3893, %v3912
        %v3914 = vrot.slane %v3901, 4
        %v3915 = vsel %vm3250, %v3914, %v3877
        %v3916 = vrot.slane %v3877, 4
        %v3917 = vsel %vm3250, %v3901, %v3916
        %v3918 = vrot.slane %v3905, 4
        %v3919 = vsel %vm3250, %v3918, %v3881
        %v3920 = vrot.slane %v3881, 4
        %v3921 = vsel %vm3250, %v3905, %v3920
        %v3922 = vpack.c.bf16 %v3347, %v3347
        %v3923 = vpack.c.bf16 %v3459, %v3459
        %v3924 = vpack.c.bf16 %v3349, %v3349
        %v3925 = vpack.c.bf16 %v3461, %v3461
        %v3926 = vpack.c.bf16 %v3351, %v3351
        %v3927 = vpack.c.bf16 %v3463, %v3463
        %v3928 = vpack.c.bf16 %v3353, %v3353
        %v3929 = vpack.c.bf16 %v3465, %v3465
        %v3930 = vpack.c.bf16 %v3355, %v3355
        %v3931 = vpack.c.bf16 %v3467, %v3467
        %v3932 = vpack.c.bf16 %v3357, %v3357
        %v3933 = vpack.c.bf16 %v3469, %v3469
        %v3934 = vpack.c.bf16 %v3359, %v3359
        %v3935 = vpack.c.bf16 %v3471, %v3471
        %v3936 = vpack.c.bf16 %v3361, %v3361
        %v3937 = vpack.c.bf16 %v3473, %v3473
        %v3938 = vpack.c.bf16 %v3571, %v3571
        %v3939 = vpack.c.bf16 %v3683, %v3683
        %v3940 = vpack.c.bf16 %v3573, %v3573
        %v3941 = vpack.c.bf16 %v3685, %v3685
        %v3942 = vpack.c.bf16 %v3575, %v3575
        %v3943 = vpack.c.bf16 %v3687, %v3687
        %v3944 = vpack.c.bf16 %v3577, %v3577
        %v3945 = vpack.c.bf16 %v3689, %v3689
        %v3946 = vpack.c.bf16 %v3579, %v3579
        %v3947 = vpack.c.bf16 %v3691, %v3691
        %v3948 = vpack.c.bf16 %v3581, %v3581
        %v3949 = vpack.c.bf16 %v3693, %v3693
        %v3950 = vpack.c.bf16 %v3583, %v3583
        %v3951 = vpack.c.bf16 %v3695, %v3695
        %v3952 = vpack.c.bf16 %v3585, %v3585
        %v3953 = vpack.c.bf16 %v3697, %v3697
        %v3954 = vpack.c.bf16 %v3795, %v3795
        %v3955 = vpack.c.bf16 %v3907, %v3907
        %v3956 = vpack.c.bf16 %v3797, %v3797
        %v3957 = vpack.c.bf16 %v3909, %v3909
        %v3958 = vpack.c.bf16 %v3799, %v3799
        %v3959 = vpack.c.bf16 %v3911, %v3911
        %v3960 = vpack.c.bf16 %v3801, %v3801
        %v3961 = vpack.c.bf16 %v3913, %v3913
        %v3962 = vpack.c.bf16 %v3803, %v3803
        %v3963 = vpack.c.bf16 %v3915, %v3915
        %v3964 = vpack.c.bf16 %v3805, %v3805
        %v3965 = vpack.c.bf16 %v3917, %v3917
        %v3966 = vpack.c.bf16 %v3807, %v3807
        %v3967 = vpack.c.bf16 %v3919, %v3919
        %v3968 = vpack.c.bf16 %v3809, %v3809
        %v3969 = vpack.c.bf16 %v3921, %v3921
        %v3970 = vlaneseq
        %v3971 = vshrl.u32 %v3970, 7
        %v3972 = vadd.s32 %v3971, 8
        %v3973 = vstv %s2953
        %v3974 = vadd.s32 %v3971, %v3973
        %v3975 = vadd.s32 %v3972, %v3973
        %v3976 = vlaneseq
        %v3977 = vand.u32 %v3976, 127
        %vm3978 = vcmp.eq.s32.totalorder %v3974, %v3977
        %vm3979 = vcmp.eq.s32.totalorder %v3975, %v3977
        %v3980 = vsel %vm3978, -1e+30, 0.0
        %v3981 = vsel %vm3979, -1e+30, 0.0
        %v3984 = vunpack.c.l.b16 %v3922
        %v3985 = vunpack.c.l.b16 %v3923
        %v3986 = vpack.c.b16 %v3985, %v3984
        %v3989 = vunpack.c.l.b16 %v3105
        %v3990 = vunpack.c.l.b16 %v3106
        %v3991 = vpack.c.b16 %v3990, %v3989
        %vm3992 = vcmask 31744
        %v3994 = vsel %vm3992, %v3986, 0
        %v3997 = vsel %vm3992, %v3991, 0
        %3999 = vmatpush.bf16.xpose.msra.mxu0 0
        %4000 = vmatpush.bf16.xpose.msra.mxu0 0
        %4001 = vmatpush.bf16.xpose.msra.mxu0 0
        %4002 = vmatpush.bf16.xpose.msra.mxu0 0
        %4003 = vmatpush.bf16.xpose.msra.mxu0 0
        %4004 = vmatpush.bf16.xpose.msra.mxu0 0
        %4005 = vmatpush.bf16.xpose.msra.mxu0 0
        %4006 = vmatpush.bf16.xpose.msra.mxu0 %v3997
        %4007 = vmatmul.bf16.gmra.mxu0 %v3994
        %v4008 = vpop.f32.mrf.mxu0
        %v4009 = vadd.f32 %v3980, %v4008
        %v4010 = vpop.f32.mrf.mxu0
        %v4011 = vadd.f32 %v3981, %v4010
        %4012 = vdwg.mxu0
        %v4015 = vunpack.c.l.b16 %v3924
        %v4016 = vunpack.c.l.b16 %v3925
        %v4017 = vpack.c.b16 %v4016, %v4015
        %v4020 = vunpack.c.l.b16 %v3107
        %v4021 = vunpack.c.l.b16 %v3108
        %v4022 = vpack.c.b16 %v4021, %v4020
        %v4024 = vsel %vm3992, %v4017, 0
        %v4027 = vsel %vm3992, %v4022, 0
        %4029 = vmatpush.bf16.xpose.msra.mxu0 0
        %4030 = vmatpush.bf16.xpose.msra.mxu0 0
        %4031 = vmatpush.bf16.xpose.msra.mxu0 0
        %4032 = vmatpush.bf16.xpose.msra.mxu0 0
        %4033 = vmatpush.bf16.xpose.msra.mxu0 0
        %4034 = vmatpush.bf16.xpose.msra.mxu0 0
        %4035 = vmatpush.bf16.xpose.msra.mxu0 0
        %4036 = vmatpush.bf16.xpose.msra.mxu0 %v4027
        %4037 = vmatmul.bf16.gmra.mxu0 %v4024
        %v4038 = vpop.f32.mrf.mxu0
        %v4039 = vadd.f32 %v3980, %v4038
        %v4040 = vpop.f32.mrf.mxu0
        %v4041 = vadd.f32 %v3981, %v4040
        %4042 = vdwg.mxu0
        %v4045 = vunpack.c.l.b16 %v3926
        %v4046 = vunpack.c.l.b16 %v3927
        %v4047 = vpack.c.b16 %v4046, %v4045
        %v4050 = vunpack.c.l.b16 %v3109
        %v4051 = vunpack.c.l.b16 %v3110
        %v4052 = vpack.c.b16 %v4051, %v4050
        %v4054 = vsel %vm3992, %v4047, 0
        %v4057 = vsel %vm3992, %v4052, 0
        %4059 = vmatpush.bf16.xpose.msra.mxu0 0
        %4060 = vmatpush.bf16.xpose.msra.mxu0 0
        %4061 = vmatpush.bf16.xpose.msra.mxu0 0
        %4062 = vmatpush.bf16.xpose.msra.mxu0 0
        %4063 = vmatpush.bf16.xpose.msra.mxu0 0
        %4064 = vmatpush.bf16.xpose.msra.mxu0 0
        %4065 = vmatpush.bf16.xpose.msra.mxu0 0
        %4066 = vmatpush.bf16.xpose.msra.mxu0 %v4057
        %4067 = vmatmul.bf16.gmra.mxu0 %v4054
        %v4068 = vpop.f32.mrf.mxu0
        %v4069 = vadd.f32 %v3980, %v4068
        %v4070 = vpop.f32.mrf.mxu0
        %v4071 = vadd.f32 %v3981, %v4070
        %4072 = vdwg.mxu0
        %v4075 = vunpack.c.l.b16 %v3928
        %v4076 = vunpack.c.l.b16 %v3929
        %v4077 = vpack.c.b16 %v4076, %v4075
        %v4080 = vunpack.c.l.b16 %v3111
        %v4081 = vunpack.c.l.b16 %v3112
        %v4082 = vpack.c.b16 %v4081, %v4080
        %v4084 = vsel %vm3992, %v4077, 0
        %v4087 = vsel %vm3992, %v4082, 0
        %4089 = vmatpush.bf16.xpose.msra.mxu0 0
        %4090 = vmatpush.bf16.xpose.msra.mxu0 0
        %4091 = vmatpush.bf16.xpose.msra.mxu0 0
        %4092 = vmatpush.bf16.xpose.msra.mxu0 0
        %4093 = vmatpush.bf16.xpose.msra.mxu0 0
        %4094 = vmatpush.bf16.xpose.msra.mxu0 0
        %4095 = vmatpush.bf16.xpose.msra.mxu0 0
        %4096 = vmatpush.bf16.xpose.msra.mxu0 %v4087
        %4097 = vmatmul.bf16.gmra.mxu0 %v4084
        %v4098 = vpop.f32.mrf.mxu0
        %v4099 = vadd.f32 %v3980, %v4098
        %v4100 = vpop.f32.mrf.mxu0
        %v4101 = vadd.f32 %v3981, %v4100
        %4102 = vdwg.mxu0
        %v4105 = vunpack.c.l.b16 %v3930
        %v4106 = vunpack.c.l.b16 %v3931
        %v4107 = vpack.c.b16 %v4106, %v4105
        %v4110 = vunpack.c.l.b16 %v3113
        %v4111 = vunpack.c.l.b16 %v3114
        %v4112 = vpack.c.b16 %v4111, %v4110
        %v4114 = vsel %vm3992, %v4107, 0
        %v4117 = vsel %vm3992, %v4112, 0
        %4119 = vmatpush.bf16.xpose.msra.mxu0 0
        %4120 = vmatpush.bf16.xpose.msra.mxu0 0
        %4121 = vmatpush.bf16.xpose.msra.mxu0 0
        %4122 = vmatpush.bf16.xpose.msra.mxu0 0
        %4123 = vmatpush.bf16.xpose.msra.mxu0 0
        %4124 = vmatpush.bf16.xpose.msra.mxu0 0
        %4125 = vmatpush.bf16.xpose.msra.mxu0 0
        %4126 = vmatpush.bf16.xpose.msra.mxu0 %v4117
        %4127 = vmatmul.bf16.gmra.mxu0 %v4114
        %v4128 = vpop.f32.mrf.mxu0
        %v4129 = vadd.f32 %v3980, %v4128
        %v4130 = vpop.f32.mrf.mxu0
        %v4131 = vadd.f32 %v3981, %v4130
        %4132 = vdwg.mxu0
        %v4135 = vunpack.c.l.b16 %v3932
        %v4136 = vunpack.c.l.b16 %v3933
        %v4137 = vpack.c.b16 %v4136, %v4135
        %v4140 = vunpack.c.l.b16 %v3115
        %v4141 = vunpack.c.l.b16 %v3116
        %v4142 = vpack.c.b16 %v4141, %v4140
        %v4144 = vsel %vm3992, %v4137, 0
        %v4147 = vsel %vm3992, %v4142, 0
        %4149 = vmatpush.bf16.xpose.msra.mxu0 0
        %4150 = vmatpush.bf16.xpose.msra.mxu0 0
        %4151 = vmatpush.bf16.xpose.msra.mxu0 0
        %4152 = vmatpush.bf16.xpose.msra.mxu0 0
        %4153 = vmatpush.bf16.xpose.msra.mxu0 0
        %4154 = vmatpush.bf16.xpose.msra.mxu0 0
        %4155 = vmatpush.bf16.xpose.msra.mxu0 0
        %4156 = vmatpush.bf16.xpose.msra.mxu0 %v4147
        %4157 = vmatmul.bf16.gmra.mxu0 %v4144
        %v4158 = vpop.f32.mrf.mxu0
        %v4159 = vadd.f32 %v3980, %v4158
        %v4160 = vpop.f32.mrf.mxu0
        %v4161 = vadd.f32 %v3981, %v4160
        %4162 = vdwg.mxu0
        %v4165 = vunpack.c.l.b16 %v3934
        %v4166 = vunpack.c.l.b16 %v3935
        %v4167 = vpack.c.b16 %v4166, %v4165
        %v4170 = vunpack.c.l.b16 %v3117
        %v4171 = vunpack.c.l.b16 %v3118
        %v4172 = vpack.c.b16 %v4171, %v4170
        %v4174 = vsel %vm3992, %v4167, 0
        %v4177 = vsel %vm3992, %v4172, 0
        %4179 = vmatpush.bf16.xpose.msra.mxu0 0
        %4180 = vmatpush.bf16.xpose.msra.mxu0 0
        %4181 = vmatpush.bf16.xpose.msra.mxu0 0
        %4182 = vmatpush.bf16.xpose.msra.mxu0 0
        %4183 = vmatpush.bf16.xpose.msra.mxu0 0
        %4184 = vmatpush.bf16.xpose.msra.mxu0 0
        %4185 = vmatpush.bf16.xpose.msra.mxu0 0
        %4186 = vmatpush.bf16.xpose.msra.mxu0 %v4177
        %4187 = vmatmul.bf16.gmra.mxu0 %v4174
        %v4188 = vpop.f32.mrf.mxu0
        %v4189 = vadd.f32 %v3980, %v4188
        %v4190 = vpop.f32.mrf.mxu0
        %v4191 = vadd.f32 %v3981, %v4190
        %4192 = vdwg.mxu0
        %v4195 = vunpack.c.l.b16 %v3936
        %v4196 = vunpack.c.l.b16 %v3937
        %v4197 = vpack.c.b16 %v4196, %v4195
        %v4200 = vunpack.c.l.b16 %v3119
        %v4201 = vunpack.c.l.b16 %v3120
        %v4202 = vpack.c.b16 %v4201, %v4200
        %v4204 = vsel %vm3992, %v4197, 0
        %v4207 = vsel %vm3992, %v4202, 0
        %4209 = vmatpush.bf16.xpose.msra.mxu0 0
        %4210 = vmatpush.bf16.xpose.msra.mxu0 0
        %4211 = vmatpush.bf16.xpose.msra.mxu0 0
        %4212 = vmatpush.bf16.xpose.msra.mxu0 0
        %4213 = vmatpush.bf16.xpose.msra.mxu0 0
        %4214 = vmatpush.bf16.xpose.msra.mxu0 0
        %4215 = vmatpush.bf16.xpose.msra.mxu0 0
        %4216 = vmatpush.bf16.xpose.msra.mxu0 %v4207
        %4217 = vmatmul.bf16.gmra.mxu0 %v4204
        %v4218 = vpop.f32.mrf.mxu0
        %v4219 = vadd.f32 %v3980, %v4218
        %v4220 = vpop.f32.mrf.mxu0
        %v4221 = vadd.f32 %v3981, %v4220
        %4222 = vdwg.mxu0
        %v4225 = vunpack.c.l.b16 %v3938
        %v4226 = vunpack.c.l.b16 %v3939
        %v4227 = vpack.c.b16 %v4226, %v4225
        %v4230 = vunpack.c.l.b16 %v3121
        %v4231 = vunpack.c.l.b16 %v3122
        %v4232 = vpack.c.b16 %v4231, %v4230
        %v4234 = vsel %vm3992, %v4227, 0
        %v4237 = vsel %vm3992, %v4232, 0
        %4239 = vmatpush.bf16.xpose.msra.mxu0 0
        %4240 = vmatpush.bf16.xpose.msra.mxu0 0
        %4241 = vmatpush.bf16.xpose.msra.mxu0 0
        %4242 = vmatpush.bf16.xpose.msra.mxu0 0
        %4243 = vmatpush.bf16.xpose.msra.mxu0 0
        %4244 = vmatpush.bf16.xpose.msra.mxu0 0
        %4245 = vmatpush.bf16.xpose.msra.mxu0 0
        %4246 = vmatpush.bf16.xpose.msra.mxu0 %v4237
        %4247 = vmatmul.bf16.gmra.mxu0 %v4234
        %v4248 = vpop.f32.mrf.mxu0
        %v4249 = vadd.f32 %v3980, %v4248
        %v4250 = vpop.f32.mrf.mxu0
        %v4251 = vadd.f32 %v3981, %v4250
        %4252 = vdwg.mxu0
        %v4255 = vunpack.c.l.b16 %v3940
        %v4256 = vunpack.c.l.b16 %v3941
        %v4257 = vpack.c.b16 %v4256, %v4255
        %v4260 = vunpack.c.l.b16 %v3123
        %v4261 = vunpack.c.l.b16 %v3124
        %v4262 = vpack.c.b16 %v4261, %v4260
        %v4264 = vsel %vm3992, %v4257, 0
        %v4267 = vsel %vm3992, %v4262, 0
        %4269 = vmatpush.bf16.xpose.msra.mxu0 0
        %4270 = vmatpush.bf16.xpose.msra.mxu0 0
        %4271 = vmatpush.bf16.xpose.msra.mxu0 0
        %4272 = vmatpush.bf16.xpose.msra.mxu0 0
        %4273 = vmatpush.bf16.xpose.msra.mxu0 0
        %4274 = vmatpush.bf16.xpose.msra.mxu0 0
        %4275 = vmatpush.bf16.xpose.msra.mxu0 0
        %4276 = vmatpush.bf16.xpose.msra.mxu0 %v4267
        %4277 = vmatmul.bf16.gmra.mxu0 %v4264
        %v4278 = vpop.f32.mrf.mxu0
        %v4279 = vadd.f32 %v3980, %v4278
        %v4280 = vpop.f32.mrf.mxu0
        %v4281 = vadd.f32 %v3981, %v4280
        %4282 = vdwg.mxu0
        %v4285 = vunpack.c.l.b16 %v3942
        %v4286 = vunpack.c.l.b16 %v3943
        %v4287 = vpack.c.b16 %v4286, %v4285
        %v4290 = vunpack.c.l.b16 %v3125
        %v4291 = vunpack.c.l.b16 %v3126
        %v4292 = vpack.c.b16 %v4291, %v4290
        %v4294 = vsel %vm3992, %v4287, 0
        %v4297 = vsel %vm3992, %v4292, 0
        %4299 = vmatpush.bf16.xpose.msra.mxu0 0
        %4300 = vmatpush.bf16.xpose.msra.mxu0 0
        %4301 = vmatpush.bf16.xpose.msra.mxu0 0
        %4302 = vmatpush.bf16.xpose.msra.mxu0 0
        %4303 = vmatpush.bf16.xpose.msra.mxu0 0
        %4304 = vmatpush.bf16.xpose.msra.mxu0 0
        %4305 = vmatpush.bf16.xpose.msra.mxu0 0
        %4306 = vmatpush.bf16.xpose.msra.mxu0 %v4297
        %4307 = vmatmul.bf16.gmra.mxu0 %v4294
        %v4308 = vpop.f32.mrf.mxu0
        %v4309 = vadd.f32 %v3980, %v4308
        %v4310 = vpop.f32.mrf.mxu0
        %v4311 = vadd.f32 %v3981, %v4310
        %4312 = vdwg.mxu0
        %v4315 = vunpack.c.l.b16 %v3944
        %v4316 = vunpack.c.l.b16 %v3945
        %v4317 = vpack.c.b16 %v4316, %v4315
        %v4320 = vunpack.c.l.b16 %v3127
        %v4321 = vunpack.c.l.b16 %v3128
        %v4322 = vpack.c.b16 %v4321, %v4320
        %v4324 = vsel %vm3992, %v4317, 0
        %v4327 = vsel %vm3992, %v4322, 0
        %4329 = vmatpush.bf16.xpose.msra.mxu0 0
        %4330 = vmatpush.bf16.xpose.msra.mxu0 0
        %4331 = vmatpush.bf16.xpose.msra.mxu0 0
        %4332 = vmatpush.bf16.xpose.msra.mxu0 0
        %4333 = vmatpush.bf16.xpose.msra.mxu0 0
        %4334 = vmatpush.bf16.xpose.msra.mxu0 0
        %4335 = vmatpush.bf16.xpose.msra.mxu0 0
        %4336 = vmatpush.bf16.xpose.msra.mxu0 %v4327
        %4337 = vmatmul.bf16.gmra.mxu0 %v4324
        %v4338 = vpop.f32.mrf.mxu0
        %v4339 = vadd.f32 %v3980, %v4338
        %v4340 = vpop.f32.mrf.mxu0
        %v4341 = vadd.f32 %v3981, %v4340
        %4342 = vdwg.mxu0
        %v4345 = vunpack.c.l.b16 %v3946
        %v4346 = vunpack.c.l.b16 %v3947
        %v4347 = vpack.c.b16 %v4346, %v4345
        %v4350 = vunpack.c.l.b16 %v3129
        %v4351 = vunpack.c.l.b16 %v3130
        %v4352 = vpack.c.b16 %v4351, %v4350
        %v4354 = vsel %vm3992, %v4347, 0
        %v4357 = vsel %vm3992, %v4352, 0
        %4359 = vmatpush.bf16.xpose.msra.mxu0 0
        %4360 = vmatpush.bf16.xpose.msra.mxu0 0
        %4361 = vmatpush.bf16.xpose.msra.mxu0 0
        %4362 = vmatpush.bf16.xpose.msra.mxu0 0
        %4363 = vmatpush.bf16.xpose.msra.mxu0 0
        %4364 = vmatpush.bf16.xpose.msra.mxu0 0
        %4365 = vmatpush.bf16.xpose.msra.mxu0 0
        %4366 = vmatpush.bf16.xpose.msra.mxu0 %v4357
        %4367 = vmatmul.bf16.gmra.mxu0 %v4354
        %v4368 = vpop.f32.mrf.mxu0
        %v4369 = vadd.f32 %v3980, %v4368
        %v4370 = vpop.f32.mrf.mxu0
        %v4371 = vadd.f32 %v3981, %v4370
        %4372 = vdwg.mxu0
        %v4375 = vunpack.c.l.b16 %v3948
        %v4376 = vunpack.c.l.b16 %v3949
        %v4377 = vpack.c.b16 %v4376, %v4375
        %v4380 = vunpack.c.l.b16 %v3131
        %v4381 = vunpack.c.l.b16 %v3132
        %v4382 = vpack.c.b16 %v4381, %v4380
        %v4384 = vsel %vm3992, %v4377, 0
        %v4387 = vsel %vm3992, %v4382, 0
        %4389 = vmatpush.bf16.xpose.msra.mxu0 0
        %4390 = vmatpush.bf16.xpose.msra.mxu0 0
        %4391 = vmatpush.bf16.xpose.msra.mxu0 0
        %4392 = vmatpush.bf16.xpose.msra.mxu0 0
        %4393 = vmatpush.bf16.xpose.msra.mxu0 0
        %4394 = vmatpush.bf16.xpose.msra.mxu0 0
        %4395 = vmatpush.bf16.xpose.msra.mxu0 0
        %4396 = vmatpush.bf16.xpose.msra.mxu0 %v4387
        %4397 = vmatmul.bf16.gmra.mxu0 %v4384
        %v4398 = vpop.f32.mrf.mxu0
        %v4399 = vadd.f32 %v3980, %v4398
        %v4400 = vpop.f32.mrf.mxu0
        %v4401 = vadd.f32 %v3981, %v4400
        %4402 = vdwg.mxu0
        %v4405 = vunpack.c.l.b16 %v3950
        %v4406 = vunpack.c.l.b16 %v3951
        %v4407 = vpack.c.b16 %v4406, %v4405
        %v4410 = vunpack.c.l.b16 %v3133
        %v4411 = vunpack.c.l.b16 %v3134
        %v4412 = vpack.c.b16 %v4411, %v4410
        %v4414 = vsel %vm3992, %v4407, 0
        %v4417 = vsel %vm3992, %v4412, 0
        %4419 = vmatpush.bf16.xpose.msra.mxu0 0
        %4420 = vmatpush.bf16.xpose.msra.mxu0 0
        %4421 = vmatpush.bf16.xpose.msra.mxu0 0
        %4422 = vmatpush.bf16.xpose.msra.mxu0 0
        %4423 = vmatpush.bf16.xpose.msra.mxu0 0
        %4424 = vmatpush.bf16.xpose.msra.mxu0 0
        %4425 = vmatpush.bf16.xpose.msra.mxu0 0
        %4426 = vmatpush.bf16.xpose.msra.mxu0 %v4417
        %4427 = vmatmul.bf16.gmra.mxu0 %v4414
        %v4428 = vpop.f32.mrf.mxu0
        %v4429 = vadd.f32 %v3980, %v4428
        %v4430 = vpop.f32.mrf.mxu0
        %v4431 = vadd.f32 %v3981, %v4430
        %4432 = vdwg.mxu0
        %v4435 = vunpack.c.l.b16 %v3952
        %v4436 = vunpack.c.l.b16 %v3953
        %v4437 = vpack.c.b16 %v4436, %v4435
        %v4440 = vunpack.c.l.b16 %v3135
        %v4441 = vunpack.c.l.b16 %v3136
        %v4442 = vpack.c.b16 %v4441, %v4440
        %v4444 = vsel %vm3992, %v4437, 0
        %v4447 = vsel %vm3992, %v4442, 0
        %4449 = vmatpush.bf16.xpose.msra.mxu0 0
        %4450 = vmatpush.bf16.xpose.msra.mxu0 0
        %4451 = vmatpush.bf16.xpose.msra.mxu0 0
        %4452 = vmatpush.bf16.xpose.msra.mxu0 0
        %4453 = vmatpush.bf16.xpose.msra.mxu0 0
        %4454 = vmatpush.bf16.xpose.msra.mxu0 0
        %4455 = vmatpush.bf16.xpose.msra.mxu0 0
        %4456 = vmatpush.bf16.xpose.msra.mxu0 %v4447
        %4457 = vmatmul.bf16.gmra.mxu0 %v4444
        %v4458 = vpop.f32.mrf.mxu0
        %v4459 = vadd.f32 %v3980, %v4458
        %v4460 = vpop.f32.mrf.mxu0
        %v4461 = vadd.f32 %v3981, %v4460
        %4462 = vdwg.mxu0
        %v4465 = vunpack.c.l.b16 %v3954
        %v4466 = vunpack.c.l.b16 %v3955
        %v4467 = vpack.c.b16 %v4466, %v4465
        %v4470 = vunpack.c.l.b16 %v3137
        %v4471 = vunpack.c.l.b16 %v3138
        %v4472 = vpack.c.b16 %v4471, %v4470
        %v4474 = vsel %vm3992, %v4467, 0
        %v4477 = vsel %vm3992, %v4472, 0
        %4479 = vmatpush.bf16.xpose.msra.mxu0 0
        %4480 = vmatpush.bf16.xpose.msra.mxu0 0
        %4481 = vmatpush.bf16.xpose.msra.mxu0 0
        %4482 = vmatpush.bf16.xpose.msra.mxu0 0
        %4483 = vmatpush.bf16.xpose.msra.mxu0 0
        %4484 = vmatpush.bf16.xpose.msra.mxu0 0
        %4485 = vmatpush.bf16.xpose.msra.mxu0 0
        %4486 = vmatpush.bf16.xpose.msra.mxu0 %v4477
        %4487 = vmatmul.bf16.gmra.mxu0 %v4474
        %v4488 = vpop.f32.mrf.mxu0
        %v4489 = vadd.f32 %v3980, %v4488
        %v4490 = vpop.f32.mrf.mxu0
        %v4491 = vadd.f32 %v3981, %v4490
        %4492 = vdwg.mxu0
        %v4495 = vunpack.c.l.b16 %v3956
        %v4496 = vunpack.c.l.b16 %v3957
        %v4497 = vpack.c.b16 %v4496, %v4495
        %v4500 = vunpack.c.l.b16 %v3139
        %v4501 = vunpack.c.l.b16 %v3140
        %v4502 = vpack.c.b16 %v4501, %v4500
        %v4504 = vsel %vm3992, %v4497, 0
        %v4507 = vsel %vm3992, %v4502, 0
        %4509 = vmatpush.bf16.xpose.msra.mxu0 0
        %4510 = vmatpush.bf16.xpose.msra.mxu0 0
        %4511 = vmatpush.bf16.xpose.msra.mxu0 0
        %4512 = vmatpush.bf16.xpose.msra.mxu0 0
        %4513 = vmatpush.bf16.xpose.msra.mxu0 0
        %4514 = vmatpush.bf16.xpose.msra.mxu0 0
        %4515 = vmatpush.bf16.xpose.msra.mxu0 0
        %4516 = vmatpush.bf16.xpose.msra.mxu0 %v4507
        %4517 = vmatmul.bf16.gmra.mxu0 %v4504
        %v4518 = vpop.f32.mrf.mxu0
        %v4519 = vadd.f32 %v3980, %v4518
        %v4520 = vpop.f32.mrf.mxu0
        %v4521 = vadd.f32 %v3981, %v4520
        %4522 = vdwg.mxu0
        %v4525 = vunpack.c.l.b16 %v3958
        %v4526 = vunpack.c.l.b16 %v3959
        %v4527 = vpack.c.b16 %v4526, %v4525
        %v4530 = vunpack.c.l.b16 %v3141
        %v4531 = vunpack.c.l.b16 %v3142
        %v4532 = vpack.c.b16 %v4531, %v4530
        %v4534 = vsel %vm3992, %v4527, 0
        %v4537 = vsel %vm3992, %v4532, 0
        %4539 = vmatpush.bf16.xpose.msra.mxu0 0
        %4540 = vmatpush.bf16.xpose.msra.mxu0 0
        %4541 = vmatpush.bf16.xpose.msra.mxu0 0
        %4542 = vmatpush.bf16.xpose.msra.mxu0 0
        %4543 = vmatpush.bf16.xpose.msra.mxu0 0
        %4544 = vmatpush.bf16.xpose.msra.mxu0 0
        %4545 = vmatpush.bf16.xpose.msra.mxu0 0
        %4546 = vmatpush.bf16.xpose.msra.mxu0 %v4537
        %4547 = vmatmul.bf16.gmra.mxu0 %v4534
        %v4548 = vpop.f32.mrf.mxu0
        %v4549 = vadd.f32 %v3980, %v4548
        %v4550 = vpop.f32.mrf.mxu0
        %v4551 = vadd.f32 %v3981, %v4550
        %4552 = vdwg.mxu0
        %v4555 = vunpack.c.l.b16 %v3960
        %v4556 = vunpack.c.l.b16 %v3961
        %v4557 = vpack.c.b16 %v4556, %v4555
        %v4560 = vunpack.c.l.b16 %v3143
        %v4561 = vunpack.c.l.b16 %v3144
        %v4562 = vpack.c.b16 %v4561, %v4560
        %v4564 = vsel %vm3992, %v4557, 0
        %v4567 = vsel %vm3992, %v4562, 0
        %4569 = vmatpush.bf16.xpose.msra.mxu0 0
        %4570 = vmatpush.bf16.xpose.msra.mxu0 0
        %4571 = vmatpush.bf16.xpose.msra.mxu0 0
        %4572 = vmatpush.bf16.xpose.msra.mxu0 0
        %4573 = vmatpush.bf16.xpose.msra.mxu0 0
        %4574 = vmatpush.bf16.xpose.msra.mxu0 0
        %4575 = vmatpush.bf16.xpose.msra.mxu0 0
        %4576 = vmatpush.bf16.xpose.msra.mxu0 %v4567
        %4577 = vmatmul.bf16.gmra.mxu0 %v4564
        %v4578 = vpop.f32.mrf.mxu0
        %v4579 = vadd.f32 %v3980, %v4578
        %v4580 = vpop.f32.mrf.mxu0
        %v4581 = vadd.f32 %v3981, %v4580
        %4582 = vdwg.mxu0
        %v4585 = vunpack.c.l.b16 %v3962
        %v4586 = vunpack.c.l.b16 %v3963
        %v4587 = vpack.c.b16 %v4586, %v4585
        %v4590 = vunpack.c.l.b16 %v3145
        %v4591 = vunpack.c.l.b16 %v3146
        %v4592 = vpack.c.b16 %v4591, %v4590
        %v4594 = vsel %vm3992, %v4587, 0
        %v4597 = vsel %vm3992, %v4592, 0
        %4599 = vmatpush.bf16.xpose.msra.mxu0 0
        %4600 = vmatpush.bf16.xpose.msra.mxu0 0
        %4601 = vmatpush.bf16.xpose.msra.mxu0 0
        %4602 = vmatpush.bf16.xpose.msra.mxu0 0
        %4603 = vmatpush.bf16.xpose.msra.mxu0 0
        %4604 = vmatpush.bf16.xpose.msra.mxu0 0
        %4605 = vmatpush.bf16.xpose.msra.mxu0 0
        %4606 = vmatpush.bf16.xpose.msra.mxu0 %v4597
        %4607 = vmatmul.bf16.gmra.mxu0 %v4594
        %v4608 = vpop.f32.mrf.mxu0
        %v4609 = vadd.f32 %v3980, %v4608
        %v4610 = vpop.f32.mrf.mxu0
        %v4611 = vadd.f32 %v3981, %v4610
        %4612 = vdwg.mxu0
        %v4615 = vunpack.c.l.b16 %v3964
        %v4616 = vunpack.c.l.b16 %v3965
        %v4617 = vpack.c.b16 %v4616, %v4615
        %v4620 = vunpack.c.l.b16 %v3147
        %v4621 = vunpack.c.l.b16 %v3148
        %v4622 = vpack.c.b16 %v4621, %v4620
        %v4624 = vsel %vm3992, %v4617, 0
        %v4627 = vsel %vm3992, %v4622, 0
        %4629 = vmatpush.bf16.xpose.msra.mxu0 0
        %4630 = vmatpush.bf16.xpose.msra.mxu0 0
        %4631 = vmatpush.bf16.xpose.msra.mxu0 0
        %4632 = vmatpush.bf16.xpose.msra.mxu0 0
        %4633 = vmatpush.bf16.xpose.msra.mxu0 0
        %4634 = vmatpush.bf16.xpose.msra.mxu0 0
        %4635 = vmatpush.bf16.xpose.msra.mxu0 0
        %4636 = vmatpush.bf16.xpose.msra.mxu0 %v4627
        %4637 = vmatmul.bf16.gmra.mxu0 %v4624
        %v4638 = vpop.f32.mrf.mxu0
        %v4639 = vadd.f32 %v3980, %v4638
        %v4640 = vpop.f32.mrf.mxu0
        %v4641 = vadd.f32 %v3981, %v4640
        %4642 = vdwg.mxu0
        %v4645 = vunpack.c.l.b16 %v3966
        %v4646 = vunpack.c.l.b16 %v3967
        %v4647 = vpack.c.b16 %v4646, %v4645
        %v4650 = vunpack.c.l.b16 %v3149
        %v4651 = vunpack.c.l.b16 %v3150
        %v4652 = vpack.c.b16 %v4651, %v4650
        %v4654 = vsel %vm3992, %v4647, 0
        %v4657 = vsel %vm3992, %v4652, 0
        %4659 = vmatpush.bf16.xpose.msra.mxu0 0
        %4660 = vmatpush.bf16.xpose.msra.mxu0 0
        %4661 = vmatpush.bf16.xpose.msra.mxu0 0
        %4662 = vmatpush.bf16.xpose.msra.mxu0 0
        %4663 = vmatpush.bf16.xpose.msra.mxu0 0
        %4664 = vmatpush.bf16.xpose.msra.mxu0 0
        %4665 = vmatpush.bf16.xpose.msra.mxu0 0
        %4666 = vmatpush.bf16.xpose.msra.mxu0 %v4657
        %4667 = vmatmul.bf16.gmra.mxu0 %v4654
        %v4668 = vpop.f32.mrf.mxu0
        %v4669 = vadd.f32 %v3980, %v4668
        %v4670 = vpop.f32.mrf.mxu0
        %v4671 = vadd.f32 %v3981, %v4670
        %4672 = vdwg.mxu0
        %v4675 = vunpack.c.l.b16 %v3968
        %v4676 = vunpack.c.l.b16 %v3969
        %v4677 = vpack.c.b16 %v4676, %v4675
        %v4680 = vunpack.c.l.b16 %v3151
        %v4681 = vunpack.c.l.b16 %v3152
        %v4682 = vpack.c.b16 %v4681, %v4680
        %v4684 = vsel %vm3992, %v4677, 0
        %v4687 = vsel %vm3992, %v4682, 0
        %4689 = vmatpush.bf16.xpose.msra.mxu0 0
        %4690 = vmatpush.bf16.xpose.msra.mxu0 0
        %4691 = vmatpush.bf16.xpose.msra.mxu0 0
        %4692 = vmatpush.bf16.xpose.msra.mxu0 0
        %4693 = vmatpush.bf16.xpose.msra.mxu0 0
        %4694 = vmatpush.bf16.xpose.msra.mxu0 0
        %4695 = vmatpush.bf16.xpose.msra.mxu0 0
        %4696 = vmatpush.bf16.xpose.msra.mxu0 %v4687
        %4697 = vmatmul.bf16.gmra.mxu0 %v4684
        %v4698 = vpop.f32.mrf.mxu0
        %v4699 = vadd.f32 %v3980, %v4698
        %v4700 = vpop.f32.mrf.mxu0
        %v4701 = vadd.f32 %v3981, %v4700
        %4702 = vdwg.mxu0
        %v4706 = vunpack.c.l.b16 %v2957
        %v4707 = vunpack.c.l.b16 %v2958
        %v4708 = vunpack.c.l.b16 %v2959
        %v4709 = vpack.c.b16 %v4707, %v4706
        %v4710 = vpack.c.b16 %v4708, %v4708
        %v4714 = vunpack.c.l.b16 %v3007
        %v4715 = vunpack.c.l.b16 %v3008
        %v4716 = vunpack.c.l.b16 %v3009
        %v4717 = vpack.c.b16 %v4715, %v4714
        %v4718 = vpack.c.b16 %v4716, %v4716
        %v4720 = vsel %vm3992, %v4709, 0
        %v4723 = vsel %vm3992, %v4710, 0
        %v4726 = vsel %vm3992, %v4717, 0
        %v4729 = vsel %vm3992, %v4718, 0
        %4731 = vmatpush.bf16.xpose.msra.mxu0 0
        %4732 = vmatpush.bf16.xpose.msra.mxu0 0
        %4733 = vmatpush.bf16.xpose.msra.mxu0 0
        %4734 = vmatpush.bf16.xpose.msra.mxu0 0
        %4735 = vmatpush.bf16.xpose.msra.mxu0 0
        %4736 = vmatpush.bf16.xpose.msra.mxu0 0
        %4737 = vmatpush.bf16.xpose.msra.mxu0 %v4729
        %4738 = vmatpush.bf16.xpose.msra.mxu0 %v4726
        %4739 = vmatmul.bf16.gmra.mxu0 %v4720
        %v4740 = vpop.f32.mrf.mxu0
        %v4741 = vadd.f32 0.0, %v4740
        %v4742 = vpop.f32.mrf.mxu0
        %v4743 = vadd.f32 0.0, %v4742
        %4744 = vmatmul.bf16.gmra.mxu0 %v4723
        %v4745 = vpop.f32.mrf.mxu0
        %v4746 = vadd.f32 0.0, %v4745
        %v4747 = vpop.f32.mrf.mxu0
        %4748 = vdwg.mxu0
        %v4752 = vunpack.c.l.b16 %v2960
        %v4753 = vunpack.c.l.b16 %v2961
        %v4754 = vunpack.c.l.b16 %v2962
        %v4755 = vpack.c.b16 %v4753, %v4752
        %v4756 = vpack.c.b16 %v4754, %v4754
        %v4760 = vunpack.c.l.b16 %v3010
        %v4761 = vunpack.c.l.b16 %v3011
        %v4762 = vunpack.c.l.b16 %v3012
        %v4763 = vpack.c.b16 %v4761, %v4760
        %v4764 = vpack.c.b16 %v4762, %v4762
        %v4766 = vsel %vm3992, %v4755, 0
        %v4769 = vsel %vm3992, %v4756, 0
        %v4772 = vsel %vm3992, %v4763, 0
        %v4775 = vsel %vm3992, %v4764, 0
        %4777 = vmatpush.bf16.xpose.msra.mxu0 0
        %4778 = vmatpush.bf16.xpose.msra.mxu0 0
        %4779 = vmatpush.bf16.xpose.msra.mxu0 0
        %4780 = vmatpush.bf16.xpose.msra.mxu0 0
        %4781 = vmatpush.bf16.xpose.msra.mxu0 0
        %4782 = vmatpush.bf16.xpose.msra.mxu0 0
        %4783 = vmatpush.bf16.xpose.msra.mxu0 %v4775
        %4784 = vmatpush.bf16.xpose.msra.mxu0 %v4772
        %4785 = vmatmul.bf16.gmra.mxu0 %v4766
        %v4786 = vpop.f32.mrf.mxu0
        %v4787 = vadd.f32 0.0, %v4786
        %v4788 = vpop.f32.mrf.mxu0
        %v4789 = vadd.f32 0.0, %v4788
        %4790 = vmatmul.bf16.gmra.mxu0 %v4769
        %v4791 = vpop.f32.mrf.mxu0
        %v4792 = vadd.f32 0.0, %v4791
        %v4793 = vpop.f32.mrf.mxu0
        %4794 = vdwg.mxu0
        %v4798 = vunpack.c.l.b16 %v2963
        %v4799 = vunpack.c.l.b16 %v2964
        %v4800 = vunpack.c.l.b16 %v2965
        %v4801 = vpack.c.b16 %v4799, %v4798
        %v4802 = vpack.c.b16 %v4800, %v4800
        %v4806 = vunpack.c.l.b16 %v3013
        %v4807 = vunpack.c.l.b16 %v3014
        %v4808 = vunpack.c.l.b16 %v3015
        %v4809 = vpack.c.b16 %v4807, %v4806
        %v4810 = vpack.c.b16 %v4808, %v4808
        %v4812 = vsel %vm3992, %v4801, 0
        %v4815 = vsel %vm3992, %v4802, 0
        %v4818 = vsel %vm3992, %v4809, 0
        %v4821 = vsel %vm3992, %v4810, 0
        %4823 = vmatpush.bf16.xpose.msra.mxu0 0
        %4824 = vmatpush.bf16.xpose.msra.mxu0 0
        %4825 = vmatpush.bf16.xpose.msra.mxu0 0
        %4826 = vmatpush.bf16.xpose.msra.mxu0 0
        %4827 = vmatpush.bf16.xpose.msra.mxu0 0
        %4828 = vmatpush.bf16.xpose.msra.mxu0 0
        %4829 = vmatpush.bf16.xpose.msra.mxu0 %v4821
        %4830 = vmatpush.bf16.xpose.msra.mxu0 %v4818
        %4831 = vmatmul.bf16.gmra.mxu0 %v4812
        %v4832 = vpop.f32.mrf.mxu0
        %v4833 = vadd.f32 0.0, %v4832
        %v4834 = vpop.f32.mrf.mxu0
        %v4835 = vadd.f32 0.0, %v4834
        %4836 = vmatmul.bf16.gmra.mxu0 %v4815
        %v4837 = vpop.f32.mrf.mxu0
        %v4838 = vadd.f32 0.0, %v4837
        %v4839 = vpop.f32.mrf.mxu0
        %4840 = vdwg.mxu0
        %v4844 = vunpack.c.l.b16 %v2966
        %v4845 = vunpack.c.l.b16 %v2967
        %v4846 = vunpack.c.l.b16 %v2968
        %v4847 = vpack.c.b16 %v4845, %v4844
        %v4848 = vpack.c.b16 %v4846, %v4846
        %v4852 = vunpack.c.l.b16 %v3016
        %v4853 = vunpack.c.l.b16 %v3017
        %v4854 = vunpack.c.l.b16 %v3018
        %v4855 = vpack.c.b16 %v4853, %v4852
        %v4856 = vpack.c.b16 %v4854, %v4854
        %v4858 = vsel %vm3992, %v4847, 0
        %v4861 = vsel %vm3992, %v4848, 0
        %v4864 = vsel %vm3992, %v4855, 0
        %v4867 = vsel %vm3992, %v4856, 0
        %4869 = vmatpush.bf16.xpose.msra.mxu0 0
        %4870 = vmatpush.bf16.xpose.msra.mxu0 0
        %4871 = vmatpush.bf16.xpose.msra.mxu0 0
        %4872 = vmatpush.bf16.xpose.msra.mxu0 0
        %4873 = vmatpush.bf16.xpose.msra.mxu0 0
        %4874 = vmatpush.bf16.xpose.msra.mxu0 0
        %4875 = vmatpush.bf16.xpose.msra.mxu0 %v4867
        %4876 = vmatpush.bf16.xpose.msra.mxu0 %v4864
        %4877 = vmatmul.bf16.gmra.mxu0 %v4858
        %v4878 = vpop.f32.mrf.mxu0
        %v4879 = vadd.f32 0.0, %v4878
        %v4880 = vpop.f32.mrf.mxu0
        %v4881 = vadd.f32 0.0, %v4880
        %4882 = vmatmul.bf16.gmra.mxu0 %v4861
        %v4883 = vpop.f32.mrf.mxu0
        %v4884 = vadd.f32 0.0, %v4883
        %v4885 = vpop.f32.mrf.mxu0
        %4886 = vdwg.mxu0
        %v4890 = vunpack.c.l.b16 %v2969
        %v4891 = vunpack.c.l.b16 %v2970
        %v4892 = vunpack.c.l.b16 %v2971
        %v4893 = vpack.c.b16 %v4891, %v4890
        %v4894 = vpack.c.b16 %v4892, %v4892
        %v4898 = vunpack.c.l.b16 %v3019
        %v4899 = vunpack.c.l.b16 %v3020
        %v4900 = vunpack.c.l.b16 %v3021
        %v4901 = vpack.c.b16 %v4899, %v4898
        %v4902 = vpack.c.b16 %v4900, %v4900
        %v4904 = vsel %vm3992, %v4893, 0
        %v4907 = vsel %vm3992, %v4894, 0
        %v4910 = vsel %vm3992, %v4901, 0
        %v4913 = vsel %vm3992, %v4902, 0
        %4915 = vmatpush.bf16.xpose.msra.mxu0 0
        %4916 = vmatpush.bf16.xpose.msra.mxu0 0
        %4917 = vmatpush.bf16.xpose.msra.mxu0 0
        %4918 = vmatpush.bf16.xpose.msra.mxu0 0
        %4919 = vmatpush.bf16.xpose.msra.mxu0 0
        %4920 = vmatpush.bf16.xpose.msra.mxu0 0
        %4921 = vmatpush.bf16.xpose.msra.mxu0 %v4913
        %4922 = vmatpush.bf16.xpose.msra.mxu0 %v4910
        %4923 = vmatmul.bf16.gmra.mxu0 %v4904
        %v4924 = vpop.f32.mrf.mxu0
        %v4925 = vadd.f32 0.0, %v4924
        %v4926 = vpop.f32.mrf.mxu0
        %v4927 = vadd.f32 0.0, %v4926
        %4928 = vmatmul.bf16.gmra.mxu0 %v4907
        %v4929 = vpop.f32.mrf.mxu0
        %v4930 = vadd.f32 0.0, %v4929
        %v4931 = vpop.f32.mrf.mxu0
        %4932 = vdwg.mxu0
        %v4936 = vunpack.c.l.b16 %v2972
        %v4937 = vunpack.c.l.b16 %v2973
        %v4938 = vunpack.c.l.b16 %v2974
        %v4939 = vpack.c.b16 %v4937, %v4936
        %v4940 = vpack.c.b16 %v4938, %v4938
        %v4944 = vunpack.c.l.b16 %v3022
        %v4945 = vunpack.c.l.b16 %v3023
        %v4946 = vunpack.c.l.b16 %v3024
        %v4947 = vpack.c.b16 %v4945, %v4944
        %v4948 = vpack.c.b16 %v4946, %v4946
        %v4950 = vsel %vm3992, %v4939, 0
        %v4953 = vsel %vm3992, %v4940, 0
        %v4956 = vsel %vm3992, %v4947, 0
        %v4959 = vsel %vm3992, %v4948, 0
        %4961 = vmatpush.bf16.xpose.msra.mxu0 0
        %4962 = vmatpush.bf16.xpose.msra.mxu0 0
        %4963 = vmatpush.bf16.xpose.msra.mxu0 0
        %4964 = vmatpush.bf16.xpose.msra.mxu0 0
        %4965 = vmatpush.bf16.xpose.msra.mxu0 0
        %4966 = vmatpush.bf16.xpose.msra.mxu0 0
        %4967 = vmatpush.bf16.xpose.msra.mxu0 %v4959
        %4968 = vmatpush.bf16.xpose.msra.mxu0 %v4956
        %4969 = vmatmul.bf16.gmra.mxu0 %v4950
        %v4970 = vpop.f32.mrf.mxu0
        %v4971 = vadd.f32 0.0, %v4970
        %v4972 = vpop.f32.mrf.mxu0
        %v4973 = vadd.f32 0.0, %v4972
        %4974 = vmatmul.bf16.gmra.mxu0 %v4953
        %v4975 = vpop.f32.mrf.mxu0
        %v4976 = vadd.f32 0.0, %v4975
        %v4977 = vpop.f32.mrf.mxu0
        %4978 = vdwg.mxu0
        %v4982 = vunpack.c.l.b16 %v2975
        %v4983 = vunpack.c.l.b16 %v2976
        %v4984 = vunpack.c.l.b16 %v2977
        %v4985 = vpack.c.b16 %v4983, %v4982
        %v4986 = vpack.c.b16 %v4984, %v4984
        %v4990 = vunpack.c.l.b16 %v3025
        %v4991 = vunpack.c.l.b16 %v3026
        %v4992 = vunpack.c.l.b16 %v3027
        %v4993 = vpack.c.b16 %v4991, %v4990
        %v4994 = vpack.c.b16 %v4992, %v4992
        %v4996 = vsel %vm3992, %v4985, 0
        %v4999 = vsel %vm3992, %v4986, 0
        %v5002 = vsel %vm3992, %v4993, 0
        %v5005 = vsel %vm3992, %v4994, 0
        %5007 = vmatpush.bf16.xpose.msra.mxu0 0
        %5008 = vmatpush.bf16.xpose.msra.mxu0 0
        %5009 = vmatpush.bf16.xpose.msra.mxu0 0
        %5010 = vmatpush.bf16.xpose.msra.mxu0 0
        %5011 = vmatpush.bf16.xpose.msra.mxu0 0
        %5012 = vmatpush.bf16.xpose.msra.mxu0 0
        %5013 = vmatpush.bf16.xpose.msra.mxu0 %v5005
        %5014 = vmatpush.bf16.xpose.msra.mxu0 %v5002
        %5015 = vmatmul.bf16.gmra.mxu0 %v4996
        %v5016 = vpop.f32.mrf.mxu0
        %v5017 = vadd.f32 0.0, %v5016
        %v5018 = vpop.f32.mrf.mxu0
        %v5019 = vadd.f32 0.0, %v5018
        %5020 = vmatmul.bf16.gmra.mxu0 %v4999
        %v5021 = vpop.f32.mrf.mxu0
        %v5022 = vadd.f32 0.0, %v5021
        %v5023 = vpop.f32.mrf.mxu0
        %5024 = vdwg.mxu0
        %v5028 = vunpack.c.l.b16 %v2978
        %v5029 = vunpack.c.l.b16 %v2979
        %v5030 = vunpack.c.l.b16 %v2980
        %v5031 = vpack.c.b16 %v5029, %v5028
        %v5032 = vpack.c.b16 %v5030, %v5030
        %v5036 = vunpack.c.l.b16 %v3028
        %v5037 = vunpack.c.l.b16 %v3029
        %v5038 = vunpack.c.l.b16 %v3030
        %v5039 = vpack.c.b16 %v5037, %v5036
        %v5040 = vpack.c.b16 %v5038, %v5038
        %v5042 = vsel %vm3992, %v5031, 0
        %v5045 = vsel %vm3992, %v5032, 0
        %v5048 = vsel %vm3992, %v5039, 0
        %v5051 = vsel %vm3992, %v5040, 0
        %5053 = vmatpush.bf16.xpose.msra.mxu0 0
        %5054 = vmatpush.bf16.xpose.msra.mxu0 0
        %5055 = vmatpush.bf16.xpose.msra.mxu0 0
        %5056 = vmatpush.bf16.xpose.msra.mxu0 0
        %5057 = vmatpush.bf16.xpose.msra.mxu0 0
        %5058 = vmatpush.bf16.xpose.msra.mxu0 0
        %5059 = vmatpush.bf16.xpose.msra.mxu0 %v5051
        %5060 = vmatpush.bf16.xpose.msra.mxu0 %v5048
        %5061 = vmatmul.bf16.gmra.mxu0 %v5042
        %v5062 = vpop.f32.mrf.mxu0
        %v5063 = vadd.f32 0.0, %v5062
        %v5064 = vpop.f32.mrf.mxu0
        %v5065 = vadd.f32 0.0, %v5064
        %5066 = vmatmul.bf16.gmra.mxu0 %v5045
        %v5067 = vpop.f32.mrf.mxu0
        %v5068 = vadd.f32 0.0, %v5067
        %v5069 = vpop.f32.mrf.mxu0
        %5070 = vdwg.mxu0
        %v5074 = vunpack.c.l.b16 %v2981
        %v5075 = vunpack.c.l.b16 %v2982
        %v5076 = vunpack.c.l.b16 %v2983
        %v5077 = vpack.c.b16 %v5075, %v5074
        %v5078 = vpack.c.b16 %v5076, %v5076
        %v5082 = vunpack.c.l.b16 %v3031
        %v5083 = vunpack.c.l.b16 %v3032
        %v5084 = vunpack.c.l.b16 %v3033
        %v5085 = vpack.c.b16 %v5083, %v5082
        %v5086 = vpack.c.b16 %v5084, %v5084
        %v5088 = vsel %vm3992, %v5077, 0
        %v5091 = vsel %vm3992, %v5078, 0
        %v5094 = vsel %vm3992, %v5085, 0
        %v5097 = vsel %vm3992, %v5086, 0
        %5099 = vmatpush.bf16.xpose.msra.mxu0 0
        %5100 = vmatpush.bf16.xpose.msra.mxu0 0
        %5101 = vmatpush.bf16.xpose.msra.mxu0 0
        %5102 = vmatpush.bf16.xpose.msra.mxu0 0
        %5103 = vmatpush.bf16.xpose.msra.mxu0 0
        %5104 = vmatpush.bf16.xpose.msra.mxu0 0
        %5105 = vmatpush.bf16.xpose.msra.mxu0 %v5097
        %5106 = vmatpush.bf16.xpose.msra.mxu0 %v5094
        %5107 = vmatmul.bf16.gmra.mxu0 %v5088
        %v5108 = vpop.f32.mrf.mxu0
        %v5109 = vadd.f32 0.0, %v5108
        %v5110 = vpop.f32.mrf.mxu0
        %v5111 = vadd.f32 0.0, %v5110
        %5112 = vmatmul.bf16.gmra.mxu0 %v5091
        %v5113 = vpop.f32.mrf.mxu0
        %v5114 = vadd.f32 0.0, %v5113
        %v5115 = vpop.f32.mrf.mxu0
        %5116 = vdwg.mxu0
        %v5120 = vunpack.c.l.b16 %v2984
        %v5121 = vunpack.c.l.b16 %v2985
        %v5122 = vunpack.c.l.b16 %v2986
        %v5123 = vpack.c.b16 %v5121, %v5120
        %v5124 = vpack.c.b16 %v5122, %v5122
        %v5128 = vunpack.c.l.b16 %v3034
        %v5129 = vunpack.c.l.b16 %v3035
        %v5130 = vunpack.c.l.b16 %v3036
        %v5131 = vpack.c.b16 %v5129, %v5128
        %v5132 = vpack.c.b16 %v5130, %v5130
        %v5134 = vsel %vm3992, %v5123, 0
        %v5137 = vsel %vm3992, %v5124, 0
        %v5140 = vsel %vm3992, %v5131, 0
        %v5143 = vsel %vm3992, %v5132, 0
        %5145 = vmatpush.bf16.xpose.msra.mxu0 0
        %5146 = vmatpush.bf16.xpose.msra.mxu0 0
        %5147 = vmatpush.bf16.xpose.msra.mxu0 0
        %5148 = vmatpush.bf16.xpose.msra.mxu0 0
        %5149 = vmatpush.bf16.xpose.msra.mxu0 0
        %5150 = vmatpush.bf16.xpose.msra.mxu0 0
        %5151 = vmatpush.bf16.xpose.msra.mxu0 %v5143
        %5152 = vmatpush.bf16.xpose.msra.mxu0 %v5140
        %5153 = vmatmul.bf16.gmra.mxu0 %v5134
        %v5154 = vpop.f32.mrf.mxu0
        %v5155 = vadd.f32 0.0, %v5154
        %v5156 = vpop.f32.mrf.mxu0
        %v5157 = vadd.f32 0.0, %v5156
        %5158 = vmatmul.bf16.gmra.mxu0 %v5137
        %v5159 = vpop.f32.mrf.mxu0
        %v5160 = vadd.f32 0.0, %v5159
        %v5161 = vpop.f32.mrf.mxu0
        %5162 = vdwg.mxu0
        %v5166 = vunpack.c.l.b16 %v2987
        %v5167 = vunpack.c.l.b16 %v2988
        %v5168 = vunpack.c.l.b16 %v2989
        %v5169 = vpack.c.b16 %v5167, %v5166
        %v5170 = vpack.c.b16 %v5168, %v5168
        %v5174 = vunpack.c.l.b16 %v3037
        %v5175 = vunpack.c.l.b16 %v3038
        %v5176 = vunpack.c.l.b16 %v3039
        %v5177 = vpack.c.b16 %v5175, %v5174
        %v5178 = vpack.c.b16 %v5176, %v5176
        %v5180 = vsel %vm3992, %v5169, 0
        %v5183 = vsel %vm3992, %v5170, 0
        %v5186 = vsel %vm3992, %v5177, 0
        %v5189 = vsel %vm3992, %v5178, 0
        %5191 = vmatpush.bf16.xpose.msra.mxu0 0
        %5192 = vmatpush.bf16.xpose.msra.mxu0 0
        %5193 = vmatpush.bf16.xpose.msra.mxu0 0
        %5194 = vmatpush.bf16.xpose.msra.mxu0 0
        %5195 = vmatpush.bf16.xpose.msra.mxu0 0
        %5196 = vmatpush.bf16.xpose.msra.mxu0 0
        %5197 = vmatpush.bf16.xpose.msra.mxu0 %v5189
        %5198 = vmatpush.bf16.xpose.msra.mxu0 %v5186
        %5199 = vmatmul.bf16.gmra.mxu0 %v5180
        %v5200 = vpop.f32.mrf.mxu0
        %v5201 = vadd.f32 0.0, %v5200
        %v5202 = vpop.f32.mrf.mxu0
        %v5203 = vadd.f32 0.0, %v5202
        %5204 = vmatmul.bf16.gmra.mxu0 %v5183
        %v5205 = vpop.f32.mrf.mxu0
        %v5206 = vadd.f32 0.0, %v5205
        %v5207 = vpop.f32.mrf.mxu0
        %5208 = vdwg.mxu0
        %v5212 = vunpack.c.l.b16 %v2990
        %v5213 = vunpack.c.l.b16 %v2991
        %v5214 = vunpack.c.l.b16 %v2992
        %v5215 = vpack.c.b16 %v5213, %v5212
        %v5216 = vpack.c.b16 %v5214, %v5214
        %v5220 = vunpack.c.l.b16 %v3040
        %v5221 = vunpack.c.l.b16 %v3041
        %v5222 = vunpack.c.l.b16 %v3042
        %v5223 = vpack.c.b16 %v5221, %v5220
        %v5224 = vpack.c.b16 %v5222, %v5222
        %v5226 = vsel %vm3992, %v5215, 0
        %v5229 = vsel %vm3992, %v5216, 0
        %v5232 = vsel %vm3992, %v5223, 0
        %v5235 = vsel %vm3992, %v5224, 0
        %5237 = vmatpush.bf16.xpose.msra.mxu0 0
        %5238 = vmatpush.bf16.xpose.msra.mxu0 0
        %5239 = vmatpush.bf16.xpose.msra.mxu0 0
        %5240 = vmatpush.bf16.xpose.msra.mxu0 0
        %5241 = vmatpush.bf16.xpose.msra.mxu0 0
        %5242 = vmatpush.bf16.xpose.msra.mxu0 0
        %5243 = vmatpush.bf16.xpose.msra.mxu0 %v5235
        %5244 = vmatpush.bf16.xpose.msra.mxu0 %v5232
        %5245 = vmatmul.bf16.gmra.mxu0 %v5226
        %v5246 = vpop.f32.mrf.mxu0
        %v5247 = vadd.f32 0.0, %v5246
        %v5248 = vpop.f32.mrf.mxu0
        %v5249 = vadd.f32 0.0, %v5248
        %5250 = vmatmul.bf16.gmra.mxu0 %v5229
        %v5251 = vpop.f32.mrf.mxu0
        %v5252 = vadd.f32 0.0, %v5251
        %v5253 = vpop.f32.mrf.mxu0
        %5254 = vdwg.mxu0
        %v5258 = vunpack.c.l.b16 %v2993
        %v5259 = vunpack.c.l.b16 %v2994
        %v5260 = vunpack.c.l.b16 %v2995
        %v5261 = vpack.c.b16 %v5259, %v5258
        %v5262 = vpack.c.b16 %v5260, %v5260
        %v5266 = vunpack.c.l.b16 %v3043
        %v5267 = vunpack.c.l.b16 %v3044
        %v5268 = vunpack.c.l.b16 %v3045
        %v5269 = vpack.c.b16 %v5267, %v5266
        %v5270 = vpack.c.b16 %v5268, %v5268
        %v5272 = vsel %vm3992, %v5261, 0
        %v5275 = vsel %vm3992, %v5262, 0
        %v5278 = vsel %vm3992, %v5269, 0
        %v5281 = vsel %vm3992, %v5270, 0
        %5283 = vmatpush.bf16.xpose.msra.mxu0 0
        %5284 = vmatpush.bf16.xpose.msra.mxu0 0
        %5285 = vmatpush.bf16.xpose.msra.mxu0 0
        %5286 = vmatpush.bf16.xpose.msra.mxu0 0
        %5287 = vmatpush.bf16.xpose.msra.mxu0 0
        %5288 = vmatpush.bf16.xpose.msra.mxu0 0
        %5289 = vmatpush.bf16.xpose.msra.mxu0 %v5281
        %5290 = vmatpush.bf16.xpose.msra.mxu0 %v5278
        %5291 = vmatmul.bf16.gmra.mxu0 %v5272
        %v5292 = vpop.f32.mrf.mxu0
        %v5293 = vadd.f32 0.0, %v5292
        %v5294 = vpop.f32.mrf.mxu0
        %v5295 = vadd.f32 0.0, %v5294
        %5296 = vmatmul.bf16.gmra.mxu0 %v5275
        %v5297 = vpop.f32.mrf.mxu0
        %v5298 = vadd.f32 0.0, %v5297
        %v5299 = vpop.f32.mrf.mxu0
        %5300 = vdwg.mxu0
        %v5304 = vunpack.c.l.b16 %v2996
        %v5305 = vunpack.c.l.b16 %v2997
        %v5306 = vunpack.c.l.b16 %v2998
        %v5307 = vpack.c.b16 %v5305, %v5304
        %v5308 = vpack.c.b16 %v5306, %v5306
        %v5312 = vunpack.c.l.b16 %v3046
        %v5313 = vunpack.c.l.b16 %v3047
        %v5314 = vunpack.c.l.b16 %v3048
        %v5315 = vpack.c.b16 %v5313, %v5312
        %v5316 = vpack.c.b16 %v5314, %v5314
        %v5318 = vsel %vm3992, %v5307, 0
        %v5321 = vsel %vm3992, %v5308, 0
        %v5324 = vsel %vm3992, %v5315, 0
        %v5327 = vsel %vm3992, %v5316, 0
        %5329 = vmatpush.bf16.xpose.msra.mxu0 0
        %5330 = vmatpush.bf16.xpose.msra.mxu0 0
        %5331 = vmatpush.bf16.xpose.msra.mxu0 0
        %5332 = vmatpush.bf16.xpose.msra.mxu0 0
        %5333 = vmatpush.bf16.xpose.msra.mxu0 0
        %5334 = vmatpush.bf16.xpose.msra.mxu0 0
        %5335 = vmatpush.bf16.xpose.msra.mxu0 %v5327
        %5336 = vmatpush.bf16.xpose.msra.mxu0 %v5324
        %5337 = vmatmul.bf16.gmra.mxu0 %v5318
        %v5338 = vpop.f32.mrf.mxu0
        %v5339 = vadd.f32 0.0, %v5338
        %v5340 = vpop.f32.mrf.mxu0
        %v5341 = vadd.f32 0.0, %v5340
        %5342 = vmatmul.bf16.gmra.mxu0 %v5321
        %v5343 = vpop.f32.mrf.mxu0
        %v5344 = vadd.f32 0.0, %v5343
        %v5345 = vpop.f32.mrf.mxu0
        %5346 = vdwg.mxu0
        %v5350 = vunpack.c.l.b16 %v2999
        %v5351 = vunpack.c.l.b16 %v3000
        %v5352 = vunpack.c.l.b16 %v3001
        %v5353 = vpack.c.b16 %v5351, %v5350
        %v5354 = vpack.c.b16 %v5352, %v5352
        %v5358 = vunpack.c.l.b16 %v3049
        %v5359 = vunpack.c.l.b16 %v3050
        %v5360 = vunpack.c.l.b16 %v3051
        %v5361 = vpack.c.b16 %v5359, %v5358
        %v5362 = vpack.c.b16 %v5360, %v5360
        %v5364 = vsel %vm3992, %v5353, 0
        %v5367 = vsel %vm3992, %v5354, 0
        %v5370 = vsel %vm3992, %v5361, 0
        %v5373 = vsel %vm3992, %v5362, 0
        %5375 = vmatpush.bf16.xpose.msra.mxu0 0
        %5376 = vmatpush.bf16.xpose.msra.mxu0 0
        %5377 = vmatpush.bf16.xpose.msra.mxu0 0
        %5378 = vmatpush.bf16.xpose.msra.mxu0 0
        %5379 = vmatpush.bf16.xpose.msra.mxu0 0
        %5380 = vmatpush.bf16.xpose.msra.mxu0 0
        %5381 = vmatpush.bf16.xpose.msra.mxu0 %v5373
        %5382 = vmatpush.bf16.xpose.msra.mxu0 %v5370
        %5383 = vmatmul.bf16.gmra.mxu0 %v5364
        %v5384 = vpop.f32.mrf.mxu0
        %v5385 = vadd.f32 0.0, %v5384
        %v5386 = vpop.f32.mrf.mxu0
        %v5387 = vadd.f32 0.0, %v5386
        %5388 = vmatmul.bf16.gmra.mxu0 %v5367
        %v5389 = vpop.f32.mrf.mxu0
        %v5390 = vadd.f32 0.0, %v5389
        %v5391 = vpop.f32.mrf.mxu0
        %5392 = vdwg.mxu0
        %v5396 = vunpack.c.l.b16 %v3002
        %v5397 = vunpack.c.l.b16 %v3003
        %v5398 = vunpack.c.l.b16 %v3004
        %v5399 = vpack.c.b16 %v5397, %v5396
        %v5400 = vpack.c.b16 %v5398, %v5398
        %v5404 = vunpack.c.l.b16 %v3052
        %v5405 = vunpack.c.l.b16 %v3053
        %v5406 = vunpack.c.l.b16 %v3054
        %v5407 = vpack.c.b16 %v5405, %v5404
        %v5408 = vpack.c.b16 %v5406, %v5406
        %v5410 = vsel %vm3992, %v5399, 0
        %v5413 = vsel %vm3992, %v5400, 0
        %v5416 = vsel %vm3992, %v5407, 0
        %v5419 = vsel %vm3992, %v5408, 0
        %5421 = vmatpush.bf16.xpose.msra.mxu0 0
        %5422 = vmatpush.bf16.xpose.msra.mxu0 0
        %5423 = vmatpush.bf16.xpose.msra.mxu0 0
        %5424 = vmatpush.bf16.xpose.msra.mxu0 0
        %5425 = vmatpush.bf16.xpose.msra.mxu0 0
        %5426 = vmatpush.bf16.xpose.msra.mxu0 0
        %5427 = vmatpush.bf16.xpose.msra.mxu0 %v5419
        %5428 = vmatpush.bf16.xpose.msra.mxu0 %v5416
        %5429 = vmatmul.bf16.gmra.mxu0 %v5410
        %v5430 = vpop.f32.mrf.mxu0
        %v5431 = vadd.f32 0.0, %v5430
        %v5432 = vpop.f32.mrf.mxu0
        %v5433 = vadd.f32 0.0, %v5432
        %5434 = vmatmul.bf16.gmra.mxu0 %v5413
        %v5435 = vpop.f32.mrf.mxu0
        %v5436 = vadd.f32 0.0, %v5435
        %v5437 = vpop.f32.mrf.mxu0
        %5438 = vdwg.mxu0
        %vm5439 = vcmask 195584
        %v5440 = vsel %vm5439, %v4741, -inf
        %5441 = vmax.xlane.f32.xlu0 %v5440
        %v5442 = vpop.xlane.xlu0 %5441
        %v5443 = vsel %vm5439, %v4743, -inf
        %5444 = vmax.xlane.f32.xlu0 %v5443
        %v5445 = vpop.xlane.xlu0 %5444
        %v5446 = vsel %vm5439, %v4746, -inf
        %5447 = vmax.xlane.f32.xlu0 %v5446
        %v5448 = vpop.xlane.xlu0 %5447
        %v5449 = vsel %vm5439, %v4787, -inf
        %5450 = vmax.xlane.f32.xlu0 %v5449
        %v5451 = vpop.xlane.xlu0 %5450
        %v5452 = vsel %vm5439, %v4789, -inf
        %5453 = vmax.xlane.f32.xlu0 %v5452
        %v5454 = vpop.xlane.xlu0 %5453
        %v5455 = vsel %vm5439, %v4792, -inf
        %5456 = vmax.xlane.f32.xlu0 %v5455
        %v5457 = vpop.xlane.xlu0 %5456
        %v5458 = vsel %vm5439, %v4833, -inf
        %5459 = vmax.xlane.f32.xlu0 %v5458
        %v5460 = vpop.xlane.xlu0 %5459
        %v5461 = vsel %vm5439, %v4835, -inf
        %5462 = vmax.xlane.f32.xlu0 %v5461
        %v5463 = vpop.xlane.xlu0 %5462
        %v5464 = vsel %vm5439, %v4838, -inf
        %5465 = vmax.xlane.f32.xlu0 %v5464
        %v5466 = vpop.xlane.xlu0 %5465
        %v5467 = vsel %vm5439, %v4879, -inf
        %5468 = vmax.xlane.f32.xlu0 %v5467
        %v5469 = vpop.xlane.xlu0 %5468
        %v5470 = vsel %vm5439, %v4881, -inf
        %5471 = vmax.xlane.f32.xlu0 %v5470
        %v5472 = vpop.xlane.xlu0 %5471
        %v5473 = vsel %vm5439, %v4884, -inf
        %5474 = vmax.xlane.f32.xlu0 %v5473
        %v5475 = vpop.xlane.xlu0 %5474
        %v5476 = vsel %vm5439, %v4925, -inf
        %5477 = vmax.xlane.f32.xlu0 %v5476
        %v5478 = vpop.xlane.xlu0 %5477
        %v5479 = vsel %vm5439, %v4927, -inf
        %5480 = vmax.xlane.f32.xlu0 %v5479
        %v5481 = vpop.xlane.xlu0 %5480
        %v5482 = vsel %vm5439, %v4930, -inf
        %5483 = vmax.xlane.f32.xlu0 %v5482
        %v5484 = vpop.xlane.xlu0 %5483
        %v5485 = vsel %vm5439, %v4971, -inf
        %5486 = vmax.xlane.f32.xlu0 %v5485
        %v5487 = vpop.xlane.xlu0 %5486
        %v5488 = vsel %vm5439, %v4973, -inf
        %5489 = vmax.xlane.f32.xlu0 %v5488
        %v5490 = vpop.xlane.xlu0 %5489
        %v5491 = vsel %vm5439, %v4976, -inf
        %5492 = vmax.xlane.f32.xlu0 %v5491
        %v5493 = vpop.xlane.xlu0 %5492
        %v5494 = vsel %vm5439, %v5017, -inf
        %5495 = vmax.xlane.f32.xlu0 %v5494
        %v5496 = vpop.xlane.xlu0 %5495
        %v5497 = vsel %vm5439, %v5019, -inf
        %5498 = vmax.xlane.f32.xlu0 %v5497
        %v5499 = vpop.xlane.xlu0 %5498
        %v5500 = vsel %vm5439, %v5022, -inf
        %5501 = vmax.xlane.f32.xlu0 %v5500
        %v5502 = vpop.xlane.xlu0 %5501
        %v5503 = vsel %vm5439, %v5063, -inf
        %5504 = vmax.xlane.f32.xlu0 %v5503
        %v5505 = vpop.xlane.xlu0 %5504
        %v5506 = vsel %vm5439, %v5065, -inf
        %5507 = vmax.xlane.f32.xlu0 %v5506
        %v5508 = vpop.xlane.xlu0 %5507
        %v5509 = vsel %vm5439, %v5068, -inf
        %5510 = vmax.xlane.f32.xlu0 %v5509
        %v5511 = vpop.xlane.xlu0 %5510
        %v5512 = vsel %vm5439, %v5109, -inf
        %5513 = vmax.xlane.f32.xlu0 %v5512
        %v5514 = vpop.xlane.xlu0 %5513
        %v5515 = vsel %vm5439, %v5111, -inf
        %5516 = vmax.xlane.f32.xlu0 %v5515
        %v5517 = vpop.xlane.xlu0 %5516
        %v5518 = vsel %vm5439, %v5114, -inf
        %5519 = vmax.xlane.f32.xlu0 %v5518
        %v5520 = vpop.xlane.xlu0 %5519
        %v5521 = vsel %vm5439, %v5155, -inf
        %5522 = vmax.xlane.f32.xlu0 %v5521
        %v5523 = vpop.xlane.xlu0 %5522
        %v5524 = vsel %vm5439, %v5157, -inf
        %5525 = vmax.xlane.f32.xlu0 %v5524
        %v5526 = vpop.xlane.xlu0 %5525
        %v5527 = vsel %vm5439, %v5160, -inf
        %5528 = vmax.xlane.f32.xlu0 %v5527
        %v5529 = vpop.xlane.xlu0 %5528
        %v5530 = vsel %vm5439, %v5201, -inf
        %5531 = vmax.xlane.f32.xlu0 %v5530
        %v5532 = vpop.xlane.xlu0 %5531
        %v5533 = vsel %vm5439, %v5203, -inf
        %5534 = vmax.xlane.f32.xlu0 %v5533
        %v5535 = vpop.xlane.xlu0 %5534
        %v5536 = vsel %vm5439, %v5206, -inf
        %5537 = vmax.xlane.f32.xlu0 %v5536
        %v5538 = vpop.xlane.xlu0 %5537
        %v5539 = vsel %vm5439, %v5247, -inf
        %5540 = vmax.xlane.f32.xlu0 %v5539
        %v5541 = vpop.xlane.xlu0 %5540
        %v5542 = vsel %vm5439, %v5249, -inf
        %5543 = vmax.xlane.f32.xlu0 %v5542
        %v5544 = vpop.xlane.xlu0 %5543
        %v5545 = vsel %vm5439, %v5252, -inf
        %5546 = vmax.xlane.f32.xlu0 %v5545
        %v5547 = vpop.xlane.xlu0 %5546
        %v5548 = vsel %vm5439, %v5293, -inf
        %5549 = vmax.xlane.f32.xlu0 %v5548
        %v5550 = vpop.xlane.xlu0 %5549
        %v5551 = vsel %vm5439, %v5295, -inf
        %5552 = vmax.xlane.f32.xlu0 %v5551
        %v5553 = vpop.xlane.xlu0 %5552
        %v5554 = vsel %vm5439, %v5298, -inf
        %5555 = vmax.xlane.f32.xlu0 %v5554
        %v5556 = vpop.xlane.xlu0 %5555
        %v5557 = vsel %vm5439, %v5339, -inf
        %5558 = vmax.xlane.f32.xlu0 %v5557
        %v5559 = vpop.xlane.xlu0 %5558
        %v5560 = vsel %vm5439, %v5341, -inf
        %5561 = vmax.xlane.f32.xlu0 %v5560
        %v5562 = vpop.xlane.xlu0 %5561
        %v5563 = vsel %vm5439, %v5344, -inf
        %5564 = vmax.xlane.f32.xlu0 %v5563
        %v5565 = vpop.xlane.xlu0 %5564
        %v5566 = vsel %vm5439, %v5385, -inf
        %5567 = vmax.xlane.f32.xlu0 %v5566
        %v5568 = vpop.xlane.xlu0 %5567
        %v5569 = vsel %vm5439, %v5387, -inf
        %5570 = vmax.xlane.f32.xlu0 %v5569
        %v5571 = vpop.xlane.xlu0 %5570
        %v5572 = vsel %vm5439, %v5390, -inf
        %5573 = vmax.xlane.f32.xlu0 %v5572
        %v5574 = vpop.xlane.xlu0 %5573
        %v5575 = vsel %vm5439, %v5431, -inf
        %5576 = vmax.xlane.f32.xlu0 %v5575
        %v5577 = vpop.xlane.xlu0 %5576
        %v5578 = vsel %vm5439, %v5433, -inf
        %5579 = vmax.xlane.f32.xlu0 %v5578
        %v5580 = vpop.xlane.xlu0 %5579
        %v5581 = vsel %vm5439, %v5436, -inf
        %5582 = vmax.xlane.f32.xlu0 %v5581
        %v5583 = vpop.xlane.xlu0 %5582
        %vm5584 = vcmask 130048
        %v5585 = vsel %vm5584, %v4009, -inf
        %5586 = vmax.xlane.f32.xlu0 %v5585
        %v5587 = vpop.xlane.xlu0 %5586
        %v5588 = vsel %vm5584, %v4011, -inf
        %5589 = vmax.xlane.f32.xlu0 %v5588
        %v5590 = vpop.xlane.xlu0 %5589
        %v5591 = vsel %vm5584, %v4039, -inf
        %5592 = vmax.xlane.f32.xlu0 %v5591
        %v5593 = vpop.xlane.xlu0 %5592
        %v5594 = vsel %vm5584, %v4041, -inf
        %5595 = vmax.xlane.f32.xlu0 %v5594
        %v5596 = vpop.xlane.xlu0 %5595
        %v5597 = vsel %vm5584, %v4069, -inf
        %5598 = vmax.xlane.f32.xlu0 %v5597
        %v5599 = vpop.xlane.xlu0 %5598
        %v5600 = vsel %vm5584, %v4071, -inf
        %5601 = vmax.xlane.f32.xlu0 %v5600
        %v5602 = vpop.xlane.xlu0 %5601
        %v5603 = vsel %vm5584, %v4099, -inf
        %5604 = vmax.xlane.f32.xlu0 %v5603
        %v5605 = vpop.xlane.xlu0 %5604
        %v5606 = vsel %vm5584, %v4101, -inf
        %5607 = vmax.xlane.f32.xlu0 %v5606
        %v5608 = vpop.xlane.xlu0 %5607
        %v5609 = vsel %vm5584, %v4129, -inf
        %5610 = vmax.xlane.f32.xlu0 %v5609
        %v5611 = vpop.xlane.xlu0 %5610
        %v5612 = vsel %vm5584, %v4131, -inf
        %5613 = vmax.xlane.f32.xlu0 %v5612
        %v5614 = vpop.xlane.xlu0 %5613
        %v5615 = vsel %vm5584, %v4159, -inf
        %5616 = vmax.xlane.f32.xlu0 %v5615
        %v5617 = vpop.xlane.xlu0 %5616
        %v5618 = vsel %vm5584, %v4161, -inf
        %5619 = vmax.xlane.f32.xlu0 %v5618
        %v5620 = vpop.xlane.xlu0 %5619
        %v5621 = vsel %vm5584, %v4189, -inf
        %5622 = vmax.xlane.f32.xlu0 %v5621
        %v5623 = vpop.xlane.xlu0 %5622
        %v5624 = vsel %vm5584, %v4191, -inf
        %5625 = vmax.xlane.f32.xlu0 %v5624
        %v5626 = vpop.xlane.xlu0 %5625
        %v5627 = vsel %vm5584, %v4219, -inf
        %5628 = vmax.xlane.f32.xlu0 %v5627
        %v5629 = vpop.xlane.xlu0 %5628
        %v5630 = vsel %vm5584, %v4221, -inf
        %5631 = vmax.xlane.f32.xlu0 %v5630
        %v5632 = vpop.xlane.xlu0 %5631
        %v5633 = vsel %vm5584, %v4249, -inf
        %5634 = vmax.xlane.f32.xlu0 %v5633
        %v5635 = vpop.xlane.xlu0 %5634
        %v5636 = vsel %vm5584, %v4251, -inf
        %5637 = vmax.xlane.f32.xlu0 %v5636
        %v5638 = vpop.xlane.xlu0 %5637
        %v5639 = vsel %vm5584, %v4279, -inf
        %5640 = vmax.xlane.f32.xlu0 %v5639
        %v5641 = vpop.xlane.xlu0 %5640
        %v5642 = vsel %vm5584, %v4281, -inf
        %5643 = vmax.xlane.f32.xlu0 %v5642
        %v5644 = vpop.xlane.xlu0 %5643
        %v5645 = vsel %vm5584, %v4309, -inf
        %5646 = vmax.xlane.f32.xlu0 %v5645
        %v5647 = vpop.xlane.xlu0 %5646
        %v5648 = vsel %vm5584, %v4311, -inf
        %5649 = vmax.xlane.f32.xlu0 %v5648
        %v5650 = vpop.xlane.xlu0 %5649
        %v5651 = vsel %vm5584, %v4339, -inf
        %5652 = vmax.xlane.f32.xlu0 %v5651
        %v5653 = vpop.xlane.xlu0 %5652
        %v5654 = vsel %vm5584, %v4341, -inf
        %5655 = vmax.xlane.f32.xlu0 %v5654
        %v5656 = vpop.xlane.xlu0 %5655
        %v5657 = vsel %vm5584, %v4369, -inf
        %5658 = vmax.xlane.f32.xlu0 %v5657
        %v5659 = vpop.xlane.xlu0 %5658
        %v5660 = vsel %vm5584, %v4371, -inf
        %5661 = vmax.xlane.f32.xlu0 %v5660
        %v5662 = vpop.xlane.xlu0 %5661
        %v5663 = vsel %vm5584, %v4399, -inf
        %5664 = vmax.xlane.f32.xlu0 %v5663
        %v5665 = vpop.xlane.xlu0 %5664
        %v5666 = vsel %vm5584, %v4401, -inf
        %5667 = vmax.xlane.f32.xlu0 %v5666
        %v5668 = vpop.xlane.xlu0 %5667
        %v5669 = vsel %vm5584, %v4429, -inf
        %5670 = vmax.xlane.f32.xlu0 %v5669
        %v5671 = vpop.xlane.xlu0 %5670
        %v5672 = vsel %vm5584, %v4431, -inf
        %5673 = vmax.xlane.f32.xlu0 %v5672
        %v5674 = vpop.xlane.xlu0 %5673
        %v5675 = vsel %vm5584, %v4459, -inf
        %5676 = vmax.xlane.f32.xlu0 %v5675
        %v5677 = vpop.xlane.xlu0 %5676
        %v5678 = vsel %vm5584, %v4461, -inf
        %5679 = vmax.xlane.f32.xlu0 %v5678
        %v5680 = vpop.xlane.xlu0 %5679
        %v5681 = vsel %vm5584, %v4489, -inf
        %5682 = vmax.xlane.f32.xlu0 %v5681
        %v5683 = vpop.xlane.xlu0 %5682
        %v5684 = vsel %vm5584, %v4491, -inf
        %5685 = vmax.xlane.f32.xlu0 %v5684
        %v5686 = vpop.xlane.xlu0 %5685
        %v5687 = vsel %vm5584, %v4519, -inf
        %5688 = vmax.xlane.f32.xlu0 %v5687
        %v5689 = vpop.xlane.xlu0 %5688
        %v5690 = vsel %vm5584, %v4521, -inf
        %5691 = vmax.xlane.f32.xlu0 %v5690
        %v5692 = vpop.xlane.xlu0 %5691
        %v5693 = vsel %vm5584, %v4549, -inf
        %5694 = vmax.xlane.f32.xlu0 %v5693
        %v5695 = vpop.xlane.xlu0 %5694
        %v5696 = vsel %vm5584, %v4551, -inf
        %5697 = vmax.xlane.f32.xlu0 %v5696
        %v5698 = vpop.xlane.xlu0 %5697
        %v5699 = vsel %vm5584, %v4579, -inf
        %5700 = vmax.xlane.f32.xlu0 %v5699
        %v5701 = vpop.xlane.xlu0 %5700
        %v5702 = vsel %vm5584, %v4581, -inf
        %5703 = vmax.xlane.f32.xlu0 %v5702
        %v5704 = vpop.xlane.xlu0 %5703
        %v5705 = vsel %vm5584, %v4609, -inf
        %5706 = vmax.xlane.f32.xlu0 %v5705
        %v5707 = vpop.xlane.xlu0 %5706
        %v5708 = vsel %vm5584, %v4611, -inf
        %5709 = vmax.xlane.f32.xlu0 %v5708
        %v5710 = vpop.xlane.xlu0 %5709
        %v5711 = vsel %vm5584, %v4639, -inf
        %5712 = vmax.xlane.f32.xlu0 %v5711
        %v5713 = vpop.xlane.xlu0 %5712
        %v5714 = vsel %vm5584, %v4641, -inf
        %5715 = vmax.xlane.f32.xlu0 %v5714
        %v5716 = vpop.xlane.xlu0 %5715
        %v5717 = vsel %vm5584, %v4669, -inf
        %5718 = vmax.xlane.f32.xlu0 %v5717
        %v5719 = vpop.xlane.xlu0 %5718
        %v5720 = vsel %vm5584, %v4671, -inf
        %5721 = vmax.xlane.f32.xlu0 %v5720
        %v5722 = vpop.xlane.xlu0 %5721
        %v5723 = vsel %vm5584, %v4699, -inf
        %5724 = vmax.xlane.f32.xlu0 %v5723
        %v5725 = vpop.xlane.xlu0 %5724
        %v5726 = vsel %vm5584, %v4701, -inf
        %5727 = vmax.xlane.f32.xlu0 %v5726
        %v5728 = vpop.xlane.xlu0 %5727
        %v5777 = vperm.slane %v5587, %v3977
        %v5778 = vadd.s32 %v3977, 4294967288
        %v5779 = vperm.slane %v5590, %v5778
        %vm5780 = vcmask 130112
        %v5781 = vsel %vm5780, %v5779, %v5777
        %v5782 = vperm.slane %v5593, %v3977
        %v5783 = vperm.slane %v5596, %v5778
        %v5784 = vsel %vm5780, %v5783, %v5782
        %v5785 = vperm.slane %v5599, %v3977
        %v5786 = vperm.slane %v5602, %v5778
        %v5787 = vsel %vm5780, %v5786, %v5785
        %v5788 = vperm.slane %v5605, %v3977
        %v5789 = vperm.slane %v5608, %v5778
        %v5790 = vsel %vm5780, %v5789, %v5788
        %v5791 = vperm.slane %v5611, %v3977
        %v5792 = vperm.slane %v5614, %v5778
        %v5793 = vsel %vm5780, %v5792, %v5791
        %v5794 = vperm.slane %v5617, %v3977
        %v5795 = vperm.slane %v5620, %v5778
        %v5796 = vsel %vm5780, %v5795, %v5794
        %v5797 = vperm.slane %v5623, %v3977
        %v5798 = vperm.slane %v5626, %v5778
        %v5799 = vsel %vm5780, %v5798, %v5797
        %v5800 = vperm.slane %v5629, %v3977
        %v5801 = vperm.slane %v5632, %v5778
        %v5802 = vsel %vm5780, %v5801, %v5800
        %v5803 = vperm.slane %v5635, %v3977
        %v5804 = vperm.slane %v5638, %v5778
        %v5805 = vsel %vm5780, %v5804, %v5803
        %v5806 = vperm.slane %v5641, %v3977
        %v5807 = vperm.slane %v5644, %v5778
        %v5808 = vsel %vm5780, %v5807, %v5806
        %v5809 = vperm.slane %v5647, %v3977
        %v5810 = vperm.slane %v5650, %v5778
        %v5811 = vsel %vm5780, %v5810, %v5809
        %v5812 = vperm.slane %v5653, %v3977
        %v5813 = vperm.slane %v5656, %v5778
        %v5814 = vsel %vm5780, %v5813, %v5812
        %v5815 = vperm.slane %v5659, %v3977
        %v5816 = vperm.slane %v5662, %v5778
        %v5817 = vsel %vm5780, %v5816, %v5815
        %v5818 = vperm.slane %v5665, %v3977
        %v5819 = vperm.slane %v5668, %v5778
        %v5820 = vsel %vm5780, %v5819, %v5818
        %v5821 = vperm.slane %v5671, %v3977
        %v5822 = vperm.slane %v5674, %v5778
        %v5823 = vsel %vm5780, %v5822, %v5821
        %v5824 = vperm.slane %v5677, %v3977
        %v5825 = vperm.slane %v5680, %v5778
        %v5826 = vsel %vm5780, %v5825, %v5824
        %v5827 = vperm.slane %v5683, %v3977
        %v5828 = vperm.slane %v5686, %v5778
        %v5829 = vsel %vm5780, %v5828, %v5827
        %v5830 = vperm.slane %v5689, %v3977
        %v5831 = vperm.slane %v5692, %v5778
        %v5832 = vsel %vm5780, %v5831, %v5830
        %v5833 = vperm.slane %v5695, %v3977
        %v5834 = vperm.slane %v5698, %v5778
        %v5835 = vsel %vm5780, %v5834, %v5833
        %v5836 = vperm.slane %v5701, %v3977
        %v5837 = vperm.slane %v5704, %v5778
        %v5838 = vsel %vm5780, %v5837, %v5836
        %v5839 = vperm.slane %v5707, %v3977
        %v5840 = vperm.slane %v5710, %v5778
        %v5841 = vsel %vm5780, %v5840, %v5839
        %v5842 = vperm.slane %v5713, %v3977
        %v5843 = vperm.slane %v5716, %v5778
        %v5844 = vsel %vm5780, %v5843, %v5842
        %v5845 = vperm.slane %v5719, %v3977
        %v5846 = vperm.slane %v5722, %v5778
        %v5847 = vsel %vm5780, %v5846, %v5845
        %v5848 = vperm.slane %v5725, %v3977
        %v5849 = vperm.slane %v5728, %v5778
        %v5850 = vsel %vm5780, %v5849, %v5848
        %vm5851 = vcmask 1041409
        %v5852 = vsel %vm5851, %v5784, %v5781
        %vm5853 = vcmask 1042434
        %v5854 = vsel %vm5853, %v5787, %v5852
        %vm5855 = vcmask 1043459
        %v5856 = vsel %vm5855, %v5790, %v5854
        %vm5857 = vcmask 1044484
        %v5858 = vsel %vm5857, %v5793, %v5856
        %vm5859 = vcmask 1045509
        %v5860 = vsel %vm5859, %v5796, %v5858
        %vm5861 = vcmask 1046534
        %v5862 = vsel %vm5861, %v5799, %v5860
        %vm5863 = vcmask 1047559
        %v5864 = vsel %vm5863, %v5802, %v5862
        %v5865 = vsel %vm5851, %v5808, %v5805
        %v5866 = vsel %vm5853, %v5811, %v5865
        %v5867 = vsel %vm5855, %v5814, %v5866
        %v5868 = vsel %vm5857, %v5817, %v5867
        %v5869 = vsel %vm5859, %v5820, %v5868
        %v5870 = vsel %vm5861, %v5823, %v5869
        %v5871 = vsel %vm5863, %v5826, %v5870
        %v5872 = vsel %vm5851, %v5832, %v5829
        %v5873 = vsel %vm5853, %v5835, %v5872
        %v5874 = vsel %vm5855, %v5838, %v5873
        %v5875 = vsel %vm5857, %v5841, %v5874
        %v5876 = vsel %vm5859, %v5844, %v5875
        %v5877 = vsel %vm5861, %v5847, %v5876
        %v5878 = vsel %vm5863, %v5850, %v5877
        %5882 = vxpose.xlu0.b32.start [1/16] %v5864, 128
        %5883 = vxpose.xlu0.b32.cont [2/16] %v5871, 128
        %5884 = vxpose.xlu0.b32.cont [3/16] %v5878, 128
        %5885 = vxpose.xlu0.b32.cont [4/16] 0.0, 128
        %5886 = vxpose.xlu0.b32.cont [5/16] 0.0, 128
        %5887 = vxpose.xlu0.b32.cont [6/16] 0.0, 128
        %5888 = vxpose.xlu0.b32.cont [7/16] 0.0, 128
        %5889 = vxpose.xlu0.b32.cont [8/16] 0.0, 128
        %5890 = vxpose.xlu0.b32.cont [9/16] 0.0, 128
        %5891 = vxpose.xlu0.b32.cont [10/16] 0.0, 128
        %5892 = vxpose.xlu0.b32.cont [11/16] 0.0, 128
        %5893 = vxpose.xlu0.b32.cont [12/16] 0.0, 128
        %5894 = vxpose.xlu0.b32.cont [13/16] 0.0, 128
        %5895 = vxpose.xlu0.b32.cont [14/16] 0.0, 128
        %5896 = vxpose.xlu0.b32.cont [15/16] 0.0, 128
        %5897 = vxpose.xlu0.b32.end [16/16] 0.0, 128
        %v5898 = vpop.trf.xlu0
        %v5899 = vpop.trf.xlu0
        %v5900 = vpop.trf.xlu0
        %v5901 = vpop.trf.xlu0
        %v5902 = vpop.trf.xlu0
        %v5903 = vpop.trf.xlu0
        %v5904 = vpop.trf.xlu0
        %v5905 = vpop.trf.xlu0
        %v5906 = vpop.trf.xlu0
        %v5907 = vpop.trf.xlu0
        %v5908 = vpop.trf.xlu0
        %v5909 = vpop.trf.xlu0
        %v5910 = vpop.trf.xlu0
        %v5911 = vpop.trf.xlu0
        %v5912 = vpop.trf.xlu0
        %v5913 = vpop.trf.xlu0
        %v5916 = vperm.slane %v5898, 0
        %v5917 = vlaneseq
        %v5918 = vshrl.u32 %v5917, 7
        %5920 = vset.pattern.permute.xlu0 %v5918
        %5921 = vperm.xlu0 %5920, %v5916
        %v5922 = vpop.permute.xlu0 %5921
        %v5923 = vlaneseq
        %v5924 = vshrl.u32 %v5923, 7
        %v5925 = vadd.s32 %v5924, 8
        %5926 = vset.pattern.permute.xlu0 %v5925
        %5927 = vperm.xlu0 %5926, %v5916
        %v5928 = vpop.permute.xlu0 %5927
        %v5929 = vlaneseq
        %v5930 = vshrl.u32 %v5929, 7
        %v5931 = vadd.s32 %v5930, 16
        %5932 = vset.pattern.permute.xlu0 %v5931
        %5933 = vperm.xlu0 %5932, %v5916
        %v5934 = vpop.permute.xlu0 %5933
        %v5935 = vperm.slane %v5898, 1
        %v5936 = vlaneseq
        %v5937 = vshrl.u32 %v5936, 7
        %5939 = vset.pattern.permute.xlu0 %v5937
        %5940 = vperm.xlu0 %5939, %v5935
        %v5941 = vpop.permute.xlu0 %5940
        %v5942 = vlaneseq
        %v5943 = vshrl.u32 %v5942, 7
        %v5944 = vadd.s32 %v5943, 8
        %5945 = vset.pattern.permute.xlu0 %v5944
        %5946 = vperm.xlu0 %5945, %v5935
        %v5947 = vpop.permute.xlu0 %5946
        %v5948 = vlaneseq
        %v5949 = vshrl.u32 %v5948, 7
        %v5950 = vadd.s32 %v5949, 16
        %5951 = vset.pattern.permute.xlu0 %v5950
        %5952 = vperm.xlu0 %5951, %v5935
        %v5953 = vpop.permute.xlu0 %5952
        %v5954 = vperm.slane %v5898, 2
        %v5955 = vlaneseq
        %v5956 = vshrl.u32 %v5955, 7
        %5958 = vset.pattern.permute.xlu0 %v5956
        %5959 = vperm.xlu0 %5958, %v5954
        %v5960 = vpop.permute.xlu0 %5959
        %v5961 = vlaneseq
        %v5962 = vshrl.u32 %v5961, 7
        %v5963 = vadd.s32 %v5962, 8
        %5964 = vset.pattern.permute.xlu0 %v5963
        %5965 = vperm.xlu0 %5964, %v5954
        %v5966 = vpop.permute.xlu0 %5965
        %v5967 = vlaneseq
        %v5968 = vshrl.u32 %v5967, 7
        %v5969 = vadd.s32 %v5968, 16
        %5970 = vset.pattern.permute.xlu0 %v5969
        %5971 = vperm.xlu0 %5970, %v5954
        %v5972 = vpop.permute.xlu0 %5971
        %v5973 = vperm.slane %v5898, 3
        %v5974 = vlaneseq
        %v5975 = vshrl.u32 %v5974, 7
        %5977 = vset.pattern.permute.xlu0 %v5975
        %5978 = vperm.xlu0 %5977, %v5973
        %v5979 = vpop.permute.xlu0 %5978
        %v5980 = vlaneseq
        %v5981 = vshrl.u32 %v5980, 7
        %v5982 = vadd.s32 %v5981, 8
        %5983 = vset.pattern.permute.xlu0 %v5982
        %5984 = vperm.xlu0 %5983, %v5973
        %v5985 = vpop.permute.xlu0 %5984
        %v5986 = vlaneseq
        %v5987 = vshrl.u32 %v5986, 7
        %v5988 = vadd.s32 %v5987, 16
        %5989 = vset.pattern.permute.xlu0 %v5988
        %5990 = vperm.xlu0 %5989, %v5973
        %v5991 = vpop.permute.xlu0 %5990
        %v5992 = vperm.slane %v5898, 4
        %v5993 = vlaneseq
        %v5994 = vshrl.u32 %v5993, 7
        %5996 = vset.pattern.permute.xlu0 %v5994
        %5997 = vperm.xlu0 %5996, %v5992
        %v5998 = vpop.permute.xlu0 %5997
        %v5999 = vlaneseq
        %v6000 = vshrl.u32 %v5999, 7
        %v6001 = vadd.s32 %v6000, 8
        %6002 = vset.pattern.permute.xlu0 %v6001
        %6003 = vperm.xlu0 %6002, %v5992
        %v6004 = vpop.permute.xlu0 %6003
        %v6005 = vlaneseq
        %v6006 = vshrl.u32 %v6005, 7
        %v6007 = vadd.s32 %v6006, 16
        %6008 = vset.pattern.permute.xlu0 %v6007
        %6009 = vperm.xlu0 %6008, %v5992
        %v6010 = vpop.permute.xlu0 %6009
        %v6011 = vperm.slane %v5898, 5
        %v6012 = vlaneseq
        %v6013 = vshrl.u32 %v6012, 7
        %6015 = vset.pattern.permute.xlu0 %v6013
        %6016 = vperm.xlu0 %6015, %v6011
        %v6017 = vpop.permute.xlu0 %6016
        %v6018 = vlaneseq
        %v6019 = vshrl.u32 %v6018, 7
        %v6020 = vadd.s32 %v6019, 8
        %6021 = vset.pattern.permute.xlu0 %v6020
        %6022 = vperm.xlu0 %6021, %v6011
        %v6023 = vpop.permute.xlu0 %6022
        %v6024 = vlaneseq
        %v6025 = vshrl.u32 %v6024, 7
        %v6026 = vadd.s32 %v6025, 16
        %6027 = vset.pattern.permute.xlu0 %v6026
        %6028 = vperm.xlu0 %6027, %v6011
        %v6029 = vpop.permute.xlu0 %6028
        %v6030 = vperm.slane %v5898, 6
        %v6031 = vlaneseq
        %v6032 = vshrl.u32 %v6031, 7
        %6034 = vset.pattern.permute.xlu0 %v6032
        %6035 = vperm.xlu0 %6034, %v6030
        %v6036 = vpop.permute.xlu0 %6035
        %v6037 = vlaneseq
        %v6038 = vshrl.u32 %v6037, 7
        %v6039 = vadd.s32 %v6038, 8
        %6040 = vset.pattern.permute.xlu0 %v6039
        %6041 = vperm.xlu0 %6040, %v6030
        %v6042 = vpop.permute.xlu0 %6041
        %v6043 = vlaneseq
        %v6044 = vshrl.u32 %v6043, 7
        %v6045 = vadd.s32 %v6044, 16
        %6046 = vset.pattern.permute.xlu0 %v6045
        %6047 = vperm.xlu0 %6046, %v6030
        %v6048 = vpop.permute.xlu0 %6047
        %v6049 = vperm.slane %v5898, 7
        %v6050 = vlaneseq
        %v6051 = vshrl.u32 %v6050, 7
        %6053 = vset.pattern.permute.xlu0 %v6051
        %6054 = vperm.xlu0 %6053, %v6049
        %v6055 = vpop.permute.xlu0 %6054
        %v6056 = vlaneseq
        %v6057 = vshrl.u32 %v6056, 7
        %v6058 = vadd.s32 %v6057, 8
        %6059 = vset.pattern.permute.xlu0 %v6058
        %6060 = vperm.xlu0 %6059, %v6049
        %v6061 = vpop.permute.xlu0 %6060
        %v6062 = vlaneseq
        %v6063 = vshrl.u32 %v6062, 7
        %v6064 = vadd.s32 %v6063, 16
        %6065 = vset.pattern.permute.xlu0 %v6064
        %6066 = vperm.xlu0 %6065, %v6049
        %v6067 = vpop.permute.xlu0 %6066
        %v6068 = vperm.slane %v5899, 0
        %v6069 = vlaneseq
        %v6070 = vshrl.u32 %v6069, 7
        %6072 = vset.pattern.permute.xlu0 %v6070
        %6073 = vperm.xlu0 %6072, %v6068
        %v6074 = vpop.permute.xlu0 %6073
        %v6075 = vlaneseq
        %v6076 = vshrl.u32 %v6075, 7
        %v6077 = vadd.s32 %v6076, 8
        %6078 = vset.pattern.permute.xlu0 %v6077
        %6079 = vperm.xlu0 %6078, %v6068
        %v6080 = vpop.permute.xlu0 %6079
        %v6081 = vlaneseq
        %v6082 = vshrl.u32 %v6081, 7
        %v6083 = vadd.s32 %v6082, 16
        %6084 = vset.pattern.permute.xlu0 %v6083
        %6085 = vperm.xlu0 %6084, %v6068
        %v6086 = vpop.permute.xlu0 %6085
        %v6087 = vperm.slane %v5899, 1
        %v6088 = vlaneseq
        %v6089 = vshrl.u32 %v6088, 7
        %6091 = vset.pattern.permute.xlu0 %v6089
        %6092 = vperm.xlu0 %6091, %v6087
        %v6093 = vpop.permute.xlu0 %6092
        %v6094 = vlaneseq
        %v6095 = vshrl.u32 %v6094, 7
        %v6096 = vadd.s32 %v6095, 8
        %6097 = vset.pattern.permute.xlu0 %v6096
        %6098 = vperm.xlu0 %6097, %v6087
        %v6099 = vpop.permute.xlu0 %6098
        %v6100 = vlaneseq
        %v6101 = vshrl.u32 %v6100, 7
        %v6102 = vadd.s32 %v6101, 16
        %6103 = vset.pattern.permute.xlu0 %v6102
        %6104 = vperm.xlu0 %6103, %v6087
        %v6105 = vpop.permute.xlu0 %6104
        %v6106 = vperm.slane %v5899, 2
        %v6107 = vlaneseq
        %v6108 = vshrl.u32 %v6107, 7
        %6110 = vset.pattern.permute.xlu0 %v6108
        %6111 = vperm.xlu0 %6110, %v6106
        %v6112 = vpop.permute.xlu0 %6111
        %v6113 = vlaneseq
        %v6114 = vshrl.u32 %v6113, 7
        %v6115 = vadd.s32 %v6114, 8
        %6116 = vset.pattern.permute.xlu0 %v6115
        %6117 = vperm.xlu0 %6116, %v6106
        %v6118 = vpop.permute.xlu0 %6117
        %v6119 = vlaneseq
        %v6120 = vshrl.u32 %v6119, 7
        %v6121 = vadd.s32 %v6120, 16
        %6122 = vset.pattern.permute.xlu0 %v6121
        %6123 = vperm.xlu0 %6122, %v6106
        %v6124 = vpop.permute.xlu0 %6123
        %v6125 = vperm.slane %v5899, 3
        %v6126 = vlaneseq
        %v6127 = vshrl.u32 %v6126, 7
        %6129 = vset.pattern.permute.xlu0 %v6127
        %6130 = vperm.xlu0 %6129, %v6125
        %v6131 = vpop.permute.xlu0 %6130
        %v6132 = vlaneseq
        %v6133 = vshrl.u32 %v6132, 7
        %v6134 = vadd.s32 %v6133, 8
        %6135 = vset.pattern.permute.xlu0 %v6134
        %6136 = vperm.xlu0 %6135, %v6125
        %v6137 = vpop.permute.xlu0 %6136
        %v6138 = vlaneseq
        %v6139 = vshrl.u32 %v6138, 7
        %v6140 = vadd.s32 %v6139, 16
        %6141 = vset.pattern.permute.xlu0 %v6140
        %6142 = vperm.xlu0 %6141, %v6125
        %v6143 = vpop.permute.xlu0 %6142
        %v6144 = vperm.slane %v5899, 4
        %v6145 = vlaneseq
        %v6146 = vshrl.u32 %v6145, 7
        %6148 = vset.pattern.permute.xlu0 %v6146
        %6149 = vperm.xlu0 %6148, %v6144
        %v6150 = vpop.permute.xlu0 %6149
        %v6151 = vlaneseq
        %v6152 = vshrl.u32 %v6151, 7
        %v6153 = vadd.s32 %v6152, 8
        %6154 = vset.pattern.permute.xlu0 %v6153
        %6155 = vperm.xlu0 %6154, %v6144
        %v6156 = vpop.permute.xlu0 %6155
        %v6157 = vlaneseq
        %v6158 = vshrl.u32 %v6157, 7
        %v6159 = vadd.s32 %v6158, 16
        %6160 = vset.pattern.permute.xlu0 %v6159
        %6161 = vperm.xlu0 %6160, %v6144
        %v6162 = vpop.permute.xlu0 %6161
        %v6163 = vperm.slane %v5899, 5
        %v6164 = vlaneseq
        %v6165 = vshrl.u32 %v6164, 7
        %6167 = vset.pattern.permute.xlu0 %v6165
        %6168 = vperm.xlu0 %6167, %v6163
        %v6169 = vpop.permute.xlu0 %6168
        %v6170 = vlaneseq
        %v6171 = vshrl.u32 %v6170, 7
        %v6172 = vadd.s32 %v6171, 8
        %6173 = vset.pattern.permute.xlu0 %v6172
        %6174 = vperm.xlu0 %6173, %v6163
        %v6175 = vpop.permute.xlu0 %6174
        %v6176 = vlaneseq
        %v6177 = vshrl.u32 %v6176, 7
        %v6178 = vadd.s32 %v6177, 16
        %6179 = vset.pattern.permute.xlu0 %v6178
        %6180 = vperm.xlu0 %6179, %v6163
        %v6181 = vpop.permute.xlu0 %6180
        %v6182 = vperm.slane %v5899, 6
        %v6183 = vlaneseq
        %v6184 = vshrl.u32 %v6183, 7
        %6186 = vset.pattern.permute.xlu0 %v6184
        %6187 = vperm.xlu0 %6186, %v6182
        %v6188 = vpop.permute.xlu0 %6187
        %v6189 = vlaneseq
        %v6190 = vshrl.u32 %v6189, 7
        %v6191 = vadd.s32 %v6190, 8
        %6192 = vset.pattern.permute.xlu0 %v6191
        %6193 = vperm.xlu0 %6192, %v6182
        %v6194 = vpop.permute.xlu0 %6193
        %v6195 = vlaneseq
        %v6196 = vshrl.u32 %v6195, 7
        %v6197 = vadd.s32 %v6196, 16
        %6198 = vset.pattern.permute.xlu0 %v6197
        %6199 = vperm.xlu0 %6198, %v6182
        %v6200 = vpop.permute.xlu0 %6199
        %v6201 = vperm.slane %v5899, 7
        %v6202 = vlaneseq
        %v6203 = vshrl.u32 %v6202, 7
        %6205 = vset.pattern.permute.xlu0 %v6203
        %6206 = vperm.xlu0 %6205, %v6201
        %v6207 = vpop.permute.xlu0 %6206
        %v6208 = vlaneseq
        %v6209 = vshrl.u32 %v6208, 7
        %v6210 = vadd.s32 %v6209, 8
        %6211 = vset.pattern.permute.xlu0 %v6210
        %6212 = vperm.xlu0 %6211, %v6201
        %v6213 = vpop.permute.xlu0 %6212
        %v6214 = vlaneseq
        %v6215 = vshrl.u32 %v6214, 7
        %v6216 = vadd.s32 %v6215, 16
        %6217 = vset.pattern.permute.xlu0 %v6216
        %6218 = vperm.xlu0 %6217, %v6201
        %v6219 = vpop.permute.xlu0 %6218
        %v6268 = vmax.f32 %v5442, %v5922
        %v6269 = vmax.f32 %v5445, %v5928
        %v6270 = vmax.f32 %v5448, %v5934
        %v6271 = vmax.f32 %v5451, %v5941
        %v6272 = vmax.f32 %v5454, %v5947
        %v6273 = vmax.f32 %v5457, %v5953
        %v6274 = vmax.f32 %v5460, %v5960
        %v6275 = vmax.f32 %v5463, %v5966
        %v6276 = vmax.f32 %v5466, %v5972
        %v6277 = vmax.f32 %v5469, %v5979
        %v6278 = vmax.f32 %v5472, %v5985
        %v6279 = vmax.f32 %v5475, %v5991
        %v6280 = vmax.f32 %v5478, %v5998
        %v6281 = vmax.f32 %v5481, %v6004
        %v6282 = vmax.f32 %v5484, %v6010
        %v6283 = vmax.f32 %v5487, %v6017
        %v6284 = vmax.f32 %v5490, %v6023
        %v6285 = vmax.f32 %v5493, %v6029
        %v6286 = vmax.f32 %v5496, %v6036
        %v6287 = vmax.f32 %v5499, %v6042
        %v6288 = vmax.f32 %v5502, %v6048
        %v6289 = vmax.f32 %v5505, %v6055
        %v6290 = vmax.f32 %v5508, %v6061
        %v6291 = vmax.f32 %v5511, %v6067
        %v6292 = vmax.f32 %v5514, %v6074
        %v6293 = vmax.f32 %v5517, %v6080
        %v6294 = vmax.f32 %v5520, %v6086
        %v6295 = vmax.f32 %v5523, %v6093
        %v6296 = vmax.f32 %v5526, %v6099
        %v6297 = vmax.f32 %v5529, %v6105
        %v6298 = vmax.f32 %v5532, %v6112
        %v6299 = vmax.f32 %v5535, %v6118
        %v6300 = vmax.f32 %v5538, %v6124
        %v6301 = vmax.f32 %v5541, %v6131
        %v6302 = vmax.f32 %v5544, %v6137
        %v6303 = vmax.f32 %v5547, %v6143
        %v6304 = vmax.f32 %v5550, %v6150
        %v6305 = vmax.f32 %v5553, %v6156
        %v6306 = vmax.f32 %v5556, %v6162
        %v6307 = vmax.f32 %v5559, %v6169
        %v6308 = vmax.f32 %v5562, %v6175
        %v6309 = vmax.f32 %v5565, %v6181
        %v6310 = vmax.f32 %v5568, %v6188
        %v6311 = vmax.f32 %v5571, %v6194
        %v6312 = vmax.f32 %v5574, %v6200
        %v6313 = vmax.f32 %v5577, %v6207
        %v6314 = vmax.f32 %v5580, %v6213
        %v6315 = vmax.f32 %v5583, %v6219
        %6364 = vset.pattern.permute.xlu0 0
        %6365 = vperm.xlu0 %6364, %v6268
        %v6366 = vpop.permute.xlu0 %6365
        %6367 = vset.pattern.permute.xlu0 0
        %6368 = vperm.xlu0 %6367, %v6269
        %v6369 = vpop.permute.xlu0 %6368
        %6370 = vset.pattern.permute.xlu0 0
        %6371 = vperm.xlu0 %6370, %v6270
        %v6372 = vpop.permute.xlu0 %6371
        %6373 = vset.pattern.permute.xlu0 0
        %6374 = vperm.xlu0 %6373, %v6271
        %v6375 = vpop.permute.xlu0 %6374
        %6376 = vset.pattern.permute.xlu0 0
        %6377 = vperm.xlu0 %6376, %v6272
        %v6378 = vpop.permute.xlu0 %6377
        %6379 = vset.pattern.permute.xlu0 0
        %6380 = vperm.xlu0 %6379, %v6273
        %v6381 = vpop.permute.xlu0 %6380
        %6382 = vset.pattern.permute.xlu0 0
        %6383 = vperm.xlu0 %6382, %v6274
        %v6384 = vpop.permute.xlu0 %6383
        %6385 = vset.pattern.permute.xlu0 0
        %6386 = vperm.xlu0 %6385, %v6275
        %v6387 = vpop.permute.xlu0 %6386
        %6388 = vset.pattern.permute.xlu0 0
        %6389 = vperm.xlu0 %6388, %v6276
        %v6390 = vpop.permute.xlu0 %6389
        %6391 = vset.pattern.permute.xlu0 0
        %6392 = vperm.xlu0 %6391, %v6277
        %v6393 = vpop.permute.xlu0 %6392
        %6394 = vset.pattern.permute.xlu0 0
        %6395 = vperm.xlu0 %6394, %v6278
        %v6396 = vpop.permute.xlu0 %6395
        %6397 = vset.pattern.permute.xlu0 0
        %6398 = vperm.xlu0 %6397, %v6279
        %v6399 = vpop.permute.xlu0 %6398
        %6400 = vset.pattern.permute.xlu0 0
        %6401 = vperm.xlu0 %6400, %v6280
        %v6402 = vpop.permute.xlu0 %6401
        %6403 = vset.pattern.permute.xlu0 0
        %6404 = vperm.xlu0 %6403, %v6281
        %v6405 = vpop.permute.xlu0 %6404
        %6406 = vset.pattern.permute.xlu0 0
        %6407 = vperm.xlu0 %6406, %v6282
        %v6408 = vpop.permute.xlu0 %6407
        %6409 = vset.pattern.permute.xlu0 0
        %6410 = vperm.xlu0 %6409, %v6283
        %v6411 = vpop.permute.xlu0 %6410
        %6412 = vset.pattern.permute.xlu0 0
        %6413 = vperm.xlu0 %6412, %v6284
        %v6414 = vpop.permute.xlu0 %6413
        %6415 = vset.pattern.permute.xlu0 0
        %6416 = vperm.xlu0 %6415, %v6285
        %v6417 = vpop.permute.xlu0 %6416
        %6418 = vset.pattern.permute.xlu0 0
        %6419 = vperm.xlu0 %6418, %v6286
        %v6420 = vpop.permute.xlu0 %6419
        %6421 = vset.pattern.permute.xlu0 0
        %6422 = vperm.xlu0 %6421, %v6287
        %v6423 = vpop.permute.xlu0 %6422
        %6424 = vset.pattern.permute.xlu0 0
        %6425 = vperm.xlu0 %6424, %v6288
        %v6426 = vpop.permute.xlu0 %6425
        %6427 = vset.pattern.permute.xlu0 0
        %6428 = vperm.xlu0 %6427, %v6289
        %v6429 = vpop.permute.xlu0 %6428
        %6430 = vset.pattern.permute.xlu0 0
        %6431 = vperm.xlu0 %6430, %v6290
        %v6432 = vpop.permute.xlu0 %6431
        %6433 = vset.pattern.permute.xlu0 0
        %6434 = vperm.xlu0 %6433, %v6291
        %v6435 = vpop.permute.xlu0 %6434
        %6436 = vset.pattern.permute.xlu0 0
        %6437 = vperm.xlu0 %6436, %v6292
        %v6438 = vpop.permute.xlu0 %6437
        %6439 = vset.pattern.permute.xlu0 0
        %6440 = vperm.xlu0 %6439, %v6293
        %v6441 = vpop.permute.xlu0 %6440
        %6442 = vset.pattern.permute.xlu0 0
        %6443 = vperm.xlu0 %6442, %v6294
        %v6444 = vpop.permute.xlu0 %6443
        %6445 = vset.pattern.permute.xlu0 0
        %6446 = vperm.xlu0 %6445, %v6295
        %v6447 = vpop.permute.xlu0 %6446
        %6448 = vset.pattern.permute.xlu0 0
        %6449 = vperm.xlu0 %6448, %v6296
        %v6450 = vpop.permute.xlu0 %6449
        %6451 = vset.pattern.permute.xlu0 0
        %6452 = vperm.xlu0 %6451, %v6297
        %v6453 = vpop.permute.xlu0 %6452
        %6454 = vset.pattern.permute.xlu0 0
        %6455 = vperm.xlu0 %6454, %v6298
        %v6456 = vpop.permute.xlu0 %6455
        %6457 = vset.pattern.permute.xlu0 0
        %6458 = vperm.xlu0 %6457, %v6299
        %v6459 = vpop.permute.xlu0 %6458
        %6460 = vset.pattern.permute.xlu0 0
        %6461 = vperm.xlu0 %6460, %v6300
        %v6462 = vpop.permute.xlu0 %6461
        %6463 = vset.pattern.permute.xlu0 0
        %6464 = vperm.xlu0 %6463, %v6301
        %v6465 = vpop.permute.xlu0 %6464
        %6466 = vset.pattern.permute.xlu0 0
        %6467 = vperm.xlu0 %6466, %v6302
        %v6468 = vpop.permute.xlu0 %6467
        %6469 = vset.pattern.permute.xlu0 0
        %6470 = vperm.xlu0 %6469, %v6303
        %v6471 = vpop.permute.xlu0 %6470
        %6472 = vset.pattern.permute.xlu0 0
        %6473 = vperm.xlu0 %6472, %v6304
        %v6474 = vpop.permute.xlu0 %6473
        %6475 = vset.pattern.permute.xlu0 0
        %6476 = vperm.xlu0 %6475, %v6305
        %v6477 = vpop.permute.xlu0 %6476
        %6478 = vset.pattern.permute.xlu0 0
        %6479 = vperm.xlu0 %6478, %v6306
        %v6480 = vpop.permute.xlu0 %6479
        %6481 = vset.pattern.permute.xlu0 0
        %6482 = vperm.xlu0 %6481, %v6307
        %v6483 = vpop.permute.xlu0 %6482
        %6484 = vset.pattern.permute.xlu0 0
        %6485 = vperm.xlu0 %6484, %v6308
        %v6486 = vpop.permute.xlu0 %6485
        %6487 = vset.pattern.permute.xlu0 0
        %6488 = vperm.xlu0 %6487, %v6309
        %v6489 = vpop.permute.xlu0 %6488
        %6490 = vset.pattern.permute.xlu0 0
        %6491 = vperm.xlu0 %6490, %v6310
        %v6492 = vpop.permute.xlu0 %6491
        %6493 = vset.pattern.permute.xlu0 0
        %6494 = vperm.xlu0 %6493, %v6311
        %v6495 = vpop.permute.xlu0 %6494
        %6496 = vset.pattern.permute.xlu0 0
        %6497 = vperm.xlu0 %6496, %v6312
        %v6498 = vpop.permute.xlu0 %6497
        %6499 = vset.pattern.permute.xlu0 0
        %6500 = vperm.xlu0 %6499, %v6313
        %v6501 = vpop.permute.xlu0 %6500
        %6502 = vset.pattern.permute.xlu0 0
        %6503 = vperm.xlu0 %6502, %v6314
        %v6504 = vpop.permute.xlu0 %6503
        %6505 = vset.pattern.permute.xlu0 0
        %6506 = vperm.xlu0 %6505, %v6315
        %v6507 = vpop.permute.xlu0 %6506
        %v6508 = vperm.slane %v6366, %v3977
        %v6509 = vperm.slane %v6369, %v5778
        %v6510 = vsel %vm5780, %v6509, %v6508
        %v6511 = vadd.s32 %v3977, 4294967280
        %v6512 = vperm.slane %v6372, %v6511
        %vm6513 = vcmask 195712
        %v6514 = vsel %vm6513, %v6512, %v6510
        %v6515 = vperm.slane %v6375, %v3977
        %v6516 = vperm.slane %v6378, %v5778
        %v6517 = vsel %vm5780, %v6516, %v6515
        %v6518 = vperm.slane %v6381, %v6511
        %v6519 = vsel %vm6513, %v6518, %v6517
        %v6520 = vperm.slane %v6384, %v3977
        %v6521 = vperm.slane %v6387, %v5778
        %v6522 = vsel %vm5780, %v6521, %v6520
        %v6523 = vperm.slane %v6390, %v6511
        %v6524 = vsel %vm6513, %v6523, %v6522
        %v6525 = vperm.slane %v6393, %v3977
        %v6526 = vperm.slane %v6396, %v5778
        %v6527 = vsel %vm5780, %v6526, %v6525
        %v6528 = vperm.slane %v6399, %v6511
        %v6529 = vsel %vm6513, %v6528, %v6527
        %v6530 = vperm.slane %v6402, %v3977
        %v6531 = vperm.slane %v6405, %v5778
        %v6532 = vsel %vm5780, %v6531, %v6530
        %v6533 = vperm.slane %v6408, %v6511
        %v6534 = vsel %vm6513, %v6533, %v6532
        %v6535 = vperm.slane %v6411, %v3977
        %v6536 = vperm.slane %v6414, %v5778
        %v6537 = vsel %vm5780, %v6536, %v6535
        %v6538 = vperm.slane %v6417, %v6511
        %v6539 = vsel %vm6513, %v6538, %v6537
        %v6540 = vperm.slane %v6420, %v3977
        %v6541 = vperm.slane %v6423, %v5778
        %v6542 = vsel %vm5780, %v6541, %v6540
        %v6543 = vperm.slane %v6426, %v6511
        %v6544 = vsel %vm6513, %v6543, %v6542
        %v6545 = vperm.slane %v6429, %v3977
        %v6546 = vperm.slane %v6432, %v5778
        %v6547 = vsel %vm5780, %v6546, %v6545
        %v6548 = vperm.slane %v6435, %v6511
        %v6549 = vsel %vm6513, %v6548, %v6547
        %v6550 = vperm.slane %v6438, %v3977
        %v6551 = vperm.slane %v6441, %v5778
        %v6552 = vsel %vm5780, %v6551, %v6550
        %v6553 = vperm.slane %v6444, %v6511
        %v6554 = vsel %vm6513, %v6553, %v6552
        %v6555 = vperm.slane %v6447, %v3977
        %v6556 = vperm.slane %v6450, %v5778
        %v6557 = vsel %vm5780, %v6556, %v6555
        %v6558 = vperm.slane %v6453, %v6511
        %v6559 = vsel %vm6513, %v6558, %v6557
        %v6560 = vperm.slane %v6456, %v3977
        %v6561 = vperm.slane %v6459, %v5778
        %v6562 = vsel %vm5780, %v6561, %v6560
        %v6563 = vperm.slane %v6462, %v6511
        %v6564 = vsel %vm6513, %v6563, %v6562
        %v6565 = vperm.slane %v6465, %v3977
        %v6566 = vperm.slane %v6468, %v5778
        %v6567 = vsel %vm5780, %v6566, %v6565
        %v6568 = vperm.slane %v6471, %v6511
        %v6569 = vsel %vm6513, %v6568, %v6567
        %v6570 = vperm.slane %v6474, %v3977
        %v6571 = vperm.slane %v6477, %v5778
        %v6572 = vsel %vm5780, %v6571, %v6570
        %v6573 = vperm.slane %v6480, %v6511
        %v6574 = vsel %vm6513, %v6573, %v6572
        %v6575 = vperm.slane %v6483, %v3977
        %v6576 = vperm.slane %v6486, %v5778
        %v6577 = vsel %vm5780, %v6576, %v6575
        %v6578 = vperm.slane %v6489, %v6511
        %v6579 = vsel %vm6513, %v6578, %v6577
        %v6580 = vperm.slane %v6492, %v3977
        %v6581 = vperm.slane %v6495, %v5778
        %v6582 = vsel %vm5780, %v6581, %v6580
        %v6583 = vperm.slane %v6498, %v6511
        %v6584 = vsel %vm6513, %v6583, %v6582
        %v6585 = vperm.slane %v6501, %v3977
        %v6586 = vperm.slane %v6504, %v5778
        %v6587 = vsel %vm5780, %v6586, %v6585
        %v6588 = vperm.slane %v6507, %v6511
        %v6589 = vsel %vm6513, %v6588, %v6587
        %v6590 = vsel %vm5851, %v6519, %v6514
        %v6591 = vsel %vm5853, %v6524, %v6590
        %v6592 = vsel %vm5855, %v6529, %v6591
        %v6593 = vsel %vm5857, %v6534, %v6592
        %v6594 = vsel %vm5859, %v6539, %v6593
        %v6595 = vsel %vm5861, %v6544, %v6594
        %v6596 = vsel %vm5863, %v6549, %v6595
        %v6597 = vsel %vm5851, %v6559, %v6554
        %v6598 = vsel %vm5853, %v6564, %v6597
        %v6599 = vsel %vm5855, %v6569, %v6598
        %v6600 = vsel %vm5857, %v6574, %v6599
        %v6601 = vsel %vm5859, %v6579, %v6600
        %v6602 = vsel %vm5861, %v6584, %v6601
        %v6603 = vsel %vm5863, %v6589, %v6602
        %6606 = vxpose.xlu0.b32.start [1/16] %v6596, 128
        %6607 = vxpose.xlu0.b32.cont [2/16] %v6603, 128
        %6608 = vxpose.xlu0.b32.cont [3/16] 0.0, 128
        %6609 = vxpose.xlu0.b32.cont [4/16] 0.0, 128
        %6610 = vxpose.xlu0.b32.cont [5/16] 0.0, 128
        %6611 = vxpose.xlu0.b32.cont [6/16] 0.0, 128
        %6612 = vxpose.xlu0.b32.cont [7/16] 0.0, 128
        %6613 = vxpose.xlu0.b32.cont [8/16] 0.0, 128
        %6614 = vxpose.xlu0.b32.cont [9/16] 0.0, 128
        %6615 = vxpose.xlu0.b32.cont [10/16] 0.0, 128
        %6616 = vxpose.xlu0.b32.cont [11/16] 0.0, 128
        %6617 = vxpose.xlu0.b32.cont [12/16] 0.0, 128
        %6618 = vxpose.xlu0.b32.cont [13/16] 0.0, 128
        %6619 = vxpose.xlu0.b32.cont [14/16] 0.0, 128
        %6620 = vxpose.xlu0.b32.cont [15/16] 0.0, 128
        %6621 = vxpose.xlu0.b32.end [16/16] 0.0, 128
        %v6622 = vpop.trf.xlu0
        %v6623 = vpop.trf.xlu0
        %v6624 = vpop.trf.xlu0
        %v6625 = vpop.trf.xlu0
        %v6626 = vpop.trf.xlu0
        %v6627 = vpop.trf.xlu0
        %v6628 = vpop.trf.xlu0
        %v6629 = vpop.trf.xlu0
        %v6630 = vpop.trf.xlu0
        %v6631 = vpop.trf.xlu0
        %v6632 = vpop.trf.xlu0
        %v6633 = vpop.trf.xlu0
        %v6634 = vpop.trf.xlu0
        %v6635 = vpop.trf.xlu0
        %v6636 = vpop.trf.xlu0
        %v6637 = vpop.trf.xlu0
        %v6686 = vsub.f32 %v4741, %v6366
        %v6687 = vsub.f32 %v4743, %v6369
        %v6688 = vsub.f32 %v4746, %v6372
        %v6689 = vsub.f32 %v4787, %v6375
        %v6690 = vsub.f32 %v4789, %v6378
        %v6691 = vsub.f32 %v4792, %v6381
        %v6692 = vsub.f32 %v4833, %v6384
        %v6693 = vsub.f32 %v4835, %v6387
        %v6694 = vsub.f32 %v4838, %v6390
        %v6695 = vsub.f32 %v4879, %v6393
        %v6696 = vsub.f32 %v4881, %v6396
        %v6697 = vsub.f32 %v4884, %v6399
        %v6698 = vsub.f32 %v4925, %v6402
        %v6699 = vsub.f32 %v4927, %v6405
        %v6700 = vsub.f32 %v4930, %v6408
        %v6701 = vsub.f32 %v4971, %v6411
        %v6702 = vsub.f32 %v4973, %v6414
        %v6703 = vsub.f32 %v4976, %v6417
        %v6704 = vsub.f32 %v5017, %v6420
        %v6705 = vsub.f32 %v5019, %v6423
        %v6706 = vsub.f32 %v5022, %v6426
        %v6707 = vsub.f32 %v5063, %v6429
        %v6708 = vsub.f32 %v5065, %v6432
        %v6709 = vsub.f32 %v5068, %v6435
        %v6710 = vsub.f32 %v5109, %v6438
        %v6711 = vsub.f32 %v5111, %v6441
        %v6712 = vsub.f32 %v5114, %v6444
        %v6713 = vsub.f32 %v5155, %v6447
        %v6714 = vsub.f32 %v5157, %v6450
        %v6715 = vsub.f32 %v5160, %v6453
        %v6716 = vsub.f32 %v5201, %v6456
        %v6717 = vsub.f32 %v5203, %v6459
        %v6718 = vsub.f32 %v5206, %v6462
        %v6719 = vsub.f32 %v5247, %v6465
        %v6720 = vsub.f32 %v5249, %v6468
        %v6721 = vsub.f32 %v5252, %v6471
        %v6722 = vsub.f32 %v5293, %v6474
        %v6723 = vsub.f32 %v5295, %v6477
        %v6724 = vsub.f32 %v5298, %v6480
        %v6725 = vsub.f32 %v5339, %v6483
        %v6726 = vsub.f32 %v5341, %v6486
        %v6727 = vsub.f32 %v5344, %v6489
        %v6728 = vsub.f32 %v5385, %v6492
        %v6729 = vsub.f32 %v5387, %v6495
        %v6730 = vsub.f32 %v5390, %v6498
        %v6731 = vsub.f32 %v5431, %v6501
        %v6732 = vsub.f32 %v5433, %v6504
        %v6733 = vsub.f32 %v5436, %v6507
        %v6734 = vmul.f32 %v6686, 1.442695
        %v6735 = vpow.pop %v6734
        %v6736 = vmul.f32 %v6687, 1.442695
        %v6737 = vpow.pop %v6736
        %v6738 = vmul.f32 %v6688, 1.442695
        %v6739 = vpow.pop %v6738
        %v6740 = vmul.f32 %v6689, 1.442695
        %v6741 = vpow.pop %v6740
        %v6742 = vmul.f32 %v6690, 1.442695
        %v6743 = vpow.pop %v6742
        %v6744 = vmul.f32 %v6691, 1.442695
        %v6745 = vpow.pop %v6744
        %v6746 = vmul.f32 %v6692, 1.442695
        %v6747 = vpow.pop %v6746
        %v6748 = vmul.f32 %v6693, 1.442695
        %v6749 = vpow.pop %v6748
        %v6750 = vmul.f32 %v6694, 1.442695
        %v6751 = vpow.pop %v6750
        %v6752 = vmul.f32 %v6695, 1.442695
        %v6753 = vpow.pop %v6752
        %v6754 = vmul.f32 %v6696, 1.442695
        %v6755 = vpow.pop %v6754
        %v6756 = vmul.f32 %v6697, 1.442695
        %v6757 = vpow.pop %v6756
        %v6758 = vmul.f32 %v6698, 1.442695
        %v6759 = vpow.pop %v6758
        %v6760 = vmul.f32 %v6699, 1.442695
        %v6761 = vpow.pop %v6760
        %v6762 = vmul.f32 %v6700, 1.442695
        %v6763 = vpow.pop %v6762
        %v6764 = vmul.f32 %v6701, 1.442695
        %v6765 = vpow.pop %v6764
        %v6766 = vmul.f32 %v6702, 1.442695
        %v6767 = vpow.pop %v6766
        %v6768 = vmul.f32 %v6703, 1.442695
        %v6769 = vpow.pop %v6768
        %v6770 = vmul.f32 %v6704, 1.442695
        %v6771 = vpow.pop %v6770
        %v6772 = vmul.f32 %v6705, 1.442695
        %v6773 = vpow.pop %v6772
        %v6774 = vmul.f32 %v6706, 1.442695
        %v6775 = vpow.pop %v6774
        %v6776 = vmul.f32 %v6707, 1.442695
        %v6777 = vpow.pop %v6776
        %v6778 = vmul.f32 %v6708, 1.442695
        %v6779 = vpow.pop %v6778
        %v6780 = vmul.f32 %v6709, 1.442695
        %v6781 = vpow.pop %v6780
        %v6782 = vmul.f32 %v6710, 1.442695
        %v6783 = vpow.pop %v6782
        %v6784 = vmul.f32 %v6711, 1.442695
        %v6785 = vpow.pop %v6784
        %v6786 = vmul.f32 %v6712, 1.442695
        %v6787 = vpow.pop %v6786
        %v6788 = vmul.f32 %v6713, 1.442695
        %v6789 = vpow.pop %v6788
        %v6790 = vmul.f32 %v6714, 1.442695
        %v6791 = vpow.pop %v6790
        %v6792 = vmul.f32 %v6715, 1.442695
        %v6793 = vpow.pop %v6792
        %v6794 = vmul.f32 %v6716, 1.442695
        %v6795 = vpow.pop %v6794
        %v6796 = vmul.f32 %v6717, 1.442695
        %v6797 = vpow.pop %v6796
        %v6798 = vmul.f32 %v6718, 1.442695
        %v6799 = vpow.pop %v6798
        %v6800 = vmul.f32 %v6719, 1.442695
        %v6801 = vpow.pop %v6800
        %v6802 = vmul.f32 %v6720, 1.442695
        %v6803 = vpow.pop %v6802
        %v6804 = vmul.f32 %v6721, 1.442695
        %v6805 = vpow.pop %v6804
        %v6806 = vmul.f32 %v6722, 1.442695
        %v6807 = vpow.pop %v6806
        %v6808 = vmul.f32 %v6723, 1.442695
        %v6809 = vpow.pop %v6808
        %v6810 = vmul.f32 %v6724, 1.442695
        %v6811 = vpow.pop %v6810
        %v6812 = vmul.f32 %v6725, 1.442695
        %v6813 = vpow.pop %v6812
        %v6814 = vmul.f32 %v6726, 1.442695
        %v6815 = vpow.pop %v6814
        %v6816 = vmul.f32 %v6727, 1.442695
        %v6817 = vpow.pop %v6816
        %v6818 = vmul.f32 %v6728, 1.442695
        %v6819 = vpow.pop %v6818
        %v6820 = vmul.f32 %v6729, 1.442695
        %v6821 = vpow.pop %v6820
        %v6822 = vmul.f32 %v6730, 1.442695
        %v6823 = vpow.pop %v6822
        %v6824 = vmul.f32 %v6731, 1.442695
        %v6825 = vpow.pop %v6824
        %v6826 = vmul.f32 %v6732, 1.442695
        %v6827 = vpow.pop %v6826
        %v6828 = vmul.f32 %v6733, 1.442695
        %v6829 = vpow.pop %v6828
        %v6830 = vperm.slane %v6622, 0
        %v6831 = vlaneseq
        %v6832 = vshrl.u32 %v6831, 7
        %6834 = vset.pattern.permute.xlu0 %v6832
        %6835 = vperm.xlu0 %6834, %v6830
        %v6836 = vpop.permute.xlu0 %6835
        %v6837 = vlaneseq
        %v6838 = vshrl.u32 %v6837, 7
        %v6839 = vadd.s32 %v6838, 8
        %6840 = vset.pattern.permute.xlu0 %v6839
        %6841 = vperm.xlu0 %6840, %v6830
        %v6842 = vpop.permute.xlu0 %6841
        %v6843 = vperm.slane %v6622, 1
        %v6844 = vlaneseq
        %v6845 = vshrl.u32 %v6844, 7
        %6847 = vset.pattern.permute.xlu0 %v6845
        %6848 = vperm.xlu0 %6847, %v6843
        %v6849 = vpop.permute.xlu0 %6848
        %v6850 = vlaneseq
        %v6851 = vshrl.u32 %v6850, 7
        %v6852 = vadd.s32 %v6851, 8
        %6853 = vset.pattern.permute.xlu0 %v6852
        %6854 = vperm.xlu0 %6853, %v6843
        %v6855 = vpop.permute.xlu0 %6854
        %v6856 = vperm.slane %v6622, 2
        %v6857 = vlaneseq
        %v6858 = vshrl.u32 %v6857, 7
        %6860 = vset.pattern.permute.xlu0 %v6858
        %6861 = vperm.xlu0 %6860, %v6856
        %v6862 = vpop.permute.xlu0 %6861
        %v6863 = vlaneseq
        %v6864 = vshrl.u32 %v6863, 7
        %v6865 = vadd.s32 %v6864, 8
        %6866 = vset.pattern.permute.xlu0 %v6865
        %6867 = vperm.xlu0 %6866, %v6856
        %v6868 = vpop.permute.xlu0 %6867
        %v6869 = vperm.slane %v6622, 3
        %v6870 = vlaneseq
        %v6871 = vshrl.u32 %v6870, 7
        %6873 = vset.pattern.permute.xlu0 %v6871
        %6874 = vperm.xlu0 %6873, %v6869
        %v6875 = vpop.permute.xlu0 %6874
        %v6876 = vlaneseq
        %v6877 = vshrl.u32 %v6876, 7
        %v6878 = vadd.s32 %v6877, 8
        %6879 = vset.pattern.permute.xlu0 %v6878
        %6880 = vperm.xlu0 %6879, %v6869
        %v6881 = vpop.permute.xlu0 %6880
        %v6882 = vperm.slane %v6622, 4
        %v6883 = vlaneseq
        %v6884 = vshrl.u32 %v6883, 7
        %6886 = vset.pattern.permute.xlu0 %v6884
        %6887 = vperm.xlu0 %6886, %v6882
        %v6888 = vpop.permute.xlu0 %6887
        %v6889 = vlaneseq
        %v6890 = vshrl.u32 %v6889, 7
        %v6891 = vadd.s32 %v6890, 8
        %6892 = vset.pattern.permute.xlu0 %v6891
        %6893 = vperm.xlu0 %6892, %v6882
        %v6894 = vpop.permute.xlu0 %6893
        %v6895 = vperm.slane %v6622, 5
        %v6896 = vlaneseq
        %v6897 = vshrl.u32 %v6896, 7
        %6899 = vset.pattern.permute.xlu0 %v6897
        %6900 = vperm.xlu0 %6899, %v6895
        %v6901 = vpop.permute.xlu0 %6900
        %v6902 = vlaneseq
        %v6903 = vshrl.u32 %v6902, 7
        %v6904 = vadd.s32 %v6903, 8
        %6905 = vset.pattern.permute.xlu0 %v6904
        %6906 = vperm.xlu0 %6905, %v6895
        %v6907 = vpop.permute.xlu0 %6906
        %v6908 = vperm.slane %v6622, 6
        %v6909 = vlaneseq
        %v6910 = vshrl.u32 %v6909, 7
        %6912 = vset.pattern.permute.xlu0 %v6910
        %6913 = vperm.xlu0 %6912, %v6908
        %v6914 = vpop.permute.xlu0 %6913
        %v6915 = vlaneseq
        %v6916 = vshrl.u32 %v6915, 7
        %v6917 = vadd.s32 %v6916, 8
        %6918 = vset.pattern.permute.xlu0 %v6917
        %6919 = vperm.xlu0 %6918, %v6908
        %v6920 = vpop.permute.xlu0 %6919
        %v6921 = vperm.slane %v6622, 7
        %v6922 = vlaneseq
        %v6923 = vshrl.u32 %v6922, 7
        %6925 = vset.pattern.permute.xlu0 %v6923
        %6926 = vperm.xlu0 %6925, %v6921
        %v6927 = vpop.permute.xlu0 %6926
        %v6928 = vlaneseq
        %v6929 = vshrl.u32 %v6928, 7
        %v6930 = vadd.s32 %v6929, 8
        %6931 = vset.pattern.permute.xlu0 %v6930
        %6932 = vperm.xlu0 %6931, %v6921
        %v6933 = vpop.permute.xlu0 %6932
        %v6934 = vperm.slane %v6623, 0
        %v6935 = vlaneseq
        %v6936 = vshrl.u32 %v6935, 7
        %6938 = vset.pattern.permute.xlu0 %v6936
        %6939 = vperm.xlu0 %6938, %v6934
        %v6940 = vpop.permute.xlu0 %6939
        %v6941 = vlaneseq
        %v6942 = vshrl.u32 %v6941, 7
        %v6943 = vadd.s32 %v6942, 8
        %6944 = vset.pattern.permute.xlu0 %v6943
        %6945 = vperm.xlu0 %6944, %v6934
        %v6946 = vpop.permute.xlu0 %6945
        %v6947 = vperm.slane %v6623, 1
        %v6948 = vlaneseq
        %v6949 = vshrl.u32 %v6948, 7
        %6951 = vset.pattern.permute.xlu0 %v6949
        %6952 = vperm.xlu0 %6951, %v6947
        %v6953 = vpop.permute.xlu0 %6952
        %v6954 = vlaneseq
        %v6955 = vshrl.u32 %v6954, 7
        %v6956 = vadd.s32 %v6955, 8
        %6957 = vset.pattern.permute.xlu0 %v6956
        %6958 = vperm.xlu0 %6957, %v6947
        %v6959 = vpop.permute.xlu0 %6958
        %v6960 = vperm.slane %v6623, 2
        %v6961 = vlaneseq
        %v6962 = vshrl.u32 %v6961, 7
        %6964 = vset.pattern.permute.xlu0 %v6962
        %6965 = vperm.xlu0 %6964, %v6960
        %v6966 = vpop.permute.xlu0 %6965
        %v6967 = vlaneseq
        %v6968 = vshrl.u32 %v6967, 7
        %v6969 = vadd.s32 %v6968, 8
        %6970 = vset.pattern.permute.xlu0 %v6969
        %6971 = vperm.xlu0 %6970, %v6960
        %v6972 = vpop.permute.xlu0 %6971
        %v6973 = vperm.slane %v6623, 3
        %v6974 = vlaneseq
        %v6975 = vshrl.u32 %v6974, 7
        %6977 = vset.pattern.permute.xlu0 %v6975
        %6978 = vperm.xlu0 %6977, %v6973
        %v6979 = vpop.permute.xlu0 %6978
        %v6980 = vlaneseq
        %v6981 = vshrl.u32 %v6980, 7
        %v6982 = vadd.s32 %v6981, 8
        %6983 = vset.pattern.permute.xlu0 %v6982
        %6984 = vperm.xlu0 %6983, %v6973
        %v6985 = vpop.permute.xlu0 %6984
        %v6986 = vperm.slane %v6623, 4
        %v6987 = vlaneseq
        %v6988 = vshrl.u32 %v6987, 7
        %6990 = vset.pattern.permute.xlu0 %v6988
        %6991 = vperm.xlu0 %6990, %v6986
        %v6992 = vpop.permute.xlu0 %6991
        %v6993 = vlaneseq
        %v6994 = vshrl.u32 %v6993, 7
        %v6995 = vadd.s32 %v6994, 8
        %6996 = vset.pattern.permute.xlu0 %v6995
        %6997 = vperm.xlu0 %6996, %v6986
        %v6998 = vpop.permute.xlu0 %6997
        %v6999 = vperm.slane %v6623, 5
        %v7000 = vlaneseq
        %v7001 = vshrl.u32 %v7000, 7
        %7003 = vset.pattern.permute.xlu0 %v7001
        %7004 = vperm.xlu0 %7003, %v6999
        %v7005 = vpop.permute.xlu0 %7004
        %v7006 = vlaneseq
        %v7007 = vshrl.u32 %v7006, 7
        %v7008 = vadd.s32 %v7007, 8
        %7009 = vset.pattern.permute.xlu0 %v7008
        %7010 = vperm.xlu0 %7009, %v6999
        %v7011 = vpop.permute.xlu0 %7010
        %v7012 = vperm.slane %v6623, 6
        %v7013 = vlaneseq
        %v7014 = vshrl.u32 %v7013, 7
        %7016 = vset.pattern.permute.xlu0 %v7014
        %7017 = vperm.xlu0 %7016, %v7012
        %v7018 = vpop.permute.xlu0 %7017
        %v7019 = vlaneseq
        %v7020 = vshrl.u32 %v7019, 7
        %v7021 = vadd.s32 %v7020, 8
        %7022 = vset.pattern.permute.xlu0 %v7021
        %7023 = vperm.xlu0 %7022, %v7012
        %v7024 = vpop.permute.xlu0 %7023
        %v7025 = vperm.slane %v6623, 7
        %v7026 = vlaneseq
        %v7027 = vshrl.u32 %v7026, 7
        %7029 = vset.pattern.permute.xlu0 %v7027
        %7030 = vperm.xlu0 %7029, %v7025
        %v7031 = vpop.permute.xlu0 %7030
        %v7032 = vlaneseq
        %v7033 = vshrl.u32 %v7032, 7
        %v7034 = vadd.s32 %v7033, 8
        %7035 = vset.pattern.permute.xlu0 %v7034
        %7036 = vperm.xlu0 %7035, %v7025
        %v7037 = vpop.permute.xlu0 %7036
        %v7038 = vperm.slane %v6624, 0
        %v7039 = vlaneseq
        %v7040 = vshrl.u32 %v7039, 7
        %7042 = vset.pattern.permute.xlu0 %v7040
        %7043 = vperm.xlu0 %7042, %v7038
        %v7044 = vpop.permute.xlu0 %7043
        %v7045 = vlaneseq
        %v7046 = vshrl.u32 %v7045, 7
        %v7047 = vadd.s32 %v7046, 8
        %7048 = vset.pattern.permute.xlu0 %v7047
        %7049 = vperm.xlu0 %7048, %v7038
        %v7050 = vpop.permute.xlu0 %7049
        %v7051 = vperm.slane %v6624, 1
        %v7052 = vlaneseq
        %v7053 = vshrl.u32 %v7052, 7
        %7055 = vset.pattern.permute.xlu0 %v7053
        %7056 = vperm.xlu0 %7055, %v7051
        %v7057 = vpop.permute.xlu0 %7056
        %v7058 = vlaneseq
        %v7059 = vshrl.u32 %v7058, 7
        %v7060 = vadd.s32 %v7059, 8
        %7061 = vset.pattern.permute.xlu0 %v7060
        %7062 = vperm.xlu0 %7061, %v7051
        %v7063 = vpop.permute.xlu0 %7062
        %v7064 = vperm.slane %v6624, 2
        %v7065 = vlaneseq
        %v7066 = vshrl.u32 %v7065, 7
        %7068 = vset.pattern.permute.xlu0 %v7066
        %7069 = vperm.xlu0 %7068, %v7064
        %v7070 = vpop.permute.xlu0 %7069
        %v7071 = vlaneseq
        %v7072 = vshrl.u32 %v7071, 7
        %v7073 = vadd.s32 %v7072, 8
        %7074 = vset.pattern.permute.xlu0 %v7073
        %7075 = vperm.xlu0 %7074, %v7064
        %v7076 = vpop.permute.xlu0 %7075
        %v7077 = vperm.slane %v6624, 3
        %v7078 = vlaneseq
        %v7079 = vshrl.u32 %v7078, 7
        %7081 = vset.pattern.permute.xlu0 %v7079
        %7082 = vperm.xlu0 %7081, %v7077
        %v7083 = vpop.permute.xlu0 %7082
        %v7084 = vlaneseq
        %v7085 = vshrl.u32 %v7084, 7
        %v7086 = vadd.s32 %v7085, 8
        %7087 = vset.pattern.permute.xlu0 %v7086
        %7088 = vperm.xlu0 %7087, %v7077
        %v7089 = vpop.permute.xlu0 %7088
        %v7090 = vperm.slane %v6624, 4
        %v7091 = vlaneseq
        %v7092 = vshrl.u32 %v7091, 7
        %7094 = vset.pattern.permute.xlu0 %v7092
        %7095 = vperm.xlu0 %7094, %v7090
        %v7096 = vpop.permute.xlu0 %7095
        %v7097 = vlaneseq
        %v7098 = vshrl.u32 %v7097, 7
        %v7099 = vadd.s32 %v7098, 8
        %7100 = vset.pattern.permute.xlu0 %v7099
        %7101 = vperm.xlu0 %7100, %v7090
        %v7102 = vpop.permute.xlu0 %7101
        %v7103 = vperm.slane %v6624, 5
        %v7104 = vlaneseq
        %v7105 = vshrl.u32 %v7104, 7
        %7107 = vset.pattern.permute.xlu0 %v7105
        %7108 = vperm.xlu0 %7107, %v7103
        %v7109 = vpop.permute.xlu0 %7108
        %v7110 = vlaneseq
        %v7111 = vshrl.u32 %v7110, 7
        %v7112 = vadd.s32 %v7111, 8
        %7113 = vset.pattern.permute.xlu0 %v7112
        %7114 = vperm.xlu0 %7113, %v7103
        %v7115 = vpop.permute.xlu0 %7114
        %v7116 = vperm.slane %v6624, 6
        %v7117 = vlaneseq
        %v7118 = vshrl.u32 %v7117, 7
        %7120 = vset.pattern.permute.xlu0 %v7118
        %7121 = vperm.xlu0 %7120, %v7116
        %v7122 = vpop.permute.xlu0 %7121
        %v7123 = vlaneseq
        %v7124 = vshrl.u32 %v7123, 7
        %v7125 = vadd.s32 %v7124, 8
        %7126 = vset.pattern.permute.xlu0 %v7125
        %7127 = vperm.xlu0 %7126, %v7116
        %v7128 = vpop.permute.xlu0 %7127
        %v7129 = vperm.slane %v6624, 7
        %v7130 = vlaneseq
        %v7131 = vshrl.u32 %v7130, 7
        %7133 = vset.pattern.permute.xlu0 %v7131
        %7134 = vperm.xlu0 %7133, %v7129
        %v7135 = vpop.permute.xlu0 %7134
        %v7136 = vlaneseq
        %v7137 = vshrl.u32 %v7136, 7
        %v7138 = vadd.s32 %v7137, 8
        %7139 = vset.pattern.permute.xlu0 %v7138
        %7140 = vperm.xlu0 %7139, %v7129
        %v7141 = vpop.permute.xlu0 %7140
        %v7142 = vsub.f32 %v4009, %v6836
        %v7143 = vsub.f32 %v4011, %v6842
        %v7144 = vsub.f32 %v4039, %v6849
        %v7145 = vsub.f32 %v4041, %v6855
        %v7146 = vsub.f32 %v4069, %v6862
        %v7147 = vsub.f32 %v4071, %v6868
        %v7148 = vsub.f32 %v4099, %v6875
        %v7149 = vsub.f32 %v4101, %v6881
        %v7150 = vsub.f32 %v4129, %v6888
        %v7151 = vsub.f32 %v4131, %v6894
        %v7152 = vsub.f32 %v4159, %v6901
        %v7153 = vsub.f32 %v4161, %v6907
        %v7154 = vsub.f32 %v4189, %v6914
        %v7155 = vsub.f32 %v4191, %v6920
        %v7156 = vsub.f32 %v4219, %v6927
        %v7157 = vsub.f32 %v4221, %v6933
        %v7158 = vsub.f32 %v4249, %v6940
        %v7159 = vsub.f32 %v4251, %v6946
        %v7160 = vsub.f32 %v4279, %v6953
        %v7161 = vsub.f32 %v4281, %v6959
        %v7162 = vsub.f32 %v4309, %v6966
        %v7163 = vsub.f32 %v4311, %v6972
        %v7164 = vsub.f32 %v4339, %v6979
        %v7165 = vsub.f32 %v4341, %v6985
        %v7166 = vsub.f32 %v4369, %v6992
        %v7167 = vsub.f32 %v4371, %v6998
        %v7168 = vsub.f32 %v4399, %v7005
        %v7169 = vsub.f32 %v4401, %v7011
        %v7170 = vsub.f32 %v4429, %v7018
        %v7171 = vsub.f32 %v4431, %v7024
        %v7172 = vsub.f32 %v4459, %v7031
        %v7173 = vsub.f32 %v4461, %v7037
        %v7174 = vsub.f32 %v4489, %v7044
        %v7175 = vsub.f32 %v4491, %v7050
        %v7176 = vsub.f32 %v4519, %v7057
        %v7177 = vsub.f32 %v4521, %v7063
        %v7178 = vsub.f32 %v4549, %v7070
        %v7179 = vsub.f32 %v4551, %v7076
        %v7180 = vsub.f32 %v4579, %v7083
        %v7181 = vsub.f32 %v4581, %v7089
        %v7182 = vsub.f32 %v4609, %v7096
        %v7183 = vsub.f32 %v4611, %v7102
        %v7184 = vsub.f32 %v4639, %v7109
        %v7185 = vsub.f32 %v4641, %v7115
        %v7186 = vsub.f32 %v4669, %v7122
        %v7187 = vsub.f32 %v4671, %v7128
        %v7188 = vsub.f32 %v4699, %v7135
        %v7189 = vsub.f32 %v4701, %v7141
        %v7190 = vmul.f32 %v7142, 1.442695
        %v7191 = vpow.pop %v7190
        %v7192 = vmul.f32 %v7143, 1.442695
        %v7193 = vpow.pop %v7192
        %v7194 = vmul.f32 %v7144, 1.442695
        %v7195 = vpow.pop %v7194
        %v7196 = vmul.f32 %v7145, 1.442695
        %v7197 = vpow.pop %v7196
        %v7198 = vmul.f32 %v7146, 1.442695
        %v7199 = vpow.pop %v7198
        %v7200 = vmul.f32 %v7147, 1.442695
        %v7201 = vpow.pop %v7200
        %v7202 = vmul.f32 %v7148, 1.442695
        %v7203 = vpow.pop %v7202
        %v7204 = vmul.f32 %v7149, 1.442695
        %v7205 = vpow.pop %v7204
        %v7206 = vmul.f32 %v7150, 1.442695
        %v7207 = vpow.pop %v7206
        %v7208 = vmul.f32 %v7151, 1.442695
        %v7209 = vpow.pop %v7208
        %v7210 = vmul.f32 %v7152, 1.442695
        %v7211 = vpow.pop %v7210
        %v7212 = vmul.f32 %v7153, 1.442695
        %v7213 = vpow.pop %v7212
        %v7214 = vmul.f32 %v7154, 1.442695
        %v7215 = vpow.pop %v7214
        %v7216 = vmul.f32 %v7155, 1.442695
        %v7217 = vpow.pop %v7216
        %v7218 = vmul.f32 %v7156, 1.442695
        %v7219 = vpow.pop %v7218
        %v7220 = vmul.f32 %v7157, 1.442695
        %v7221 = vpow.pop %v7220
        %v7222 = vmul.f32 %v7158, 1.442695
        %v7223 = vpow.pop %v7222
        %v7224 = vmul.f32 %v7159, 1.442695
        %v7225 = vpow.pop %v7224
        %v7226 = vmul.f32 %v7160, 1.442695
        %v7227 = vpow.pop %v7226
        %v7228 = vmul.f32 %v7161, 1.442695
        %v7229 = vpow.pop %v7228
        %v7230 = vmul.f32 %v7162, 1.442695
        %v7231 = vpow.pop %v7230
        %v7232 = vmul.f32 %v7163, 1.442695
        %v7233 = vpow.pop %v7232
        %v7234 = vmul.f32 %v7164, 1.442695
        %v7235 = vpow.pop %v7234
        %v7236 = vmul.f32 %v7165, 1.442695
        %v7237 = vpow.pop %v7236
        %v7238 = vmul.f32 %v7166, 1.442695
        %v7239 = vpow.pop %v7238
        %v7240 = vmul.f32 %v7167, 1.442695
        %v7241 = vpow.pop %v7240
        %v7242 = vmul.f32 %v7168, 1.442695
        %v7243 = vpow.pop %v7242
        %v7244 = vmul.f32 %v7169, 1.442695
        %v7245 = vpow.pop %v7244
        %v7246 = vmul.f32 %v7170, 1.442695
        %v7247 = vpow.pop %v7246
        %v7248 = vmul.f32 %v7171, 1.442695
        %v7249 = vpow.pop %v7248
        %v7250 = vmul.f32 %v7172, 1.442695
        %v7251 = vpow.pop %v7250
        %v7252 = vmul.f32 %v7173, 1.442695
        %v7253 = vpow.pop %v7252
        %v7254 = vmul.f32 %v7174, 1.442695
        %v7255 = vpow.pop %v7254
        %v7256 = vmul.f32 %v7175, 1.442695
        %v7257 = vpow.pop %v7256
        %v7258 = vmul.f32 %v7176, 1.442695
        %v7259 = vpow.pop %v7258
        %v7260 = vmul.f32 %v7177, 1.442695
        %v7261 = vpow.pop %v7260
        %v7262 = vmul.f32 %v7178, 1.442695
        %v7263 = vpow.pop %v7262
        %v7264 = vmul.f32 %v7179, 1.442695
        %v7265 = vpow.pop %v7264
        %v7266 = vmul.f32 %v7180, 1.442695
        %v7267 = vpow.pop %v7266
        %v7268 = vmul.f32 %v7181, 1.442695
        %v7269 = vpow.pop %v7268
        %v7270 = vmul.f32 %v7182, 1.442695
        %v7271 = vpow.pop %v7270
        %v7272 = vmul.f32 %v7183, 1.442695
        %v7273 = vpow.pop %v7272
        %v7274 = vmul.f32 %v7184, 1.442695
        %v7275 = vpow.pop %v7274
        %v7276 = vmul.f32 %v7185, 1.442695
        %v7277 = vpow.pop %v7276
        %v7278 = vmul.f32 %v7186, 1.442695
        %v7279 = vpow.pop %v7278
        %v7280 = vmul.f32 %v7187, 1.442695
        %v7281 = vpow.pop %v7280
        %v7282 = vmul.f32 %v7188, 1.442695
        %v7283 = vpow.pop %v7282
        %v7284 = vmul.f32 %v7189, 1.442695
        %v7285 = vpow.pop %v7284
        %v7286 = vsel %vm5439, %v6735, 0.0
        %7287 = vadd.xlane.f32.xlu0 %v7286
        %v7288 = vpop.xlane.xlu0 %7287
        %v7289 = vsel %vm5439, %v6737, 0.0
        %7290 = vadd.xlane.f32.xlu0 %v7289
        %v7291 = vpop.xlane.xlu0 %7290
        %v7292 = vsel %vm5439, %v6739, 0.0
        %7293 = vadd.xlane.f32.xlu0 %v7292
        %v7294 = vpop.xlane.xlu0 %7293
        %v7295 = vsel %vm5439, %v6741, 0.0
        %7296 = vadd.xlane.f32.xlu0 %v7295
        %v7297 = vpop.xlane.xlu0 %7296
        %v7298 = vsel %vm5439, %v6743, 0.0
        %7299 = vadd.xlane.f32.xlu0 %v7298
        %v7300 = vpop.xlane.xlu0 %7299
        %v7301 = vsel %vm5439, %v6745, 0.0
        %7302 = vadd.xlane.f32.xlu0 %v7301
        %v7303 = vpop.xlane.xlu0 %7302
        %v7304 = vsel %vm5439, %v6747, 0.0
        %7305 = vadd.xlane.f32.xlu0 %v7304
        %v7306 = vpop.xlane.xlu0 %7305
        %v7307 = vsel %vm5439, %v6749, 0.0
        %7308 = vadd.xlane.f32.xlu0 %v7307
        %v7309 = vpop.xlane.xlu0 %7308
        %v7310 = vsel %vm5439, %v6751, 0.0
        %7311 = vadd.xlane.f32.xlu0 %v7310
        %v7312 = vpop.xlane.xlu0 %7311
        %v7313 = vsel %vm5439, %v6753, 0.0
        %7314 = vadd.xlane.f32.xlu0 %v7313
        %v7315 = vpop.xlane.xlu0 %7314
        %v7316 = vsel %vm5439, %v6755, 0.0
        %7317 = vadd.xlane.f32.xlu0 %v7316
        %v7318 = vpop.xlane.xlu0 %7317
        %v7319 = vsel %vm5439, %v6757, 0.0
        %7320 = vadd.xlane.f32.xlu0 %v7319
        %v7321 = vpop.xlane.xlu0 %7320
        %v7322 = vsel %vm5439, %v6759, 0.0
        %7323 = vadd.xlane.f32.xlu0 %v7322
        %v7324 = vpop.xlane.xlu0 %7323
        %v7325 = vsel %vm5439, %v6761, 0.0
        %7326 = vadd.xlane.f32.xlu0 %v7325
        %v7327 = vpop.xlane.xlu0 %7326
        %v7328 = vsel %vm5439, %v6763, 0.0
        %7329 = vadd.xlane.f32.xlu0 %v7328
        %v7330 = vpop.xlane.xlu0 %7329
        %v7331 = vsel %vm5439, %v6765, 0.0
        %7332 = vadd.xlane.f32.xlu0 %v7331
        %v7333 = vpop.xlane.xlu0 %7332
        %v7334 = vsel %vm5439, %v6767, 0.0
        %7335 = vadd.xlane.f32.xlu0 %v7334
        %v7336 = vpop.xlane.xlu0 %7335
        %v7337 = vsel %vm5439, %v6769, 0.0
        %7338 = vadd.xlane.f32.xlu0 %v7337
        %v7339 = vpop.xlane.xlu0 %7338
        %v7340 = vsel %vm5439, %v6771, 0.0
        %7341 = vadd.xlane.f32.xlu0 %v7340
        %v7342 = vpop.xlane.xlu0 %7341
        %v7343 = vsel %vm5439, %v6773, 0.0
        %7344 = vadd.xlane.f32.xlu0 %v7343
        %v7345 = vpop.xlane.xlu0 %7344
        %v7346 = vsel %vm5439, %v6775, 0.0
        %7347 = vadd.xlane.f32.xlu0 %v7346
        %v7348 = vpop.xlane.xlu0 %7347
        %v7349 = vsel %vm5439, %v6777, 0.0
        %7350 = vadd.xlane.f32.xlu0 %v7349
        %v7351 = vpop.xlane.xlu0 %7350
        %v7352 = vsel %vm5439, %v6779, 0.0
        %7353 = vadd.xlane.f32.xlu0 %v7352
        %v7354 = vpop.xlane.xlu0 %7353
        %v7355 = vsel %vm5439, %v6781, 0.0
        %7356 = vadd.xlane.f32.xlu0 %v7355
        %v7357 = vpop.xlane.xlu0 %7356
        %v7358 = vsel %vm5439, %v6783, 0.0
        %7359 = vadd.xlane.f32.xlu0 %v7358
        %v7360 = vpop.xlane.xlu0 %7359
        %v7361 = vsel %vm5439, %v6785, 0.0
        %7362 = vadd.xlane.f32.xlu0 %v7361
        %v7363 = vpop.xlane.xlu0 %7362
        %v7364 = vsel %vm5439, %v6787, 0.0
        %7365 = vadd.xlane.f32.xlu0 %v7364
        %v7366 = vpop.xlane.xlu0 %7365
        %v7367 = vsel %vm5439, %v6789, 0.0
        %7368 = vadd.xlane.f32.xlu0 %v7367
        %v7369 = vpop.xlane.xlu0 %7368
        %v7370 = vsel %vm5439, %v6791, 0.0
        %7371 = vadd.xlane.f32.xlu0 %v7370
        %v7372 = vpop.xlane.xlu0 %7371
        %v7373 = vsel %vm5439, %v6793, 0.0
        %7374 = vadd.xlane.f32.xlu0 %v7373
        %v7375 = vpop.xlane.xlu0 %7374
        %v7376 = vsel %vm5439, %v6795, 0.0
        %7377 = vadd.xlane.f32.xlu0 %v7376
        %v7378 = vpop.xlane.xlu0 %7377
        %v7379 = vsel %vm5439, %v6797, 0.0
        %7380 = vadd.xlane.f32.xlu0 %v7379
        %v7381 = vpop.xlane.xlu0 %7380
        %v7382 = vsel %vm5439, %v6799, 0.0
        %7383 = vadd.xlane.f32.xlu0 %v7382
        %v7384 = vpop.xlane.xlu0 %7383
        %v7385 = vsel %vm5439, %v6801, 0.0
        %7386 = vadd.xlane.f32.xlu0 %v7385
        %v7387 = vpop.xlane.xlu0 %7386
        %v7388 = vsel %vm5439, %v6803, 0.0
        %7389 = vadd.xlane.f32.xlu0 %v7388
        %v7390 = vpop.xlane.xlu0 %7389
        %v7391 = vsel %vm5439, %v6805, 0.0
        %7392 = vadd.xlane.f32.xlu0 %v7391
        %v7393 = vpop.xlane.xlu0 %7392
        %v7394 = vsel %vm5439, %v6807, 0.0
        %7395 = vadd.xlane.f32.xlu0 %v7394
        %v7396 = vpop.xlane.xlu0 %7395
        %v7397 = vsel %vm5439, %v6809, 0.0
        %7398 = vadd.xlane.f32.xlu0 %v7397
        %v7399 = vpop.xlane.xlu0 %7398
        %v7400 = vsel %vm5439, %v6811, 0.0
        %7401 = vadd.xlane.f32.xlu0 %v7400
        %v7402 = vpop.xlane.xlu0 %7401
        %v7403 = vsel %vm5439, %v6813, 0.0
        %7404 = vadd.xlane.f32.xlu0 %v7403
        %v7405 = vpop.xlane.xlu0 %7404
        %v7406 = vsel %vm5439, %v6815, 0.0
        %7407 = vadd.xlane.f32.xlu0 %v7406
        %v7408 = vpop.xlane.xlu0 %7407
        %v7409 = vsel %vm5439, %v6817, 0.0
        %7410 = vadd.xlane.f32.xlu0 %v7409
        %v7411 = vpop.xlane.xlu0 %7410
        %v7412 = vsel %vm5439, %v6819, 0.0
        %7413 = vadd.xlane.f32.xlu0 %v7412
        %v7414 = vpop.xlane.xlu0 %7413
        %v7415 = vsel %vm5439, %v6821, 0.0
        %7416 = vadd.xlane.f32.xlu0 %v7415
        %v7417 = vpop.xlane.xlu0 %7416
        %v7418 = vsel %vm5439, %v6823, 0.0
        %7419 = vadd.xlane.f32.xlu0 %v7418
        %v7420 = vpop.xlane.xlu0 %7419
        %v7421 = vsel %vm5439, %v6825, 0.0
        %7422 = vadd.xlane.f32.xlu0 %v7421
        %v7423 = vpop.xlane.xlu0 %7422
        %v7424 = vsel %vm5439, %v6827, 0.0
        %7425 = vadd.xlane.f32.xlu0 %v7424
        %v7426 = vpop.xlane.xlu0 %7425
        %v7427 = vsel %vm5439, %v6829, 0.0
        %7428 = vadd.xlane.f32.xlu0 %v7427
        %v7429 = vpop.xlane.xlu0 %7428
        %v7430 = vsel %vm5584, %v7191, 0.0
        %7431 = vadd.xlane.f32.xlu0 %v7430
        %v7432 = vpop.xlane.xlu0 %7431
        %v7433 = vsel %vm5584, %v7193, 0.0
        %7434 = vadd.xlane.f32.xlu0 %v7433
        %v7435 = vpop.xlane.xlu0 %7434
        %v7436 = vsel %vm5584, %v7195, 0.0
        %7437 = vadd.xlane.f32.xlu0 %v7436
        %v7438 = vpop.xlane.xlu0 %7437
        %v7439 = vsel %vm5584, %v7197, 0.0
        %7440 = vadd.xlane.f32.xlu0 %v7439
        %v7441 = vpop.xlane.xlu0 %7440
        %v7442 = vsel %vm5584, %v7199, 0.0
        %7443 = vadd.xlane.f32.xlu0 %v7442
        %v7444 = vpop.xlane.xlu0 %7443
        %v7445 = vsel %vm5584, %v7201, 0.0
        %7446 = vadd.xlane.f32.xlu0 %v7445
        %v7447 = vpop.xlane.xlu0 %7446
        %v7448 = vsel %vm5584, %v7203, 0.0
        %7449 = vadd.xlane.f32.xlu0 %v7448
        %v7450 = vpop.xlane.xlu0 %7449
        %v7451 = vsel %vm5584, %v7205, 0.0
        %7452 = vadd.xlane.f32.xlu0 %v7451
        %v7453 = vpop.xlane.xlu0 %7452
        %v7454 = vsel %vm5584, %v7207, 0.0
        %7455 = vadd.xlane.f32.xlu0 %v7454
        %v7456 = vpop.xlane.xlu0 %7455
        %v7457 = vsel %vm5584, %v7209, 0.0
        %7458 = vadd.xlane.f32.xlu0 %v7457
        %v7459 = vpop.xlane.xlu0 %7458
        %v7460 = vsel %vm5584, %v7211, 0.0
        %7461 = vadd.xlane.f32.xlu0 %v7460
        %v7462 = vpop.xlane.xlu0 %7461
        %v7463 = vsel %vm5584, %v7213, 0.0
        %7464 = vadd.xlane.f32.xlu0 %v7463
        %v7465 = vpop.xlane.xlu0 %7464
        %v7466 = vsel %vm5584, %v7215, 0.0
        %7467 = vadd.xlane.f32.xlu0 %v7466
        %v7468 = vpop.xlane.xlu0 %7467
        %v7469 = vsel %vm5584, %v7217, 0.0
        %7470 = vadd.xlane.f32.xlu0 %v7469
        %v7471 = vpop.xlane.xlu0 %7470
        %v7472 = vsel %vm5584, %v7219, 0.0
        %7473 = vadd.xlane.f32.xlu0 %v7472
        %v7474 = vpop.xlane.xlu0 %7473
        %v7475 = vsel %vm5584, %v7221, 0.0
        %7476 = vadd.xlane.f32.xlu0 %v7475
        %v7477 = vpop.xlane.xlu0 %7476
        %v7478 = vsel %vm5584, %v7223, 0.0
        %7479 = vadd.xlane.f32.xlu0 %v7478
        %v7480 = vpop.xlane.xlu0 %7479
        %v7481 = vsel %vm5584, %v7225, 0.0
        %7482 = vadd.xlane.f32.xlu0 %v7481
        %v7483 = vpop.xlane.xlu0 %7482
        %v7484 = vsel %vm5584, %v7227, 0.0
        %7485 = vadd.xlane.f32.xlu0 %v7484
        %v7486 = vpop.xlane.xlu0 %7485
        %v7487 = vsel %vm5584, %v7229, 0.0
        %7488 = vadd.xlane.f32.xlu0 %v7487
        %v7489 = vpop.xlane.xlu0 %7488
        %v7490 = vsel %vm5584, %v7231, 0.0
        %7491 = vadd.xlane.f32.xlu0 %v7490
        %v7492 = vpop.xlane.xlu0 %7491
        %v7493 = vsel %vm5584, %v7233, 0.0
        %7494 = vadd.xlane.f32.xlu0 %v7493
        %v7495 = vpop.xlane.xlu0 %7494
        %v7496 = vsel %vm5584, %v7235, 0.0
        %7497 = vadd.xlane.f32.xlu0 %v7496
        %v7498 = vpop.xlane.xlu0 %7497
        %v7499 = vsel %vm5584, %v7237, 0.0
        %7500 = vadd.xlane.f32.xlu0 %v7499
        %v7501 = vpop.xlane.xlu0 %7500
        %v7502 = vsel %vm5584, %v7239, 0.0
        %7503 = vadd.xlane.f32.xlu0 %v7502
        %v7504 = vpop.xlane.xlu0 %7503
        %v7505 = vsel %vm5584, %v7241, 0.0
        %7506 = vadd.xlane.f32.xlu0 %v7505
        %v7507 = vpop.xlane.xlu0 %7506
        %v7508 = vsel %vm5584, %v7243, 0.0
        %7509 = vadd.xlane.f32.xlu0 %v7508
        %v7510 = vpop.xlane.xlu0 %7509
        %v7511 = vsel %vm5584, %v7245, 0.0
        %7512 = vadd.xlane.f32.xlu0 %v7511
        %v7513 = vpop.xlane.xlu0 %7512
        %v7514 = vsel %vm5584, %v7247, 0.0
        %7515 = vadd.xlane.f32.xlu0 %v7514
        %v7516 = vpop.xlane.xlu0 %7515
        %v7517 = vsel %vm5584, %v7249, 0.0
        %7518 = vadd.xlane.f32.xlu0 %v7517
        %v7519 = vpop.xlane.xlu0 %7518
        %v7520 = vsel %vm5584, %v7251, 0.0
        %7521 = vadd.xlane.f32.xlu0 %v7520
        %v7522 = vpop.xlane.xlu0 %7521
        %v7523 = vsel %vm5584, %v7253, 0.0
        %7524 = vadd.xlane.f32.xlu0 %v7523
        %v7525 = vpop.xlane.xlu0 %7524
        %v7526 = vsel %vm5584, %v7255, 0.0
        %7527 = vadd.xlane.f32.xlu0 %v7526
        %v7528 = vpop.xlane.xlu0 %7527
        %v7529 = vsel %vm5584, %v7257, 0.0
        %7530 = vadd.xlane.f32.xlu0 %v7529
        %v7531 = vpop.xlane.xlu0 %7530
        %v7532 = vsel %vm5584, %v7259, 0.0
        %7533 = vadd.xlane.f32.xlu0 %v7532
        %v7534 = vpop.xlane.xlu0 %7533
        %v7535 = vsel %vm5584, %v7261, 0.0
        %7536 = vadd.xlane.f32.xlu0 %v7535
        %v7537 = vpop.xlane.xlu0 %7536
        %v7538 = vsel %vm5584, %v7263, 0.0
        %7539 = vadd.xlane.f32.xlu0 %v7538
        %v7540 = vpop.xlane.xlu0 %7539
        %v7541 = vsel %vm5584, %v7265, 0.0
        %7542 = vadd.xlane.f32.xlu0 %v7541
        %v7543 = vpop.xlane.xlu0 %7542
        %v7544 = vsel %vm5584, %v7267, 0.0
        %7545 = vadd.xlane.f32.xlu0 %v7544
        %v7546 = vpop.xlane.xlu0 %7545
        %v7547 = vsel %vm5584, %v7269, 0.0
        %7548 = vadd.xlane.f32.xlu0 %v7547
        %v7549 = vpop.xlane.xlu0 %7548
        %v7550 = vsel %vm5584, %v7271, 0.0
        %7551 = vadd.xlane.f32.xlu0 %v7550
        %v7552 = vpop.xlane.xlu0 %7551
        %v7553 = vsel %vm5584, %v7273, 0.0
        %7554 = vadd.xlane.f32.xlu0 %v7553
        %v7555 = vpop.xlane.xlu0 %7554
        %v7556 = vsel %vm5584, %v7275, 0.0
        %7557 = vadd.xlane.f32.xlu0 %v7556
        %v7558 = vpop.xlane.xlu0 %7557
        %v7559 = vsel %vm5584, %v7277, 0.0
        %7560 = vadd.xlane.f32.xlu0 %v7559
        %v7561 = vpop.xlane.xlu0 %7560
        %v7562 = vsel %vm5584, %v7279, 0.0
        %7563 = vadd.xlane.f32.xlu0 %v7562
        %v7564 = vpop.xlane.xlu0 %7563
        %v7565 = vsel %vm5584, %v7281, 0.0
        %7566 = vadd.xlane.f32.xlu0 %v7565
        %v7567 = vpop.xlane.xlu0 %7566
        %v7568 = vsel %vm5584, %v7283, 0.0
        %7569 = vadd.xlane.f32.xlu0 %v7568
        %v7570 = vpop.xlane.xlu0 %7569
        %v7571 = vsel %vm5584, %v7285, 0.0
        %7572 = vadd.xlane.f32.xlu0 %v7571
        %v7573 = vpop.xlane.xlu0 %7572
        %v7622 = vperm.slane %v7432, %v3977
        %v7623 = vperm.slane %v7435, %v5778
        %v7624 = vsel %vm5780, %v7623, %v7622
        %v7625 = vperm.slane %v7438, %v3977
        %v7626 = vperm.slane %v7441, %v5778
        %v7627 = vsel %vm5780, %v7626, %v7625
        %v7628 = vperm.slane %v7444, %v3977
        %v7629 = vperm.slane %v7447, %v5778
        %v7630 = vsel %vm5780, %v7629, %v7628
        %v7631 = vperm.slane %v7450, %v3977
        %v7632 = vperm.slane %v7453, %v5778
        %v7633 = vsel %vm5780, %v7632, %v7631
        %v7634 = vperm.slane %v7456, %v3977
        %v7635 = vperm.slane %v7459, %v5778
        %v7636 = vsel %vm5780, %v7635, %v7634
        %v7637 = vperm.slane %v7462, %v3977
        %v7638 = vperm.slane %v7465, %v5778
        %v7639 = vsel %vm5780, %v7638, %v7637
        %v7640 = vperm.slane %v7468, %v3977
        %v7641 = vperm.slane %v7471, %v5778
        %v7642 = vsel %vm5780, %v7641, %v7640
        %v7643 = vperm.slane %v7474, %v3977
        %v7644 = vperm.slane %v7477, %v5778
        %v7645 = vsel %vm5780, %v7644, %v7643
        %v7646 = vperm.slane %v7480, %v3977
        %v7647 = vperm.slane %v7483, %v5778
        %v7648 = vsel %vm5780, %v7647, %v7646
        %v7649 = vperm.slane %v7486, %v3977
        %v7650 = vperm.slane %v7489, %v5778
        %v7651 = vsel %vm5780, %v7650, %v7649
        %v7652 = vperm.slane %v7492, %v3977
        %v7653 = vperm.slane %v7495, %v5778
        %v7654 = vsel %vm5780, %v7653, %v7652
        %v7655 = vperm.slane %v7498, %v3977
        %v7656 = vperm.slane %v7501, %v5778
        %v7657 = vsel %vm5780, %v7656, %v7655
        %v7658 = vperm.slane %v7504, %v3977
        %v7659 = vperm.slane %v7507, %v5778
        %v7660 = vsel %vm5780, %v7659, %v7658
        %v7661 = vperm.slane %v7510, %v3977
        %v7662 = vperm.slane %v7513, %v5778
        %v7663 = vsel %vm5780, %v7662, %v7661
        %v7664 = vperm.slane %v7516, %v3977
        %v7665 = vperm.slane %v7519, %v5778
        %v7666 = vsel %vm5780, %v7665, %v7664
        %v7667 = vperm.slane %v7522, %v3977
        %v7668 = vperm.slane %v7525, %v5778
        %v7669 = vsel %vm5780, %v7668, %v7667
        %v7670 = vperm.slane %v7528, %v3977
        %v7671 = vperm.slane %v7531, %v5778
        %v7672 = vsel %vm5780, %v7671, %v7670
        %v7673 = vperm.slane %v7534, %v3977
        %v7674 = vperm.slane %v7537, %v5778
        %v7675 = vsel %vm5780, %v7674, %v7673
        %v7676 = vperm.slane %v7540, %v3977
        %v7677 = vperm.slane %v7543, %v5778
        %v7678 = vsel %vm5780, %v7677, %v7676
        %v7679 = vperm.slane %v7546, %v3977
        %v7680 = vperm.slane %v7549, %v5778
        %v7681 = vsel %vm5780, %v7680, %v7679
        %v7682 = vperm.slane %v7552, %v3977
        %v7683 = vperm.slane %v7555, %v5778
        %v7684 = vsel %vm5780, %v7683, %v7682
        %v7685 = vperm.slane %v7558, %v3977
        %v7686 = vperm.slane %v7561, %v5778
        %v7687 = vsel %vm5780, %v7686, %v7685
        %v7688 = vperm.slane %v7564, %v3977
        %v7689 = vperm.slane %v7567, %v5778
        %v7690 = vsel %vm5780, %v7689, %v7688
        %v7691 = vperm.slane %v7570, %v3977
        %v7692 = vperm.slane %v7573, %v5778
        %v7693 = vsel %vm5780, %v7692, %v7691
        %v7694 = vsel %vm5851, %v7627, %v7624
        %v7695 = vsel %vm5853, %v7630, %v7694
        %v7696 = vsel %vm5855, %v7633, %v7695
        %v7697 = vsel %vm5857, %v7636, %v7696
        %v7698 = vsel %vm5859, %v7639, %v7697
        %v7699 = vsel %vm5861, %v7642, %v7698
        %v7700 = vsel %vm5863, %v7645, %v7699
        %v7701 = vsel %vm5851, %v7651, %v7648
        %v7702 = vsel %vm5853, %v7654, %v7701
        %v7703 = vsel %vm5855, %v7657, %v7702
        %v7704 = vsel %vm5857, %v7660, %v7703
        %v7705 = vsel %vm5859, %v7663, %v7704
        %v7706 = vsel %vm5861, %v7666, %v7705
        %v7707 = vsel %vm5863, %v7669, %v7706
        %v7708 = vsel %vm5851, %v7675, %v7672
        %v7709 = vsel %vm5853, %v7678, %v7708
        %v7710 = vsel %vm5855, %v7681, %v7709
        %v7711 = vsel %vm5857, %v7684, %v7710
        %v7712 = vsel %vm5859, %v7687, %v7711
        %v7713 = vsel %vm5861, %v7690, %v7712
        %v7714 = vsel %vm5863, %v7693, %v7713
        %7718 = vxpose.xlu0.b32.start [1/16] %v7700, 128
        %7719 = vxpose.xlu0.b32.cont [2/16] %v7707, 128
        %7720 = vxpose.xlu0.b32.cont [3/16] %v7714, 128
        %7721 = vxpose.xlu0.b32.cont [4/16] 0.0, 128
        %7722 = vxpose.xlu0.b32.cont [5/16] 0.0, 128
        %7723 = vxpose.xlu0.b32.cont [6/16] 0.0, 128
        %7724 = vxpose.xlu0.b32.cont [7/16] 0.0, 128
        %7725 = vxpose.xlu0.b32.cont [8/16] 0.0, 128
        %7726 = vxpose.xlu0.b32.cont [9/16] 0.0, 128
        %7727 = vxpose.xlu0.b32.cont [10/16] 0.0, 128
        %7728 = vxpose.xlu0.b32.cont [11/16] 0.0, 128
        %7729 = vxpose.xlu0.b32.cont [12/16] 0.0, 128
        %7730 = vxpose.xlu0.b32.cont [13/16] 0.0, 128
        %7731 = vxpose.xlu0.b32.cont [14/16] 0.0, 128
        %7732 = vxpose.xlu0.b32.cont [15/16] 0.0, 128
        %7733 = vxpose.xlu0.b32.end [16/16] 0.0, 128
        %v7734 = vpop.trf.xlu0
        %v7735 = vpop.trf.xlu0
        %v7736 = vpop.trf.xlu0
        %v7737 = vpop.trf.xlu0
        %v7738 = vpop.trf.xlu0
        %v7739 = vpop.trf.xlu0
        %v7740 = vpop.trf.xlu0
        %v7741 = vpop.trf.xlu0
        %v7742 = vpop.trf.xlu0
        %v7743 = vpop.trf.xlu0
        %v7744 = vpop.trf.xlu0
        %v7745 = vpop.trf.xlu0
        %v7746 = vpop.trf.xlu0
        %v7747 = vpop.trf.xlu0
        %v7748 = vpop.trf.xlu0
        %v7749 = vpop.trf.xlu0
        %v7752 = vperm.slane %v7734, 0
        %v7753 = vlaneseq
        %v7754 = vshrl.u32 %v7753, 7
        %7756 = vset.pattern.permute.xlu0 %v7754
        %7757 = vperm.xlu0 %7756, %v7752
        %v7758 = vpop.permute.xlu0 %7757
        %v7759 = vlaneseq
        %v7760 = vshrl.u32 %v7759, 7
        %v7761 = vadd.s32 %v7760, 8
        %7762 = vset.pattern.permute.xlu0 %v7761
        %7763 = vperm.xlu0 %7762, %v7752
        %v7764 = vpop.permute.xlu0 %7763
        %v7765 = vlaneseq
        %v7766 = vshrl.u32 %v7765, 7
        %v7767 = vadd.s32 %v7766, 16
        %7768 = vset.pattern.permute.xlu0 %v7767
        %7769 = vperm.xlu0 %7768, %v7752
        %v7770 = vpop.permute.xlu0 %7769
        %v7771 = vperm.slane %v7734, 1
        %v7772 = vlaneseq
        %v7773 = vshrl.u32 %v7772, 7
        %7775 = vset.pattern.permute.xlu0 %v7773
        %7776 = vperm.xlu0 %7775, %v7771
        %v7777 = vpop.permute.xlu0 %7776
        %v7778 = vlaneseq
        %v7779 = vshrl.u32 %v7778, 7
        %v7780 = vadd.s32 %v7779, 8
        %7781 = vset.pattern.permute.xlu0 %v7780
        %7782 = vperm.xlu0 %7781, %v7771
        %v7783 = vpop.permute.xlu0 %7782
        %v7784 = vlaneseq
        %v7785 = vshrl.u32 %v7784, 7
        %v7786 = vadd.s32 %v7785, 16
        %7787 = vset.pattern.permute.xlu0 %v7786
        %7788 = vperm.xlu0 %7787, %v7771
        %v7789 = vpop.permute.xlu0 %7788
        %v7790 = vperm.slane %v7734, 2
        %v7791 = vlaneseq
        %v7792 = vshrl.u32 %v7791, 7
        %7794 = vset.pattern.permute.xlu0 %v7792
        %7795 = vperm.xlu0 %7794, %v7790
        %v7796 = vpop.permute.xlu0 %7795
        %v7797 = vlaneseq
        %v7798 = vshrl.u32 %v7797, 7
        %v7799 = vadd.s32 %v7798, 8
        %7800 = vset.pattern.permute.xlu0 %v7799
        %7801 = vperm.xlu0 %7800, %v7790
        %v7802 = vpop.permute.xlu0 %7801
        %v7803 = vlaneseq
        %v7804 = vshrl.u32 %v7803, 7
        %v7805 = vadd.s32 %v7804, 16
        %7806 = vset.pattern.permute.xlu0 %v7805
        %7807 = vperm.xlu0 %7806, %v7790
        %v7808 = vpop.permute.xlu0 %7807
        %v7809 = vperm.slane %v7734, 3
        %v7810 = vlaneseq
        %v7811 = vshrl.u32 %v7810, 7
        %7813 = vset.pattern.permute.xlu0 %v7811
        %7814 = vperm.xlu0 %7813, %v7809
        %v7815 = vpop.permute.xlu0 %7814
        %v7816 = vlaneseq
        %v7817 = vshrl.u32 %v7816, 7
        %v7818 = vadd.s32 %v7817, 8
        %7819 = vset.pattern.permute.xlu0 %v7818
        %7820 = vperm.xlu0 %7819, %v7809
        %v7821 = vpop.permute.xlu0 %7820
        %v7822 = vlaneseq
        %v7823 = vshrl.u32 %v7822, 7
        %v7824 = vadd.s32 %v7823, 16
        %7825 = vset.pattern.permute.xlu0 %v7824
        %7826 = vperm.xlu0 %7825, %v7809
        %v7827 = vpop.permute.xlu0 %7826
        %v7828 = vperm.slane %v7734, 4
        %v7829 = vlaneseq
        %v7830 = vshrl.u32 %v7829, 7
        %7832 = vset.pattern.permute.xlu0 %v7830
        %7833 = vperm.xlu0 %7832, %v7828
        %v7834 = vpop.permute.xlu0 %7833
        %v7835 = vlaneseq
        %v7836 = vshrl.u32 %v7835, 7
        %v7837 = vadd.s32 %v7836, 8
        %7838 = vset.pattern.permute.xlu0 %v7837
        %7839 = vperm.xlu0 %7838, %v7828
        %v7840 = vpop.permute.xlu0 %7839
        %v7841 = vlaneseq
        %v7842 = vshrl.u32 %v7841, 7
        %v7843 = vadd.s32 %v7842, 16
        %7844 = vset.pattern.permute.xlu0 %v7843
        %7845 = vperm.xlu0 %7844, %v7828
        %v7846 = vpop.permute.xlu0 %7845
        %v7847 = vperm.slane %v7734, 5
        %v7848 = vlaneseq
        %v7849 = vshrl.u32 %v7848, 7
        %7851 = vset.pattern.permute.xlu0 %v7849
        %7852 = vperm.xlu0 %7851, %v7847
        %v7853 = vpop.permute.xlu0 %7852
        %v7854 = vlaneseq
        %v7855 = vshrl.u32 %v7854, 7
        %v7856 = vadd.s32 %v7855, 8
        %7857 = vset.pattern.permute.xlu0 %v7856
        %7858 = vperm.xlu0 %7857, %v7847
        %v7859 = vpop.permute.xlu0 %7858
        %v7860 = vlaneseq
        %v7861 = vshrl.u32 %v7860, 7
        %v7862 = vadd.s32 %v7861, 16
        %7863 = vset.pattern.permute.xlu0 %v7862
        %7864 = vperm.xlu0 %7863, %v7847
        %v7865 = vpop.permute.xlu0 %7864
        %v7866 = vperm.slane %v7734, 6
        %v7867 = vlaneseq
        %v7868 = vshrl.u32 %v7867, 7
        %7870 = vset.pattern.permute.xlu0 %v7868
        %7871 = vperm.xlu0 %7870, %v7866
        %v7872 = vpop.permute.xlu0 %7871
        %v7873 = vlaneseq
        %v7874 = vshrl.u32 %v7873, 7
        %v7875 = vadd.s32 %v7874, 8
        %7876 = vset.pattern.permute.xlu0 %v7875
        %7877 = vperm.xlu0 %7876, %v7866
        %v7878 = vpop.permute.xlu0 %7877
        %v7879 = vlaneseq
        %v7880 = vshrl.u32 %v7879, 7
        %v7881 = vadd.s32 %v7880, 16
        %7882 = vset.pattern.permute.xlu0 %v7881
        %7883 = vperm.xlu0 %7882, %v7866
        %v7884 = vpop.permute.xlu0 %7883
        %v7885 = vperm.slane %v7734, 7
        %v7886 = vlaneseq
        %v7887 = vshrl.u32 %v7886, 7
        %7889 = vset.pattern.permute.xlu0 %v7887
        %7890 = vperm.xlu0 %7889, %v7885
        %v7891 = vpop.permute.xlu0 %7890
        %v7892 = vlaneseq
        %v7893 = vshrl.u32 %v7892, 7
        %v7894 = vadd.s32 %v7893, 8
        %7895 = vset.pattern.permute.xlu0 %v7894
        %7896 = vperm.xlu0 %7895, %v7885
        %v7897 = vpop.permute.xlu0 %7896
        %v7898 = vlaneseq
        %v7899 = vshrl.u32 %v7898, 7
        %v7900 = vadd.s32 %v7899, 16
        %7901 = vset.pattern.permute.xlu0 %v7900
        %7902 = vperm.xlu0 %7901, %v7885
        %v7903 = vpop.permute.xlu0 %7902
        %v7904 = vperm.slane %v7735, 0
        %v7905 = vlaneseq
        %v7906 = vshrl.u32 %v7905, 7
        %7908 = vset.pattern.permute.xlu0 %v7906
        %7909 = vperm.xlu0 %7908, %v7904
        %v7910 = vpop.permute.xlu0 %7909
        %v7911 = vlaneseq
        %v7912 = vshrl.u32 %v7911, 7
        %v7913 = vadd.s32 %v7912, 8
        %7914 = vset.pattern.permute.xlu0 %v7913
        %7915 = vperm.xlu0 %7914, %v7904
        %v7916 = vpop.permute.xlu0 %7915
        %v7917 = vlaneseq
        %v7918 = vshrl.u32 %v7917, 7
        %v7919 = vadd.s32 %v7918, 16
        %7920 = vset.pattern.permute.xlu0 %v7919
        %7921 = vperm.xlu0 %7920, %v7904
        %v7922 = vpop.permute.xlu0 %7921
        %v7923 = vperm.slane %v7735, 1
        %v7924 = vlaneseq
        %v7925 = vshrl.u32 %v7924, 7
        %7927 = vset.pattern.permute.xlu0 %v7925
        %7928 = vperm.xlu0 %7927, %v7923
        %v7929 = vpop.permute.xlu0 %7928
        %v7930 = vlaneseq
        %v7931 = vshrl.u32 %v7930, 7
        %v7932 = vadd.s32 %v7931, 8
        %7933 = vset.pattern.permute.xlu0 %v7932
        %7934 = vperm.xlu0 %7933, %v7923
        %v7935 = vpop.permute.xlu0 %7934
        %v7936 = vlaneseq
        %v7937 = vshrl.u32 %v7936, 7
        %v7938 = vadd.s32 %v7937, 16
        %7939 = vset.pattern.permute.xlu0 %v7938
        %7940 = vperm.xlu0 %7939, %v7923
        %v7941 = vpop.permute.xlu0 %7940
        %v7942 = vperm.slane %v7735, 2
        %v7943 = vlaneseq
        %v7944 = vshrl.u32 %v7943, 7
        %7946 = vset.pattern.permute.xlu0 %v7944
        %7947 = vperm.xlu0 %7946, %v7942
        %v7948 = vpop.permute.xlu0 %7947
        %v7949 = vlaneseq
        %v7950 = vshrl.u32 %v7949, 7
        %v7951 = vadd.s32 %v7950, 8
        %7952 = vset.pattern.permute.xlu0 %v7951
        %7953 = vperm.xlu0 %7952, %v7942
        %v7954 = vpop.permute.xlu0 %7953
        %v7955 = vlaneseq
        %v7956 = vshrl.u32 %v7955, 7
        %v7957 = vadd.s32 %v7956, 16
        %7958 = vset.pattern.permute.xlu0 %v7957
        %7959 = vperm.xlu0 %7958, %v7942
        %v7960 = vpop.permute.xlu0 %7959
        %v7961 = vperm.slane %v7735, 3
        %v7962 = vlaneseq
        %v7963 = vshrl.u32 %v7962, 7
        %7965 = vset.pattern.permute.xlu0 %v7963
        %7966 = vperm.xlu0 %7965, %v7961
        %v7967 = vpop.permute.xlu0 %7966
        %v7968 = vlaneseq
        %v7969 = vshrl.u32 %v7968, 7
        %v7970 = vadd.s32 %v7969, 8
        %7971 = vset.pattern.permute.xlu0 %v7970
        %7972 = vperm.xlu0 %7971, %v7961
        %v7973 = vpop.permute.xlu0 %7972
        %v7974 = vlaneseq
        %v7975 = vshrl.u32 %v7974, 7
        %v7976 = vadd.s32 %v7975, 16
        %7977 = vset.pattern.permute.xlu0 %v7976
        %7978 = vperm.xlu0 %7977, %v7961
        %v7979 = vpop.permute.xlu0 %7978
        %v7980 = vperm.slane %v7735, 4
        %v7981 = vlaneseq
        %v7982 = vshrl.u32 %v7981, 7
        %7984 = vset.pattern.permute.xlu0 %v7982
        %7985 = vperm.xlu0 %7984, %v7980
        %v7986 = vpop.permute.xlu0 %7985
        %v7987 = vlaneseq
        %v7988 = vshrl.u32 %v7987, 7
        %v7989 = vadd.s32 %v7988, 8
        %7990 = vset.pattern.permute.xlu0 %v7989
        %7991 = vperm.xlu0 %7990, %v7980
        %v7992 = vpop.permute.xlu0 %7991
        %v7993 = vlaneseq
        %v7994 = vshrl.u32 %v7993, 7
        %v7995 = vadd.s32 %v7994, 16
        %7996 = vset.pattern.permute.xlu0 %v7995
        %7997 = vperm.xlu0 %7996, %v7980
        %v7998 = vpop.permute.xlu0 %7997
        %v7999 = vperm.slane %v7735, 5
        %v8000 = vlaneseq
        %v8001 = vshrl.u32 %v8000, 7
        %8003 = vset.pattern.permute.xlu0 %v8001
        %8004 = vperm.xlu0 %8003, %v7999
        %v8005 = vpop.permute.xlu0 %8004
        %v8006 = vlaneseq
        %v8007 = vshrl.u32 %v8006, 7
        %v8008 = vadd.s32 %v8007, 8
        %8009 = vset.pattern.permute.xlu0 %v8008
        %8010 = vperm.xlu0 %8009, %v7999
        %v8011 = vpop.permute.xlu0 %8010
        %v8012 = vlaneseq
        %v8013 = vshrl.u32 %v8012, 7
        %v8014 = vadd.s32 %v8013, 16
        %8015 = vset.pattern.permute.xlu0 %v8014
        %8016 = vperm.xlu0 %8015, %v7999
        %v8017 = vpop.permute.xlu0 %8016
        %v8018 = vperm.slane %v7735, 6
        %v8019 = vlaneseq
        %v8020 = vshrl.u32 %v8019, 7
        %8022 = vset.pattern.permute.xlu0 %v8020
        %8023 = vperm.xlu0 %8022, %v8018
        %v8024 = vpop.permute.xlu0 %8023
        %v8025 = vlaneseq
        %v8026 = vshrl.u32 %v8025, 7
        %v8027 = vadd.s32 %v8026, 8
        %8028 = vset.pattern.permute.xlu0 %v8027
        %8029 = vperm.xlu0 %8028, %v8018
        %v8030 = vpop.permute.xlu0 %8029
        %v8031 = vlaneseq
        %v8032 = vshrl.u32 %v8031, 7
        %v8033 = vadd.s32 %v8032, 16
        %8034 = vset.pattern.permute.xlu0 %v8033
        %8035 = vperm.xlu0 %8034, %v8018
        %v8036 = vpop.permute.xlu0 %8035
        %v8037 = vperm.slane %v7735, 7
        %v8038 = vlaneseq
        %v8039 = vshrl.u32 %v8038, 7
        %8041 = vset.pattern.permute.xlu0 %v8039
        %8042 = vperm.xlu0 %8041, %v8037
        %v8043 = vpop.permute.xlu0 %8042
        %v8044 = vlaneseq
        %v8045 = vshrl.u32 %v8044, 7
        %v8046 = vadd.s32 %v8045, 8
        %8047 = vset.pattern.permute.xlu0 %v8046
        %8048 = vperm.xlu0 %8047, %v8037
        %v8049 = vpop.permute.xlu0 %8048
        %v8050 = vlaneseq
        %v8051 = vshrl.u32 %v8050, 7
        %v8052 = vadd.s32 %v8051, 16
        %8053 = vset.pattern.permute.xlu0 %v8052
        %8054 = vperm.xlu0 %8053, %v8037
        %v8055 = vpop.permute.xlu0 %8054
        %v8104 = vadd.f32 %v7288, %v7758
        %v8105 = vadd.f32 %v7291, %v7764
        %v8106 = vadd.f32 %v7294, %v7770
        %v8107 = vadd.f32 %v7297, %v7777
        %v8108 = vadd.f32 %v7300, %v7783
        %v8109 = vadd.f32 %v7303, %v7789
        %v8110 = vadd.f32 %v7306, %v7796
        %v8111 = vadd.f32 %v7309, %v7802
        %v8112 = vadd.f32 %v7312, %v7808
        %v8113 = vadd.f32 %v7315, %v7815
        %v8114 = vadd.f32 %v7318, %v7821
        %v8115 = vadd.f32 %v7321, %v7827
        %v8116 = vadd.f32 %v7324, %v7834
        %v8117 = vadd.f32 %v7327, %v7840
        %v8118 = vadd.f32 %v7330, %v7846
        %v8119 = vadd.f32 %v7333, %v7853
        %v8120 = vadd.f32 %v7336, %v7859
        %v8121 = vadd.f32 %v7339, %v7865
        %v8122 = vadd.f32 %v7342, %v7872
        %v8123 = vadd.f32 %v7345, %v7878
        %v8124 = vadd.f32 %v7348, %v7884
        %v8125 = vadd.f32 %v7351, %v7891
        %v8126 = vadd.f32 %v7354, %v7897
        %v8127 = vadd.f32 %v7357, %v7903
        %v8128 = vadd.f32 %v7360, %v7910
        %v8129 = vadd.f32 %v7363, %v7916
        %v8130 = vadd.f32 %v7366, %v7922
        %v8131 = vadd.f32 %v7369, %v7929
        %v8132 = vadd.f32 %v7372, %v7935
        %v8133 = vadd.f32 %v7375, %v7941
        %v8134 = vadd.f32 %v7378, %v7948
        %v8135 = vadd.f32 %v7381, %v7954
        %v8136 = vadd.f32 %v7384, %v7960
        %v8137 = vadd.f32 %v7387, %v7967
        %v8138 = vadd.f32 %v7390, %v7973
        %v8139 = vadd.f32 %v7393, %v7979
        %v8140 = vadd.f32 %v7396, %v7986
        %v8141 = vadd.f32 %v7399, %v7992
        %v8142 = vadd.f32 %v7402, %v7998
        %v8143 = vadd.f32 %v7405, %v8005
        %v8144 = vadd.f32 %v7408, %v8011
        %v8145 = vadd.f32 %v7411, %v8017
        %v8146 = vadd.f32 %v7414, %v8024
        %v8147 = vadd.f32 %v7417, %v8030
        %v8148 = vadd.f32 %v7420, %v8036
        %v8149 = vadd.f32 %v7423, %v8043
        %v8150 = vadd.f32 %v7426, %v8049
        %v8151 = vadd.f32 %v7429, %v8055
        %v8152 = vrcp.pop %v8104
        %v8153 = vrcp.pop %v8105
        %v8154 = vrcp.pop %v8106
        %v8155 = vrcp.pop %v8107
        %v8156 = vrcp.pop %v8108
        %v8157 = vrcp.pop %v8109
        %v8158 = vrcp.pop %v8110
        %v8159 = vrcp.pop %v8111
        %v8160 = vrcp.pop %v8112
        %v8161 = vrcp.pop %v8113
        %v8162 = vrcp.pop %v8114
        %v8163 = vrcp.pop %v8115
        %v8164 = vrcp.pop %v8116
        %v8165 = vrcp.pop %v8117
        %v8166 = vrcp.pop %v8118
        %v8167 = vrcp.pop %v8119
        %v8168 = vrcp.pop %v8120
        %v8169 = vrcp.pop %v8121
        %v8170 = vrcp.pop %v8122
        %v8171 = vrcp.pop %v8123
        %v8172 = vrcp.pop %v8124
        %v8173 = vrcp.pop %v8125
        %v8174 = vrcp.pop %v8126
        %v8175 = vrcp.pop %v8127
        %v8176 = vrcp.pop %v8128
        %v8177 = vrcp.pop %v8129
        %v8178 = vrcp.pop %v8130
        %v8179 = vrcp.pop %v8131
        %v8180 = vrcp.pop %v8132
        %v8181 = vrcp.pop %v8133
        %v8182 = vrcp.pop %v8134
        %v8183 = vrcp.pop %v8135
        %v8184 = vrcp.pop %v8136
        %v8185 = vrcp.pop %v8137
        %v8186 = vrcp.pop %v8138
        %v8187 = vrcp.pop %v8139
        %v8188 = vrcp.pop %v8140
        %v8189 = vrcp.pop %v8141
        %v8190 = vrcp.pop %v8142
        %v8191 = vrcp.pop %v8143
        %v8192 = vrcp.pop %v8144
        %v8193 = vrcp.pop %v8145
        %v8194 = vrcp.pop %v8146
        %v8195 = vrcp.pop %v8147
        %v8196 = vrcp.pop %v8148
        %v8197 = vrcp.pop %v8149
        %v8198 = vrcp.pop %v8150
        %v8199 = vrcp.pop %v8151
        %v8200 = vpack.c.bf16 %v6735, %v6735
        %v8201 = vpack.c.bf16 %v6737, %v6737
        %v8202 = vpack.c.bf16 %v6739, %v6739
        %v8203 = vpack.c.bf16 %v6741, %v6741
        %v8204 = vpack.c.bf16 %v6743, %v6743
        %v8205 = vpack.c.bf16 %v6745, %v6745
        %v8206 = vpack.c.bf16 %v6747, %v6747
        %v8207 = vpack.c.bf16 %v6749, %v6749
        %v8208 = vpack.c.bf16 %v6751, %v6751
        %v8209 = vpack.c.bf16 %v6753, %v6753
        %v8210 = vpack.c.bf16 %v6755, %v6755
        %v8211 = vpack.c.bf16 %v6757, %v6757
        %v8212 = vpack.c.bf16 %v6759, %v6759
        %v8213 = vpack.c.bf16 %v6761, %v6761
        %v8214 = vpack.c.bf16 %v6763, %v6763
        %v8215 = vpack.c.bf16 %v6765, %v6765
        %v8216 = vpack.c.bf16 %v6767, %v6767
        %v8217 = vpack.c.bf16 %v6769, %v6769
        %v8218 = vpack.c.bf16 %v6771, %v6771
        %v8219 = vpack.c.bf16 %v6773, %v6773
        %v8220 = vpack.c.bf16 %v6775, %v6775
        %v8221 = vpack.c.bf16 %v6777, %v6777
        %v8222 = vpack.c.bf16 %v6779, %v6779
        %v8223 = vpack.c.bf16 %v6781, %v6781
        %v8224 = vpack.c.bf16 %v6783, %v6783
        %v8225 = vpack.c.bf16 %v6785, %v6785
        %v8226 = vpack.c.bf16 %v6787, %v6787
        %v8227 = vpack.c.bf16 %v6789, %v6789
        %v8228 = vpack.c.bf16 %v6791, %v6791
        %v8229 = vpack.c.bf16 %v6793, %v6793
        %v8230 = vpack.c.bf16 %v6795, %v6795
        %v8231 = vpack.c.bf16 %v6797, %v6797
        %v8232 = vpack.c.bf16 %v6799, %v6799
        %v8233 = vpack.c.bf16 %v6801, %v6801
        %v8234 = vpack.c.bf16 %v6803, %v6803
        %v8235 = vpack.c.bf16 %v6805, %v6805
        %v8236 = vpack.c.bf16 %v6807, %v6807
        %v8237 = vpack.c.bf16 %v6809, %v6809
        %v8238 = vpack.c.bf16 %v6811, %v6811
        %v8239 = vpack.c.bf16 %v6813, %v6813
        %v8240 = vpack.c.bf16 %v6815, %v6815
        %v8241 = vpack.c.bf16 %v6817, %v6817
        %v8242 = vpack.c.bf16 %v6819, %v6819
        %v8243 = vpack.c.bf16 %v6821, %v6821
        %v8244 = vpack.c.bf16 %v6823, %v6823
        %v8245 = vpack.c.bf16 %v6825, %v6825
        %v8246 = vpack.c.bf16 %v6827, %v6827
        %v8247 = vpack.c.bf16 %v6829, %v6829
        %v8251 = vunpack.c.l.b16 %v8200
        %v8252 = vunpack.c.l.b16 %v8201
        %v8253 = vunpack.c.l.b16 %v8202
        %v8254 = vpack.c.b16 %v8252, %v8251
        %v8255 = vpack.c.b16 %v8253, %v8253
        %v8259 = vunpack.c.l.b16 %v3057
        %v8260 = vunpack.c.l.b16 %v3058
        %v8261 = vunpack.c.l.b16 %v3059
        %v8262 = vpack.c.b16 %v8260, %v8259
        %v8263 = vpack.c.b16 %v8261, %v8261
        %v8266 = vsel %vm5439, %v8254, 0
        %v8269 = vsel %vm5439, %v8255, 0
        %vm8271 = vcmask 1043456
        %v8273 = vsel %vm8271, %v8263, 0
        %8275 = vmatpush.bf16.msra.mxu0 0
        %8276 = vmatpush.bf16.msra.mxu0 0
        %8277 = vmatpush.bf16.msra.mxu0 0
        %8278 = vmatpush.bf16.msra.mxu0 0
        %8279 = vmatpush.bf16.msra.mxu0 0
        %8280 = vmatpush.bf16.msra.mxu0 0
        %8281 = vmatpush.bf16.msra.mxu0 %v8273
        %8282 = vmatpush.bf16.msra.mxu0 %v8262
        %8283 = vmatmul.bf16.gmra.mxu0 %v8266
        %v8284 = vpop.f32.mrf.mxu0
        %v8285 = vadd.f32 0.0, %v8284
        %v8286 = vpop.f32.mrf.mxu0
        %v8287 = vadd.f32 0.0, %v8286
        %8288 = vmatmul.bf16.gmra.mxu0 %v8269
        %v8289 = vpop.f32.mrf.mxu0
        %v8290 = vadd.f32 0.0, %v8289
        %v8291 = vpop.f32.mrf.mxu0
        %8292 = vdwg.mxu0
        %v8296 = vunpack.c.l.b16 %v8203
        %v8297 = vunpack.c.l.b16 %v8204
        %v8298 = vunpack.c.l.b16 %v8205
        %v8299 = vpack.c.b16 %v8297, %v8296
        %v8300 = vpack.c.b16 %v8298, %v8298
        %v8304 = vunpack.c.l.b16 %v3060
        %v8305 = vunpack.c.l.b16 %v3061
        %v8306 = vunpack.c.l.b16 %v3062
        %v8307 = vpack.c.b16 %v8305, %v8304
        %v8308 = vpack.c.b16 %v8306, %v8306
        %v8311 = vsel %vm5439, %v8299, 0
        %v8314 = vsel %vm5439, %v8300, 0
        %v8317 = vsel %vm8271, %v8308, 0
        %8319 = vmatpush.bf16.msra.mxu0 0
        %8320 = vmatpush.bf16.msra.mxu0 0
        %8321 = vmatpush.bf16.msra.mxu0 0
        %8322 = vmatpush.bf16.msra.mxu0 0
        %8323 = vmatpush.bf16.msra.mxu0 0
        %8324 = vmatpush.bf16.msra.mxu0 0
        %8325 = vmatpush.bf16.msra.mxu0 %v8317
        %8326 = vmatpush.bf16.msra.mxu0 %v8307
        %8327 = vmatmul.bf16.gmra.mxu0 %v8311
        %v8328 = vpop.f32.mrf.mxu0
        %v8329 = vadd.f32 0.0, %v8328
        %v8330 = vpop.f32.mrf.mxu0
        %v8331 = vadd.f32 0.0, %v8330
        %8332 = vmatmul.bf16.gmra.mxu0 %v8314
        %v8333 = vpop.f32.mrf.mxu0
        %v8334 = vadd.f32 0.0, %v8333
        %v8335 = vpop.f32.mrf.mxu0
        %8336 = vdwg.mxu0
        %v8340 = vunpack.c.l.b16 %v8206
        %v8341 = vunpack.c.l.b16 %v8207
        %v8342 = vunpack.c.l.b16 %v8208
        %v8343 = vpack.c.b16 %v8341, %v8340
        %v8344 = vpack.c.b16 %v8342, %v8342
        %v8348 = vunpack.c.l.b16 %v3063
        %v8349 = vunpack.c.l.b16 %v3064
        %v8350 = vunpack.c.l.b16 %v3065
        %v8351 = vpack.c.b16 %v8349, %v8348
        %v8352 = vpack.c.b16 %v8350, %v8350
        %v8355 = vsel %vm5439, %v8343, 0
        %v8358 = vsel %vm5439, %v8344, 0
        %v8361 = vsel %vm8271, %v8352, 0
        %8363 = vmatpush.bf16.msra.mxu0 0
        %8364 = vmatpush.bf16.msra.mxu0 0
        %8365 = vmatpush.bf16.msra.mxu0 0
        %8366 = vmatpush.bf16.msra.mxu0 0
        %8367 = vmatpush.bf16.msra.mxu0 0
        %8368 = vmatpush.bf16.msra.mxu0 0
        %8369 = vmatpush.bf16.msra.mxu0 %v8361
        %8370 = vmatpush.bf16.msra.mxu0 %v8351
        %8371 = vmatmul.bf16.gmra.mxu0 %v8355
        %v8372 = vpop.f32.mrf.mxu0
        %v8373 = vadd.f32 0.0, %v8372
        %v8374 = vpop.f32.mrf.mxu0
        %v8375 = vadd.f32 0.0, %v8374
        %8376 = vmatmul.bf16.gmra.mxu0 %v8358
        %v8377 = vpop.f32.mrf.mxu0
        %v8378 = vadd.f32 0.0, %v8377
        %v8379 = vpop.f32.mrf.mxu0
        %8380 = vdwg.mxu0
        %v8384 = vunpack.c.l.b16 %v8209
        %v8385 = vunpack.c.l.b16 %v8210
        %v8386 = vunpack.c.l.b16 %v8211
        %v8387 = vpack.c.b16 %v8385, %v8384
        %v8388 = vpack.c.b16 %v8386, %v8386
        %v8392 = vunpack.c.l.b16 %v3066
        %v8393 = vunpack.c.l.b16 %v3067
        %v8394 = vunpack.c.l.b16 %v3068
        %v8395 = vpack.c.b16 %v8393, %v8392
        %v8396 = vpack.c.b16 %v8394, %v8394
        %v8399 = vsel %vm5439, %v8387, 0
        %v8402 = vsel %vm5439, %v8388, 0
        %v8405 = vsel %vm8271, %v8396, 0
        %8407 = vmatpush.bf16.msra.mxu0 0
        %8408 = vmatpush.bf16.msra.mxu0 0
        %8409 = vmatpush.bf16.msra.mxu0 0
        %8410 = vmatpush.bf16.msra.mxu0 0
        %8411 = vmatpush.bf16.msra.mxu0 0
        %8412 = vmatpush.bf16.msra.mxu0 0
        %8413 = vmatpush.bf16.msra.mxu0 %v8405
        %8414 = vmatpush.bf16.msra.mxu0 %v8395
        %8415 = vmatmul.bf16.gmra.mxu0 %v8399
        %v8416 = vpop.f32.mrf.mxu0
        %v8417 = vadd.f32 0.0, %v8416
        %v8418 = vpop.f32.mrf.mxu0
        %v8419 = vadd.f32 0.0, %v8418
        %8420 = vmatmul.bf16.gmra.mxu0 %v8402
        %v8421 = vpop.f32.mrf.mxu0
        %v8422 = vadd.f32 0.0, %v8421
        %v8423 = vpop.f32.mrf.mxu0
        %8424 = vdwg.mxu0
        %v8428 = vunpack.c.l.b16 %v8212
        %v8429 = vunpack.c.l.b16 %v8213
        %v8430 = vunpack.c.l.b16 %v8214
        %v8431 = vpack.c.b16 %v8429, %v8428
        %v8432 = vpack.c.b16 %v8430, %v8430
        %v8436 = vunpack.c.l.b16 %v3069
        %v8437 = vunpack.c.l.b16 %v3070
        %v8438 = vunpack.c.l.b16 %v3071
        %v8439 = vpack.c.b16 %v8437, %v8436
        %v8440 = vpack.c.b16 %v8438, %v8438
        %v8443 = vsel %vm5439, %v8431, 0
        %v8446 = vsel %vm5439, %v8432, 0
        %v8449 = vsel %vm8271, %v8440, 0
        %8451 = vmatpush.bf16.msra.mxu0 0
        %8452 = vmatpush.bf16.msra.mxu0 0
        %8453 = vmatpush.bf16.msra.mxu0 0
        %8454 = vmatpush.bf16.msra.mxu0 0
        %8455 = vmatpush.bf16.msra.mxu0 0
        %8456 = vmatpush.bf16.msra.mxu0 0
        %8457 = vmatpush.bf16.msra.mxu0 %v8449
        %8458 = vmatpush.bf16.msra.mxu0 %v8439
        %8459 = vmatmul.bf16.gmra.mxu0 %v8443
        %v8460 = vpop.f32.mrf.mxu0
        %v8461 = vadd.f32 0.0, %v8460
        %v8462 = vpop.f32.mrf.mxu0
        %v8463 = vadd.f32 0.0, %v8462
        %8464 = vmatmul.bf16.gmra.mxu0 %v8446
        %v8465 = vpop.f32.mrf.mxu0
        %v8466 = vadd.f32 0.0, %v8465
        %v8467 = vpop.f32.mrf.mxu0
        %8468 = vdwg.mxu0
        %v8472 = vunpack.c.l.b16 %v8215
        %v8473 = vunpack.c.l.b16 %v8216
        %v8474 = vunpack.c.l.b16 %v8217
        %v8475 = vpack.c.b16 %v8473, %v8472
        %v8476 = vpack.c.b16 %v8474, %v8474
        %v8480 = vunpack.c.l.b16 %v3072
        %v8481 = vunpack.c.l.b16 %v3073
        %v8482 = vunpack.c.l.b16 %v3074
        %v8483 = vpack.c.b16 %v8481, %v8480
        %v8484 = vpack.c.b16 %v8482, %v8482
        %v8487 = vsel %vm5439, %v8475, 0
        %v8490 = vsel %vm5439, %v8476, 0
        %v8493 = vsel %vm8271, %v8484, 0
        %8495 = vmatpush.bf16.msra.mxu0 0
        %8496 = vmatpush.bf16.msra.mxu0 0
        %8497 = vmatpush.bf16.msra.mxu0 0
        %8498 = vmatpush.bf16.msra.mxu0 0
        %8499 = vmatpush.bf16.msra.mxu0 0
        %8500 = vmatpush.bf16.msra.mxu0 0
        %8501 = vmatpush.bf16.msra.mxu0 %v8493
        %8502 = vmatpush.bf16.msra.mxu0 %v8483
        %8503 = vmatmul.bf16.gmra.mxu0 %v8487
        %v8504 = vpop.f32.mrf.mxu0
        %v8505 = vadd.f32 0.0, %v8504
        %v8506 = vpop.f32.mrf.mxu0
        %v8507 = vadd.f32 0.0, %v8506
        %8508 = vmatmul.bf16.gmra.mxu0 %v8490
        %v8509 = vpop.f32.mrf.mxu0
        %v8510 = vadd.f32 0.0, %v8509
        %v8511 = vpop.f32.mrf.mxu0
        %8512 = vdwg.mxu0
        %v8516 = vunpack.c.l.b16 %v8218
        %v8517 = vunpack.c.l.b16 %v8219
        %v8518 = vunpack.c.l.b16 %v8220
        %v8519 = vpack.c.b16 %v8517, %v8516
        %v8520 = vpack.c.b16 %v8518, %v8518
        %v8524 = vunpack.c.l.b16 %v3075
        %v8525 = vunpack.c.l.b16 %v3076
        %v8526 = vunpack.c.l.b16 %v3077
        %v8527 = vpack.c.b16 %v8525, %v8524
        %v8528 = vpack.c.b16 %v8526, %v8526
        %v8531 = vsel %vm5439, %v8519, 0
        %v8534 = vsel %vm5439, %v8520, 0
        %v8537 = vsel %vm8271, %v8528, 0
        %8539 = vmatpush.bf16.msra.mxu0 0
        %8540 = vmatpush.bf16.msra.mxu0 0
        %8541 = vmatpush.bf16.msra.mxu0 0
        %8542 = vmatpush.bf16.msra.mxu0 0
        %8543 = vmatpush.bf16.msra.mxu0 0
        %8544 = vmatpush.bf16.msra.mxu0 0
        %8545 = vmatpush.bf16.msra.mxu0 %v8537
        %8546 = vmatpush.bf16.msra.mxu0 %v8527
        %8547 = vmatmul.bf16.gmra.mxu0 %v8531
        %v8548 = vpop.f32.mrf.mxu0
        %v8549 = vadd.f32 0.0, %v8548
        %v8550 = vpop.f32.mrf.mxu0
        %v8551 = vadd.f32 0.0, %v8550
        %8552 = vmatmul.bf16.gmra.mxu0 %v8534
        %v8553 = vpop.f32.mrf.mxu0
        %v8554 = vadd.f32 0.0, %v8553
        %v8555 = vpop.f32.mrf.mxu0
        %8556 = vdwg.mxu0
        %v8560 = vunpack.c.l.b16 %v8221
        %v8561 = vunpack.c.l.b16 %v8222
        %v8562 = vunpack.c.l.b16 %v8223
        %v8563 = vpack.c.b16 %v8561, %v8560
        %v8564 = vpack.c.b16 %v8562, %v8562
        %v8568 = vunpack.c.l.b16 %v3078
        %v8569 = vunpack.c.l.b16 %v3079
        %v8570 = vunpack.c.l.b16 %v3080
        %v8571 = vpack.c.b16 %v8569, %v8568
        %v8572 = vpack.c.b16 %v8570, %v8570
        %v8575 = vsel %vm5439, %v8563, 0
        %v8578 = vsel %vm5439, %v8564, 0
        %v8581 = vsel %vm8271, %v8572, 0
        %8583 = vmatpush.bf16.msra.mxu0 0
        %8584 = vmatpush.bf16.msra.mxu0 0
        %8585 = vmatpush.bf16.msra.mxu0 0
        %8586 = vmatpush.bf16.msra.mxu0 0
        %8587 = vmatpush.bf16.msra.mxu0 0
        %8588 = vmatpush.bf16.msra.mxu0 0
        %8589 = vmatpush.bf16.msra.mxu0 %v8581
        %8590 = vmatpush.bf16.msra.mxu0 %v8571
        %8591 = vmatmul.bf16.gmra.mxu0 %v8575
        %v8592 = vpop.f32.mrf.mxu0
        %v8593 = vadd.f32 0.0, %v8592
        %v8594 = vpop.f32.mrf.mxu0
        %v8595 = vadd.f32 0.0, %v8594
        %8596 = vmatmul.bf16.gmra.mxu0 %v8578
        %v8597 = vpop.f32.mrf.mxu0
        %v8598 = vadd.f32 0.0, %v8597
        %v8599 = vpop.f32.mrf.mxu0
        %8600 = vdwg.mxu0
        %v8604 = vunpack.c.l.b16 %v8224
        %v8605 = vunpack.c.l.b16 %v8225
        %v8606 = vunpack.c.l.b16 %v8226
        %v8607 = vpack.c.b16 %v8605, %v8604
        %v8608 = vpack.c.b16 %v8606, %v8606
        %v8612 = vunpack.c.l.b16 %v3081
        %v8613 = vunpack.c.l.b16 %v3082
        %v8614 = vunpack.c.l.b16 %v3083
        %v8615 = vpack.c.b16 %v8613, %v8612
        %v8616 = vpack.c.b16 %v8614, %v8614
        %v8619 = vsel %vm5439, %v8607, 0
        %v8622 = vsel %vm5439, %v8608, 0
        %v8625 = vsel %vm8271, %v8616, 0
        %8627 = vmatpush.bf16.msra.mxu0 0
        %8628 = vmatpush.bf16.msra.mxu0 0
        %8629 = vmatpush.bf16.msra.mxu0 0
        %8630 = vmatpush.bf16.msra.mxu0 0
        %8631 = vmatpush.bf16.msra.mxu0 0
        %8632 = vmatpush.bf16.msra.mxu0 0
        %8633 = vmatpush.bf16.msra.mxu0 %v8625
        %8634 = vmatpush.bf16.msra.mxu0 %v8615
        %8635 = vmatmul.bf16.gmra.mxu0 %v8619
        %v8636 = vpop.f32.mrf.mxu0
        %v8637 = vadd.f32 0.0, %v8636
        %v8638 = vpop.f32.mrf.mxu0
        %v8639 = vadd.f32 0.0, %v8638
        %8640 = vmatmul.bf16.gmra.mxu0 %v8622
        %v8641 = vpop.f32.mrf.mxu0
        %v8642 = vadd.f32 0.0, %v8641
        %v8643 = vpop.f32.mrf.mxu0
        %8644 = vdwg.mxu0
        %v8648 = vunpack.c.l.b16 %v8227
        %v8649 = vunpack.c.l.b16 %v8228
        %v8650 = vunpack.c.l.b16 %v8229
        %v8651 = vpack.c.b16 %v8649, %v8648
        %v8652 = vpack.c.b16 %v8650, %v8650
        %v8656 = vunpack.c.l.b16 %v3084
        %v8657 = vunpack.c.l.b16 %v3085
        %v8658 = vunpack.c.l.b16 %v3086
        %v8659 = vpack.c.b16 %v8657, %v8656
        %v8660 = vpack.c.b16 %v8658, %v8658
        %v8663 = vsel %vm5439, %v8651, 0
        %v8666 = vsel %vm5439, %v8652, 0
        %v8669 = vsel %vm8271, %v8660, 0
        %8671 = vmatpush.bf16.msra.mxu0 0
        %8672 = vmatpush.bf16.msra.mxu0 0
        %8673 = vmatpush.bf16.msra.mxu0 0
        %8674 = vmatpush.bf16.msra.mxu0 0
        %8675 = vmatpush.bf16.msra.mxu0 0
        %8676 = vmatpush.bf16.msra.mxu0 0
        %8677 = vmatpush.bf16.msra.mxu0 %v8669
        %8678 = vmatpush.bf16.msra.mxu0 %v8659
        %8679 = vmatmul.bf16.gmra.mxu0 %v8663
        %v8680 = vpop.f32.mrf.mxu0
        %v8681 = vadd.f32 0.0, %v8680
        %v8682 = vpop.f32.mrf.mxu0
        %v8683 = vadd.f32 0.0, %v8682
        %8684 = vmatmul.bf16.gmra.mxu0 %v8666
        %v8685 = vpop.f32.mrf.mxu0
        %v8686 = vadd.f32 0.0, %v8685
        %v8687 = vpop.f32.mrf.mxu0
        %8688 = vdwg.mxu0
        %v8692 = vunpack.c.l.b16 %v8230
        %v8693 = vunpack.c.l.b16 %v8231
        %v8694 = vunpack.c.l.b16 %v8232
        %v8695 = vpack.c.b16 %v8693, %v8692
        %v8696 = vpack.c.b16 %v8694, %v8694
        %v8700 = vunpack.c.l.b16 %v3087
        %v8701 = vunpack.c.l.b16 %v3088
        %v8702 = vunpack.c.l.b16 %v3089
        %v8703 = vpack.c.b16 %v8701, %v8700
        %v8704 = vpack.c.b16 %v8702, %v8702
        %v8707 = vsel %vm5439, %v8695, 0
        %v8710 = vsel %vm5439, %v8696, 0
        %v8713 = vsel %vm8271, %v8704, 0
        %8715 = vmatpush.bf16.msra.mxu0 0
        %8716 = vmatpush.bf16.msra.mxu0 0
        %8717 = vmatpush.bf16.msra.mxu0 0
        %8718 = vmatpush.bf16.msra.mxu0 0
        %8719 = vmatpush.bf16.msra.mxu0 0
        %8720 = vmatpush.bf16.msra.mxu0 0
        %8721 = vmatpush.bf16.msra.mxu0 %v8713
        %8722 = vmatpush.bf16.msra.mxu0 %v8703
        %8723 = vmatmul.bf16.gmra.mxu0 %v8707
        %v8724 = vpop.f32.mrf.mxu0
        %v8725 = vadd.f32 0.0, %v8724
        %v8726 = vpop.f32.mrf.mxu0
        %v8727 = vadd.f32 0.0, %v8726
        %8728 = vmatmul.bf16.gmra.mxu0 %v8710
        %v8729 = vpop.f32.mrf.mxu0
        %v8730 = vadd.f32 0.0, %v8729
        %v8731 = vpop.f32.mrf.mxu0
        %8732 = vdwg.mxu0
        %v8736 = vunpack.c.l.b16 %v8233
        %v8737 = vunpack.c.l.b16 %v8234
        %v8738 = vunpack.c.l.b16 %v8235
        %v8739 = vpack.c.b16 %v8737, %v8736
        %v8740 = vpack.c.b16 %v8738, %v8738
        %v8744 = vunpack.c.l.b16 %v3090
        %v8745 = vunpack.c.l.b16 %v3091
        %v8746 = vunpack.c.l.b16 %v3092
        %v8747 = vpack.c.b16 %v8745, %v8744
        %v8748 = vpack.c.b16 %v8746, %v8746
        %v8751 = vsel %vm5439, %v8739, 0
        %v8754 = vsel %vm5439, %v8740, 0
        %v8757 = vsel %vm8271, %v8748, 0
        %8759 = vmatpush.bf16.msra.mxu0 0
        %8760 = vmatpush.bf16.msra.mxu0 0
        %8761 = vmatpush.bf16.msra.mxu0 0
        %8762 = vmatpush.bf16.msra.mxu0 0
        %8763 = vmatpush.bf16.msra.mxu0 0
        %8764 = vmatpush.bf16.msra.mxu0 0
        %8765 = vmatpush.bf16.msra.mxu0 %v8757
        %8766 = vmatpush.bf16.msra.mxu0 %v8747
        %8767 = vmatmul.bf16.gmra.mxu0 %v8751
        %v8768 = vpop.f32.mrf.mxu0
        %v8769 = vadd.f32 0.0, %v8768
        %v8770 = vpop.f32.mrf.mxu0
        %v8771 = vadd.f32 0.0, %v8770
        %8772 = vmatmul.bf16.gmra.mxu0 %v8754
        %v8773 = vpop.f32.mrf.mxu0
        %v8774 = vadd.f32 0.0, %v8773
        %v8775 = vpop.f32.mrf.mxu0
        %8776 = vdwg.mxu0
        %v8780 = vunpack.c.l.b16 %v8236
        %v8781 = vunpack.c.l.b16 %v8237
        %v8782 = vunpack.c.l.b16 %v8238
        %v8783 = vpack.c.b16 %v8781, %v8780
        %v8784 = vpack.c.b16 %v8782, %v8782
        %v8788 = vunpack.c.l.b16 %v3093
        %v8789 = vunpack.c.l.b16 %v3094
        %v8790 = vunpack.c.l.b16 %v3095
        %v8791 = vpack.c.b16 %v8789, %v8788
        %v8792 = vpack.c.b16 %v8790, %v8790
        %v8795 = vsel %vm5439, %v8783, 0
        %v8798 = vsel %vm5439, %v8784, 0
        %v8801 = vsel %vm8271, %v8792, 0
        %8803 = vmatpush.bf16.msra.mxu0 0
        %8804 = vmatpush.bf16.msra.mxu0 0
        %8805 = vmatpush.bf16.msra.mxu0 0
        %8806 = vmatpush.bf16.msra.mxu0 0
        %8807 = vmatpush.bf16.msra.mxu0 0
        %8808 = vmatpush.bf16.msra.mxu0 0
        %8809 = vmatpush.bf16.msra.mxu0 %v8801
        %8810 = vmatpush.bf16.msra.mxu0 %v8791
        %8811 = vmatmul.bf16.gmra.mxu0 %v8795
        %v8812 = vpop.f32.mrf.mxu0
        %v8813 = vadd.f32 0.0, %v8812
        %v8814 = vpop.f32.mrf.mxu0
        %v8815 = vadd.f32 0.0, %v8814
        %8816 = vmatmul.bf16.gmra.mxu0 %v8798
        %v8817 = vpop.f32.mrf.mxu0
        %v8818 = vadd.f32 0.0, %v8817
        %v8819 = vpop.f32.mrf.mxu0
        %8820 = vdwg.mxu0
        %v8824 = vunpack.c.l.b16 %v8239
        %v8825 = vunpack.c.l.b16 %v8240
        %v8826 = vunpack.c.l.b16 %v8241
        %v8827 = vpack.c.b16 %v8825, %v8824
        %v8828 = vpack.c.b16 %v8826, %v8826
        %v8832 = vunpack.c.l.b16 %v3096
        %v8833 = vunpack.c.l.b16 %v3097
        %v8834 = vunpack.c.l.b16 %v3098
        %v8835 = vpack.c.b16 %v8833, %v8832
        %v8836 = vpack.c.b16 %v8834, %v8834
        %v8839 = vsel %vm5439, %v8827, 0
        %v8842 = vsel %vm5439, %v8828, 0
        %v8845 = vsel %vm8271, %v8836, 0
        %8847 = vmatpush.bf16.msra.mxu0 0
        %8848 = vmatpush.bf16.msra.mxu0 0
        %8849 = vmatpush.bf16.msra.mxu0 0
        %8850 = vmatpush.bf16.msra.mxu0 0
        %8851 = vmatpush.bf16.msra.mxu0 0
        %8852 = vmatpush.bf16.msra.mxu0 0
        %8853 = vmatpush.bf16.msra.mxu0 %v8845
        %8854 = vmatpush.bf16.msra.mxu0 %v8835
        %8855 = vmatmul.bf16.gmra.mxu0 %v8839
        %v8856 = vpop.f32.mrf.mxu0
        %v8857 = vadd.f32 0.0, %v8856
        %v8858 = vpop.f32.mrf.mxu0
        %v8859 = vadd.f32 0.0, %v8858
        %8860 = vmatmul.bf16.gmra.mxu0 %v8842
        %v8861 = vpop.f32.mrf.mxu0
        %v8862 = vadd.f32 0.0, %v8861
        %v8863 = vpop.f32.mrf.mxu0
        %8864 = vdwg.mxu0
        %v8868 = vunpack.c.l.b16 %v8242
        %v8869 = vunpack.c.l.b16 %v8243
        %v8870 = vunpack.c.l.b16 %v8244
        %v8871 = vpack.c.b16 %v8869, %v8868
        %v8872 = vpack.c.b16 %v8870, %v8870
        %v8876 = vunpack.c.l.b16 %v3099
        %v8877 = vunpack.c.l.b16 %v3100
        %v8878 = vunpack.c.l.b16 %v3101
        %v8879 = vpack.c.b16 %v8877, %v8876
        %v8880 = vpack.c.b16 %v8878, %v8878
        %v8883 = vsel %vm5439, %v8871, 0
        %v8886 = vsel %vm5439, %v8872, 0
        %v8889 = vsel %vm8271, %v8880, 0
        %8891 = vmatpush.bf16.msra.mxu0 0
        %8892 = vmatpush.bf16.msra.mxu0 0
        %8893 = vmatpush.bf16.msra.mxu0 0
        %8894 = vmatpush.bf16.msra.mxu0 0
        %8895 = vmatpush.bf16.msra.mxu0 0
        %8896 = vmatpush.bf16.msra.mxu0 0
        %8897 = vmatpush.bf16.msra.mxu0 %v8889
        %8898 = vmatpush.bf16.msra.mxu0 %v8879
        %8899 = vmatmul.bf16.gmra.mxu0 %v8883
        %v8900 = vpop.f32.mrf.mxu0
        %v8901 = vadd.f32 0.0, %v8900
        %v8902 = vpop.f32.mrf.mxu0
        %v8903 = vadd.f32 0.0, %v8902
        %8904 = vmatmul.bf16.gmra.mxu0 %v8886
        %v8905 = vpop.f32.mrf.mxu0
        %v8906 = vadd.f32 0.0, %v8905
        %v8907 = vpop.f32.mrf.mxu0
        %8908 = vdwg.mxu0
        %v8912 = vunpack.c.l.b16 %v8245
        %v8913 = vunpack.c.l.b16 %v8246
        %v8914 = vunpack.c.l.b16 %v8247
        %v8915 = vpack.c.b16 %v8913, %v8912
        %v8916 = vpack.c.b16 %v8914, %v8914
        %v8920 = vunpack.c.l.b16 %v3102
        %v8921 = vunpack.c.l.b16 %v3103
        %v8922 = vunpack.c.l.b16 %v3104
        %v8923 = vpack.c.b16 %v8921, %v8920
        %v8924 = vpack.c.b16 %v8922, %v8922
        %v8927 = vsel %vm5439, %v8915, 0
        %v8930 = vsel %vm5439, %v8916, 0
        %v8933 = vsel %vm8271, %v8924, 0
        %8935 = vmatpush.bf16.msra.mxu0 0
        %8936 = vmatpush.bf16.msra.mxu0 0
        %8937 = vmatpush.bf16.msra.mxu0 0
        %8938 = vmatpush.bf16.msra.mxu0 0
        %8939 = vmatpush.bf16.msra.mxu0 0
        %8940 = vmatpush.bf16.msra.mxu0 0
        %8941 = vmatpush.bf16.msra.mxu0 %v8933
        %8942 = vmatpush.bf16.msra.mxu0 %v8923
        %8943 = vmatmul.bf16.gmra.mxu0 %v8927
        %v8944 = vpop.f32.mrf.mxu0
        %v8945 = vadd.f32 0.0, %v8944
        %v8946 = vpop.f32.mrf.mxu0
        %v8947 = vadd.f32 0.0, %v8946
        %8948 = vmatmul.bf16.gmra.mxu0 %v8930
        %v8949 = vpop.f32.mrf.mxu0
        %v8950 = vadd.f32 0.0, %v8949
        %v8951 = vpop.f32.mrf.mxu0
        %8952 = vdwg.mxu0
        %v8953 = vpack.c.bf16 %v7191, %v7191
        %v8954 = vpack.c.bf16 %v7193, %v7193
        %v8955 = vpack.c.bf16 %v7195, %v7195
        %v8956 = vpack.c.bf16 %v7197, %v7197
        %v8957 = vpack.c.bf16 %v7199, %v7199
        %v8958 = vpack.c.bf16 %v7201, %v7201
        %v8959 = vpack.c.bf16 %v7203, %v7203
        %v8960 = vpack.c.bf16 %v7205, %v7205
        %v8961 = vpack.c.bf16 %v7207, %v7207
        %v8962 = vpack.c.bf16 %v7209, %v7209
        %v8963 = vpack.c.bf16 %v7211, %v7211
        %v8964 = vpack.c.bf16 %v7213, %v7213
        %v8965 = vpack.c.bf16 %v7215, %v7215
        %v8966 = vpack.c.bf16 %v7217, %v7217
        %v8967 = vpack.c.bf16 %v7219, %v7219
        %v8968 = vpack.c.bf16 %v7221, %v7221
        %v8969 = vpack.c.bf16 %v7223, %v7223
        %v8970 = vpack.c.bf16 %v7225, %v7225
        %v8971 = vpack.c.bf16 %v7227, %v7227
        %v8972 = vpack.c.bf16 %v7229, %v7229
        %v8973 = vpack.c.bf16 %v7231, %v7231
        %v8974 = vpack.c.bf16 %v7233, %v7233
        %v8975 = vpack.c.bf16 %v7235, %v7235
        %v8976 = vpack.c.bf16 %v7237, %v7237
        %v8977 = vpack.c.bf16 %v7239, %v7239
        %v8978 = vpack.c.bf16 %v7241, %v7241
        %v8979 = vpack.c.bf16 %v7243, %v7243
        %v8980 = vpack.c.bf16 %v7245, %v7245
        %v8981 = vpack.c.bf16 %v7247, %v7247
        %v8982 = vpack.c.bf16 %v7249, %v7249
        %v8983 = vpack.c.bf16 %v7251, %v7251
        %v8984 = vpack.c.bf16 %v7253, %v7253
        %v8985 = vpack.c.bf16 %v7255, %v7255
        %v8986 = vpack.c.bf16 %v7257, %v7257
        %v8987 = vpack.c.bf16 %v7259, %v7259
        %v8988 = vpack.c.bf16 %v7261, %v7261
        %v8989 = vpack.c.bf16 %v7263, %v7263
        %v8990 = vpack.c.bf16 %v7265, %v7265
        %v8991 = vpack.c.bf16 %v7267, %v7267
        %v8992 = vpack.c.bf16 %v7269, %v7269
        %v8993 = vpack.c.bf16 %v7271, %v7271
        %v8994 = vpack.c.bf16 %v7273, %v7273
        %v8995 = vpack.c.bf16 %v7275, %v7275
        %v8996 = vpack.c.bf16 %v7277, %v7277
        %v8997 = vpack.c.bf16 %v7279, %v7279
        %v8998 = vpack.c.bf16 %v7281, %v7281
        %v8999 = vpack.c.bf16 %v7283, %v7283
        %v9000 = vpack.c.bf16 %v7285, %v7285
        %v9003 = vunpack.c.l.b16 %v8953
        %v9004 = vunpack.c.l.b16 %v8954
        %v9005 = vpack.c.b16 %v9004, %v9003
        %v9008 = vunpack.c.l.b16 %v3153
        %v9009 = vunpack.c.l.b16 %v3154
        %v9010 = vpack.c.b16 %v9009, %v9008
        %v9013 = vsel %vm5584, %v9005, 0
        %9015 = vmatpush.bf16.msra.mxu0 0
        %9016 = vmatpush.bf16.msra.mxu0 0
        %9017 = vmatpush.bf16.msra.mxu0 0
        %9018 = vmatpush.bf16.msra.mxu0 0
        %9019 = vmatpush.bf16.msra.mxu0 0
        %9020 = vmatpush.bf16.msra.mxu0 0
        %9021 = vmatpush.bf16.msra.mxu0 0
        %9022 = vmatpush.bf16.msra.mxu0 %v9010
        %9023 = vmatmul.bf16.gmra.mxu0 %v9013
        %v9024 = vpop.f32.mrf.mxu0
        %v9025 = vadd.f32 0.0, %v9024
        %v9026 = vpop.f32.mrf.mxu0
        %v9027 = vadd.f32 0.0, %v9026
        %9028 = vdwg.mxu0
        %v9031 = vunpack.c.l.b16 %v8955
        %v9032 = vunpack.c.l.b16 %v8956
        %v9033 = vpack.c.b16 %v9032, %v9031
        %v9036 = vunpack.c.l.b16 %v3155
        %v9037 = vunpack.c.l.b16 %v3156
        %v9038 = vpack.c.b16 %v9037, %v9036
        %v9041 = vsel %vm5584, %v9033, 0
        %9043 = vmatpush.bf16.msra.mxu0 0
        %9044 = vmatpush.bf16.msra.mxu0 0
        %9045 = vmatpush.bf16.msra.mxu0 0
        %9046 = vmatpush.bf16.msra.mxu0 0
        %9047 = vmatpush.bf16.msra.mxu0 0
        %9048 = vmatpush.bf16.msra.mxu0 0
        %9049 = vmatpush.bf16.msra.mxu0 0
        %9050 = vmatpush.bf16.msra.mxu0 %v9038
        %9051 = vmatmul.bf16.gmra.mxu0 %v9041
        %v9052 = vpop.f32.mrf.mxu0
        %v9053 = vadd.f32 0.0, %v9052
        %v9054 = vpop.f32.mrf.mxu0
        %v9055 = vadd.f32 0.0, %v9054
        %9056 = vdwg.mxu0
        %v9059 = vunpack.c.l.b16 %v8957
        %v9060 = vunpack.c.l.b16 %v8958
        %v9061 = vpack.c.b16 %v9060, %v9059
        %v9064 = vunpack.c.l.b16 %v3157
        %v9065 = vunpack.c.l.b16 %v3158
        %v9066 = vpack.c.b16 %v9065, %v9064
        %v9069 = vsel %vm5584, %v9061, 0
        %9071 = vmatpush.bf16.msra.mxu0 0
        %9072 = vmatpush.bf16.msra.mxu0 0
        %9073 = vmatpush.bf16.msra.mxu0 0
        %9074 = vmatpush.bf16.msra.mxu0 0
        %9075 = vmatpush.bf16.msra.mxu0 0
        %9076 = vmatpush.bf16.msra.mxu0 0
        %9077 = vmatpush.bf16.msra.mxu0 0
        %9078 = vmatpush.bf16.msra.mxu0 %v9066
        %9079 = vmatmul.bf16.gmra.mxu0 %v9069
        %v9080 = vpop.f32.mrf.mxu0
        %v9081 = vadd.f32 0.0, %v9080
        %v9082 = vpop.f32.mrf.mxu0
        %v9083 = vadd.f32 0.0, %v9082
        %9084 = vdwg.mxu0
        %v9087 = vunpack.c.l.b16 %v8959
        %v9088 = vunpack.c.l.b16 %v8960
        %v9089 = vpack.c.b16 %v9088, %v9087
        %v9092 = vunpack.c.l.b16 %v3159
        %v9093 = vunpack.c.l.b16 %v3160
        %v9094 = vpack.c.b16 %v9093, %v9092
        %v9097 = vsel %vm5584, %v9089, 0
        %9099 = vmatpush.bf16.msra.mxu0 0
        %9100 = vmatpush.bf16.msra.mxu0 0
        %9101 = vmatpush.bf16.msra.mxu0 0
        %9102 = vmatpush.bf16.msra.mxu0 0
        %9103 = vmatpush.bf16.msra.mxu0 0
        %9104 = vmatpush.bf16.msra.mxu0 0
        %9105 = vmatpush.bf16.msra.mxu0 0
        %9106 = vmatpush.bf16.msra.mxu0 %v9094
        %9107 = vmatmul.bf16.gmra.mxu0 %v9097
        %v9108 = vpop.f32.mrf.mxu0
        %v9109 = vadd.f32 0.0, %v9108
        %v9110 = vpop.f32.mrf.mxu0
        %v9111 = vadd.f32 0.0, %v9110
        %9112 = vdwg.mxu0
        %v9115 = vunpack.c.l.b16 %v8961
        %v9116 = vunpack.c.l.b16 %v8962
        %v9117 = vpack.c.b16 %v9116, %v9115
        %v9120 = vunpack.c.l.b16 %v3161
        %v9121 = vunpack.c.l.b16 %v3162
        %v9122 = vpack.c.b16 %v9121, %v9120
        %v9125 = vsel %vm5584, %v9117, 0
        %9127 = vmatpush.bf16.msra.mxu0 0
        %9128 = vmatpush.bf16.msra.mxu0 0
        %9129 = vmatpush.bf16.msra.mxu0 0
        %9130 = vmatpush.bf16.msra.mxu0 0
        %9131 = vmatpush.bf16.msra.mxu0 0
        %9132 = vmatpush.bf16.msra.mxu0 0
        %9133 = vmatpush.bf16.msra.mxu0 0
        %9134 = vmatpush.bf16.msra.mxu0 %v9122
        %9135 = vmatmul.bf16.gmra.mxu0 %v9125
        %v9136 = vpop.f32.mrf.mxu0
        %v9137 = vadd.f32 0.0, %v9136
        %v9138 = vpop.f32.mrf.mxu0
        %v9139 = vadd.f32 0.0, %v9138
        %9140 = vdwg.mxu0
        %v9143 = vunpack.c.l.b16 %v8963
        %v9144 = vunpack.c.l.b16 %v8964
        %v9145 = vpack.c.b16 %v9144, %v9143
        %v9148 = vunpack.c.l.b16 %v3163
        %v9149 = vunpack.c.l.b16 %v3164
        %v9150 = vpack.c.b16 %v9149, %v9148
        %v9153 = vsel %vm5584, %v9145, 0
        %9155 = vmatpush.bf16.msra.mxu0 0
        %9156 = vmatpush.bf16.msra.mxu0 0
        %9157 = vmatpush.bf16.msra.mxu0 0
        %9158 = vmatpush.bf16.msra.mxu0 0
        %9159 = vmatpush.bf16.msra.mxu0 0
        %9160 = vmatpush.bf16.msra.mxu0 0
        %9161 = vmatpush.bf16.msra.mxu0 0
        %9162 = vmatpush.bf16.msra.mxu0 %v9150
        %9163 = vmatmul.bf16.gmra.mxu0 %v9153
        %v9164 = vpop.f32.mrf.mxu0
        %v9165 = vadd.f32 0.0, %v9164
        %v9166 = vpop.f32.mrf.mxu0
        %v9167 = vadd.f32 0.0, %v9166
        %9168 = vdwg.mxu0
        %v9171 = vunpack.c.l.b16 %v8965
        %v9172 = vunpack.c.l.b16 %v8966
        %v9173 = vpack.c.b16 %v9172, %v9171
        %v9176 = vunpack.c.l.b16 %v3165
        %v9177 = vunpack.c.l.b16 %v3166
        %v9178 = vpack.c.b16 %v9177, %v9176
        %v9181 = vsel %vm5584, %v9173, 0
        %9183 = vmatpush.bf16.msra.mxu0 0
        %9184 = vmatpush.bf16.msra.mxu0 0
        %9185 = vmatpush.bf16.msra.mxu0 0
        %9186 = vmatpush.bf16.msra.mxu0 0
        %9187 = vmatpush.bf16.msra.mxu0 0
        %9188 = vmatpush.bf16.msra.mxu0 0
        %9189 = vmatpush.bf16.msra.mxu0 0
        %9190 = vmatpush.bf16.msra.mxu0 %v9178
        %9191 = vmatmul.bf16.gmra.mxu0 %v9181
        %v9192 = vpop.f32.mrf.mxu0
        %v9193 = vadd.f32 0.0, %v9192
        %v9194 = vpop.f32.mrf.mxu0
        %v9195 = vadd.f32 0.0, %v9194
        %9196 = vdwg.mxu0
        %v9199 = vunpack.c.l.b16 %v8967
        %v9200 = vunpack.c.l.b16 %v8968
        %v9201 = vpack.c.b16 %v9200, %v9199
        %v9204 = vunpack.c.l.b16 %v3167
        %v9205 = vunpack.c.l.b16 %v3168
        %v9206 = vpack.c.b16 %v9205, %v9204
        %v9209 = vsel %vm5584, %v9201, 0
        %9211 = vmatpush.bf16.msra.mxu0 0
        %9212 = vmatpush.bf16.msra.mxu0 0
        %9213 = vmatpush.bf16.msra.mxu0 0
        %9214 = vmatpush.bf16.msra.mxu0 0
        %9215 = vmatpush.bf16.msra.mxu0 0
        %9216 = vmatpush.bf16.msra.mxu0 0
        %9217 = vmatpush.bf16.msra.mxu0 0
        %9218 = vmatpush.bf16.msra.mxu0 %v9206
        %9219 = vmatmul.bf16.gmra.mxu0 %v9209
        %v9220 = vpop.f32.mrf.mxu0
        %v9221 = vadd.f32 0.0, %v9220
        %v9222 = vpop.f32.mrf.mxu0
        %v9223 = vadd.f32 0.0, %v9222
        %9224 = vdwg.mxu0
        %v9227 = vunpack.c.l.b16 %v8969
        %v9228 = vunpack.c.l.b16 %v8970
        %v9229 = vpack.c.b16 %v9228, %v9227
        %v9232 = vunpack.c.l.b16 %v3169
        %v9233 = vunpack.c.l.b16 %v3170
        %v9234 = vpack.c.b16 %v9233, %v9232
        %v9237 = vsel %vm5584, %v9229, 0
        %9239 = vmatpush.bf16.msra.mxu0 0
        %9240 = vmatpush.bf16.msra.mxu0 0
        %9241 = vmatpush.bf16.msra.mxu0 0
        %9242 = vmatpush.bf16.msra.mxu0 0
        %9243 = vmatpush.bf16.msra.mxu0 0
        %9244 = vmatpush.bf16.msra.mxu0 0
        %9245 = vmatpush.bf16.msra.mxu0 0
        %9246 = vmatpush.bf16.msra.mxu0 %v9234
        %9247 = vmatmul.bf16.gmra.mxu0 %v9237
        %v9248 = vpop.f32.mrf.mxu0
        %v9249 = vadd.f32 0.0, %v9248
        %v9250 = vpop.f32.mrf.mxu0
        %v9251 = vadd.f32 0.0, %v9250
        %9252 = vdwg.mxu0
        %v9255 = vunpack.c.l.b16 %v8971
        %v9256 = vunpack.c.l.b16 %v8972
        %v9257 = vpack.c.b16 %v9256, %v9255
        %v9260 = vunpack.c.l.b16 %v3171
        %v9261 = vunpack.c.l.b16 %v3172
        %v9262 = vpack.c.b16 %v9261, %v9260
        %v9265 = vsel %vm5584, %v9257, 0
        %9267 = vmatpush.bf16.msra.mxu0 0
        %9268 = vmatpush.bf16.msra.mxu0 0
        %9269 = vmatpush.bf16.msra.mxu0 0
        %9270 = vmatpush.bf16.msra.mxu0 0
        %9271 = vmatpush.bf16.msra.mxu0 0
        %9272 = vmatpush.bf16.msra.mxu0 0
        %9273 = vmatpush.bf16.msra.mxu0 0
        %9274 = vmatpush.bf16.msra.mxu0 %v9262
        %9275 = vmatmul.bf16.gmra.mxu0 %v9265
        %v9276 = vpop.f32.mrf.mxu0
        %v9277 = vadd.f32 0.0, %v9276
        %v9278 = vpop.f32.mrf.mxu0
        %v9279 = vadd.f32 0.0, %v9278
        %9280 = vdwg.mxu0
        %v9283 = vunpack.c.l.b16 %v8973
        %v9284 = vunpack.c.l.b16 %v8974
        %v9285 = vpack.c.b16 %v9284, %v9283
        %v9288 = vunpack.c.l.b16 %v3173
        %v9289 = vunpack.c.l.b16 %v3174
        %v9290 = vpack.c.b16 %v9289, %v9288
        %v9293 = vsel %vm5584, %v9285, 0
        %9295 = vmatpush.bf16.msra.mxu0 0
        %9296 = vmatpush.bf16.msra.mxu0 0
        %9297 = vmatpush.bf16.msra.mxu0 0
        %9298 = vmatpush.bf16.msra.mxu0 0
        %9299 = vmatpush.bf16.msra.mxu0 0
        %9300 = vmatpush.bf16.msra.mxu0 0
        %9301 = vmatpush.bf16.msra.mxu0 0
        %9302 = vmatpush.bf16.msra.mxu0 %v9290
        %9303 = vmatmul.bf16.gmra.mxu0 %v9293
        %v9304 = vpop.f32.mrf.mxu0
        %v9305 = vadd.f32 0.0, %v9304
        %v9306 = vpop.f32.mrf.mxu0
        %v9307 = vadd.f32 0.0, %v9306
        %9308 = vdwg.mxu0
        %v9311 = vunpack.c.l.b16 %v8975
        %v9312 = vunpack.c.l.b16 %v8976
        %v9313 = vpack.c.b16 %v9312, %v9311
        %v9316 = vunpack.c.l.b16 %v3175
        %v9317 = vunpack.c.l.b16 %v3176
        %v9318 = vpack.c.b16 %v9317, %v9316
        %v9321 = vsel %vm5584, %v9313, 0
        %9323 = vmatpush.bf16.msra.mxu0 0
        %9324 = vmatpush.bf16.msra.mxu0 0
        %9325 = vmatpush.bf16.msra.mxu0 0
        %9326 = vmatpush.bf16.msra.mxu0 0
        %9327 = vmatpush.bf16.msra.mxu0 0
        %9328 = vmatpush.bf16.msra.mxu0 0
        %9329 = vmatpush.bf16.msra.mxu0 0
        %9330 = vmatpush.bf16.msra.mxu0 %v9318
        %9331 = vmatmul.bf16.gmra.mxu0 %v9321
        %v9332 = vpop.f32.mrf.mxu0
        %v9333 = vadd.f32 0.0, %v9332
        %v9334 = vpop.f32.mrf.mxu0
        %v9335 = vadd.f32 0.0, %v9334
        %9336 = vdwg.mxu0
        %v9339 = vunpack.c.l.b16 %v8977
        %v9340 = vunpack.c.l.b16 %v8978
        %v9341 = vpack.c.b16 %v9340, %v9339
        %v9344 = vunpack.c.l.b16 %v3177
        %v9345 = vunpack.c.l.b16 %v3178
        %v9346 = vpack.c.b16 %v9345, %v9344
        %v9349 = vsel %vm5584, %v9341, 0
        %9351 = vmatpush.bf16.msra.mxu0 0
        %9352 = vmatpush.bf16.msra.mxu0 0
        %9353 = vmatpush.bf16.msra.mxu0 0
        %9354 = vmatpush.bf16.msra.mxu0 0
        %9355 = vmatpush.bf16.msra.mxu0 0
        %9356 = vmatpush.bf16.msra.mxu0 0
        %9357 = vmatpush.bf16.msra.mxu0 0
        %9358 = vmatpush.bf16.msra.mxu0 %v9346
        %9359 = vmatmul.bf16.gmra.mxu0 %v9349
        %v9360 = vpop.f32.mrf.mxu0
        %v9361 = vadd.f32 0.0, %v9360
        %v9362 = vpop.f32.mrf.mxu0
        %v9363 = vadd.f32 0.0, %v9362
        %9364 = vdwg.mxu0
        %v9367 = vunpack.c.l.b16 %v8979
        %v9368 = vunpack.c.l.b16 %v8980
        %v9369 = vpack.c.b16 %v9368, %v9367
        %v9372 = vunpack.c.l.b16 %v3179
        %v9373 = vunpack.c.l.b16 %v3180
        %v9374 = vpack.c.b16 %v9373, %v9372
        %v9377 = vsel %vm5584, %v9369, 0
        %9379 = vmatpush.bf16.msra.mxu0 0
        %9380 = vmatpush.bf16.msra.mxu0 0
        %9381 = vmatpush.bf16.msra.mxu0 0
        %9382 = vmatpush.bf16.msra.mxu0 0
        %9383 = vmatpush.bf16.msra.mxu0 0
        %9384 = vmatpush.bf16.msra.mxu0 0
        %9385 = vmatpush.bf16.msra.mxu0 0
        %9386 = vmatpush.bf16.msra.mxu0 %v9374
        %9387 = vmatmul.bf16.gmra.mxu0 %v9377
        %v9388 = vpop.f32.mrf.mxu0
        %v9389 = vadd.f32 0.0, %v9388
        %v9390 = vpop.f32.mrf.mxu0
        %v9391 = vadd.f32 0.0, %v9390
        %9392 = vdwg.mxu0
        %v9395 = vunpack.c.l.b16 %v8981
        %v9396 = vunpack.c.l.b16 %v8982
        %v9397 = vpack.c.b16 %v9396, %v9395
        %v9400 = vunpack.c.l.b16 %v3181
        %v9401 = vunpack.c.l.b16 %v3182
        %v9402 = vpack.c.b16 %v9401, %v9400
        %v9405 = vsel %vm5584, %v9397, 0
        %9407 = vmatpush.bf16.msra.mxu0 0
        %9408 = vmatpush.bf16.msra.mxu0 0
        %9409 = vmatpush.bf16.msra.mxu0 0
        %9410 = vmatpush.bf16.msra.mxu0 0
        %9411 = vmatpush.bf16.msra.mxu0 0
        %9412 = vmatpush.bf16.msra.mxu0 0
        %9413 = vmatpush.bf16.msra.mxu0 0
        %9414 = vmatpush.bf16.msra.mxu0 %v9402
        %9415 = vmatmul.bf16.gmra.mxu0 %v9405
        %v9416 = vpop.f32.mrf.mxu0
        %v9417 = vadd.f32 0.0, %v9416
        %v9418 = vpop.f32.mrf.mxu0
        %v9419 = vadd.f32 0.0, %v9418
        %9420 = vdwg.mxu0
        %v9423 = vunpack.c.l.b16 %v8983
        %v9424 = vunpack.c.l.b16 %v8984
        %v9425 = vpack.c.b16 %v9424, %v9423
        %v9428 = vunpack.c.l.b16 %v3183
        %v9429 = vunpack.c.l.b16 %v3184
        %v9430 = vpack.c.b16 %v9429, %v9428
        %v9433 = vsel %vm5584, %v9425, 0
        %9435 = vmatpush.bf16.msra.mxu0 0
        %9436 = vmatpush.bf16.msra.mxu0 0
        %9437 = vmatpush.bf16.msra.mxu0 0
        %9438 = vmatpush.bf16.msra.mxu0 0
        %9439 = vmatpush.bf16.msra.mxu0 0
        %9440 = vmatpush.bf16.msra.mxu0 0
        %9441 = vmatpush.bf16.msra.mxu0 0
        %9442 = vmatpush.bf16.msra.mxu0 %v9430
        %9443 = vmatmul.bf16.gmra.mxu0 %v9433
        %v9444 = vpop.f32.mrf.mxu0
        %v9445 = vadd.f32 0.0, %v9444
        %v9446 = vpop.f32.mrf.mxu0
        %v9447 = vadd.f32 0.0, %v9446
        %9448 = vdwg.mxu0
        %v9451 = vunpack.c.l.b16 %v8985
        %v9452 = vunpack.c.l.b16 %v8986
        %v9453 = vpack.c.b16 %v9452, %v9451
        %v9456 = vunpack.c.l.b16 %v3185
        %v9457 = vunpack.c.l.b16 %v3186
        %v9458 = vpack.c.b16 %v9457, %v9456
        %v9461 = vsel %vm5584, %v9453, 0
        %9463 = vmatpush.bf16.msra.mxu0 0
        %9464 = vmatpush.bf16.msra.mxu0 0
        %9465 = vmatpush.bf16.msra.mxu0 0
        %9466 = vmatpush.bf16.msra.mxu0 0
        %9467 = vmatpush.bf16.msra.mxu0 0
        %9468 = vmatpush.bf16.msra.mxu0 0
        %9469 = vmatpush.bf16.msra.mxu0 0
        %9470 = vmatpush.bf16.msra.mxu0 %v9458
        %9471 = vmatmul.bf16.gmra.mxu0 %v9461
        %v9472 = vpop.f32.mrf.mxu0
        %v9473 = vadd.f32 0.0, %v9472
        %v9474 = vpop.f32.mrf.mxu0
        %v9475 = vadd.f32 0.0, %v9474
        %9476 = vdwg.mxu0
        %v9479 = vunpack.c.l.b16 %v8987
        %v9480 = vunpack.c.l.b16 %v8988
        %v9481 = vpack.c.b16 %v9480, %v9479
        %v9484 = vunpack.c.l.b16 %v3187
        %v9485 = vunpack.c.l.b16 %v3188
        %v9486 = vpack.c.b16 %v9485, %v9484
        %v9489 = vsel %vm5584, %v9481, 0
        %9491 = vmatpush.bf16.msra.mxu0 0
        %9492 = vmatpush.bf16.msra.mxu0 0
        %9493 = vmatpush.bf16.msra.mxu0 0
        %9494 = vmatpush.bf16.msra.mxu0 0
        %9495 = vmatpush.bf16.msra.mxu0 0
        %9496 = vmatpush.bf16.msra.mxu0 0
        %9497 = vmatpush.bf16.msra.mxu0 0
        %9498 = vmatpush.bf16.msra.mxu0 %v9486
        %9499 = vmatmul.bf16.gmra.mxu0 %v9489
        %v9500 = vpop.f32.mrf.mxu0
        %v9501 = vadd.f32 0.0, %v9500
        %v9502 = vpop.f32.mrf.mxu0
        %v9503 = vadd.f32 0.0, %v9502
        %9504 = vdwg.mxu0
        %v9507 = vunpack.c.l.b16 %v8989
        %v9508 = vunpack.c.l.b16 %v8990
        %v9509 = vpack.c.b16 %v9508, %v9507
        %v9512 = vunpack.c.l.b16 %v3189
        %v9513 = vunpack.c.l.b16 %v3190
        %v9514 = vpack.c.b16 %v9513, %v9512
        %v9517 = vsel %vm5584, %v9509, 0
        %9519 = vmatpush.bf16.msra.mxu0 0
        %9520 = vmatpush.bf16.msra.mxu0 0
        %9521 = vmatpush.bf16.msra.mxu0 0
        %9522 = vmatpush.bf16.msra.mxu0 0
        %9523 = vmatpush.bf16.msra.mxu0 0
        %9524 = vmatpush.bf16.msra.mxu0 0
        %9525 = vmatpush.bf16.msra.mxu0 0
        %9526 = vmatpush.bf16.msra.mxu0 %v9514
        %9527 = vmatmul.bf16.gmra.mxu0 %v9517
        %v9528 = vpop.f32.mrf.mxu0
        %v9529 = vadd.f32 0.0, %v9528
        %v9530 = vpop.f32.mrf.mxu0
        %v9531 = vadd.f32 0.0, %v9530
        %9532 = vdwg.mxu0
        %v9535 = vunpack.c.l.b16 %v8991
        %v9536 = vunpack.c.l.b16 %v8992
        %v9537 = vpack.c.b16 %v9536, %v9535
        %v9540 = vunpack.c.l.b16 %v3191
        %v9541 = vunpack.c.l.b16 %v3192
        %v9542 = vpack.c.b16 %v9541, %v9540
        %v9545 = vsel %vm5584, %v9537, 0
        %9547 = vmatpush.bf16.msra.mxu0 0
        %9548 = vmatpush.bf16.msra.mxu0 0
        %9549 = vmatpush.bf16.msra.mxu0 0
        %9550 = vmatpush.bf16.msra.mxu0 0
        %9551 = vmatpush.bf16.msra.mxu0 0
        %9552 = vmatpush.bf16.msra.mxu0 0
        %9553 = vmatpush.bf16.msra.mxu0 0
        %9554 = vmatpush.bf16.msra.mxu0 %v9542
        %9555 = vmatmul.bf16.gmra.mxu0 %v9545
        %v9556 = vpop.f32.mrf.mxu0
        %v9557 = vadd.f32 0.0, %v9556
        %v9558 = vpop.f32.mrf.mxu0
        %v9559 = vadd.f32 0.0, %v9558
        %9560 = vdwg.mxu0
        %v9563 = vunpack.c.l.b16 %v8993
        %v9564 = vunpack.c.l.b16 %v8994
        %v9565 = vpack.c.b16 %v9564, %v9563
        %v9568 = vunpack.c.l.b16 %v3193
        %v9569 = vunpack.c.l.b16 %v3194
        %v9570 = vpack.c.b16 %v9569, %v9568
        %v9573 = vsel %vm5584, %v9565, 0
        %9575 = vmatpush.bf16.msra.mxu0 0
        %9576 = vmatpush.bf16.msra.mxu0 0
        %9577 = vmatpush.bf16.msra.mxu0 0
        %9578 = vmatpush.bf16.msra.mxu0 0
        %9579 = vmatpush.bf16.msra.mxu0 0
        %9580 = vmatpush.bf16.msra.mxu0 0
        %9581 = vmatpush.bf16.msra.mxu0 0
        %9582 = vmatpush.bf16.msra.mxu0 %v9570
        %9583 = vmatmul.bf16.gmra.mxu0 %v9573
        %v9584 = vpop.f32.mrf.mxu0
        %v9585 = vadd.f32 0.0, %v9584
        %v9586 = vpop.f32.mrf.mxu0
        %v9587 = vadd.f32 0.0, %v9586
        %9588 = vdwg.mxu0
        %v9591 = vunpack.c.l.b16 %v8995
        %v9592 = vunpack.c.l.b16 %v8996
        %v9593 = vpack.c.b16 %v9592, %v9591
        %v9596 = vunpack.c.l.b16 %v3195
        %v9597 = vunpack.c.l.b16 %v3196
        %v9598 = vpack.c.b16 %v9597, %v9596
        %v9601 = vsel %vm5584, %v9593, 0
        %9603 = vmatpush.bf16.msra.mxu0 0
        %9604 = vmatpush.bf16.msra.mxu0 0
        %9605 = vmatpush.bf16.msra.mxu0 0
        %9606 = vmatpush.bf16.msra.mxu0 0
        %9607 = vmatpush.bf16.msra.mxu0 0
        %9608 = vmatpush.bf16.msra.mxu0 0
        %9609 = vmatpush.bf16.msra.mxu0 0
        %9610 = vmatpush.bf16.msra.mxu0 %v9598
        %9611 = vmatmul.bf16.gmra.mxu0 %v9601
        %v9612 = vpop.f32.mrf.mxu0
        %v9613 = vadd.f32 0.0, %v9612
        %v9614 = vpop.f32.mrf.mxu0
        %v9615 = vadd.f32 0.0, %v9614
        %9616 = vdwg.mxu0
        %v9619 = vunpack.c.l.b16 %v8997
        %v9620 = vunpack.c.l.b16 %v8998
        %v9621 = vpack.c.b16 %v9620, %v9619
        %v9624 = vunpack.c.l.b16 %v3197
        %v9625 = vunpack.c.l.b16 %v3198
        %v9626 = vpack.c.b16 %v9625, %v9624
        %v9629 = vsel %vm5584, %v9621, 0
        %9631 = vmatpush.bf16.msra.mxu0 0
        %9632 = vmatpush.bf16.msra.mxu0 0
        %9633 = vmatpush.bf16.msra.mxu0 0
        %9634 = vmatpush.bf16.msra.mxu0 0
        %9635 = vmatpush.bf16.msra.mxu0 0
        %9636 = vmatpush.bf16.msra.mxu0 0
        %9637 = vmatpush.bf16.msra.mxu0 0
        %9638 = vmatpush.bf16.msra.mxu0 %v9626
        %9639 = vmatmul.bf16.gmra.mxu0 %v9629
        %v9640 = vpop.f32.mrf.mxu0
        %v9641 = vadd.f32 0.0, %v9640
        %v9642 = vpop.f32.mrf.mxu0
        %v9643 = vadd.f32 0.0, %v9642
        %9644 = vdwg.mxu0
        %v9647 = vunpack.c.l.b16 %v8999
        %v9648 = vunpack.c.l.b16 %v9000
        %v9649 = vpack.c.b16 %v9648, %v9647
        %v9652 = vunpack.c.l.b16 %v3199
        %v9653 = vunpack.c.l.b16 %v3200
        %v9654 = vpack.c.b16 %v9653, %v9652
        %v9657 = vsel %vm5584, %v9649, 0
        %9659 = vmatpush.bf16.msra.mxu0 0
        %9660 = vmatpush.bf16.msra.mxu0 0
        %9661 = vmatpush.bf16.msra.mxu0 0
        %9662 = vmatpush.bf16.msra.mxu0 0
        %9663 = vmatpush.bf16.msra.mxu0 0
        %9664 = vmatpush.bf16.msra.mxu0 0
        %9665 = vmatpush.bf16.msra.mxu0 0
        %9666 = vmatpush.bf16.msra.mxu0 %v9654
        %9667 = vmatmul.bf16.gmra.mxu0 %v9657
        %v9668 = vpop.f32.mrf.mxu0
        %v9669 = vadd.f32 0.0, %v9668
        %v9670 = vpop.f32.mrf.mxu0
        %v9671 = vadd.f32 0.0, %v9670
        %9672 = vdwg.mxu0
        %v9673 = vrot.slane %v9081, 4
        %v9674 = vsel %vm3250, %v9673, %v9025
        %v9675 = vrot.slane %v9025, 4
        %v9676 = vsel %vm3250, %v9081, %v9675
        %v9678 = vunpack.c.l.s4 1983009808
        %v9679 = vunpack.c.0.s8 %v9678
        %v9680 = vperm.slane %v9674, %v9679
        %v9682 = vunpack.c.l.s4 1983009808
        %v9683 = vunpack.c.0.s8 %v9682
        %v9684 = vperm.slane %v9676, %v9683
        %v9685 = vrot.slane %v9109, 4
        %v9686 = vsel %vm3250, %v9685, %v9053
        %v9687 = vrot.slane %v9053, 4
        %v9688 = vsel %vm3250, %v9109, %v9687
        %v9690 = vunpack.c.l.s4 1983009808
        %v9691 = vunpack.c.0.s8 %v9690
        %v9692 = vperm.slane %v9686, %v9691
        %v9694 = vunpack.c.l.s4 1983009808
        %v9695 = vunpack.c.0.s8 %v9694
        %v9696 = vperm.slane %v9688, %v9695
        %v9697 = vrot.slane %v9193, 4
        %v9698 = vsel %vm3250, %v9697, %v9137
        %v9699 = vrot.slane %v9137, 4
        %v9700 = vsel %vm3250, %v9193, %v9699
        %v9702 = vunpack.c.l.s4 1983009808
        %v9703 = vunpack.c.0.s8 %v9702
        %v9704 = vperm.slane %v9698, %v9703
        %v9706 = vunpack.c.l.s4 1983009808
        %v9707 = vunpack.c.0.s8 %v9706
        %v9708 = vperm.slane %v9700, %v9707
        %v9709 = vrot.slane %v9221, 4
        %v9710 = vsel %vm3250, %v9709, %v9165
        %v9711 = vrot.slane %v9165, 4
        %v9712 = vsel %vm3250, %v9221, %v9711
        %v9714 = vunpack.c.l.s4 1983009808
        %v9715 = vunpack.c.0.s8 %v9714
        %v9716 = vperm.slane %v9710, %v9715
        %v9718 = vunpack.c.l.s4 1983009808
        %v9719 = vunpack.c.0.s8 %v9718
        %v9720 = vperm.slane %v9712, %v9719
        %v9721 = vrot.slane %v9692, 4
        %v9722 = vsel %vm3250, %v9721, %v9680
        %v9723 = vrot.slane %v9680, 4
        %v9724 = vsel %vm3250, %v9692, %v9723
        %v9726 = vunpack.c.l.s4 1934713408
        %v9727 = vunpack.c.0.s8 %v9726
        %v9728 = vperm.slane %v9722, %v9727
        %v9730 = vunpack.c.l.s4 1934713408
        %v9731 = vunpack.c.0.s8 %v9730
        %v9732 = vperm.slane %v9724, %v9731
        %v9733 = vrot.slane %v9696, 4
        %v9734 = vsel %vm3250, %v9733, %v9684
        %v9735 = vrot.slane %v9684, 4
        %v9736 = vsel %vm3250, %v9696, %v9735
        %v9738 = vunpack.c.l.s4 1934713408
        %v9739 = vunpack.c.0.s8 %v9738
        %v9740 = vperm.slane %v9734, %v9739
        %v9742 = vunpack.c.l.s4 1934713408
        %v9743 = vunpack.c.0.s8 %v9742
        %v9744 = vperm.slane %v9736, %v9743
        %v9745 = vrot.slane %v9716, 4
        %v9746 = vsel %vm3250, %v9745, %v9704
        %v9747 = vrot.slane %v9704, 4
        %v9748 = vsel %vm3250, %v9716, %v9747
        %v9750 = vunpack.c.l.s4 1934713408
        %v9751 = vunpack.c.0.s8 %v9750
        %v9752 = vperm.slane %v9746, %v9751
        %v9754 = vunpack.c.l.s4 1934713408
        %v9755 = vunpack.c.0.s8 %v9754
        %v9756 = vperm.slane %v9748, %v9755
        %v9757 = vrot.slane %v9720, 4
        %v9758 = vsel %vm3250, %v9757, %v9708
        %v9759 = vrot.slane %v9708, 4
        %v9760 = vsel %vm3250, %v9720, %v9759
        %v9762 = vunpack.c.l.s4 1934713408
        %v9763 = vunpack.c.0.s8 %v9762
        %v9764 = vperm.slane %v9758, %v9763
        %v9766 = vunpack.c.l.s4 1934713408
        %v9767 = vunpack.c.0.s8 %v9766
        %v9768 = vperm.slane %v9760, %v9767
        %v9769 = vrot.slane %v9752, 4
        %v9770 = vsel %vm3250, %v9769, %v9728
        %v9771 = vrot.slane %v9728, 4
        %v9772 = vsel %vm3250, %v9752, %v9771
        %v9773 = vrot.slane %v9756, 4
        %v9774 = vsel %vm3250, %v9773, %v9732
        %v9775 = vrot.slane %v9732, 4
        %v9776 = vsel %vm3250, %v9756, %v9775
        %v9777 = vrot.slane %v9764, 4
        %v9778 = vsel %vm3250, %v9777, %v9740
        %v9779 = vrot.slane %v9740, 4
        %v9780 = vsel %vm3250, %v9764, %v9779
        %v9781 = vrot.slane %v9768, 4
        %v9782 = vsel %vm3250, %v9781, %v9744
        %v9783 = vrot.slane %v9744, 4
        %v9784 = vsel %vm3250, %v9768, %v9783
        %v9785 = vrot.slane %v9305, 4
        %v9786 = vsel %vm3250, %v9785, %v9249
        %v9787 = vrot.slane %v9249, 4
        %v9788 = vsel %vm3250, %v9305, %v9787
        %v9790 = vunpack.c.l.s4 1983009808
        %v9791 = vunpack.c.0.s8 %v9790
        %v9792 = vperm.slane %v9786, %v9791
        %v9794 = vunpack.c.l.s4 1983009808
        %v9795 = vunpack.c.0.s8 %v9794
        %v9796 = vperm.slane %v9788, %v9795
        %v9797 = vrot.slane %v9333, 4
        %v9798 = vsel %vm3250, %v9797, %v9277
        %v9799 = vrot.slane %v9277, 4
        %v9800 = vsel %vm3250, %v9333, %v9799
        %v9802 = vunpack.c.l.s4 1983009808
        %v9803 = vunpack.c.0.s8 %v9802
        %v9804 = vperm.slane %v9798, %v9803
        %v9806 = vunpack.c.l.s4 1983009808
        %v9807 = vunpack.c.0.s8 %v9806
        %v9808 = vperm.slane %v9800, %v9807
        %v9809 = vrot.slane %v9417, 4
        %v9810 = vsel %vm3250, %v9809, %v9361
        %v9811 = vrot.slane %v9361, 4
        %v9812 = vsel %vm3250, %v9417, %v9811
        %v9814 = vunpack.c.l.s4 1983009808
        %v9815 = vunpack.c.0.s8 %v9814
        %v9816 = vperm.slane %v9810, %v9815
        %v9818 = vunpack.c.l.s4 1983009808
        %v9819 = vunpack.c.0.s8 %v9818
        %v9820 = vperm.slane %v9812, %v9819
        %v9821 = vrot.slane %v9445, 4
        %v9822 = vsel %vm3250, %v9821, %v9389
        %v9823 = vrot.slane %v9389, 4
        %v9824 = vsel %vm3250, %v9445, %v9823
        %v9826 = vunpack.c.l.s4 1983009808
        %v9827 = vunpack.c.0.s8 %v9826
        %v9828 = vperm.slane %v9822, %v9827
        %v9830 = vunpack.c.l.s4 1983009808
        %v9831 = vunpack.c.0.s8 %v9830
        %v9832 = vperm.slane %v9824, %v9831
        %v9833 = vrot.slane %v9804, 4
        %v9834 = vsel %vm3250, %v9833, %v9792
        %v9835 = vrot.slane %v9792, 4
        %v9836 = vsel %vm3250, %v9804, %v9835
        %v9838 = vunpack.c.l.s4 1934713408
        %v9839 = vunpack.c.0.s8 %v9838
        %v9840 = vperm.slane %v9834, %v9839
        %v9842 = vunpack.c.l.s4 1934713408
        %v9843 = vunpack.c.0.s8 %v9842
        %v9844 = vperm.slane %v9836, %v9843
        %v9845 = vrot.slane %v9808, 4
        %v9846 = vsel %vm3250, %v9845, %v9796
        %v9847 = vrot.slane %v9796, 4
        %v9848 = vsel %vm3250, %v9808, %v9847
        %v9850 = vunpack.c.l.s4 1934713408
        %v9851 = vunpack.c.0.s8 %v9850
        %v9852 = vperm.slane %v9846, %v9851
        %v9854 = vunpack.c.l.s4 1934713408
        %v9855 = vunpack.c.0.s8 %v9854
        %v9856 = vperm.slane %v9848, %v9855
        %v9857 = vrot.slane %v9828, 4
        %v9858 = vsel %vm3250, %v9857, %v9816
        %v9859 = vrot.slane %v9816, 4
        %v9860 = vsel %vm3250, %v9828, %v9859
        %v9862 = vunpack.c.l.s4 1934713408
        %v9863 = vunpack.c.0.s8 %v9862
        %v9864 = vperm.slane %v9858, %v9863
        %v9866 = vunpack.c.l.s4 1934713408
        %v9867 = vunpack.c.0.s8 %v9866
        %v9868 = vperm.slane %v9860, %v9867
        %v9869 = vrot.slane %v9832, 4
        %v9870 = vsel %vm3250, %v9869, %v9820
        %v9871 = vrot.slane %v9820, 4
        %v9872 = vsel %vm3250, %v9832, %v9871
        %v9874 = vunpack.c.l.s4 1934713408
        %v9875 = vunpack.c.0.s8 %v9874
        %v9876 = vperm.slane %v9870, %v9875
        %v9878 = vunpack.c.l.s4 1934713408
        %v9879 = vunpack.c.0.s8 %v9878
        %v9880 = vperm.slane %v9872, %v9879
        %v9881 = vrot.slane %v9864, 4
        %v9882 = vsel %vm3250, %v9881, %v9840
        %v9883 = vrot.slane %v9840, 4
        %v9884 = vsel %vm3250, %v9864, %v9883
        %v9885 = vrot.slane %v9868, 4
        %v9886 = vsel %vm3250, %v9885, %v9844
        %v9887 = vrot.slane %v9844, 4
        %v9888 = vsel %vm3250, %v9868, %v9887
        %v9889 = vrot.slane %v9876, 4
        %v9890 = vsel %vm3250, %v9889, %v9852
        %v9891 = vrot.slane %v9852, 4
        %v9892 = vsel %vm3250, %v9876, %v9891
        %v9893 = vrot.slane %v9880, 4
        %v9894 = vsel %vm3250, %v9893, %v9856
        %v9895 = vrot.slane %v9856, 4
        %v9896 = vsel %vm3250, %v9880, %v9895
        %v9897 = vrot.slane %v9529, 4
        %v9898 = vsel %vm3250, %v9897, %v9473
        %v9899 = vrot.slane %v9473, 4
        %v9900 = vsel %vm3250, %v9529, %v9899
        %v9902 = vunpack.c.l.s4 1983009808
        %v9903 = vunpack.c.0.s8 %v9902
        %v9904 = vperm.slane %v9898, %v9903
        %v9906 = vunpack.c.l.s4 1983009808
        %v9907 = vunpack.c.0.s8 %v9906
        %v9908 = vperm.slane %v9900, %v9907
        %v9909 = vrot.slane %v9557, 4
        %v9910 = vsel %vm3250, %v9909, %v9501
        %v9911 = vrot.slane %v9501, 4
        %v9912 = vsel %vm3250, %v9557, %v9911
        %v9914 = vunpack.c.l.s4 1983009808
        %v9915 = vunpack.c.0.s8 %v9914
        %v9916 = vperm.slane %v9910, %v9915
        %v9918 = vunpack.c.l.s4 1983009808
        %v9919 = vunpack.c.0.s8 %v9918
        %v9920 = vperm.slane %v9912, %v9919
        %v9921 = vrot.slane %v9641, 4
        %v9922 = vsel %vm3250, %v9921, %v9585
        %v9923 = vrot.slane %v9585, 4
        %v9924 = vsel %vm3250, %v9641, %v9923
        %v9926 = vunpack.c.l.s4 1983009808
        %v9927 = vunpack.c.0.s8 %v9926
        %v9928 = vperm.slane %v9922, %v9927
        %v9930 = vunpack.c.l.s4 1983009808
        %v9931 = vunpack.c.0.s8 %v9930
        %v9932 = vperm.slane %v9924, %v9931
        %v9933 = vrot.slane %v9669, 4
        %v9934 = vsel %vm3250, %v9933, %v9613
        %v9935 = vrot.slane %v9613, 4
        %v9936 = vsel %vm3250, %v9669, %v9935
        %v9938 = vunpack.c.l.s4 1983009808
        %v9939 = vunpack.c.0.s8 %v9938
        %v9940 = vperm.slane %v9934, %v9939
        %v9942 = vunpack.c.l.s4 1983009808
        %v9943 = vunpack.c.0.s8 %v9942
        %v9944 = vperm.slane %v9936, %v9943
        %v9945 = vrot.slane %v9916, 4
        %v9946 = vsel %vm3250, %v9945, %v9904
        %v9947 = vrot.slane %v9904, 4
        %v9948 = vsel %vm3250, %v9916, %v9947
        %v9950 = vunpack.c.l.s4 1934713408
        %v9951 = vunpack.c.0.s8 %v9950
        %v9952 = vperm.slane %v9946, %v9951
        %v9954 = vunpack.c.l.s4 1934713408
        %v9955 = vunpack.c.0.s8 %v9954
        %v9956 = vperm.slane %v9948, %v9955
        %v9957 = vrot.slane %v9920, 4
        %v9958 = vsel %vm3250, %v9957, %v9908
        %v9959 = vrot.slane %v9908, 4
        %v9960 = vsel %vm3250, %v9920, %v9959
        %v9962 = vunpack.c.l.s4 1934713408
        %v9963 = vunpack.c.0.s8 %v9962
        %v9964 = vperm.slane %v9958, %v9963
        %v9966 = vunpack.c.l.s4 1934713408
        %v9967 = vunpack.c.0.s8 %v9966
        %v9968 = vperm.slane %v9960, %v9967
        %v9969 = vrot.slane %v9940, 4
        %v9970 = vsel %vm3250, %v9969, %v9928
        %v9971 = vrot.slane %v9928, 4
        %v9972 = vsel %vm3250, %v9940, %v9971
        %v9974 = vunpack.c.l.s4 1934713408
        %v9975 = vunpack.c.0.s8 %v9974
        %v9976 = vperm.slane %v9970, %v9975
        %v9978 = vunpack.c.l.s4 1934713408
        %v9979 = vunpack.c.0.s8 %v9978
        %v9980 = vperm.slane %v9972, %v9979
        %v9981 = vrot.slane %v9944, 4
        %v9982 = vsel %vm3250, %v9981, %v9932
        %v9983 = vrot.slane %v9932, 4
        %v9984 = vsel %vm3250, %v9944, %v9983
        %v9986 = vunpack.c.l.s4 1934713408
        %v9987 = vunpack.c.0.s8 %v9986
        %v9988 = vperm.slane %v9982, %v9987
        %v9990 = vunpack.c.l.s4 1934713408
        %v9991 = vunpack.c.0.s8 %v9990
        %v9992 = vperm.slane %v9984, %v9991
        %v9993 = vrot.slane %v9976, 4
        %v9994 = vsel %vm3250, %v9993, %v9952
        %v9995 = vrot.slane %v9952, 4
        %v9996 = vsel %vm3250, %v9976, %v9995
        %v9997 = vrot.slane %v9980, 4
        %v9998 = vsel %vm3250, %v9997, %v9956
        %v9999 = vrot.slane %v9956, 4
        %v10000 = vsel %vm3250, %v9980, %v9999
        %v10001 = vrot.slane %v9988, 4
        %v10002 = vsel %vm3250, %v10001, %v9964
        %v10003 = vrot.slane %v9964, 4
        %v10004 = vsel %vm3250, %v9988, %v10003
        %v10005 = vrot.slane %v9992, 4
        %v10006 = vsel %vm3250, %v10005, %v9968
        %v10007 = vrot.slane %v9968, 4
        %v10008 = vsel %vm3250, %v9992, %v10007
        %v10009 = vrot.slane %v9083, 4
        %v10010 = vsel %vm3250, %v10009, %v9027
        %v10011 = vrot.slane %v9027, 4
        %v10012 = vsel %vm3250, %v9083, %v10011
        %v10014 = vunpack.c.l.s4 1983009808
        %v10015 = vunpack.c.0.s8 %v10014
        %v10016 = vperm.slane %v10010, %v10015
        %v10018 = vunpack.c.l.s4 1983009808
        %v10019 = vunpack.c.0.s8 %v10018
        %v10020 = vperm.slane %v10012, %v10019
        %v10021 = vrot.slane %v9111, 4
        %v10022 = vsel %vm3250, %v10021, %v9055
        %v10023 = vrot.slane %v9055, 4
        %v10024 = vsel %vm3250, %v9111, %v10023
        %v10026 = vunpack.c.l.s4 1983009808
        %v10027 = vunpack.c.0.s8 %v10026
        %v10028 = vperm.slane %v10022, %v10027
        %v10030 = vunpack.c.l.s4 1983009808
        %v10031 = vunpack.c.0.s8 %v10030
        %v10032 = vperm.slane %v10024, %v10031
        %v10033 = vrot.slane %v9195, 4
        %v10034 = vsel %vm3250, %v10033, %v9139
        %v10035 = vrot.slane %v9139, 4
        %v10036 = vsel %vm3250, %v9195, %v10035
        %v10038 = vunpack.c.l.s4 1983009808
        %v10039 = vunpack.c.0.s8 %v10038
        %v10040 = vperm.slane %v10034, %v10039
        %v10042 = vunpack.c.l.s4 1983009808
        %v10043 = vunpack.c.0.s8 %v10042
        %v10044 = vperm.slane %v10036, %v10043
        %v10045 = vrot.slane %v9223, 4
        %v10046 = vsel %vm3250, %v10045, %v9167
        %v10047 = vrot.slane %v9167, 4
        %v10048 = vsel %vm3250, %v9223, %v10047
        %v10050 = vunpack.c.l.s4 1983009808
        %v10051 = vunpack.c.0.s8 %v10050
        %v10052 = vperm.slane %v10046, %v10051
        %v10054 = vunpack.c.l.s4 1983009808
        %v10055 = vunpack.c.0.s8 %v10054
        %v10056 = vperm.slane %v10048, %v10055
        %v10057 = vrot.slane %v10028, 4
        %v10058 = vsel %vm3250, %v10057, %v10016
        %v10059 = vrot.slane %v10016, 4
        %v10060 = vsel %vm3250, %v10028, %v10059
        %v10062 = vunpack.c.l.s4 1934713408
        %v10063 = vunpack.c.0.s8 %v10062
        %v10064 = vperm.slane %v10058, %v10063
        %v10066 = vunpack.c.l.s4 1934713408
        %v10067 = vunpack.c.0.s8 %v10066
        %v10068 = vperm.slane %v10060, %v10067
        %v10069 = vrot.slane %v10032, 4
        %v10070 = vsel %vm3250, %v10069, %v10020
        %v10071 = vrot.slane %v10020, 4
        %v10072 = vsel %vm3250, %v10032, %v10071
        %v10074 = vunpack.c.l.s4 1934713408
        %v10075 = vunpack.c.0.s8 %v10074
        %v10076 = vperm.slane %v10070, %v10075
        %v10078 = vunpack.c.l.s4 1934713408
        %v10079 = vunpack.c.0.s8 %v10078
        %v10080 = vperm.slane %v10072, %v10079
        %v10081 = vrot.slane %v10052, 4
        %v10082 = vsel %vm3250, %v10081, %v10040
        %v10083 = vrot.slane %v10040, 4
        %v10084 = vsel %vm3250, %v10052, %v10083
        %v10086 = vunpack.c.l.s4 1934713408
        %v10087 = vunpack.c.0.s8 %v10086
        %v10088 = vperm.slane %v10082, %v10087
        %v10090 = vunpack.c.l.s4 1934713408
        %v10091 = vunpack.c.0.s8 %v10090
        %v10092 = vperm.slane %v10084, %v10091
        %v10093 = vrot.slane %v10056, 4
        %v10094 = vsel %vm3250, %v10093, %v10044
        %v10095 = vrot.slane %v10044, 4
        %v10096 = vsel %vm3250, %v10056, %v10095
        %v10098 = vunpack.c.l.s4 1934713408
        %v10099 = vunpack.c.0.s8 %v10098
        %v10100 = vperm.slane %v10094, %v10099
        %v10102 = vunpack.c.l.s4 1934713408
        %v10103 = vunpack.c.0.s8 %v10102
        %v10104 = vperm.slane %v10096, %v10103
        %v10105 = vrot.slane %v10088, 4
        %v10106 = vsel %vm3250, %v10105, %v10064
        %v10107 = vrot.slane %v10064, 4
        %v10108 = vsel %vm3250, %v10088, %v10107
        %v10109 = vrot.slane %v10092, 4
        %v10110 = vsel %vm3250, %v10109, %v10068
        %v10111 = vrot.slane %v10068, 4
        %v10112 = vsel %vm3250, %v10092, %v10111
        %v10113 = vrot.slane %v10100, 4
        %v10114 = vsel %vm3250, %v10113, %v10076
        %v10115 = vrot.slane %v10076, 4
        %v10116 = vsel %vm3250, %v10100, %v10115
        %v10117 = vrot.slane %v10104, 4
        %v10118 = vsel %vm3250, %v10117, %v10080
        %v10119 = vrot.slane %v10080, 4
        %v10120 = vsel %vm3250, %v10104, %v10119
        %v10121 = vrot.slane %v9307, 4
        %v10122 = vsel %vm3250, %v10121, %v9251
        %v10123 = vrot.slane %v9251, 4
        %v10124 = vsel %vm3250, %v9307, %v10123
        %v10126 = vunpack.c.l.s4 1983009808
        %v10127 = vunpack.c.0.s8 %v10126
        %v10128 = vperm.slane %v10122, %v10127
        %v10130 = vunpack.c.l.s4 1983009808
        %v10131 = vunpack.c.0.s8 %v10130
        %v10132 = vperm.slane %v10124, %v10131
        %v10133 = vrot.slane %v9335, 4
        %v10134 = vsel %vm3250, %v10133, %v9279
        %v10135 = vrot.slane %v9279, 4
        %v10136 = vsel %vm3250, %v9335, %v10135
        %v10138 = vunpack.c.l.s4 1983009808
        %v10139 = vunpack.c.0.s8 %v10138
        %v10140 = vperm.slane %v10134, %v10139
        %v10142 = vunpack.c.l.s4 1983009808
        %v10143 = vunpack.c.0.s8 %v10142
        %v10144 = vperm.slane %v10136, %v10143
        %v10145 = vrot.slane %v9419, 4
        %v10146 = vsel %vm3250, %v10145, %v9363
        %v10147 = vrot.slane %v9363, 4
        %v10148 = vsel %vm3250, %v9419, %v10147
        %v10150 = vunpack.c.l.s4 1983009808
        %v10151 = vunpack.c.0.s8 %v10150
        %v10152 = vperm.slane %v10146, %v10151
        %v10154 = vunpack.c.l.s4 1983009808
        %v10155 = vunpack.c.0.s8 %v10154
        %v10156 = vperm.slane %v10148, %v10155
        %v10157 = vrot.slane %v9447, 4
        %v10158 = vsel %vm3250, %v10157, %v9391
        %v10159 = vrot.slane %v9391, 4
        %v10160 = vsel %vm3250, %v9447, %v10159
        %v10162 = vunpack.c.l.s4 1983009808
        %v10163 = vunpack.c.0.s8 %v10162
        %v10164 = vperm.slane %v10158, %v10163
        %v10166 = vunpack.c.l.s4 1983009808
        %v10167 = vunpack.c.0.s8 %v10166
        %v10168 = vperm.slane %v10160, %v10167
        %v10169 = vrot.slane %v10140, 4
        %v10170 = vsel %vm3250, %v10169, %v10128
        %v10171 = vrot.slane %v10128, 4
        %v10172 = vsel %vm3250, %v10140, %v10171
        %v10174 = vunpack.c.l.s4 1934713408
        %v10175 = vunpack.c.0.s8 %v10174
        %v10176 = vperm.slane %v10170, %v10175
        %v10178 = vunpack.c.l.s4 1934713408
        %v10179 = vunpack.c.0.s8 %v10178
        %v10180 = vperm.slane %v10172, %v10179
        %v10181 = vrot.slane %v10144, 4
        %v10182 = vsel %vm3250, %v10181, %v10132
        %v10183 = vrot.slane %v10132, 4
        %v10184 = vsel %vm3250, %v10144, %v10183
        %v10186 = vunpack.c.l.s4 1934713408
        %v10187 = vunpack.c.0.s8 %v10186
        %v10188 = vperm.slane %v10182, %v10187
        %v10190 = vunpack.c.l.s4 1934713408
        %v10191 = vunpack.c.0.s8 %v10190
        %v10192 = vperm.slane %v10184, %v10191
        %v10193 = vrot.slane %v10164, 4
        %v10194 = vsel %vm3250, %v10193, %v10152
        %v10195 = vrot.slane %v10152, 4
        %v10196 = vsel %vm3250, %v10164, %v10195
        %v10198 = vunpack.c.l.s4 1934713408
        %v10199 = vunpack.c.0.s8 %v10198
        %v10200 = vperm.slane %v10194, %v10199
        %v10202 = vunpack.c.l.s4 1934713408
        %v10203 = vunpack.c.0.s8 %v10202
        %v10204 = vperm.slane %v10196, %v10203
        %v10205 = vrot.slane %v10168, 4
        %v10206 = vsel %vm3250, %v10205, %v10156
        %v10207 = vrot.slane %v10156, 4
        %v10208 = vsel %vm3250, %v10168, %v10207
        %v10210 = vunpack.c.l.s4 1934713408
        %v10211 = vunpack.c.0.s8 %v10210
        %v10212 = vperm.slane %v10206, %v10211
        %v10214 = vunpack.c.l.s4 1934713408
        %v10215 = vunpack.c.0.s8 %v10214
        %v10216 = vperm.slane %v10208, %v10215
        %v10217 = vrot.slane %v10200, 4
        %v10218 = vsel %vm3250, %v10217, %v10176
        %v10219 = vrot.slane %v10176, 4
        %v10220 = vsel %vm3250, %v10200, %v10219
        %v10221 = vrot.slane %v10204, 4
        %v10222 = vsel %vm3250, %v10221, %v10180
        %v10223 = vrot.slane %v10180, 4
        %v10224 = vsel %vm3250, %v10204, %v10223
        %v10225 = vrot.slane %v10212, 4
        %v10226 = vsel %vm3250, %v10225, %v10188
        %v10227 = vrot.slane %v10188, 4
        %v10228 = vsel %vm3250, %v10212, %v10227
        %v10229 = vrot.slane %v10216, 4
        %v10230 = vsel %vm3250, %v10229, %v10192
        %v10231 = vrot.slane %v10192, 4
        %v10232 = vsel %vm3250, %v10216, %v10231
        %v10233 = vrot.slane %v9531, 4
        %v10234 = vsel %vm3250, %v10233, %v9475
        %v10235 = vrot.slane %v9475, 4
        %v10236 = vsel %vm3250, %v9531, %v10235
        %v10238 = vunpack.c.l.s4 1983009808
        %v10239 = vunpack.c.0.s8 %v10238
        %v10240 = vperm.slane %v10234, %v10239
        %v10242 = vunpack.c.l.s4 1983009808
        %v10243 = vunpack.c.0.s8 %v10242
        %v10244 = vperm.slane %v10236, %v10243
        %v10245 = vrot.slane %v9559, 4
        %v10246 = vsel %vm3250, %v10245, %v9503
        %v10247 = vrot.slane %v9503, 4
        %v10248 = vsel %vm3250, %v9559, %v10247
        %v10250 = vunpack.c.l.s4 1983009808
        %v10251 = vunpack.c.0.s8 %v10250
        %v10252 = vperm.slane %v10246, %v10251
        %v10254 = vunpack.c.l.s4 1983009808
        %v10255 = vunpack.c.0.s8 %v10254
        %v10256 = vperm.slane %v10248, %v10255
        %v10257 = vrot.slane %v9643, 4
        %v10258 = vsel %vm3250, %v10257, %v9587
        %v10259 = vrot.slane %v9587, 4
        %v10260 = vsel %vm3250, %v9643, %v10259
        %v10262 = vunpack.c.l.s4 1983009808
        %v10263 = vunpack.c.0.s8 %v10262
        %v10264 = vperm.slane %v10258, %v10263
        %v10266 = vunpack.c.l.s4 1983009808
        %v10267 = vunpack.c.0.s8 %v10266
        %v10268 = vperm.slane %v10260, %v10267
        %v10269 = vrot.slane %v9671, 4
        %v10270 = vsel %vm3250, %v10269, %v9615
        %v10271 = vrot.slane %v9615, 4
        %v10272 = vsel %vm3250, %v9671, %v10271
        %v10274 = vunpack.c.l.s4 1983009808
        %v10275 = vunpack.c.0.s8 %v10274
        %v10276 = vperm.slane %v10270, %v10275
        %v10278 = vunpack.c.l.s4 1983009808
        %v10279 = vunpack.c.0.s8 %v10278
        %v10280 = vperm.slane %v10272, %v10279
        %v10281 = vrot.slane %v10252, 4
        %v10282 = vsel %vm3250, %v10281, %v10240
        %v10283 = vrot.slane %v10240, 4
        %v10284 = vsel %vm3250, %v10252, %v10283
        %v10286 = vunpack.c.l.s4 1934713408
        %v10287 = vunpack.c.0.s8 %v10286
        %v10288 = vperm.slane %v10282, %v10287
        %v10290 = vunpack.c.l.s4 1934713408
        %v10291 = vunpack.c.0.s8 %v10290
        %v10292 = vperm.slane %v10284, %v10291
        %v10293 = vrot.slane %v10256, 4
        %v10294 = vsel %vm3250, %v10293, %v10244
        %v10295 = vrot.slane %v10244, 4
        %v10296 = vsel %vm3250, %v10256, %v10295
        %v10298 = vunpack.c.l.s4 1934713408
        %v10299 = vunpack.c.0.s8 %v10298
        %v10300 = vperm.slane %v10294, %v10299
        %v10302 = vunpack.c.l.s4 1934713408
        %v10303 = vunpack.c.0.s8 %v10302
        %v10304 = vperm.slane %v10296, %v10303
        %v10305 = vrot.slane %v10276, 4
        %v10306 = vsel %vm3250, %v10305, %v10264
        %v10307 = vrot.slane %v10264, 4
        %v10308 = vsel %vm3250, %v10276, %v10307
        %v10310 = vunpack.c.l.s4 1934713408
        %v10311 = vunpack.c.0.s8 %v10310
        %v10312 = vperm.slane %v10306, %v10311
        %v10314 = vunpack.c.l.s4 1934713408
        %v10315 = vunpack.c.0.s8 %v10314
        %v10316 = vperm.slane %v10308, %v10315
        %v10317 = vrot.slane %v10280, 4
        %v10318 = vsel %vm3250, %v10317, %v10268
        %v10319 = vrot.slane %v10268, 4
        %v10320 = vsel %vm3250, %v10280, %v10319
        %v10322 = vunpack.c.l.s4 1934713408
        %v10323 = vunpack.c.0.s8 %v10322
        %v10324 = vperm.slane %v10318, %v10323
        %v10326 = vunpack.c.l.s4 1934713408
        %v10327 = vunpack.c.0.s8 %v10326
        %v10328 = vperm.slane %v10320, %v10327
        %v10329 = vrot.slane %v10312, 4
        %v10330 = vsel %vm3250, %v10329, %v10288
        %v10331 = vrot.slane %v10288, 4
        %v10332 = vsel %vm3250, %v10312, %v10331
        %v10333 = vrot.slane %v10316, 4
        %v10334 = vsel %vm3250, %v10333, %v10292
        %v10335 = vrot.slane %v10292, 4
        %v10336 = vsel %vm3250, %v10316, %v10335
        %v10337 = vrot.slane %v10324, 4
        %v10338 = vsel %vm3250, %v10337, %v10300
        %v10339 = vrot.slane %v10300, 4
        %v10340 = vsel %vm3250, %v10324, %v10339
        %v10341 = vrot.slane %v10328, 4
        %v10342 = vsel %vm3250, %v10341, %v10304
        %v10343 = vrot.slane %v10304, 4
        %v10344 = vsel %vm3250, %v10328, %v10343
        %s10345 = smul.u32 %s2953, 24
        %s10346 = scalar_lea.vmem %s219, %s10345 [#allocation8]
        %v10347 = vld [vmem:[%s10346] sm:$0xff]
        %v10348 = vld [vmem:[%s10346 + $0x8] sm:$0xff]
        %v10349 = vld [vmem:[%s10346 + $0x10] sm:$0xff]
        %v10350 = vld [vmem:[%s10346 + $0x18] sm:$0xff]
        %v10351 = vld [vmem:[%s10346 + $0x20] sm:$0xff]
        %v10352 = vld [vmem:[%s10346 + $0x28] sm:$0xff]
        %v10353 = vld [vmem:[%s10346 + $0x30] sm:$0xff]
        %v10354 = vld [vmem:[%s10346 + $0x38] sm:$0xff]
        %v10355 = vld [vmem:[%s10346 + $0x40] sm:$0xff]
        %v10356 = vld [vmem:[%s10346 + $0x48] sm:$0xff]
        %v10357 = vld [vmem:[%s10346 + $0x50] sm:$0xff]
        %v10358 = vld [vmem:[%s10346 + $0x58] sm:$0xff]
        %v10359 = vld [vmem:[%s10346 + $0x60] sm:$0xff]
        %v10360 = vld [vmem:[%s10346 + $0x68] sm:$0xff]
        %v10361 = vld [vmem:[%s10346 + $0x70] sm:$0xff]
        %v10362 = vld [vmem:[%s10346 + $0x78] sm:$0xff]
        %v10363 = vld [vmem:[%s10346 + $0x80] sm:$0xff]
        %v10364 = vld [vmem:[%s10346 + $0x88] sm:$0xff]
        %v10365 = vld [vmem:[%s10346 + $0x90] sm:$0xff]
        %v10366 = vld [vmem:[%s10346 + $0x98] sm:$0xff]
        %v10367 = vld [vmem:[%s10346 + $0xa0] sm:$0xff]
        %v10368 = vld [vmem:[%s10346 + $0xa8] sm:$0xff]
        %v10369 = vld [vmem:[%s10346 + $0xb0] sm:$0xff]
        %v10370 = vld [vmem:[%s10346 + $0xb8] sm:$0xff]
        %v10371 = vld [vmem:[%s10346 + $0xc0] sm:$0xff]
        %v10372 = vld [vmem:[%s10346 + $0xc8] sm:$0xff]
        %v10373 = vld [vmem:[%s10346 + $0xd0] sm:$0xff]
        %v10374 = vld [vmem:[%s10346 + $0xd8] sm:$0xff]
        %v10375 = vld [vmem:[%s10346 + $0xe0] sm:$0xff]
        %v10376 = vld [vmem:[%s10346 + $0xe8] sm:$0xff]
        %v10377 = vld [vmem:[%s10346 + $0xf0] sm:$0xff]
        %v10378 = vld [vmem:[%s10346 + $0xf8] sm:$0xff]
        %v10379 = vld [vmem:[%s10346 + $0x100] sm:$0xff]
        %v10380 = vld [vmem:[%s10346 + $0x108] sm:$0xff]
        %v10381 = vld [vmem:[%s10346 + $0x110] sm:$0xff]
        %v10382 = vld [vmem:[%s10346 + $0x118] sm:$0xff]
        %v10383 = vld [vmem:[%s10346 + $0x120] sm:$0xff]
        %v10384 = vld [vmem:[%s10346 + $0x128] sm:$0xff]
        %v10385 = vld [vmem:[%s10346 + $0x130] sm:$0xff]
        %v10386 = vld [vmem:[%s10346 + $0x138] sm:$0xff]
        %v10387 = vld [vmem:[%s10346 + $0x140] sm:$0xff]
        %v10388 = vld [vmem:[%s10346 + $0x148] sm:$0xff]
        %v10389 = vld [vmem:[%s10346 + $0x150] sm:$0xff]
        %v10390 = vld [vmem:[%s10346 + $0x158] sm:$0xff]
        %v10391 = vld [vmem:[%s10346 + $0x160] sm:$0xff]
        %v10392 = vld [vmem:[%s10346 + $0x168] sm:$0xff]
        %v10393 = vld [vmem:[%s10346 + $0x170] sm:$0xff]
        %v10394 = vld [vmem:[%s10346 + $0x178] sm:$0xff]
        %s10395 = sld [smem:[#allocation7]]
        %v10396 = vadd.f32 %v9770, %v8285
        %v10397 = vadd.f32 %v9882, %v8287
        %v10398 = vadd.f32 %v9994, %v8290
        %v10399 = vadd.f32 %v9772, %v8329
        %v10400 = vadd.f32 %v9884, %v8331
        %v10401 = vadd.f32 %v9996, %v8334
        %v10402 = vadd.f32 %v9774, %v8373
        %v10403 = vadd.f32 %v9886, %v8375
        %v10404 = vadd.f32 %v9998, %v8378
        %v10405 = vadd.f32 %v9776, %v8417
        %v10406 = vadd.f32 %v9888, %v8419
        %v10407 = vadd.f32 %v10000, %v8422
        %v10408 = vadd.f32 %v9778, %v8461
        %v10409 = vadd.f32 %v9890, %v8463
        %v10410 = vadd.f32 %v10002, %v8466
        %v10411 = vadd.f32 %v9780, %v8505
        %v10412 = vadd.f32 %v9892, %v8507
        %v10413 = vadd.f32 %v10004, %v8510
        %v10414 = vadd.f32 %v9782, %v8549
        %v10415 = vadd.f32 %v9894, %v8551
        %v10416 = vadd.f32 %v10006, %v8554
        %v10417 = vadd.f32 %v9784, %v8593
        %v10418 = vadd.f32 %v9896, %v8595
        %v10419 = vadd.f32 %v10008, %v8598
        %v10420 = vadd.f32 %v10106, %v8637
        %v10421 = vadd.f32 %v10218, %v8639
        %v10422 = vadd.f32 %v10330, %v8642
        %v10423 = vadd.f32 %v10108, %v8681
        %v10424 = vadd.f32 %v10220, %v8683
        %v10425 = vadd.f32 %v10332, %v8686
        %v10426 = vadd.f32 %v10110, %v8725
        %v10427 = vadd.f32 %v10222, %v8727
        %v10428 = vadd.f32 %v10334, %v8730
        %v10429 = vadd.f32 %v10112, %v8769
        %v10430 = vadd.f32 %v10224, %v8771
        %v10431 = vadd.f32 %v10336, %v8774
        %v10432 = vadd.f32 %v10114, %v8813
        %v10433 = vadd.f32 %v10226, %v8815
        %v10434 = vadd.f32 %v10338, %v8818
        %v10435 = vadd.f32 %v10116, %v8857
        %v10436 = vadd.f32 %v10228, %v8859
        %v10437 = vadd.f32 %v10340, %v8862
        %v10438 = vadd.f32 %v10118, %v8901
        %v10439 = vadd.f32 %v10230, %v8903
        %v10440 = vadd.f32 %v10342, %v8906
        %v10441 = vadd.f32 %v10120, %v8945
        %v10442 = vadd.f32 %v10232, %v8947
        %v10443 = vadd.f32 %v10344, %v8950
        %10445 = vset.pattern.permute.xlu0 0
        %10446 = vperm.xlu0 %10445, %v8152
        %v10447 = vpop.permute.xlu0 %10446
        %10450 = vset.pattern.permute.xlu0 0
        %10451 = vperm.xlu0 %10450, %v8153
        %v10452 = vpop.permute.xlu0 %10451
        %10455 = vset.pattern.permute.xlu0 0
        %10456 = vperm.xlu0 %10455, %v8154
        %v10457 = vpop.permute.xlu0 %10456
        %10460 = vset.pattern.permute.xlu0 0
        %10461 = vperm.xlu0 %10460, %v8155
        %v10462 = vpop.permute.xlu0 %10461
        %10465 = vset.pattern.permute.xlu0 0
        %10466 = vperm.xlu0 %10465, %v8156
        %v10467 = vpop.permute.xlu0 %10466
        %10470 = vset.pattern.permute.xlu0 0
        %10471 = vperm.xlu0 %10470, %v8157
        %v10472 = vpop.permute.xlu0 %10471
        %10475 = vset.pattern.permute.xlu0 0
        %10476 = vperm.xlu0 %10475, %v8158
        %v10477 = vpop.permute.xlu0 %10476
        %10480 = vset.pattern.permute.xlu0 0
        %10481 = vperm.xlu0 %10480, %v8159
        %v10482 = vpop.permute.xlu0 %10481
        %10485 = vset.pattern.permute.xlu0 0
        %10486 = vperm.xlu0 %10485, %v8160
        %v10487 = vpop.permute.xlu0 %10486
        %10490 = vset.pattern.permute.xlu0 0
        %10491 = vperm.xlu0 %10490, %v8161
        %v10492 = vpop.permute.xlu0 %10491
        %10495 = vset.pattern.permute.xlu0 0
        %10496 = vperm.xlu0 %10495, %v8162
        %v10497 = vpop.permute.xlu0 %10496
        %10500 = vset.pattern.permute.xlu0 0
        %10501 = vperm.xlu0 %10500, %v8163
        %v10502 = vpop.permute.xlu0 %10501
        %10505 = vset.pattern.permute.xlu0 0
        %10506 = vperm.xlu0 %10505, %v8164
        %v10507 = vpop.permute.xlu0 %10506
        %10510 = vset.pattern.permute.xlu0 0
        %10511 = vperm.xlu0 %10510, %v8165
        %v10512 = vpop.permute.xlu0 %10511
        %10515 = vset.pattern.permute.xlu0 0
        %10516 = vperm.xlu0 %10515, %v8166
        %v10517 = vpop.permute.xlu0 %10516
        %10520 = vset.pattern.permute.xlu0 0
        %10521 = vperm.xlu0 %10520, %v8167
        %v10522 = vpop.permute.xlu0 %10521
        %10525 = vset.pattern.permute.xlu0 0
        %10526 = vperm.xlu0 %10525, %v8168
        %v10527 = vpop.permute.xlu0 %10526
        %10530 = vset.pattern.permute.xlu0 0
        %10531 = vperm.xlu0 %10530, %v8169
        %v10532 = vpop.permute.xlu0 %10531
        %10535 = vset.pattern.permute.xlu0 0
        %10536 = vperm.xlu0 %10535, %v8170
        %v10537 = vpop.permute.xlu0 %10536
        %10540 = vset.pattern.permute.xlu0 0
        %10541 = vperm.xlu0 %10540, %v8171
        %v10542 = vpop.permute.xlu0 %10541
        %10545 = vset.pattern.permute.xlu0 0
        %10546 = vperm.xlu0 %10545, %v8172
        %v10547 = vpop.permute.xlu0 %10546
        %10550 = vset.pattern.permute.xlu0 0
        %10551 = vperm.xlu0 %10550, %v8173
        %v10552 = vpop.permute.xlu0 %10551
        %10555 = vset.pattern.permute.xlu0 0
        %10556 = vperm.xlu0 %10555, %v8174
        %v10557 = vpop.permute.xlu0 %10556
        %10560 = vset.pattern.permute.xlu0 0
        %10561 = vperm.xlu0 %10560, %v8175
        %v10562 = vpop.permute.xlu0 %10561
        %10565 = vset.pattern.permute.xlu0 0
        %10566 = vperm.xlu0 %10565, %v8176
        %v10567 = vpop.permute.xlu0 %10566
        %10570 = vset.pattern.permute.xlu0 0
        %10571 = vperm.xlu0 %10570, %v8177
        %v10572 = vpop.permute.xlu0 %10571
        %10575 = vset.pattern.permute.xlu0 0
        %10576 = vperm.xlu0 %10575, %v8178
        %v10577 = vpop.permute.xlu0 %10576
        %10580 = vset.pattern.permute.xlu0 0
        %10581 = vperm.xlu0 %10580, %v8179
        %v10582 = vpop.permute.xlu0 %10581
        %10585 = vset.pattern.permute.xlu0 0
        %10586 = vperm.xlu0 %10585, %v8180
        %v10587 = vpop.permute.xlu0 %10586
        %10590 = vset.pattern.permute.xlu0 0
        %10591 = vperm.xlu0 %10590, %v8181
        %v10592 = vpop.permute.xlu0 %10591
        %10595 = vset.pattern.permute.xlu0 0
        %10596 = vperm.xlu0 %10595, %v8182
        %v10597 = vpop.permute.xlu0 %10596
        %10600 = vset.pattern.permute.xlu0 0
        %10601 = vperm.xlu0 %10600, %v8183
        %v10602 = vpop.permute.xlu0 %10601
        %10605 = vset.pattern.permute.xlu0 0
        %10606 = vperm.xlu0 %10605, %v8184
        %v10607 = vpop.permute.xlu0 %10606
        %10610 = vset.pattern.permute.xlu0 0
        %10611 = vperm.xlu0 %10610, %v8185
        %v10612 = vpop.permute.xlu0 %10611
        %10615 = vset.pattern.permute.xlu0 0
        %10616 = vperm.xlu0 %10615, %v8186
        %v10617 = vpop.permute.xlu0 %10616
        %10620 = vset.pattern.permute.xlu0 0
        %10621 = vperm.xlu0 %10620, %v8187
        %v10622 = vpop.permute.xlu0 %10621
        %10625 = vset.pattern.permute.xlu0 0
        %10626 = vperm.xlu0 %10625, %v8188
        %v10627 = vpop.permute.xlu0 %10626
        %10630 = vset.pattern.permute.xlu0 0
        %10631 = vperm.xlu0 %10630, %v8189
        %v10632 = vpop.permute.xlu0 %10631
        %10635 = vset.pattern.permute.xlu0 0
        %10636 = vperm.xlu0 %10635, %v8190
        %v10637 = vpop.permute.xlu0 %10636
        %10640 = vset.pattern.permute.xlu0 0
        %10641 = vperm.xlu0 %10640, %v8191
        %v10642 = vpop.permute.xlu0 %10641
        %10645 = vset.pattern.permute.xlu0 0
        %10646 = vperm.xlu0 %10645, %v8192
        %v10647 = vpop.permute.xlu0 %10646
        %10650 = vset.pattern.permute.xlu0 0
        %10651 = vperm.xlu0 %10650, %v8193
        %v10652 = vpop.permute.xlu0 %10651
        %10655 = vset.pattern.permute.xlu0 0
        %10656 = vperm.xlu0 %10655, %v8194
        %v10657 = vpop.permute.xlu0 %10656
        %10660 = vset.pattern.permute.xlu0 0
        %10661 = vperm.xlu0 %10660, %v8195
        %v10662 = vpop.permute.xlu0 %10661
        %10665 = vset.pattern.permute.xlu0 0
        %10666 = vperm.xlu0 %10665, %v8196
        %v10667 = vpop.permute.xlu0 %10666
        %10670 = vset.pattern.permute.xlu0 0
        %10671 = vperm.xlu0 %10670, %v8197
        %v10672 = vpop.permute.xlu0 %10671
        %10675 = vset.pattern.permute.xlu0 0
        %10676 = vperm.xlu0 %10675, %v8198
        %v10677 = vpop.permute.xlu0 %10676
        %10680 = vset.pattern.permute.xlu0 0
        %10681 = vperm.xlu0 %10680, %v8199
        %v10682 = vpop.permute.xlu0 %10681
        %v10684 = vmul.f32 %v10396, %v10447
        %v10685 = vmul.f32 %v10397, %v10452
        %v10686 = vmul.f32 %v10398, %v10457
        %v10687 = vmul.f32 %v10399, %v10462
        %v10688 = vmul.f32 %v10400, %v10467
        %v10689 = vmul.f32 %v10401, %v10472
        %v10690 = vmul.f32 %v10402, %v10477
        %v10691 = vmul.f32 %v10403, %v10482
        %v10692 = vmul.f32 %v10404, %v10487
        %v10693 = vmul.f32 %v10405, %v10492
        %v10694 = vmul.f32 %v10406, %v10497
        %v10695 = vmul.f32 %v10407, %v10502
        %v10696 = vmul.f32 %v10408, %v10507
        %v10697 = vmul.f32 %v10409, %v10512
        %v10698 = vmul.f32 %v10410, %v10517
        %v10699 = vmul.f32 %v10411, %v10522
        %v10700 = vmul.f32 %v10412, %v10527
        %v10701 = vmul.f32 %v10413, %v10532
        %v10702 = vmul.f32 %v10414, %v10537
        %v10703 = vmul.f32 %v10415, %v10542
        %v10704 = vmul.f32 %v10416, %v10547
        %v10705 = vmul.f32 %v10417, %v10552
        %v10706 = vmul.f32 %v10418, %v10557
        %v10707 = vmul.f32 %v10419, %v10562
        %v10708 = vmul.f32 %v10420, %v10567
        %v10709 = vmul.f32 %v10421, %v10572
        %v10710 = vmul.f32 %v10422, %v10577
        %v10711 = vmul.f32 %v10423, %v10582
        %v10712 = vmul.f32 %v10424, %v10587
        %v10713 = vmul.f32 %v10425, %v10592
        %v10714 = vmul.f32 %v10426, %v10597
        %v10715 = vmul.f32 %v10427, %v10602
        %v10716 = vmul.f32 %v10428, %v10607
        %v10717 = vmul.f32 %v10429, %v10612
        %v10718 = vmul.f32 %v10430, %v10617
        %v10719 = vmul.f32 %v10431, %v10622
        %v10720 = vmul.f32 %v10432, %v10627
        %v10721 = vmul.f32 %v10433, %v10632
        %v10722 = vmul.f32 %v10434, %v10637
        %v10723 = vmul.f32 %v10435, %v10642
        %v10724 = vmul.f32 %v10436, %v10647
        %v10725 = vmul.f32 %v10437, %v10652
        %v10726 = vmul.f32 %v10438, %v10657
        %v10727 = vmul.f32 %v10439, %v10662
        %v10728 = vmul.f32 %v10440, %v10667
        %v10729 = vmul.f32 %v10441, %v10672
        %v10730 = vmul.f32 %v10442, %v10677
        %v10731 = vmul.f32 %v10443, %v10682
        %v10732 = vstv %s10395
        %v10733 = vmul.f32 %v10732, %v10684
        %v10734 = vmul.f32 %v10732, %v10685
        %v10735 = vmul.f32 %v10732, %v10686
        %v10736 = vmul.f32 %v10732, %v10687
        %v10737 = vmul.f32 %v10732, %v10688
        %v10738 = vmul.f32 %v10732, %v10689
        %v10739 = vmul.f32 %v10732, %v10690
        %v10740 = vmul.f32 %v10732, %v10691
        %v10741 = vmul.f32 %v10732, %v10692
        %v10742 = vmul.f32 %v10732, %v10693
        %v10743 = vmul.f32 %v10732, %v10694
        %v10744 = vmul.f32 %v10732, %v10695
        %v10745 = vmul.f32 %v10732, %v10696
        %v10746 = vmul.f32 %v10732, %v10697
        %v10747 = vmul.f32 %v10732, %v10698
        %v10748 = vmul.f32 %v10732, %v10699
        %v10749 = vmul.f32 %v10732, %v10700
        %v10750 = vmul.f32 %v10732, %v10701
        %v10751 = vmul.f32 %v10732, %v10702
        %v10752 = vmul.f32 %v10732, %v10703
        %v10753 = vmul.f32 %v10732, %v10704
        %v10754 = vmul.f32 %v10732, %v10705
        %v10755 = vmul.f32 %v10732, %v10706
        %v10756 = vmul.f32 %v10732, %v10707
        %v10757 = vmul.f32 %v10732, %v10708
        %v10758 = vmul.f32 %v10732, %v10709
        %v10759 = vmul.f32 %v10732, %v10710
        %v10760 = vmul.f32 %v10732, %v10711
        %v10761 = vmul.f32 %v10732, %v10712
        %v10762 = vmul.f32 %v10732, %v10713
        %v10763 = vmul.f32 %v10732, %v10714
        %v10764 = vmul.f32 %v10732, %v10715
        %v10765 = vmul.f32 %v10732, %v10716
        %v10766 = vmul.f32 %v10732, %v10717
        %v10767 = vmul.f32 %v10732, %v10718
        %v10768 = vmul.f32 %v10732, %v10719
        %v10769 = vmul.f32 %v10732, %v10720
        %v10770 = vmul.f32 %v10732, %v10721
        %v10771 = vmul.f32 %v10732, %v10722
        %v10772 = vmul.f32 %v10732, %v10723
        %v10773 = vmul.f32 %v10732, %v10724
        %v10774 = vmul.f32 %v10732, %v10725
        %v10775 = vmul.f32 %v10732, %v10726
        %v10776 = vmul.f32 %v10732, %v10727
        %v10777 = vmul.f32 %v10732, %v10728
        %v10778 = vmul.f32 %v10732, %v10729
        %v10779 = vmul.f32 %v10732, %v10730
        %v10780 = vmul.f32 %v10732, %v10731
        %v10781 = vadd.f32 %v10733, %v10347
        %v10782 = vadd.f32 %v10734, %v10348
        %v10783 = vadd.f32 %v10735, %v10349
        %v10784 = vadd.f32 %v10736, %v10350
        %v10785 = vadd.f32 %v10737, %v10351
        %v10786 = vadd.f32 %v10738, %v10352
        %v10787 = vadd.f32 %v10739, %v10353
        %v10788 = vadd.f32 %v10740, %v10354
        %v10789 = vadd.f32 %v10741, %v10355
        %v10790 = vadd.f32 %v10742, %v10356
        %v10791 = vadd.f32 %v10743, %v10357
        %v10792 = vadd.f32 %v10744, %v10358
        %v10793 = vadd.f32 %v10745, %v10359
        %v10794 = vadd.f32 %v10746, %v10360
        %v10795 = vadd.f32 %v10747, %v10361
        %v10796 = vadd.f32 %v10748, %v10362
        %v10797 = vadd.f32 %v10749, %v10363
        %v10798 = vadd.f32 %v10750, %v10364
        %v10799 = vadd.f32 %v10751, %v10365
        %v10800 = vadd.f32 %v10752, %v10366
        %v10801 = vadd.f32 %v10753, %v10367
        %v10802 = vadd.f32 %v10754, %v10368
        %v10803 = vadd.f32 %v10755, %v10369
        %v10804 = vadd.f32 %v10756, %v10370
        %v10805 = vadd.f32 %v10757, %v10371
        %v10806 = vadd.f32 %v10758, %v10372
        %v10807 = vadd.f32 %v10759, %v10373
        %v10808 = vadd.f32 %v10760, %v10374
        %v10809 = vadd.f32 %v10761, %v10375
        %v10810 = vadd.f32 %v10762, %v10376
        %v10811 = vadd.f32 %v10763, %v10377
        %v10812 = vadd.f32 %v10764, %v10378
        %v10813 = vadd.f32 %v10765, %v10379
        %v10814 = vadd.f32 %v10766, %v10380
        %v10815 = vadd.f32 %v10767, %v10381
        %v10816 = vadd.f32 %v10768, %v10382
        %v10817 = vadd.f32 %v10769, %v10383
        %v10818 = vadd.f32 %v10770, %v10384
        %v10819 = vadd.f32 %v10771, %v10385
        %v10820 = vadd.f32 %v10772, %v10386
        %v10821 = vadd.f32 %v10773, %v10387
        %v10822 = vadd.f32 %v10774, %v10388
        %v10823 = vadd.f32 %v10775, %v10389
        %v10824 = vadd.f32 %v10776, %v10390
        %v10825 = vadd.f32 %v10777, %v10391
        %v10826 = vadd.f32 %v10778, %v10392
        %v10827 = vadd.f32 %v10779, %v10393
        %v10828 = vadd.f32 %v10780, %v10394
        %vm10829 = vcmask 261120
        %10830 = vst.msk [vmem:[%s249] sm:$0xff] %vm10829, %v10781
        %10831 = vst.msk [vmem:[%s249 + $0x8] sm:$0xff] %vm10829, %v10782
        %10832 = vst.msk [vmem:[%s249 + $0x10] sm:$0xff] %vm10829, %v10783
        %10833 = vst.msk [vmem:[%s249 + $0x18] sm:$0xff] %vm10829, %v10784
        %10834 = vst.msk [vmem:[%s249 + $0x20] sm:$0xff] %vm10829, %v10785
        %10835 = vst.msk [vmem:[%s249 + $0x28] sm:$0xff] %vm10829, %v10786
        %10836 = vst.msk [vmem:[%s249 + $0x30] sm:$0xff] %vm10829, %v10787
        %10837 = vst.msk [vmem:[%s249 + $0x38] sm:$0xff] %vm10829, %v10788
        %10838 = vst.msk [vmem:[%s249 + $0x40] sm:$0xff] %vm10829, %v10789
        %10839 = vst.msk [vmem:[%s249 + $0x48] sm:$0xff] %vm10829, %v10790
        %10840 = vst.msk [vmem:[%s249 + $0x50] sm:$0xff] %vm10829, %v10791
        %10841 = vst.msk [vmem:[%s249 + $0x58] sm:$0xff] %vm10829, %v10792
        %10842 = vst.msk [vmem:[%s249 + $0x60] sm:$0xff] %vm10829, %v10793
        %10843 = vst.msk [vmem:[%s249 + $0x68] sm:$0xff] %vm10829, %v10794
        %10844 = vst.msk [vmem:[%s249 + $0x70] sm:$0xff] %vm10829, %v10795
        %10845 = vst.msk [vmem:[%s249 + $0x78] sm:$0xff] %vm10829, %v10796
        %10846 = vst.msk [vmem:[%s249 + $0x80] sm:$0xff] %vm10829, %v10797
        %10847 = vst.msk [vmem:[%s249 + $0x88] sm:$0xff] %vm10829, %v10798
        %10848 = vst.msk [vmem:[%s249 + $0x90] sm:$0xff] %vm10829, %v10799
        %10849 = vst.msk [vmem:[%s249 + $0x98] sm:$0xff] %vm10829, %v10800
        %10850 = vst.msk [vmem:[%s249 + $0xa0] sm:$0xff] %vm10829, %v10801
        %10851 = vst.msk [vmem:[%s249 + $0xa8] sm:$0xff] %vm10829, %v10802
        %10852 = vst.msk [vmem:[%s249 + $0xb0] sm:$0xff] %vm10829, %v10803
        %10853 = vst.msk [vmem:[%s249 + $0xb8] sm:$0xff] %vm10829, %v10804
        %10854 = vst.msk [vmem:[%s249 + $0xc0] sm:$0xff] %vm10829, %v10805
        %10855 = vst.msk [vmem:[%s249 + $0xc8] sm:$0xff] %vm10829, %v10806
        %10856 = vst.msk [vmem:[%s249 + $0xd0] sm:$0xff] %vm10829, %v10807
        %10857 = vst.msk [vmem:[%s249 + $0xd8] sm:$0xff] %vm10829, %v10808
        %10858 = vst.msk [vmem:[%s249 + $0xe0] sm:$0xff] %vm10829, %v10809
        %10859 = vst.msk [vmem:[%s249 + $0xe8] sm:$0xff] %vm10829, %v10810
        %10860 = vst.msk [vmem:[%s249 + $0xf0] sm:$0xff] %vm10829, %v10811
        %10861 = vst.msk [vmem:[%s249 + $0xf8] sm:$0xff] %vm10829, %v10812
        %10862 = vst.msk [vmem:[%s249 + $0x100] sm:$0xff] %vm10829, %v10813
        %10863 = vst.msk [vmem:[%s249 + $0x108] sm:$0xff] %vm10829, %v10814
        %10864 = vst.msk [vmem:[%s249 + $0x110] sm:$0xff] %vm10829, %v10815
        %10865 = vst.msk [vmem:[%s249 + $0x118] sm:$0xff] %vm10829, %v10816
        %10866 = vst.msk [vmem:[%s249 + $0x120] sm:$0xff] %vm10829, %v10817
        %10867 = vst.msk [vmem:[%s249 + $0x128] sm:$0xff] %vm10829, %v10818
        %10868 = vst.msk [vmem:[%s249 + $0x130] sm:$0xff] %vm10829, %v10819
        %10869 = vst.msk [vmem:[%s249 + $0x138] sm:$0xff] %vm10829, %v10820
        %10870 = vst.msk [vmem:[%s249 + $0x140] sm:$0xff] %vm10829, %v10821
        %10871 = vst.msk [vmem:[%s249 + $0x148] sm:$0xff] %vm10829, %v10822
        %10872 = vst.msk [vmem:[%s249 + $0x150] sm:$0xff] %vm10829, %v10823
        %10873 = vst.msk [vmem:[%s249 + $0x158] sm:$0xff] %vm10829, %v10824
        %10874 = vst.msk [vmem:[%s249 + $0x160] sm:$0xff] %vm10829, %v10825
        %10875 = vst.msk [vmem:[%s249 + $0x168] sm:$0xff] %vm10829, %v10826
        %10876 = vst.msk [vmem:[%s249 + $0x170] sm:$0xff] %vm10829, %v10827
        %10877 = vst.msk [vmem:[%s249 + $0x178] sm:$0xff] %vm10829, %v10828
        %s10878 = sand.u32 %s134, 1
        %s10879 = scalar_lea.sflag [#allocation10], %s10878
        %s10880 = sand.u32 %s134, 1
        %s10881 = smul.addr %s10880, 384
        %s10882 = scalar_lea.vmem [#allocation13], %s10881
        // Predicated region
        $region49: #{tpu_custom_call.1} parent=35 // pred_check
          %p10883 = pneg %p144
        $region50: #{tpu_custom_call.1} parent=35 // pred_check_branch
          %10885 = sbr.rel (%p10883) target = $region52
        $region51: #{tpu_custom_call.1} parent=35 // pred_region
          %s10886 = smul.u32 16, %s28
          %10888 = vsyncadd %s10879, 0
          %s10889 = smul.addr %s10886, 3
          %s10890 = smul.addr %s27, 48
          %s10891 = sadd.s32 %s10889, %s10890
          %s10892 = smul.addr %s10891, 8
          %s10893 = scalar_lea.hbm %s4, %s10892
          %s10894 = sshll.u32 %s10882, 4
          %s10895 = int_to_ptr.vmem [resolvable:$true] %s10894
          %s10896 = sshll.u32 %s10893, 4
          %s10897 = int_to_ptr.hbm [resolvable:$true] %s10896
          %10902 = dma.vmem_to_hbm [thread:$0]  %s10895, 6144, %s10897, %s10879, 128, 128, 8
        $region52: #{tpu_custom_call.1} parent=35 // pred_fallthru
          _
      $region36: #{tpu_custom_call.1} parent=5 // pred_fallthru
        _
      %p10903 = scmp.le.s32.totalorder 2, %s18
      // Predicated region
      $region53: #{tpu_custom_call.1} parent=5 // pred_check
        %p10904 = pneg %p10903
      $region54: #{tpu_custom_call.1} parent=5 // pred_check_branch
        %10906 = sbr.rel (%p10904) target = $region56
      $region55: #{tpu_custom_call.1} parent=5 // pred_region
        %s10907 = ssub.s32 %s18, 2
        // Predicated region
        $region57: #{tpu_custom_call.1} parent=55 // pred_check
          %p10908 = pneg %p150
        $region58: #{tpu_custom_call.1} parent=55 // pred_check_branch
          %10910 = sbr.rel (%p10908) target = $region60
        $region59: #{tpu_custom_call.1} parent=55 // pred_region
          %s10911 = sand.u32 %s135, 1
          %s10912 = scalar_lea.sflag [#allocation10], %s10911
          %s10913 = sand.u32 %s135, 1
          %s10914 = smul.addr %s10913, 384
          %s10915 = scalar_lea.vmem [#allocation13], %s10914
          %10917 = dma.done %s10912, 6144
        $region60: #{tpu_custom_call.1} parent=55 // pred_fallthru
          _
      $region56: #{tpu_custom_call.1} parent=5 // pred_fallthru
        _
    $region6: #{tpu_custom_call.1} parent=1 // loop_footer
      %s22 = sadd.s32 1, %s18
    $region7: #{tpu_custom_call.1} parent=1 // loop_footer_branch
      %17 = sbr.rel target = $region3
    $region8: #{tpu_custom_call.1} parent=1 // loop_exit
      _
    %10918 = vsyncpa [#allocation9], 1
    %s10919 = scalar_lea.sflag [#allocation9], 1
    %10920 = vsyncpa %s10919, 1
    %10921 = vsyncpa [#allocation12], 1
    %10922 = vsyncpa [#allocation10], 1
    %s10923 = scalar_lea.sflag [#allocation10], 1
    %10924 = vsyncpa %s10923, 1

</llo_original>
